<compile_context>
chip_gen: v5e
topology: v5e:2x2
jax: 0.10.0
libtpu: 0.0.40
codegen_flags: <defaults>
</compile_context>

<pallas_src>
import functools

import jax
import jax.numpy as jnp
from jax import lax
from jax.experimental import pallas as pl
from jax.experimental.pallas import tpu as pltpu


# ------------------------------ small helpers ---------------------------------

def _round_up(a, b):
    return -(-a // b) * b


# ----------------------- Pallas GEMM (+bias+ReLU) kernel -----------------------

def _gemm_kernel(x_ref, w_ref, b_ref, o_ref, *, relu):
    acc = jnp.dot(x_ref[...], w_ref[...], preferred_element_type=jnp.float32)
    acc = acc + b_ref[...]
    if relu:
        acc = jnp.maximum(acc, 0.0)
    o_ref[...] = acc.astype(o_ref.dtype)


def gemm_bias_act(x, w, b=None, *, relu=True, out_dtype=jnp.float32):
    """out = act(x @ w + b): bf16 MXU operands, f32 accumulation.

    Whole K resident (no K tiling).  Single M block unless M is large
    (block_shape == full array dims is always legal, so no padding/slicing).
    x: (M, K), w: (K, N), b: (N,) -> (M, N) in out_dtype.
    """
    m, k = x.shape
    k2, n = w.shape
    assert k == k2
    if b is None:
        b = jnp.zeros((n,), jnp.float32)
    x = x.astype(jnp.bfloat16)
    w = w.astype(jnp.bfloat16)
    b2 = b.reshape(1, n).astype(jnp.float32)

    if m <= 1024:
        tm, m_pad = m, m                       # single block, no padding
    else:                                      # (not hit at these shapes)
        tm = 512
        m_pad = _round_up(m, tm)
        x = jnp.pad(x, ((0, m_pad - m), (0, 0)))
    nm = m_pad // tm

    out = pl.pallas_call(
        functools.partial(_gemm_kernel, relu=relu),
        out_shape=jax.ShapeDtypeStruct((m_pad, n), out_dtype),
        grid=(nm,),
        in_specs=[
            pl.BlockSpec((tm, k), lambda i: (i, 0)),
            pl.BlockSpec((k, n), lambda i: (0, 0)),
            pl.BlockSpec((1, n), lambda i: (0, 0)),
        ],
        out_specs=pl.BlockSpec((tm, n), lambda i: (i, 0)),
        compiler_params=pltpu.CompilerParams(
            dimension_semantics=("parallel",)),
    )(x, w, b2)
    return out if m_pad == m else out[:m]


# ------------------- fused conv3 + ASPP (fast path) Pallas kernel ---------------

def _conv3_aspp_kernel(p_ref, w3_ref, b3_ref, wb_ref, wo_ref, o_ref):
    # conv3 as GEMM over its 5x5 patches, bias + ReLU in f32.
    y = jnp.dot(p_ref[...], w3_ref[...], preferred_element_type=jnp.float32)
    y = jnp.maximum(y + b3_ref[...], 0.0).astype(jnp.bfloat16)
    # All 5 ASPP branches (reduced to 1x1 convs) + ReLU; the channel concat is
    # just the column-concatenated weight matrix, so one matmul covers it.
    z = jnp.dot(y, wb_ref[...], preferred_element_type=jnp.float32)
    z = jnp.maximum(z, 0.0).astype(jnp.bfloat16)
    # ASPP 1x1 output conv + ReLU.
    o = jnp.dot(z, wo_ref[...], preferred_element_type=jnp.float32)
    o_ref[...] = jnp.maximum(o, 0.0).astype(o_ref.dtype)


def conv3_aspp_fused(patches, w3_mat, b3, w_branch, w_out):
    """patches:(M, 25*Cin) conv3 patches; returns (M, Cout) f32."""
    m, k = patches.shape
    n3 = w3_mat.shape[1]
    cb = w_branch.shape[1]
    co = w_out.shape[1]
    return pl.pallas_call(
        _conv3_aspp_kernel,
        out_shape=jax.ShapeDtypeStruct((m, co), jnp.float32),
        grid=(1,),
        in_specs=[
            pl.BlockSpec((m, k), lambda i: (0, 0)),
            pl.BlockSpec((k, n3), lambda i: (0, 0)),
            pl.BlockSpec((1, n3), lambda i: (0, 0)),
            pl.BlockSpec((n3, cb), lambda i: (0, 0)),
            pl.BlockSpec((cb, co), lambda i: (0, 0)),
        ],
        out_specs=pl.BlockSpec((m, co), lambda i: (0, 0)),
        compiler_params=pltpu.CompilerParams(
            dimension_semantics=("parallel",)),
    )(patches.astype(jnp.bfloat16), w3_mat.astype(jnp.bfloat16),
      b3.reshape(1, n3).astype(jnp.float32),
      w_branch.astype(jnp.bfloat16), w_out.astype(jnp.bfloat16))


# ------------------------------ conv via patches --------------------------------

def extract_patches(x, k, stride, padding, dilation=1):
    """x:(N,H,W,C) -> (N,Ho,Wo, C*k*k), feature ordering (c, kh, kw).

    Implemented as ONE grouped (depthwise) identity convolution, replacing the
    previous k*k-slice + concat glue.  The identity filter is built explicitly
    so the output ordering is under our control.
    TODO(synk): patch extraction stays an XLA op; the overlapping/strided
    spatial gather is not cleanly expressible via BlockSpec index_maps.
    """
    n, h, w, c = x.shape
    s = k * k
    eye = jnp.eye(s, dtype=x.dtype).reshape(k, k, 1, s)   # filt[kh,kw,0,j]=d(kh*k+kw,j)
    filt = jnp.tile(eye, (1, 1, 1, c))                    # (k,k,1,c*s), group-major
    return lax.conv_general_dilated(
        x, filt, (stride, stride),
        [(padding, padding), (padding, padding)],
        rhs_dilation=(dilation, dilation),
        dimension_numbers=("NHWC", "HWIO", "NHWC"),
        feature_group_count=c)


def conv_weight_as_matrix(w):
    """(KH,KW,Cin,Cout) -> (Cin*KH*KW, Cout), matching extract_patches order."""
    kh, kw, cin, cout = w.shape
    return jnp.transpose(w, (2, 0, 1, 3)).reshape(cin * kh * kw, cout)


def conv2d(x, w, b=None, *, stride=1, padding=0, dilation=1, relu=True,
           out_dtype=jnp.float32):
    """x:(N,H,W,Cin), w:(KH,KW,Cin,Cout), b:(Cout,) -> NHWC in out_dtype."""
    kh, kw, cin, cout = w.shape
    assert kh == kw
    p = extract_patches(x, kh, stride, padding, dilation)
    n, ho, wo, _ = p.shape
    out = gemm_bias_act(p.reshape(n * ho * wo, cin * kh * kw),
                        conv_weight_as_matrix(w), b,
                        relu=relu, out_dtype=out_dtype)
    return out.reshape(n, ho, wo, cout)


# -------------------------------- parameters ------------------------------------

def _init_conv(key, kh, kw, cin, cout, bias):
    fan_in = cin * kh * kw
    bound = 1.0 / float(fan_in) ** 0.5
    kw_key, kb_key = jax.random.split(key)
    w = jax.random.uniform(kw_key, (kh, kw, cin, cout), jnp.float32,
                           -bound, bound)
    if bias:
        b = jax.random.uniform(kb_key, (cout,), jnp.float32, -bound, bound)
    else:
        b = jnp.zeros((cout,), jnp.float32)
    return w, b


def init_fcn_params(key, in_channels):
    chan = [64, 128, 256, 128]
    keys = jax.random.split(key, 9)
    p = {}
    p["conv1"] = _init_conv(keys[0], 12, 12, in_channels, chan[0], True)
    p["conv2"] = _init_conv(keys[1], 8, 8, chan[0], chan[1], True)
    p["conv3"] = _init_conv(keys[2], 5, 5, chan[1], chan[2], True)
    # ASPP(256, 128) — all convs bias=False
    p["aspp1"] = _init_conv(keys[3], 1, 1, chan[2], chan[3], False)
    p["aspp2"] = _init_conv(keys[4], 3, 3, chan[2], chan[3], False)
    p["aspp3"] = _init_conv(keys[5], 3, 3, chan[2], chan[3], False)
    p["aspp4"] = _init_conv(keys[6], 3, 3, chan[2], chan[3], False)
    p["aspp5"] = _init_conv(keys[7], 1, 1, chan[2], chan[3], False)
    p["aspp_out"] = _init_conv(keys[8], 1, 1, chan[3] * 5, chan[3], False)
    return p


# ------------------------------- FCN forward ------------------------------------

def fcn_forward(params, x_nchw):
    """FCN(in_channels, scale=1).forward — NCHW in / NCHW out like PyTorch."""
    x = jnp.transpose(x_nchw, (0, 2, 3, 1)).astype(jnp.bfloat16)  # NHWC bf16

    # self.scalepool is None for scale=1 (module skips pooling).

    # ---- conv1 (k12, s6, p6) ----
    # cout 64 -> 128 zero-pad so the Pallas store is lane-dense; the extra
    # channels are relu(0)=0 and conv2's weight rows for them are zero.
    w1, b1 = params["conv1"]
    n_pad1 = _round_up(w1.shape[-1], 128)
    w1p = jnp.pad(w1, ((0, 0), (0, 0), (0, 0), (0, n_pad1 - w1.shape[-1])))
    b1p = jnp.pad(b1, ((0, n_pad1 - b1.shape[0]),))
    y1 = conv2d(x, w1p, b1p, stride=6, padding=6, relu=True,
                out_dtype=jnp.bfloat16)                       # (N,17,17,128)

    # ---- conv2 (k8, s4, p4) ----
    w2, b2 = params["conv2"]
    w2p = jnp.pad(w2, ((0, 0), (0, 0), (0, n_pad1 - w2.shape[2]), (0, 0)))
    y2 = conv2d(y1, w2p, b2, stride=4, padding=4, relu=True,
                out_dtype=jnp.bfloat16)                       # (N,5,5,128)

    # ---- conv3 (k5, s2, p2) + ASPP(256, 128) ----
    # In the torch code global_pooling(x) is computed then overwritten; x5 is
    # aspp5 on the full-resolution x, so the bilinear Upsample is an identity.
    w3, b3 = params["conv3"]
    p3 = extract_patches(y2, 5, 2, 2)                         # (N,3,3, 25*128)
    n, h3, w3s, kcols = p3.shape
    m3 = n * h3 * w3s

    if h3 <= 6 and w3s <= 6:
        # Fast path: dilation d with padding d and d >= spatial extent means
        # the off-center taps of every dilated 3x3 conv only read zero
        # padding, so each branch reduces exactly to its center-tap 1x1 conv.
        # Fuse conv3 + 5 branches + concat + 1x1 output conv in ONE kernel.
        w_branch = jnp.concatenate([
            params["aspp1"][0][0, 0],
            params["aspp2"][0][1, 1],
            params["aspp3"][0][1, 1],
            params["aspp4"][0][1, 1],
            params["aspp5"][0][0, 0],
        ], axis=-1)                                           # (256, 640)
        w_out = params["aspp_out"][0][0, 0]                   # (640, 128)
        out = conv3_aspp_fused(p3.reshape(m3, kcols),
                               conv_weight_as_matrix(w3), b3,
                               w_branch, w_out)               # (m3, 128) f32
        out = out.reshape(n, h3, w3s, -1)
    else:
        # General fallback: per-branch dilated convs (patches + GEMM).
        y3 = conv2d(y2, w3, b3, stride=2, padding=2, relu=True,
                    out_dtype=jnp.bfloat16)
        x1 = conv2d(y3, *params["aspp1"], relu=True, out_dtype=jnp.bfloat16)
        x2 = conv2d(y3, *params["aspp2"], padding=6, dilation=6,
                    relu=True, out_dtype=jnp.bfloat16)
        x3b = conv2d(y3, *params["aspp3"], padding=12, dilation=12,
                     relu=True, out_dtype=jnp.bfloat16)
        x4 = conv2d(y3, *params["aspp4"], padding=18, dilation=18,
                    relu=True, out_dtype=jnp.bfloat16)
        x5 = conv2d(y3, *params["aspp5"], relu=True, out_dtype=jnp.bfloat16)
        xc = jnp.concatenate([x1, x2, x3b, x4, x5], axis=-1)
        out = conv2d(xc, *params["aspp_out"], relu=True)

    return jnp.transpose(out, (0, 3, 1, 2)).astype(jnp.float32)  # NCHW f32


# -------------------- reference (XLA convs, same bf16 rounding) ------------------

def _conv_ref(x, w, b, stride=1, padding=0, dilation=1):
    out = lax.conv_general_dilated(
        x.astype(jnp.bfloat16),
        jnp.transpose(w, (3, 2, 0, 1)).astype(jnp.bfloat16),
        window_strides=(stride, stride),
        padding=[(padding, padding), (padding, padding)],
        rhs_dilation=(dilation, dilation),
        dimension_numbers=("NCHW", "OIHW", "NCHW"),
        preferred_element_type=jnp.float32)
    return out + b.reshape(1, -1, 1, 1)


def fcn_reference(params, x):
    relu = lambda t: jnp.maximum(t, 0.0)
    x = relu(_conv_ref(x, *params["conv1"], stride=6, padding=6))
    x = relu(_conv_ref(x, *params["conv2"], stride=4, padding=4))
    x = relu(_conv_ref(x, *params["conv3"], stride=2, padding=2))
    x1 = relu(_conv_ref(x, *params["aspp1"]))
    x2 = relu(_conv_ref(x, *params["aspp2"], padding=6, dilation=6))
    x3 = relu(_conv_ref(x, *params["aspp3"], padding=12, dilation=12))
    x4 = relu(_conv_ref(x, *params["aspp4"], padding=18, dilation=18))
    x5 = relu(_conv_ref(x, *params["aspp5"]))  # upsample to same size = id
    xc = jnp.concatenate([x1, x2, x3, x4, x5], axis=1)
    return relu(_conv_ref(xc, *params["aspp_out"])).astype(jnp.float32)


# ------------------------------------ main ---------------------------------------

if __name__ == "__main__":
    key = jax.random.PRNGKey(0)
    k_param, k_input = jax.random.split(key)

    batch, in_channels, H, W = 2, 4, 96, 96
    # conv1 (k12,s6,p6): 96 -> 17; conv2 (k8,s4,p4): 17 -> 5; conv3 (k5,s2,p2): 5 -> 3
    x = jax.random.normal(k_input, (batch, in_channels, H, W), jnp.float32)
    params = init_fcn_params(k_param, in_channels)

    out = jax.block_until_ready(jax.jit(fcn_forward)(params, x))
    ref = jax.block_until_ready(jax.jit(fcn_reference)(params, x))

    assert out.shape == (batch, 128, 3, 3), out.shape
    assert out.shape == ref.shape, (out.shape, ref.shape)
    assert bool(jnp.all(jnp.isfinite(out)))
    max_err = float(jnp.max(jnp.abs(out - ref)))
    assert jnp.allclose(out, ref, rtol=1e-2, atol=1e-2), max_err

    print("KERNEL_OK")
</pallas_src>

<mosaic_0001>
module attributes {stable_mosaic.version = 11 : i64} {
  func.func @_gemm_kernel(%arg0: i32, %arg1: memref<578x576xbf16, #tpu.memory_space<vmem>>, %arg2: memref<576x128xbf16, #tpu.memory_space<vmem>>, %arg3: memref<1x128xf32, #tpu.memory_space<vmem>>, %arg4: memref<578x128xbf16, #tpu.memory_space<vmem>>) attributes {dimension_semantics = [#tpu.dimension_semantics<parallel>], iteration_bounds = array<i64: 1>, scalar_prefetch = 0 : i64, scratch_operands = 0 : i64, tpu.core_type = #tpu.core_type<tc>, window_params = [{transform_indices = @transform_0, window_bounds = array<i64: 578, 576>}, {pipeline_mode = #tpu.pipeline_mode<synchronous>, transform_indices = @transform_1, window_bounds = array<i64: 576, 128>}, {pipeline_mode = #tpu.pipeline_mode<synchronous>, transform_indices = @transform_2, window_bounds = array<i64: 1, 128>}, {transform_indices = @transform_3, window_bounds = array<i64: 578, 128>}]} {
    %c0 = arith.constant 0 : index
    %c0_0 = arith.constant 0 : index
    %0 = vector.load %arg1[%c0, %c0_0] : memref<578x576xbf16, #tpu.memory_space<vmem>>, vector<578x576xbf16>
    %c0_1 = arith.constant 0 : index
    %c0_2 = arith.constant 0 : index
    %1 = vector.load %arg2[%c0_1, %c0_2] : memref<576x128xbf16, #tpu.memory_space<vmem>>, vector<576x128xbf16>
    %cst = arith.constant dense<0.000000e+00> : vector<578x128xf32>
    %2 = tpu.matmul %0, %1, %cst {dimension_numbers = #tpu.dot_dimension_numbers<[1], [0], [0], [1], [0, 0, 1, 1], [], []>} : vector<578x576xbf16>, vector<576x128xbf16>, vector<578x128xf32> -> vector<578x128xf32>
    %c0_3 = arith.constant 0 : index
    %c0_4 = arith.constant 0 : index
    %3 = vector.load %arg3[%c0_3, %c0_4] : memref<1x128xf32, #tpu.memory_space<vmem>>, vector<1x128xf32>
    %4 = vector.broadcast %3 : vector<1x128xf32> to vector<578x128xf32>
    %5 = arith.addf %2, %4 : vector<578x128xf32>
    %cst_5 = arith.constant 0.000000e+00 : f32
    %6 = vector.broadcast %cst_5 : f32 to vector<578x128xf32>
    %7 = arith.maximumf %5, %6 : vector<578x128xf32>
    %8 = arith.truncf %7 : vector<578x128xf32> to vector<578x128xbf16>
    %c0_6 = arith.constant 0 : index
    %c0_7 = arith.constant 0 : index
    %9 = vector.load %arg4[%c0_6, %c0_7] : memref<578x128xbf16, #tpu.memory_space<vmem>>, vector<578x128xbf16>
    tpu.vector_store %arg4[%c0_6, %c0_7], %8 {strides = array<i32>} : memref<578x128xbf16, #tpu.memory_space<vmem>>, vector<578x128xbf16>,
    return
  }
  func.func @transform_0(%arg0: i32) -> (i32, i32) {
    %c0_i32 = arith.constant 0 : i32
    %c0_i32_0 = arith.constant 0 : i32
    return %arg0, %c0_i32 : i32, i32
  }
  func.func @transform_1(%arg0: i32) -> (i32, i32) {
    %c0_i32 = arith.constant 0 : i32
    %c0_i32_0 = arith.constant 0 : i32
    %c0_i32_1 = arith.constant 0 : i32
    return %c0_i32, %c0_i32_0 : i32, i32
  }
  func.func @transform_2(%arg0: i32) -> (i32, i32) {
    %c0_i32 = arith.constant 0 : i32
    %c0_i32_0 = arith.constant 0 : i32
    %c0_i32_1 = arith.constant 0 : i32
    return %c0_i32, %c0_i32_0 : i32, i32
  }
  func.func @transform_3(%arg0: i32) -> (i32, i32) {
    %c0_i32 = arith.constant 0 : i32
    %c0_i32_0 = arith.constant 0 : i32
    return %arg0, %c0_i32 : i32, i32
  }
}

module attributes {stable_mosaic.version = 11 : i64} {
  func.func @_gemm_kernel(%arg0: i32, %arg1: memref<50x8192xbf16, #tpu.memory_space<vmem>>, %arg2: memref<8192x128xbf16, #tpu.memory_space<vmem>>, %arg3: memref<1x128xf32, #tpu.memory_space<vmem>>, %arg4: memref<50x128xbf16, #tpu.memory_space<vmem>>) attributes {dimension_semantics = [#tpu.dimension_semantics<parallel>], iteration_bounds = array<i64: 1>, scalar_prefetch = 0 : i64, scratch_operands = 0 : i64, tpu.core_type = #tpu.core_type<tc>, window_params = [{transform_indices = @transform_0, window_bounds = array<i64: 50, 8192>}, {pipeline_mode = #tpu.pipeline_mode<synchronous>, transform_indices = @transform_1, window_bounds = array<i64: 8192, 128>}, {pipeline_mode = #tpu.pipeline_mode<synchronous>, transform_indices = @transform_2, window_bounds = array<i64: 1, 128>}, {transform_indices = @transform_3, window_bounds = array<i64: 50, 128>}]} {
    %c0 = arith.constant 0 : index
    %c0_0 = arith.constant 0 : index
    %0 = vector.load %arg1[%c0, %c0_0] : memref<50x8192xbf16, #tpu.memory_space<vmem>>, vector<50x8192xbf16>
    %c0_1 = arith.constant 0 : index
    %c0_2 = arith.constant 0 : index
    %1 = vector.load %arg2[%c0_1, %c0_2] : memref<8192x128xbf16, #tpu.memory_space<vmem>>, vector<8192x128xbf16>
    %cst = arith.constant dense<0.000000e+00> : vector<50x128xf32>
    %2 = tpu.matmul %0, %1, %cst {dimension_numbers = #tpu.dot_dimension_numbers<[1], [0], [0], [1], [0, 0, 1, 1], [], []>} : vector<50x8192xbf16>, vector<8192x128xbf16>, vector<50x128xf32> -> vector<50x128xf32>
    %c0_3 = arith.constant 0 : index
    %c0_4 = arith.constant 0 : index
    %3 = vector.load %arg3[%c0_3, %c0_4] : memref<1x128xf32, #tpu.memory_space<vmem>>, vector<1x128xf32>
    %4 = vector.broadcast %3 : vector<1x128xf32> to vector<50x128xf32>
    %5 = arith.addf %2, %4 : vector<50x128xf32>
    %cst_5 = arith.constant 0.000000e+00 : f32
    %6 = vector.broadcast %cst_5 : f32 to vector<50x128xf32>
    %7 = arith.maximumf %5, %6 : vector<50x128xf32>
    %8 = arith.truncf %7 : vector<50x128xf32> to vector<50x128xbf16>
    %c0_6 = arith.constant 0 : index
    %c0_7 = arith.constant 0 : index
    %9 = vector.load %arg4[%c0_6, %c0_7] : memref<50x128xbf16, #tpu.memory_space<vmem>>, vector<50x128xbf16>
    tpu.vector_store %arg4[%c0_6, %c0_7], %8 {strides = array<i32>} : memref<50x128xbf16, #tpu.memory_space<vmem>>, vector<50x128xbf16>,
    return
  }
  func.func @transform_0(%arg0: i32) -> (i32, i32) {
    %c0_i32 = arith.constant 0 : i32
    %c0_i32_0 = arith.constant 0 : i32
    return %arg0, %c0_i32 : i32, i32
  }
  func.func @transform_1(%arg0: i32) -> (i32, i32) {
    %c0_i32 = arith.constant 0 : i32
    %c0_i32_0 = arith.constant 0 : i32
    %c0_i32_1 = arith.constant 0 : i32
    return %c0_i32, %c0_i32_0 : i32, i32
  }
  func.func @transform_2(%arg0: i32) -> (i32, i32) {
    %c0_i32 = arith.constant 0 : i32
    %c0_i32_0 = arith.constant 0 : i32
    %c0_i32_1 = arith.constant 0 : i32
    return %c0_i32, %c0_i32_0 : i32, i32
  }
  func.func @transform_3(%arg0: i32) -> (i32, i32) {
    %c0_i32 = arith.constant 0 : i32
    %c0_i32_0 = arith.constant 0 : i32
    return %arg0, %c0_i32 : i32, i32
  }
}

module attributes {stable_mosaic.version = 11 : i64} {
  func.func @_conv3_aspp_kernel(%arg0: i32, %arg1: memref<18x3200xbf16, #tpu.memory_space<vmem>>, %arg2: memref<3200x256xbf16, #tpu.memory_space<vmem>>, %arg3: memref<1x256xf32, #tpu.memory_space<vmem>>, %arg4: memref<256x640xbf16, #tpu.memory_space<vmem>>, %arg5: memref<640x128xbf16, #tpu.memory_space<vmem>>, %arg6: memref<18x128xf32, #tpu.memory_space<vmem>>) attributes {dimension_semantics = [#tpu.dimension_semantics<parallel>], iteration_bounds = array<i64: 1>, scalar_prefetch = 0 : i64, scratch_operands = 0 : i64, tpu.core_type = #tpu.core_type<tc>, window_params = [{pipeline_mode = #tpu.pipeline_mode<synchronous>, transform_indices = @transform_0, window_bounds = array<i64: 18, 3200>}, {pipeline_mode = #tpu.pipeline_mode<synchronous>, transform_indices = @transform_1, window_bounds = array<i64: 3200, 256>}, {pipeline_mode = #tpu.pipeline_mode<synchronous>, transform_indices = @transform_2, window_bounds = array<i64: 1, 256>}, {pipeline_mode = #tpu.pipeline_mode<synchronous>, transform_indices = @transform_3, window_bounds = array<i64: 256, 640>}, {pipeline_mode = #tpu.pipeline_mode<synchronous>, transform_indices = @transform_4, window_bounds = array<i64: 640, 128>}, {pipeline_mode = #tpu.pipeline_mode<synchronous>, transform_indices = @transform_5, window_bounds = array<i64: 18, 128>}]} {
    %c0 = arith.constant 0 : index
    %c0_0 = arith.constant 0 : index
    %0 = vector.load %arg1[%c0, %c0_0] : memref<18x3200xbf16, #tpu.memory_space<vmem>>, vector<18x3200xbf16>
    %c0_1 = arith.constant 0 : index
    %c0_2 = arith.constant 0 : index
    %1 = vector.load %arg2[%c0_1, %c0_2] : memref<3200x256xbf16, #tpu.memory_space<vmem>>, vector<3200x256xbf16>
    %cst = arith.constant dense<0.000000e+00> : vector<18x256xf32>
    %2 = tpu.matmul %0, %1, %cst {dimension_numbers = #tpu.dot_dimension_numbers<[1], [0], [0], [1], [0, 0, 1, 1], [], []>} : vector<18x3200xbf16>, vector<3200x256xbf16>, vector<18x256xf32> -> vector<18x256xf32>
    %c0_3 = arith.constant 0 : index
    %c0_4 = arith.constant 0 : index
    %3 = vector.load %arg3[%c0_3, %c0_4] : memref<1x256xf32, #tpu.memory_space<vmem>>, vector<1x256xf32>
    %4 = vector.broadcast %3 : vector<1x256xf32> to vector<18x256xf32>
    %5 = arith.addf %2, %4 : vector<18x256xf32>
    %cst_5 = arith.constant 0.000000e+00 : f32
    %6 = vector.broadcast %cst_5 : f32 to vector<18x256xf32>
    %7 = arith.maximumf %5, %6 : vector<18x256xf32>
    %8 = arith.truncf %7 : vector<18x256xf32> to vector<18x256xbf16>
    %c0_6 = arith.constant 0 : index
    %c0_7 = arith.constant 0 : index
    %9 = vector.load %arg4[%c0_6, %c0_7] : memref<256x640xbf16, #tpu.memory_space<vmem>>, vector<256x640xbf16>
    %cst_8 = arith.constant dense<0.000000e+00> : vector<18x640xf32>
    %10 = tpu.matmul %8, %9, %cst_8 {dimension_numbers = #tpu.dot_dimension_numbers<[1], [0], [0], [1], [0, 0, 1, 1], [], []>} : vector<18x256xbf16>, vector<256x640xbf16>, vector<18x640xf32> -> vector<18x640xf32>
    %cst_9 = arith.constant 0.000000e+00 : f32
    %11 = vector.broadcast %cst_9 : f32 to vector<18x640xf32>
    %12 = arith.maximumf %10, %11 : vector<18x640xf32>
    %13 = arith.truncf %12 : vector<18x640xf32> to vector<18x640xbf16>
    %c0_10 = arith.constant 0 : index
    %c0_11 = arith.constant 0 : index
    %14 = vector.load %arg5[%c0_10, %c0_11] : memref<640x128xbf16, #tpu.memory_space<vmem>>, vector<640x128xbf16>
    %cst_12 = arith.constant dense<0.000000e+00> : vector<18x128xf32>
    %15 = tpu.matmul %13, %14, %cst_12 {dimension_numbers = #tpu.dot_dimension_numbers<[1], [0], [0], [1], [0, 0, 1, 1], [], []>} : vector<18x640xbf16>, vector<640x128xbf16>, vector<18x128xf32> -> vector<18x128xf32>
    %cst_13 = arith.constant 0.000000e+00 : f32
    %16 = vector.broadcast %cst_13 : f32 to vector<18x128xf32>
    %17 = arith.maximumf %15, %16 : vector<18x128xf32>
    %c0_14 = arith.constant 0 : index
    %c0_15 = arith.constant 0 : index
    %18 = vector.load %arg6[%c0_14, %c0_15] : memref<18x128xf32, #tpu.memory_space<vmem>>, vector<18x128xf32>
    tpu.vector_store %arg6[%c0_14, %c0_15], %17 {strides = array<i32>} : memref<18x128xf32, #tpu.memory_space<vmem>>, vector<18x128xf32>,
    return
  }
  func.func @transform_0(%arg0: i32) -> (i32, i32) {
    %c0_i32 = arith.constant 0 : i32
    %c0_i32_0 = arith.constant 0 : i32
    %c0_i32_1 = arith.constant 0 : i32
    return %c0_i32, %c0_i32_0 : i32, i32
  }
  func.func @transform_1(%arg0: i32) -> (i32, i32) {
    %c0_i32 = arith.constant 0 : i32
    %c0_i32_0 = arith.constant 0 : i32
    %c0_i32_1 = arith.constant 0 : i32
    return %c0_i32, %c0_i32_0 : i32, i32
  }
  func.func @transform_2(%arg0: i32) -> (i32, i32) {
    %c0_i32 = arith.constant 0 : i32
    %c0_i32_0 = arith.constant 0 : i32
    %c0_i32_1 = arith.constant 0 : i32
    return %c0_i32, %c0_i32_0 : i32, i32
  }
  func.func @transform_3(%arg0: i32) -> (i32, i32) {
    %c0_i32 = arith.constant 0 : i32
    %c0_i32_0 = arith.constant 0 : i32
    %c0_i32_1 = arith.constant 0 : i32
    return %c0_i32, %c0_i32_0 : i32, i32
  }
  func.func @transform_4(%arg0: i32) -> (i32, i32) {
    %c0_i32 = arith.constant 0 : i32
    %c0_i32_0 = arith.constant 0 : i32
    %c0_i32_1 = arith.constant 0 : i32
    return %c0_i32, %c0_i32_0 : i32, i32
  }
  func.func @transform_5(%arg0: i32) -> (i32, i32) {
    %c0_i32 = arith.constant 0 : i32
    %c0_i32_0 = arith.constant 0 : i32
    %c0_i32_1 = arith.constant 0 : i32
    return %c0_i32, %c0_i32_0 : i32, i32
  }
}

</mosaic_0001>

<llo_original>
// kernel: fcn_forward.3
$region0: #{fcn_forward.3}
  #allocation0 [shape = 'u32[]', space=smem, size = 0x4, offset = 0x4, fixed_abs, tag = 'smem constant byte address 0x4 - core index']
  #allocation1 [shape = 'u32[72,128]{1,0:T(1,128)}', space=vmem, size = 0x9000, scoped, tag = 'internal scratch']
  %s0 = inlined_call_operand.vmem [shape: bf16[578,576], index: 0, kind: input, shape index: {}]
  %s1 = inlined_call_operand.vmem [shape: bf16[576,128], index: 1, kind: input, shape index: {}]
  %s2 = inlined_call_operand.vmem [shape: f32[1,128], index: 2, kind: input, shape index: {}]
  %s3 = inlined_call_operand.vmem [shape: bf16[578,128], index: 3, kind: output, shape index: {}]
  %s4 = sld [smem:[#allocation0]]
  $region22: #{fcn_forward.3} parent=0
    _
  %s6 = ssub.s32 1, %s4
  %s7 = scalar_select 0, %s6, %s4
  // Predicated region
  $region2: #{fcn_forward.3} parent=0 // pred_check
    _
  $region3: #{fcn_forward.3} parent=0 // pred_check_branch
    %9 = sbr.rel (0) target = $region5
  $region4: #{fcn_forward.3} parent=0 // pred_region
    _
  $region5: #{fcn_forward.3} parent=0 // pred_fallthru
    _
  // Predicated region
  $region6: #{fcn_forward.3} parent=0 // pred_check
    _
  $region7: #{fcn_forward.3} parent=0 // pred_check_branch
    %11 = sbr.rel (0) target = $region9
  $region8: #{fcn_forward.3} parent=0 // pred_region
    _
  $region9: #{fcn_forward.3} parent=0 // pred_fallthru
    _
  // Predicated region
  $region10: #{fcn_forward.3} parent=0 // pred_check
    _
  $region11: #{fcn_forward.3} parent=0 // pred_check_branch
    %13 = sbr.rel (0) target = $region13
  $region12: #{fcn_forward.3} parent=0 // pred_region
    _
  $region13: #{fcn_forward.3} parent=0 // pred_fallthru
    _
  %v15 = vld [vmem:[%s0] sm:$0xff]
  %v16 = vld [vmem:[%s0 + $0x8] sm:$0xff]
  %v17 = vld [vmem:[%s0 + $0x10] sm:$0xf]
  %v18 = vld [vmem:[%s0 + $0x14] sm:$0xff]
  %v19 = vld [vmem:[%s0 + $0x1c] sm:$0xff]
  %v20 = vld [vmem:[%s0 + $0x24] sm:$0xf]
  %v21 = vld [vmem:[%s0 + $0x28] sm:$0xff]
  %v22 = vld [vmem:[%s0 + $0x30] sm:$0xff]
  %v23 = vld [vmem:[%s0 + $0x38] sm:$0xf]
  %v24 = vld [vmem:[%s0 + $0x3c] sm:$0xff]
  %v25 = vld [vmem:[%s0 + $0x44] sm:$0xff]
  %v26 = vld [vmem:[%s0 + $0x4c] sm:$0xf]
  %v27 = vld [vmem:[%s0 + $0x50] sm:$0xff]
  %v28 = vld [vmem:[%s0 + $0x58] sm:$0xff]
  %v29 = vld [vmem:[%s0 + $0x60] sm:$0xf]
  %v30 = vld [vmem:[%s0 + $0x64] sm:$0xff]
  %v31 = vld [vmem:[%s0 + $0x6c] sm:$0xff]
  %v32 = vld [vmem:[%s0 + $0x74] sm:$0xf]
  %v33 = vld [vmem:[%s0 + $0x78] sm:$0xff]
  %v34 = vld [vmem:[%s0 + $0x80] sm:$0xff]
  %v35 = vld [vmem:[%s0 + $0x88] sm:$0xf]
  %v36 = vld [vmem:[%s0 + $0x8c] sm:$0xff]
  %v37 = vld [vmem:[%s0 + $0x94] sm:$0xff]
  %v38 = vld [vmem:[%s0 + $0x9c] sm:$0xf]
  %v39 = vld [vmem:[%s0 + $0xa0] sm:$0xff]
  %v40 = vld [vmem:[%s0 + $0xa8] sm:$0xff]
  %v41 = vld [vmem:[%s0 + $0xb0] sm:$0xf]
  %v42 = vld [vmem:[%s0 + $0xb4] sm:$0xff]
  %v43 = vld [vmem:[%s0 + $0xbc] sm:$0xff]
  %v44 = vld [vmem:[%s0 + $0xc4] sm:$0xf]
  %v45 = vld [vmem:[%s0 + $0xc8] sm:$0xff]
  %v46 = vld [vmem:[%s0 + $0xd0] sm:$0xff]
  %v47 = vld [vmem:[%s0 + $0xd8] sm:$0xf]
  %v48 = vld [vmem:[%s0 + $0xdc] sm:$0xff]
  %v49 = vld [vmem:[%s0 + $0xe4] sm:$0xff]
  %v50 = vld [vmem:[%s0 + $0xec] sm:$0xf]
  %v51 = vld [vmem:[%s0 + $0xf0] sm:$0xff]
  %v52 = vld [vmem:[%s0 + $0xf8] sm:$0xff]
  %v53 = vld [vmem:[%s0 + $0x100] sm:$0xf]
  %v54 = vld [vmem:[%s0 + $0x104] sm:$0xff]
  %v55 = vld [vmem:[%s0 + $0x10c] sm:$0xff]
  %v56 = vld [vmem:[%s0 + $0x114] sm:$0xf]
  %v57 = vld [vmem:[%s0 + $0x118] sm:$0xff]
  %v58 = vld [vmem:[%s0 + $0x120] sm:$0xff]
  %v59 = vld [vmem:[%s0 + $0x128] sm:$0xf]
  %v60 = vld [vmem:[%s0 + $0x12c] sm:$0xff]
  %v61 = vld [vmem:[%s0 + $0x134] sm:$0xff]
  %v62 = vld [vmem:[%s0 + $0x13c] sm:$0xf]
  %v63 = vld [vmem:[%s0 + $0x140] sm:$0xff]
  %v64 = vld [vmem:[%s0 + $0x148] sm:$0xff]
  %v65 = vld [vmem:[%s0 + $0x150] sm:$0xf]
  %v66 = vld [vmem:[%s0 + $0x154] sm:$0xff]
  %v67 = vld [vmem:[%s0 + $0x15c] sm:$0xff]
  %v68 = vld [vmem:[%s0 + $0x164] sm:$0xf]
  %v69 = vld [vmem:[%s0 + $0x168] sm:$0xff]
  %v70 = vld [vmem:[%s0 + $0x170] sm:$0xff]
  %v71 = vld [vmem:[%s0 + $0x178] sm:$0xf]
  %v72 = vld [vmem:[%s0 + $0x17c] sm:$0xff]
  %v73 = vld [vmem:[%s0 + $0x184] sm:$0xff]
  %v74 = vld [vmem:[%s0 + $0x18c] sm:$0xf]
  %v75 = vld [vmem:[%s0 + $0x190] sm:$0xff]
  %v76 = vld [vmem:[%s0 + $0x198] sm:$0xff]
  %v77 = vld [vmem:[%s0 + $0x1a0] sm:$0xf]
  %v78 = vld [vmem:[%s0 + $0x1a4] sm:$0xff]
  %v79 = vld [vmem:[%s0 + $0x1ac] sm:$0xff]
  %v80 = vld [vmem:[%s0 + $0x1b4] sm:$0xf]
  %v81 = vld [vmem:[%s0 + $0x1b8] sm:$0xff]
  %v82 = vld [vmem:[%s0 + $0x1c0] sm:$0xff]
  %v83 = vld [vmem:[%s0 + $0x1c8] sm:$0xf]
  %v84 = vld [vmem:[%s0 + $0x1cc] sm:$0xff]
  %v85 = vld [vmem:[%s0 + $0x1d4] sm:$0xff]
  %v86 = vld [vmem:[%s0 + $0x1dc] sm:$0xf]
  %v87 = vld [vmem:[%s0 + $0x1e0] sm:$0xff]
  %v88 = vld [vmem:[%s0 + $0x1e8] sm:$0xff]
  %v89 = vld [vmem:[%s0 + $0x1f0] sm:$0xf]
  %v90 = vld [vmem:[%s0 + $0x1f4] sm:$0xff]
  %v91 = vld [vmem:[%s0 + $0x1fc] sm:$0xff]
  %v92 = vld [vmem:[%s0 + $0x204] sm:$0xf]
  %v93 = vld [vmem:[%s0 + $0x208] sm:$0xff]
  %v94 = vld [vmem:[%s0 + $0x210] sm:$0xff]
  %v95 = vld [vmem:[%s0 + $0x218] sm:$0xf]
  %v96 = vld [vmem:[%s0 + $0x21c] sm:$0xff]
  %v97 = vld [vmem:[%s0 + $0x224] sm:$0xff]
  %v98 = vld [vmem:[%s0 + $0x22c] sm:$0xf]
  %v99 = vld [vmem:[%s0 + $0x230] sm:$0xff]
  %v100 = vld [vmem:[%s0 + $0x238] sm:$0xff]
  %v101 = vld [vmem:[%s0 + $0x240] sm:$0xf]
  %v102 = vld [vmem:[%s0 + $0x244] sm:$0xff]
  %v103 = vld [vmem:[%s0 + $0x24c] sm:$0xff]
  %v104 = vld [vmem:[%s0 + $0x254] sm:$0xf]
  %v105 = vld [vmem:[%s0 + $0x258] sm:$0xff]
  %v106 = vld [vmem:[%s0 + $0x260] sm:$0xff]
  %v107 = vld [vmem:[%s0 + $0x268] sm:$0xf]
  %v108 = vld [vmem:[%s0 + $0x26c] sm:$0xff]
  %v109 = vld [vmem:[%s0 + $0x274] sm:$0xff]
  %v110 = vld [vmem:[%s0 + $0x27c] sm:$0xf]
  %v111 = vld [vmem:[%s0 + $0x280] sm:$0xff]
  %v112 = vld [vmem:[%s0 + $0x288] sm:$0xff]
  %v113 = vld [vmem:[%s0 + $0x290] sm:$0xf]
  %v114 = vld [vmem:[%s0 + $0x294] sm:$0xff]
  %v115 = vld [vmem:[%s0 + $0x29c] sm:$0xff]
  %v116 = vld [vmem:[%s0 + $0x2a4] sm:$0xf]
  %v117 = vld [vmem:[%s0 + $0x2a8] sm:$0xff]
  %v118 = vld [vmem:[%s0 + $0x2b0] sm:$0xff]
  %v119 = vld [vmem:[%s0 + $0x2b8] sm:$0xf]
  %v120 = vld [vmem:[%s0 + $0x2bc] sm:$0xff]
  %v121 = vld [vmem:[%s0 + $0x2c4] sm:$0xff]
  %v122 = vld [vmem:[%s0 + $0x2cc] sm:$0xf]
  %v123 = vld [vmem:[%s0 + $0x2d0] sm:$0xff]
  %v124 = vld [vmem:[%s0 + $0x2d8] sm:$0xff]
  %v125 = vld [vmem:[%s0 + $0x2e0] sm:$0xf]
  %v126 = vld [vmem:[%s0 + $0x2e4] sm:$0xff]
  %v127 = vld [vmem:[%s0 + $0x2ec] sm:$0xff]
  %v128 = vld [vmem:[%s0 + $0x2f4] sm:$0xf]
  %v129 = vld [vmem:[%s0 + $0x2f8] sm:$0xff]
  %v130 = vld [vmem:[%s0 + $0x300] sm:$0xff]
  %v131 = vld [vmem:[%s0 + $0x308] sm:$0xf]
  %v132 = vld [vmem:[%s0 + $0x30c] sm:$0xff]
  %v133 = vld [vmem:[%s0 + $0x314] sm:$0xff]
  %v134 = vld [vmem:[%s0 + $0x31c] sm:$0xf]
  %v135 = vld [vmem:[%s0 + $0x320] sm:$0xff]
  %v136 = vld [vmem:[%s0 + $0x328] sm:$0xff]
  %v137 = vld [vmem:[%s0 + $0x330] sm:$0xf]
  %v138 = vld [vmem:[%s0 + $0x334] sm:$0xff]
  %v139 = vld [vmem:[%s0 + $0x33c] sm:$0xff]
  %v140 = vld [vmem:[%s0 + $0x344] sm:$0xf]
  %v141 = vld [vmem:[%s0 + $0x348] sm:$0xff]
  %v142 = vld [vmem:[%s0 + $0x350] sm:$0xff]
  %v143 = vld [vmem:[%s0 + $0x358] sm:$0xf]
  %v144 = vld [vmem:[%s0 + $0x35c] sm:$0xff]
  %v145 = vld [vmem:[%s0 + $0x364] sm:$0xff]
  %v146 = vld [vmem:[%s0 + $0x36c] sm:$0xf]
  %v147 = vld [vmem:[%s0 + $0x370] sm:$0xff]
  %v148 = vld [vmem:[%s0 + $0x378] sm:$0xff]
  %v149 = vld [vmem:[%s0 + $0x380] sm:$0xf]
  %v150 = vld [vmem:[%s0 + $0x384] sm:$0xff]
  %v151 = vld [vmem:[%s0 + $0x38c] sm:$0xff]
  %v152 = vld [vmem:[%s0 + $0x394] sm:$0xf]
  %v153 = vld [vmem:[%s0 + $0x398] sm:$0xff]
  %v154 = vld [vmem:[%s0 + $0x3a0] sm:$0xff]
  %v155 = vld [vmem:[%s0 + $0x3a8] sm:$0xf]
  %v156 = vld [vmem:[%s0 + $0x3ac] sm:$0xff]
  %v157 = vld [vmem:[%s0 + $0x3b4] sm:$0xff]
  %v158 = vld [vmem:[%s0 + $0x3bc] sm:$0xf]
  %v159 = vld [vmem:[%s0 + $0x3c0] sm:$0xff]
  %v160 = vld [vmem:[%s0 + $0x3c8] sm:$0xff]
  %v161 = vld [vmem:[%s0 + $0x3d0] sm:$0xf]
  %v162 = vld [vmem:[%s0 + $0x3d4] sm:$0xff]
  %v163 = vld [vmem:[%s0 + $0x3dc] sm:$0xff]
  %v164 = vld [vmem:[%s0 + $0x3e4] sm:$0xf]
  %v165 = vld [vmem:[%s0 + $0x3e8] sm:$0xff]
  %v166 = vld [vmem:[%s0 + $0x3f0] sm:$0xff]
  %v167 = vld [vmem:[%s0 + $0x3f8] sm:$0xf]
  %v168 = vld [vmem:[%s0 + $0x3fc] sm:$0xff]
  %v169 = vld [vmem:[%s0 + $0x404] sm:$0xff]
  %v170 = vld [vmem:[%s0 + $0x40c] sm:$0xf]
  %v171 = vld [vmem:[%s0 + $0x410] sm:$0xff]
  %v172 = vld [vmem:[%s0 + $0x418] sm:$0xff]
  %v173 = vld [vmem:[%s0 + $0x420] sm:$0xf]
  %v174 = vld [vmem:[%s0 + $0x424] sm:$0xff]
  %v175 = vld [vmem:[%s0 + $0x42c] sm:$0xff]
  %v176 = vld [vmem:[%s0 + $0x434] sm:$0xf]
  %v177 = vld [vmem:[%s0 + $0x438] sm:$0xff]
  %v178 = vld [vmem:[%s0 + $0x440] sm:$0xff]
  %v179 = vld [vmem:[%s0 + $0x448] sm:$0xf]
  %v180 = vld [vmem:[%s0 + $0x44c] sm:$0xff]
  %v181 = vld [vmem:[%s0 + $0x454] sm:$0xff]
  %v182 = vld [vmem:[%s0 + $0x45c] sm:$0xf]
  %v183 = vld [vmem:[%s0 + $0x460] sm:$0xff]
  %v184 = vld [vmem:[%s0 + $0x468] sm:$0xff]
  %v185 = vld [vmem:[%s0 + $0x470] sm:$0xf]
  %v186 = vld [vmem:[%s0 + $0x474] sm:$0xff]
  %v187 = vld [vmem:[%s0 + $0x47c] sm:$0xff]
  %v188 = vld [vmem:[%s0 + $0x484] sm:$0xf]
  %v189 = vld [vmem:[%s0 + $0x488] sm:$0xff]
  %v190 = vld [vmem:[%s0 + $0x490] sm:$0xff]
  %v191 = vld [vmem:[%s0 + $0x498] sm:$0xf]
  %v192 = vld [vmem:[%s0 + $0x49c] sm:$0xff]
  %v193 = vld [vmem:[%s0 + $0x4a4] sm:$0xff]
  %v194 = vld [vmem:[%s0 + $0x4ac] sm:$0xf]
  %v195 = vld [vmem:[%s0 + $0x4b0] sm:$0xff]
  %v196 = vld [vmem:[%s0 + $0x4b8] sm:$0xff]
  %v197 = vld [vmem:[%s0 + $0x4c0] sm:$0xf]
  %v198 = vld [vmem:[%s0 + $0x4c4] sm:$0xff]
  %v199 = vld [vmem:[%s0 + $0x4cc] sm:$0xff]
  %v200 = vld [vmem:[%s0 + $0x4d4] sm:$0xf]
  %v201 = vld [vmem:[%s0 + $0x4d8] sm:$0xff]
  %v202 = vld [vmem:[%s0 + $0x4e0] sm:$0xff]
  %v203 = vld [vmem:[%s0 + $0x4e8] sm:$0xf]
  %v204 = vld [vmem:[%s0 + $0x4ec] sm:$0xff]
  %v205 = vld [vmem:[%s0 + $0x4f4] sm:$0xff]
  %v206 = vld [vmem:[%s0 + $0x4fc] sm:$0xf]
  %v207 = vld [vmem:[%s0 + $0x500] sm:$0xff]
  %v208 = vld [vmem:[%s0 + $0x508] sm:$0xff]
  %v209 = vld [vmem:[%s0 + $0x510] sm:$0xf]
  %v210 = vld [vmem:[%s0 + $0x514] sm:$0xff]
  %v211 = vld [vmem:[%s0 + $0x51c] sm:$0xff]
  %v212 = vld [vmem:[%s0 + $0x524] sm:$0xf]
  %v213 = vld [vmem:[%s0 + $0x528] sm:$0xff]
  %v214 = vld [vmem:[%s0 + $0x530] sm:$0xff]
  %v215 = vld [vmem:[%s0 + $0x538] sm:$0xf]
  %v216 = vld [vmem:[%s0 + $0x53c] sm:$0xff]
  %v217 = vld [vmem:[%s0 + $0x544] sm:$0xff]
  %v218 = vld [vmem:[%s0 + $0x54c] sm:$0xf]
  %v219 = vld [vmem:[%s0 + $0x550] sm:$0xff]
  %v220 = vld [vmem:[%s0 + $0x558] sm:$0xff]
  %v221 = vld [vmem:[%s0 + $0x560] sm:$0xf]
  %v222 = vld [vmem:[%s0 + $0x564] sm:$0xff]
  %v223 = vld [vmem:[%s0 + $0x56c] sm:$0xff]
  %v224 = vld [vmem:[%s0 + $0x574] sm:$0xf]
  %v225 = vld [vmem:[%s0 + $0x578] sm:$0xff]
  %v226 = vld [vmem:[%s0 + $0x580] sm:$0xff]
  %v227 = vld [vmem:[%s0 + $0x588] sm:$0xf]
  %v228 = vld [vmem:[%s0 + $0x58c] sm:$0xff]
  %v229 = vld [vmem:[%s0 + $0x594] sm:$0xff]
  %v230 = vld [vmem:[%s0 + $0x59c] sm:$0xf]
  %v231 = vld [vmem:[%s0 + $0x5a0] sm:$0x11]
  %v232 = vld [vmem:[%s0 + $0x5a8] sm:$0x11]
  %v233 = vld [vmem:[%s0 + $0x5b0] sm:$0x1]
  %v234 = vld [vmem:[%s1] sm:$0xf]
  %v235 = vld [vmem:[%s1 + $0x4] sm:$0xf]
  %v236 = vld [vmem:[%s1 + $0x8] sm:$0xf]
  %v237 = vld [vmem:[%s1 + $0xc] sm:$0xf]
  %v238 = vld [vmem:[%s1 + $0x10] sm:$0xf]
  %v239 = vld [vmem:[%s1 + $0x14] sm:$0xf]
  %v240 = vld [vmem:[%s1 + $0x18] sm:$0xf]
  %v241 = vld [vmem:[%s1 + $0x1c] sm:$0xf]
  %v242 = vld [vmem:[%s1 + $0x20] sm:$0xf]
  %v243 = vld [vmem:[%s1 + $0x24] sm:$0xf]
  %v244 = vld [vmem:[%s1 + $0x28] sm:$0xf]
  %v245 = vld [vmem:[%s1 + $0x2c] sm:$0xf]
  %v246 = vld [vmem:[%s1 + $0x30] sm:$0xf]
  %v247 = vld [vmem:[%s1 + $0x34] sm:$0xf]
  %v248 = vld [vmem:[%s1 + $0x38] sm:$0xf]
  %v249 = vld [vmem:[%s1 + $0x3c] sm:$0xf]
  %v250 = vld [vmem:[%s1 + $0x40] sm:$0xf]
  %v251 = vld [vmem:[%s1 + $0x44] sm:$0xf]
  %v252 = vld [vmem:[%s1 + $0x48] sm:$0xf]
  %v253 = vld [vmem:[%s1 + $0x4c] sm:$0xf]
  %v254 = vld [vmem:[%s1 + $0x50] sm:$0xf]
  %v255 = vld [vmem:[%s1 + $0x54] sm:$0xf]
  %v256 = vld [vmem:[%s1 + $0x58] sm:$0xf]
  %v257 = vld [vmem:[%s1 + $0x5c] sm:$0xf]
  %v258 = vld [vmem:[%s1 + $0x60] sm:$0xf]
  %v259 = vld [vmem:[%s1 + $0x64] sm:$0xf]
  %v260 = vld [vmem:[%s1 + $0x68] sm:$0xf]
  %v261 = vld [vmem:[%s1 + $0x6c] sm:$0xf]
  %v262 = vld [vmem:[%s1 + $0x70] sm:$0xf]
  %v263 = vld [vmem:[%s1 + $0x74] sm:$0xf]
  %v264 = vld [vmem:[%s1 + $0x78] sm:$0xf]
  %v265 = vld [vmem:[%s1 + $0x7c] sm:$0xf]
  %v266 = vld [vmem:[%s1 + $0x80] sm:$0xf]
  %v267 = vld [vmem:[%s1 + $0x84] sm:$0xf]
  %v268 = vld [vmem:[%s1 + $0x88] sm:$0xf]
  %v269 = vld [vmem:[%s1 + $0x8c] sm:$0xf]
  %v270 = vld [vmem:[%s1 + $0x90] sm:$0xf]
  %v271 = vld [vmem:[%s1 + $0x94] sm:$0xf]
  %v272 = vld [vmem:[%s1 + $0x98] sm:$0xf]
  %v273 = vld [vmem:[%s1 + $0x9c] sm:$0xf]
  %v274 = vld [vmem:[%s1 + $0xa0] sm:$0xf]
  %v275 = vld [vmem:[%s1 + $0xa4] sm:$0xf]
  %v276 = vld [vmem:[%s1 + $0xa8] sm:$0xf]
  %v277 = vld [vmem:[%s1 + $0xac] sm:$0xf]
  %v278 = vld [vmem:[%s1 + $0xb0] sm:$0xf]
  %v279 = vld [vmem:[%s1 + $0xb4] sm:$0xf]
  %v280 = vld [vmem:[%s1 + $0xb8] sm:$0xf]
  %v281 = vld [vmem:[%s1 + $0xbc] sm:$0xf]
  %v282 = vld [vmem:[%s1 + $0xc0] sm:$0xf]
  %v283 = vld [vmem:[%s1 + $0xc4] sm:$0xf]
  %v284 = vld [vmem:[%s1 + $0xc8] sm:$0xf]
  %v285 = vld [vmem:[%s1 + $0xcc] sm:$0xf]
  %v286 = vld [vmem:[%s1 + $0xd0] sm:$0xf]
  %v287 = vld [vmem:[%s1 + $0xd4] sm:$0xf]
  %v288 = vld [vmem:[%s1 + $0xd8] sm:$0xf]
  %v289 = vld [vmem:[%s1 + $0xdc] sm:$0xf]
  %v290 = vld [vmem:[%s1 + $0xe0] sm:$0xf]
  %v291 = vld [vmem:[%s1 + $0xe4] sm:$0xf]
  %v292 = vld [vmem:[%s1 + $0xe8] sm:$0xf]
  %v293 = vld [vmem:[%s1 + $0xec] sm:$0xf]
  %v294 = vld [vmem:[%s1 + $0xf0] sm:$0xf]
  %v295 = vld [vmem:[%s1 + $0xf4] sm:$0xf]
  %v296 = vld [vmem:[%s1 + $0xf8] sm:$0xf]
  %v297 = vld [vmem:[%s1 + $0xfc] sm:$0xf]
  %v298 = vld [vmem:[%s1 + $0x100] sm:$0xf]
  %v299 = vld [vmem:[%s1 + $0x104] sm:$0xf]
  %v300 = vld [vmem:[%s1 + $0x108] sm:$0xf]
  %v301 = vld [vmem:[%s1 + $0x10c] sm:$0xf]
  %v302 = vld [vmem:[%s1 + $0x110] sm:$0xf]
  %v303 = vld [vmem:[%s1 + $0x114] sm:$0xf]
  %v304 = vld [vmem:[%s1 + $0x118] sm:$0xf]
  %v305 = vld [vmem:[%s1 + $0x11c] sm:$0xf]
  %v306 = vld [vmem:[%s2] sm:$0x1]
  %v308 = vperm.slane %v306, 0
  %v529 = vunpack.c.l.b16 %v15
  %v530 = vunpack.c.h.b16 %v15
  %v531 = vunpack.c.l.b16 %v16
  %v532 = vunpack.c.h.b16 %v16
  %v533 = vunpack.c.l.b16 %v17
  %v534 = vunpack.c.l.b16 %v18
  %v535 = vunpack.c.h.b16 %v18
  %v536 = vunpack.c.l.b16 %v19
  %v537 = vunpack.c.h.b16 %v19
  %v538 = vunpack.c.l.b16 %v20
  %v539 = vunpack.c.l.b16 %v21
  %v540 = vunpack.c.h.b16 %v21
  %v541 = vunpack.c.l.b16 %v22
  %v542 = vunpack.c.h.b16 %v22
  %v543 = vunpack.c.l.b16 %v23
  %v544 = vunpack.c.l.b16 %v24
  %v545 = vunpack.c.h.b16 %v24
  %v546 = vunpack.c.l.b16 %v25
  %v547 = vunpack.c.h.b16 %v25
  %v548 = vunpack.c.l.b16 %v26
  %v549 = vunpack.c.l.b16 %v27
  %v550 = vunpack.c.h.b16 %v27
  %v551 = vunpack.c.l.b16 %v28
  %v552 = vunpack.c.h.b16 %v28
  %v553 = vunpack.c.l.b16 %v29
  %v554 = vunpack.c.l.b16 %v30
  %v555 = vunpack.c.h.b16 %v30
  %v556 = vunpack.c.l.b16 %v31
  %v557 = vunpack.c.h.b16 %v31
  %v558 = vunpack.c.l.b16 %v32
  %v559 = vunpack.c.l.b16 %v33
  %v560 = vunpack.c.h.b16 %v33
  %v561 = vunpack.c.l.b16 %v34
  %v562 = vunpack.c.h.b16 %v34
  %v563 = vunpack.c.l.b16 %v35
  %v564 = vunpack.c.l.b16 %v36
  %v565 = vunpack.c.h.b16 %v36
  %v566 = vunpack.c.l.b16 %v37
  %v567 = vunpack.c.h.b16 %v37
  %v568 = vunpack.c.l.b16 %v38
  %v569 = vunpack.c.l.b16 %v39
  %v570 = vunpack.c.h.b16 %v39
  %v571 = vunpack.c.l.b16 %v40
  %v572 = vunpack.c.h.b16 %v40
  %v573 = vunpack.c.l.b16 %v41
  %v574 = vunpack.c.l.b16 %v42
  %v575 = vunpack.c.h.b16 %v42
  %v576 = vunpack.c.l.b16 %v43
  %v577 = vunpack.c.h.b16 %v43
  %v578 = vunpack.c.l.b16 %v44
  %v579 = vunpack.c.l.b16 %v45
  %v580 = vunpack.c.h.b16 %v45
  %v581 = vunpack.c.l.b16 %v46
  %v582 = vunpack.c.h.b16 %v46
  %v583 = vunpack.c.l.b16 %v47
  %v584 = vunpack.c.l.b16 %v48
  %v585 = vunpack.c.h.b16 %v48
  %v586 = vunpack.c.l.b16 %v49
  %v587 = vunpack.c.h.b16 %v49
  %v588 = vunpack.c.l.b16 %v50
  %v589 = vunpack.c.l.b16 %v51
  %v590 = vunpack.c.h.b16 %v51
  %v591 = vunpack.c.l.b16 %v52
  %v592 = vunpack.c.h.b16 %v52
  %v593 = vunpack.c.l.b16 %v53
  %v594 = vunpack.c.l.b16 %v54
  %v595 = vunpack.c.h.b16 %v54
  %v596 = vunpack.c.l.b16 %v55
  %v597 = vunpack.c.h.b16 %v55
  %v598 = vunpack.c.l.b16 %v56
  %v599 = vunpack.c.l.b16 %v57
  %v600 = vunpack.c.h.b16 %v57
  %v601 = vunpack.c.l.b16 %v58
  %v602 = vunpack.c.h.b16 %v58
  %v603 = vunpack.c.l.b16 %v59
  %v604 = vunpack.c.l.b16 %v60
  %v605 = vunpack.c.h.b16 %v60
  %v606 = vunpack.c.l.b16 %v61
  %v607 = vunpack.c.h.b16 %v61
  %v608 = vunpack.c.l.b16 %v62
  %v609 = vunpack.c.l.b16 %v63
  %v610 = vunpack.c.h.b16 %v63
  %v611 = vunpack.c.l.b16 %v64
  %v612 = vunpack.c.h.b16 %v64
  %v613 = vunpack.c.l.b16 %v65
  %v614 = vunpack.c.l.b16 %v66
  %v615 = vunpack.c.h.b16 %v66
  %v616 = vunpack.c.l.b16 %v67
  %v617 = vunpack.c.h.b16 %v67
  %v618 = vunpack.c.l.b16 %v68
  %v619 = vunpack.c.l.b16 %v69
  %v620 = vunpack.c.h.b16 %v69
  %v621 = vunpack.c.l.b16 %v70
  %v622 = vunpack.c.h.b16 %v70
  %v623 = vunpack.c.l.b16 %v71
  %v624 = vunpack.c.l.b16 %v72
  %v625 = vunpack.c.h.b16 %v72
  %v626 = vunpack.c.l.b16 %v73
  %v627 = vunpack.c.h.b16 %v73
  %v628 = vunpack.c.l.b16 %v74
  %v629 = vunpack.c.l.b16 %v75
  %v630 = vunpack.c.h.b16 %v75
  %v631 = vunpack.c.l.b16 %v76
  %v632 = vunpack.c.h.b16 %v76
  %v633 = vunpack.c.l.b16 %v77
  %v634 = vunpack.c.l.b16 %v78
  %v635 = vunpack.c.h.b16 %v78
  %v636 = vunpack.c.l.b16 %v79
  %v637 = vunpack.c.h.b16 %v79
  %v638 = vunpack.c.l.b16 %v80
  %v639 = vunpack.c.l.b16 %v81
  %v640 = vunpack.c.h.b16 %v81
  %v641 = vunpack.c.l.b16 %v82
  %v642 = vunpack.c.h.b16 %v82
  %v643 = vunpack.c.l.b16 %v83
  %v644 = vunpack.c.l.b16 %v84
  %v645 = vunpack.c.h.b16 %v84
  %v646 = vunpack.c.l.b16 %v85
  %v647 = vunpack.c.h.b16 %v85
  %v648 = vunpack.c.l.b16 %v86
  %v649 = vunpack.c.l.b16 %v87
  %v650 = vunpack.c.h.b16 %v87
  %v651 = vunpack.c.l.b16 %v88
  %v652 = vunpack.c.h.b16 %v88
  %v653 = vunpack.c.l.b16 %v89
  %v654 = vunpack.c.l.b16 %v90
  %v655 = vunpack.c.h.b16 %v90
  %v656 = vunpack.c.l.b16 %v91
  %v657 = vunpack.c.h.b16 %v91
  %v658 = vunpack.c.l.b16 %v92
  %v659 = vunpack.c.l.b16 %v93
  %v660 = vunpack.c.h.b16 %v93
  %v661 = vunpack.c.l.b16 %v94
  %v662 = vunpack.c.h.b16 %v94
  %v663 = vunpack.c.l.b16 %v95
  %v664 = vunpack.c.l.b16 %v96
  %v665 = vunpack.c.h.b16 %v96
  %v666 = vunpack.c.l.b16 %v97
  %v667 = vunpack.c.h.b16 %v97
  %v668 = vunpack.c.l.b16 %v98
  %v669 = vunpack.c.l.b16 %v99
  %v670 = vunpack.c.h.b16 %v99
  %v671 = vunpack.c.l.b16 %v100
  %v672 = vunpack.c.h.b16 %v100
  %v673 = vunpack.c.l.b16 %v101
  %v674 = vunpack.c.l.b16 %v102
  %v675 = vunpack.c.h.b16 %v102
  %v676 = vunpack.c.l.b16 %v103
  %v677 = vunpack.c.h.b16 %v103
  %v678 = vunpack.c.l.b16 %v104
  %v679 = vunpack.c.l.b16 %v105
  %v680 = vunpack.c.h.b16 %v105
  %v681 = vunpack.c.l.b16 %v106
  %v682 = vunpack.c.h.b16 %v106
  %v683 = vunpack.c.l.b16 %v107
  %v684 = vunpack.c.l.b16 %v108
  %v685 = vunpack.c.h.b16 %v108
  %v686 = vunpack.c.l.b16 %v109
  %v687 = vunpack.c.h.b16 %v109
  %v688 = vunpack.c.l.b16 %v110
  %v689 = vunpack.c.l.b16 %v111
  %v690 = vunpack.c.h.b16 %v111
  %v691 = vunpack.c.l.b16 %v112
  %v692 = vunpack.c.h.b16 %v112
  %v693 = vunpack.c.l.b16 %v113
  %v694 = vunpack.c.l.b16 %v114
  %v695 = vunpack.c.h.b16 %v114
  %v696 = vunpack.c.l.b16 %v115
  %v697 = vunpack.c.h.b16 %v115
  %v698 = vunpack.c.l.b16 %v116
  %v699 = vunpack.c.l.b16 %v117
  %v700 = vunpack.c.h.b16 %v117
  %v701 = vunpack.c.l.b16 %v118
  %v702 = vunpack.c.h.b16 %v118
  %v703 = vunpack.c.l.b16 %v119
  %v704 = vunpack.c.l.b16 %v120
  %v705 = vunpack.c.h.b16 %v120
  %v706 = vunpack.c.l.b16 %v121
  %v707 = vunpack.c.h.b16 %v121
  %v708 = vunpack.c.l.b16 %v122
  %v709 = vunpack.c.l.b16 %v123
  %v710 = vunpack.c.h.b16 %v123
  %v711 = vunpack.c.l.b16 %v124
  %v712 = vunpack.c.h.b16 %v124
  %v713 = vunpack.c.l.b16 %v125
  %v714 = vunpack.c.l.b16 %v126
  %v715 = vunpack.c.h.b16 %v126
  %v716 = vunpack.c.l.b16 %v127
  %v717 = vunpack.c.h.b16 %v127
  %v718 = vunpack.c.l.b16 %v128
  %v719 = vunpack.c.l.b16 %v129
  %v720 = vunpack.c.h.b16 %v129
  %v721 = vunpack.c.l.b16 %v130
  %v722 = vunpack.c.h.b16 %v130
  %v723 = vunpack.c.l.b16 %v131
  %v724 = vunpack.c.l.b16 %v132
  %v725 = vunpack.c.h.b16 %v132
  %v726 = vunpack.c.l.b16 %v133
  %v727 = vunpack.c.h.b16 %v133
  %v728 = vunpack.c.l.b16 %v134
  %v729 = vunpack.c.l.b16 %v135
  %v730 = vunpack.c.h.b16 %v135
  %v731 = vunpack.c.l.b16 %v136
  %v732 = vunpack.c.h.b16 %v136
  %v733 = vunpack.c.l.b16 %v137
  %v734 = vunpack.c.l.b16 %v138
  %v735 = vunpack.c.h.b16 %v138
  %v736 = vunpack.c.l.b16 %v139
  %v737 = vunpack.c.h.b16 %v139
  %v738 = vunpack.c.l.b16 %v140
  %v739 = vunpack.c.l.b16 %v141
  %v740 = vunpack.c.h.b16 %v141
  %v741 = vunpack.c.l.b16 %v142
  %v742 = vunpack.c.h.b16 %v142
  %v743 = vunpack.c.l.b16 %v143
  %v744 = vunpack.c.l.b16 %v144
  %v745 = vunpack.c.h.b16 %v144
  %v746 = vunpack.c.l.b16 %v145
  %v747 = vunpack.c.h.b16 %v145
  %v748 = vunpack.c.l.b16 %v146
  %v749 = vunpack.c.l.b16 %v147
  %v750 = vunpack.c.h.b16 %v147
  %v751 = vunpack.c.l.b16 %v148
  %v752 = vunpack.c.h.b16 %v148
  %v753 = vunpack.c.l.b16 %v149
  %v754 = vunpack.c.l.b16 %v150
  %v755 = vunpack.c.h.b16 %v150
  %v756 = vunpack.c.l.b16 %v151
  %v757 = vunpack.c.h.b16 %v151
  %v758 = vunpack.c.l.b16 %v152
  %v759 = vunpack.c.l.b16 %v153
  %v760 = vunpack.c.h.b16 %v153
  %v761 = vunpack.c.l.b16 %v154
  %v762 = vunpack.c.h.b16 %v154
  %v763 = vunpack.c.l.b16 %v155
  %v764 = vunpack.c.l.b16 %v156
  %v765 = vunpack.c.h.b16 %v156
  %v766 = vunpack.c.l.b16 %v157
  %v767 = vunpack.c.h.b16 %v157
  %v768 = vunpack.c.l.b16 %v158
  %v769 = vunpack.c.l.b16 %v159
  %v770 = vunpack.c.h.b16 %v159
  %v771 = vunpack.c.l.b16 %v160
  %v772 = vunpack.c.h.b16 %v160
  %v773 = vunpack.c.l.b16 %v161
  %v774 = vunpack.c.l.b16 %v162
  %v775 = vunpack.c.h.b16 %v162
  %v776 = vunpack.c.l.b16 %v163
  %v777 = vunpack.c.h.b16 %v163
  %v778 = vunpack.c.l.b16 %v164
  %v779 = vunpack.c.l.b16 %v165
  %v780 = vunpack.c.h.b16 %v165
  %v781 = vunpack.c.l.b16 %v166
  %v782 = vunpack.c.h.b16 %v166
  %v783 = vunpack.c.l.b16 %v167
  %v784 = vunpack.c.l.b16 %v168
  %v785 = vunpack.c.h.b16 %v168
  %v786 = vunpack.c.l.b16 %v169
  %v787 = vunpack.c.h.b16 %v169
  %v788 = vunpack.c.l.b16 %v170
  %v789 = vunpack.c.l.b16 %v171
  %v790 = vunpack.c.h.b16 %v171
  %v791 = vunpack.c.l.b16 %v172
  %v792 = vunpack.c.h.b16 %v172
  %v793 = vunpack.c.l.b16 %v173
  %v794 = vunpack.c.l.b16 %v174
  %v795 = vunpack.c.h.b16 %v174
  %v796 = vunpack.c.l.b16 %v175
  %v797 = vunpack.c.h.b16 %v175
  %v798 = vunpack.c.l.b16 %v176
  %v799 = vunpack.c.l.b16 %v177
  %v800 = vunpack.c.h.b16 %v177
  %v801 = vunpack.c.l.b16 %v178
  %v802 = vunpack.c.h.b16 %v178
  %v803 = vunpack.c.l.b16 %v179
  %v804 = vunpack.c.l.b16 %v180
  %v805 = vunpack.c.h.b16 %v180
  %v806 = vunpack.c.l.b16 %v181
  %v807 = vunpack.c.h.b16 %v181
  %v808 = vunpack.c.l.b16 %v182
  %v809 = vunpack.c.l.b16 %v183
  %v810 = vunpack.c.h.b16 %v183
  %v811 = vunpack.c.l.b16 %v184
  %v812 = vunpack.c.h.b16 %v184
  %v813 = vunpack.c.l.b16 %v185
  %v814 = vunpack.c.l.b16 %v186
  %v815 = vunpack.c.h.b16 %v186
  %v816 = vunpack.c.l.b16 %v187
  %v817 = vunpack.c.h.b16 %v187
  %v818 = vunpack.c.l.b16 %v188
  %v819 = vunpack.c.l.b16 %v189
  %v820 = vunpack.c.h.b16 %v189
  %v821 = vunpack.c.l.b16 %v190
  %v822 = vunpack.c.h.b16 %v190
  %v823 = vunpack.c.l.b16 %v191
  %v824 = vunpack.c.l.b16 %v192
  %v825 = vunpack.c.h.b16 %v192
  %v826 = vunpack.c.l.b16 %v193
  %v827 = vunpack.c.h.b16 %v193
  %v828 = vunpack.c.l.b16 %v194
  %v829 = vunpack.c.l.b16 %v195
  %v830 = vunpack.c.h.b16 %v195
  %v831 = vunpack.c.l.b16 %v196
  %v832 = vunpack.c.h.b16 %v196
  %v833 = vunpack.c.l.b16 %v197
  %v834 = vunpack.c.l.b16 %v198
  %v835 = vunpack.c.h.b16 %v198
  %v836 = vunpack.c.l.b16 %v199
  %v837 = vunpack.c.h.b16 %v199
  %v838 = vunpack.c.l.b16 %v200
  %v839 = vunpack.c.l.b16 %v201
  %v840 = vunpack.c.h.b16 %v201
  %v841 = vunpack.c.l.b16 %v202
  %v842 = vunpack.c.h.b16 %v202
  %v843 = vunpack.c.l.b16 %v203
  %v844 = vunpack.c.l.b16 %v204
  %v845 = vunpack.c.h.b16 %v204
  %v846 = vunpack.c.l.b16 %v205
  %v847 = vunpack.c.h.b16 %v205
  %v848 = vunpack.c.l.b16 %v206
  %v849 = vunpack.c.l.b16 %v207
  %v850 = vunpack.c.h.b16 %v207
  %v851 = vunpack.c.l.b16 %v208
  %v852 = vunpack.c.h.b16 %v208
  %v853 = vunpack.c.l.b16 %v209
  %v854 = vunpack.c.l.b16 %v210
  %v855 = vunpack.c.h.b16 %v210
  %v856 = vunpack.c.l.b16 %v211
  %v857 = vunpack.c.h.b16 %v211
  %v858 = vunpack.c.l.b16 %v212
  %v859 = vunpack.c.l.b16 %v213
  %v860 = vunpack.c.h.b16 %v213
  %v861 = vunpack.c.l.b16 %v214
  %v862 = vunpack.c.h.b16 %v214
  %v863 = vunpack.c.l.b16 %v215
  %v864 = vunpack.c.l.b16 %v216
  %v865 = vunpack.c.h.b16 %v216
  %v866 = vunpack.c.l.b16 %v217
  %v867 = vunpack.c.h.b16 %v217
  %v868 = vunpack.c.l.b16 %v218
  %v869 = vunpack.c.l.b16 %v219
  %v870 = vunpack.c.h.b16 %v219
  %v871 = vunpack.c.l.b16 %v220
  %v872 = vunpack.c.h.b16 %v220
  %v873 = vunpack.c.l.b16 %v221
  %v874 = vunpack.c.l.b16 %v222
  %v875 = vunpack.c.h.b16 %v222
  %v876 = vunpack.c.l.b16 %v223
  %v877 = vunpack.c.h.b16 %v223
  %v878 = vunpack.c.l.b16 %v224
  %v879 = vunpack.c.l.b16 %v225
  %v880 = vunpack.c.h.b16 %v225
  %v881 = vunpack.c.l.b16 %v226
  %v882 = vunpack.c.h.b16 %v226
  %v883 = vunpack.c.l.b16 %v227
  %v884 = vunpack.c.l.b16 %v228
  %v885 = vunpack.c.h.b16 %v228
  %v886 = vunpack.c.l.b16 %v229
  %v887 = vunpack.c.h.b16 %v229
  %v888 = vunpack.c.l.b16 %v230
  %v889 = vunpack.c.l.b16 %v231
  %v890 = vunpack.c.h.b16 %v231
  %v891 = vunpack.c.l.b16 %v232
  %v892 = vunpack.c.h.b16 %v232
  %v893 = vunpack.c.l.b16 %v233
  %v894 = vpack.c.b16 %v534, %v529
  %v895 = vpack.c.b16 %v535, %v530
  %v896 = vpack.c.b16 %v536, %v531
  %v897 = vpack.c.b16 %v537, %v532
  %v898 = vpack.c.b16 %v538, %v533
  %v899 = vpack.c.b16 %v544, %v539
  %v900 = vpack.c.b16 %v545, %v540
  %v901 = vpack.c.b16 %v546, %v541
  %v902 = vpack.c.b16 %v547, %v542
  %v903 = vpack.c.b16 %v548, %v543
  %v904 = vpack.c.b16 %v554, %v549
  %v905 = vpack.c.b16 %v555, %v550
  %v906 = vpack.c.b16 %v556, %v551
  %v907 = vpack.c.b16 %v557, %v552
  %v908 = vpack.c.b16 %v558, %v553
  %v909 = vpack.c.b16 %v564, %v559
  %v910 = vpack.c.b16 %v565, %v560
  %v911 = vpack.c.b16 %v566, %v561
  %v912 = vpack.c.b16 %v567, %v562
  %v913 = vpack.c.b16 %v568, %v563
  %v914 = vpack.c.b16 %v574, %v569
  %v915 = vpack.c.b16 %v575, %v570
  %v916 = vpack.c.b16 %v576, %v571
  %v917 = vpack.c.b16 %v577, %v572
  %v918 = vpack.c.b16 %v578, %v573
  %v919 = vpack.c.b16 %v584, %v579
  %v920 = vpack.c.b16 %v585, %v580
  %v921 = vpack.c.b16 %v586, %v581
  %v922 = vpack.c.b16 %v587, %v582
  %v923 = vpack.c.b16 %v588, %v583
  %v924 = vpack.c.b16 %v594, %v589
  %v925 = vpack.c.b16 %v595, %v590
  %v926 = vpack.c.b16 %v596, %v591
  %v927 = vpack.c.b16 %v597, %v592
  %v928 = vpack.c.b16 %v598, %v593
  %v929 = vpack.c.b16 %v604, %v599
  %v930 = vpack.c.b16 %v605, %v600
  %v931 = vpack.c.b16 %v606, %v601
  %v932 = vpack.c.b16 %v607, %v602
  %v933 = vpack.c.b16 %v608, %v603
  %v934 = vpack.c.b16 %v614, %v609
  %v935 = vpack.c.b16 %v615, %v610
  %v936 = vpack.c.b16 %v616, %v611
  %v937 = vpack.c.b16 %v617, %v612
  %v938 = vpack.c.b16 %v618, %v613
  %v939 = vpack.c.b16 %v624, %v619
  %v940 = vpack.c.b16 %v625, %v620
  %v941 = vpack.c.b16 %v626, %v621
  %v942 = vpack.c.b16 %v627, %v622
  %v943 = vpack.c.b16 %v628, %v623
  %v944 = vpack.c.b16 %v634, %v629
  %v945 = vpack.c.b16 %v635, %v630
  %v946 = vpack.c.b16 %v636, %v631
  %v947 = vpack.c.b16 %v637, %v632
  %v948 = vpack.c.b16 %v638, %v633
  %v949 = vpack.c.b16 %v644, %v639
  %v950 = vpack.c.b16 %v645, %v640
  %v951 = vpack.c.b16 %v646, %v641
  %v952 = vpack.c.b16 %v647, %v642
  %v953 = vpack.c.b16 %v648, %v643
  %v954 = vpack.c.b16 %v654, %v649
  %v955 = vpack.c.b16 %v655, %v650
  %v956 = vpack.c.b16 %v656, %v651
  %v957 = vpack.c.b16 %v657, %v652
  %v958 = vpack.c.b16 %v658, %v653
  %v959 = vpack.c.b16 %v664, %v659
  %v960 = vpack.c.b16 %v665, %v660
  %v961 = vpack.c.b16 %v666, %v661
  %v962 = vpack.c.b16 %v667, %v662
  %v963 = vpack.c.b16 %v668, %v663
  %v964 = vpack.c.b16 %v674, %v669
  %v965 = vpack.c.b16 %v675, %v670
  %v966 = vpack.c.b16 %v676, %v671
  %v967 = vpack.c.b16 %v677, %v672
  %v968 = vpack.c.b16 %v678, %v673
  %v969 = vpack.c.b16 %v684, %v679
  %v970 = vpack.c.b16 %v685, %v680
  %v971 = vpack.c.b16 %v686, %v681
  %v972 = vpack.c.b16 %v687, %v682
  %v973 = vpack.c.b16 %v688, %v683
  %v974 = vpack.c.b16 %v694, %v689
  %v975 = vpack.c.b16 %v695, %v690
  %v976 = vpack.c.b16 %v696, %v691
  %v977 = vpack.c.b16 %v697, %v692
  %v978 = vpack.c.b16 %v698, %v693
  %v979 = vpack.c.b16 %v704, %v699
  %v980 = vpack.c.b16 %v705, %v700
  %v981 = vpack.c.b16 %v706, %v701
  %v982 = vpack.c.b16 %v707, %v702
  %v983 = vpack.c.b16 %v708, %v703
  %v984 = vpack.c.b16 %v714, %v709
  %v985 = vpack.c.b16 %v715, %v710
  %v986 = vpack.c.b16 %v716, %v711
  %v987 = vpack.c.b16 %v717, %v712
  %v988 = vpack.c.b16 %v718, %v713
  %v989 = vpack.c.b16 %v724, %v719
  %v990 = vpack.c.b16 %v725, %v720
  %v991 = vpack.c.b16 %v726, %v721
  %v992 = vpack.c.b16 %v727, %v722
  %v993 = vpack.c.b16 %v728, %v723
  %v994 = vpack.c.b16 %v734, %v729
  %v995 = vpack.c.b16 %v735, %v730
  %v996 = vpack.c.b16 %v736, %v731
  %v997 = vpack.c.b16 %v737, %v732
  %v998 = vpack.c.b16 %v738, %v733
  %v999 = vpack.c.b16 %v744, %v739
  %v1000 = vpack.c.b16 %v745, %v740
  %v1001 = vpack.c.b16 %v746, %v741
  %v1002 = vpack.c.b16 %v747, %v742
  %v1003 = vpack.c.b16 %v748, %v743
  %v1004 = vpack.c.b16 %v754, %v749
  %v1005 = vpack.c.b16 %v755, %v750
  %v1006 = vpack.c.b16 %v756, %v751
  %v1007 = vpack.c.b16 %v757, %v752
  %v1008 = vpack.c.b16 %v758, %v753
  %v1009 = vpack.c.b16 %v764, %v759
  %v1010 = vpack.c.b16 %v765, %v760
  %v1011 = vpack.c.b16 %v766, %v761
  %v1012 = vpack.c.b16 %v767, %v762
  %v1013 = vpack.c.b16 %v768, %v763
  %v1014 = vpack.c.b16 %v774, %v769
  %v1015 = vpack.c.b16 %v775, %v770
  %v1016 = vpack.c.b16 %v776, %v771
  %v1017 = vpack.c.b16 %v777, %v772
  %v1018 = vpack.c.b16 %v778, %v773
  %v1019 = vpack.c.b16 %v784, %v779
  %v1020 = vpack.c.b16 %v785, %v780
  %v1021 = vpack.c.b16 %v786, %v781
  %v1022 = vpack.c.b16 %v787, %v782
  %v1023 = vpack.c.b16 %v788, %v783
  %v1024 = vpack.c.b16 %v794, %v789
  %v1025 = vpack.c.b16 %v795, %v790
  %v1026 = vpack.c.b16 %v796, %v791
  %v1027 = vpack.c.b16 %v797, %v792
  %v1028 = vpack.c.b16 %v798, %v793
  %v1029 = vpack.c.b16 %v804, %v799
  %v1030 = vpack.c.b16 %v805, %v800
  %v1031 = vpack.c.b16 %v806, %v801
  %v1032 = vpack.c.b16 %v807, %v802
  %v1033 = vpack.c.b16 %v808, %v803
  %v1034 = vpack.c.b16 %v814, %v809
  %v1035 = vpack.c.b16 %v815, %v810
  %v1036 = vpack.c.b16 %v816, %v811
  %v1037 = vpack.c.b16 %v817, %v812
  %v1038 = vpack.c.b16 %v818, %v813
  %v1039 = vpack.c.b16 %v824, %v819
  %v1040 = vpack.c.b16 %v825, %v820
  %v1041 = vpack.c.b16 %v826, %v821
  %v1042 = vpack.c.b16 %v827, %v822
  %v1043 = vpack.c.b16 %v828, %v823
  %v1044 = vpack.c.b16 %v834, %v829
  %v1045 = vpack.c.b16 %v835, %v830
  %v1046 = vpack.c.b16 %v836, %v831
  %v1047 = vpack.c.b16 %v837, %v832
  %v1048 = vpack.c.b16 %v838, %v833
  %v1049 = vpack.c.b16 %v844, %v839
  %v1050 = vpack.c.b16 %v845, %v840
  %v1051 = vpack.c.b16 %v846, %v841
  %v1052 = vpack.c.b16 %v847, %v842
  %v1053 = vpack.c.b16 %v848, %v843
  %v1054 = vpack.c.b16 %v854, %v849
  %v1055 = vpack.c.b16 %v855, %v850
  %v1056 = vpack.c.b16 %v856, %v851
  %v1057 = vpack.c.b16 %v857, %v852
  %v1058 = vpack.c.b16 %v858, %v853
  %v1059 = vpack.c.b16 %v864, %v859
  %v1060 = vpack.c.b16 %v865, %v860
  %v1061 = vpack.c.b16 %v866, %v861
  %v1062 = vpack.c.b16 %v867, %v862
  %v1063 = vpack.c.b16 %v868, %v863
  %v1064 = vpack.c.b16 %v874, %v869
  %v1065 = vpack.c.b16 %v875, %v870
  %v1066 = vpack.c.b16 %v876, %v871
  %v1067 = vpack.c.b16 %v877, %v872
  %v1068 = vpack.c.b16 %v878, %v873
  %v1069 = vpack.c.b16 %v884, %v879
  %v1070 = vpack.c.b16 %v885, %v880
  %v1071 = vpack.c.b16 %v886, %v881
  %v1072 = vpack.c.b16 %v887, %v882
  %v1073 = vpack.c.b16 %v888, %v883
  %v1074 = vpack.c.b16 %v889, %v889
  %v1075 = vpack.c.b16 %v890, %v890
  %v1076 = vpack.c.b16 %v891, %v891
  %v1077 = vpack.c.b16 %v892, %v892
  %v1078 = vpack.c.b16 %v893, %v893
  %v1299 = vunpack.c.l.b16 %v234
  %v1300 = vunpack.c.l.b16 %v235
  %v1301 = vunpack.c.l.b16 %v236
  %v1302 = vunpack.c.l.b16 %v237
  %v1303 = vunpack.c.l.b16 %v238
  %v1304 = vunpack.c.l.b16 %v239
  %v1305 = vunpack.c.l.b16 %v240
  %v1306 = vunpack.c.l.b16 %v241
  %v1307 = vunpack.c.l.b16 %v242
  %v1308 = vunpack.c.l.b16 %v243
  %v1309 = vunpack.c.l.b16 %v244
  %v1310 = vunpack.c.l.b16 %v245
  %v1311 = vunpack.c.l.b16 %v246
  %v1312 = vunpack.c.l.b16 %v247
  %v1313 = vunpack.c.l.b16 %v248
  %v1314 = vunpack.c.l.b16 %v249
  %v1315 = vunpack.c.l.b16 %v250
  %v1316 = vunpack.c.l.b16 %v251
  %v1317 = vunpack.c.l.b16 %v252
  %v1318 = vunpack.c.l.b16 %v253
  %v1319 = vunpack.c.l.b16 %v254
  %v1320 = vunpack.c.l.b16 %v255
  %v1321 = vunpack.c.l.b16 %v256
  %v1322 = vunpack.c.l.b16 %v257
  %v1323 = vunpack.c.l.b16 %v258
  %v1324 = vunpack.c.l.b16 %v259
  %v1325 = vunpack.c.l.b16 %v260
  %v1326 = vunpack.c.l.b16 %v261
  %v1327 = vunpack.c.l.b16 %v262
  %v1328 = vunpack.c.l.b16 %v263
  %v1329 = vunpack.c.l.b16 %v264
  %v1330 = vunpack.c.l.b16 %v265
  %v1331 = vunpack.c.l.b16 %v266
  %v1332 = vunpack.c.l.b16 %v267
  %v1333 = vunpack.c.l.b16 %v268
  %v1334 = vunpack.c.l.b16 %v269
  %v1335 = vunpack.c.l.b16 %v270
  %v1336 = vunpack.c.l.b16 %v271
  %v1337 = vunpack.c.l.b16 %v272
  %v1338 = vunpack.c.l.b16 %v273
  %v1339 = vunpack.c.l.b16 %v274
  %v1340 = vunpack.c.l.b16 %v275
  %v1341 = vunpack.c.l.b16 %v276
  %v1342 = vunpack.c.l.b16 %v277
  %v1343 = vunpack.c.l.b16 %v278
  %v1344 = vunpack.c.l.b16 %v279
  %v1345 = vunpack.c.l.b16 %v280
  %v1346 = vunpack.c.l.b16 %v281
  %v1347 = vunpack.c.l.b16 %v282
  %v1348 = vunpack.c.l.b16 %v283
  %v1349 = vunpack.c.l.b16 %v284
  %v1350 = vunpack.c.l.b16 %v285
  %v1351 = vunpack.c.l.b16 %v286
  %v1352 = vunpack.c.l.b16 %v287
  %v1353 = vunpack.c.l.b16 %v288
  %v1354 = vunpack.c.l.b16 %v289
  %v1355 = vunpack.c.l.b16 %v290
  %v1356 = vunpack.c.l.b16 %v291
  %v1357 = vunpack.c.l.b16 %v292
  %v1358 = vunpack.c.l.b16 %v293
  %v1359 = vunpack.c.l.b16 %v294
  %v1360 = vunpack.c.l.b16 %v295
  %v1361 = vunpack.c.l.b16 %v296
  %v1362 = vunpack.c.l.b16 %v297
  %v1363 = vunpack.c.l.b16 %v298
  %v1364 = vunpack.c.l.b16 %v299
  %v1365 = vunpack.c.l.b16 %v300
  %v1366 = vunpack.c.l.b16 %v301
  %v1367 = vunpack.c.l.b16 %v302
  %v1368 = vunpack.c.l.b16 %v303
  %v1369 = vunpack.c.l.b16 %v304
  %v1370 = vunpack.c.l.b16 %v305
  %v1371 = vpack.c.b16 %v1300, %v1299
  %v1372 = vpack.c.b16 %v1302, %v1301
  %v1373 = vpack.c.b16 %v1304, %v1303
  %v1374 = vpack.c.b16 %v1306, %v1305
  %v1375 = vpack.c.b16 %v1308, %v1307
  %v1376 = vpack.c.b16 %v1310, %v1309
  %v1377 = vpack.c.b16 %v1312, %v1311
  %v1378 = vpack.c.b16 %v1314, %v1313
  %v1379 = vpack.c.b16 %v1316, %v1315
  %v1380 = vpack.c.b16 %v1318, %v1317
  %v1381 = vpack.c.b16 %v1320, %v1319
  %v1382 = vpack.c.b16 %v1322, %v1321
  %v1383 = vpack.c.b16 %v1324, %v1323
  %v1384 = vpack.c.b16 %v1326, %v1325
  %v1385 = vpack.c.b16 %v1328, %v1327
  %v1386 = vpack.c.b16 %v1330, %v1329
  %v1387 = vpack.c.b16 %v1332, %v1331
  %v1388 = vpack.c.b16 %v1334, %v1333
  %v1389 = vpack.c.b16 %v1336, %v1335
  %v1390 = vpack.c.b16 %v1338, %v1337
  %v1391 = vpack.c.b16 %v1340, %v1339
  %v1392 = vpack.c.b16 %v1342, %v1341
  %v1393 = vpack.c.b16 %v1344, %v1343
  %v1394 = vpack.c.b16 %v1346, %v1345
  %v1395 = vpack.c.b16 %v1348, %v1347
  %v1396 = vpack.c.b16 %v1350, %v1349
  %v1397 = vpack.c.b16 %v1352, %v1351
  %v1398 = vpack.c.b16 %v1354, %v1353
  %v1399 = vpack.c.b16 %v1356, %v1355
  %v1400 = vpack.c.b16 %v1358, %v1357
  %v1401 = vpack.c.b16 %v1360, %v1359
  %v1402 = vpack.c.b16 %v1362, %v1361
  %v1403 = vpack.c.b16 %v1364, %v1363
  %v1404 = vpack.c.b16 %v1366, %v1365
  %v1405 = vpack.c.b16 %v1368, %v1367
  %v1406 = vpack.c.b16 %v1370, %v1369
  %vm1443 = vcmask 523264
  %v1445 = vsel %vm1443, %v898, 0
  %v1448 = vsel %vm1443, %v903, 0
  %v1451 = vsel %vm1443, %v908, 0
  %v1454 = vsel %vm1443, %v913, 0
  %v1457 = vsel %vm1443, %v918, 0
  %v1460 = vsel %vm1443, %v923, 0
  %v1463 = vsel %vm1443, %v928, 0
  %v1466 = vsel %vm1443, %v933, 0
  %v1469 = vsel %vm1443, %v938, 0
  %v1472 = vsel %vm1443, %v943, 0
  %v1475 = vsel %vm1443, %v948, 0
  %v1478 = vsel %vm1443, %v953, 0
  %v1481 = vsel %vm1443, %v958, 0
  %v1484 = vsel %vm1443, %v963, 0
  %v1487 = vsel %vm1443, %v968, 0
  %v1490 = vsel %vm1443, %v973, 0
  %v1493 = vsel %vm1443, %v978, 0
  %v1496 = vsel %vm1443, %v983, 0
  %v1499 = vsel %vm1443, %v988, 0
  %v1502 = vsel %vm1443, %v993, 0
  %v1505 = vsel %vm1443, %v998, 0
  %v1508 = vsel %vm1443, %v1003, 0
  %v1511 = vsel %vm1443, %v1008, 0
  %v1514 = vsel %vm1443, %v1013, 0
  %v1517 = vsel %vm1443, %v1018, 0
  %v1520 = vsel %vm1443, %v1023, 0
  %v1523 = vsel %vm1443, %v1028, 0
  %v1526 = vsel %vm1443, %v1033, 0
  %v1529 = vsel %vm1443, %v1038, 0
  %v1532 = vsel %vm1443, %v1043, 0
  %v1535 = vsel %vm1443, %v1048, 0
  %v1538 = vsel %vm1443, %v1053, 0
  %v1541 = vsel %vm1443, %v1058, 0
  %v1544 = vsel %vm1443, %v1063, 0
  %v1547 = vsel %vm1443, %v1068, 0
  %v1550 = vsel %vm1443, %v1073, 0
  %v1553 = vsel %vm1443, %v1078, 0
  %1555 = vmatpush.bf16.msra.mxu0 %v1378
  %1556 = vmatpush.bf16.msra.mxu0 %v1377
  %1557 = vmatpush.bf16.msra.mxu0 %v1376
  %1558 = vmatpush.bf16.msra.mxu0 %v1375
  %1559 = vmatpush.bf16.msra.mxu0 %v1374
  %1560 = vmatpush.bf16.msra.mxu0 %v1373
  %1561 = vmatpush.bf16.msra.mxu0 %v1372
  %1562 = vmatpush.bf16.msra.mxu0 %v1371
  %1563 = vmatmul.bf16.gmra.mxu0 %v894
  %v1564 = vpop.f32.mrf.mxu0
  %v1565 = vadd.f32 %v308, %v1564
  %v1566 = vpop.f32.mrf.mxu0
  %v1567 = vadd.f32 %v308, %v1566
  %1568 = vmatmul.bf16.gmra.mxu0 %v899
  %v1569 = vpop.f32.mrf.mxu0
  %v1570 = vadd.f32 %v308, %v1569
  %v1571 = vpop.f32.mrf.mxu0
  %v1572 = vadd.f32 %v308, %v1571
  %1573 = vmatmul.bf16.gmra.mxu0 %v904
  %v1574 = vpop.f32.mrf.mxu0
  %v1575 = vadd.f32 %v308, %v1574
  %v1576 = vpop.f32.mrf.mxu0
  %v1577 = vadd.f32 %v308, %v1576
  %1578 = vmatmul.bf16.gmra.mxu0 %v909
  %v1579 = vpop.f32.mrf.mxu0
  %v1580 = vadd.f32 %v308, %v1579
  %v1581 = vpop.f32.mrf.mxu0
  %v1582 = vadd.f32 %v308, %v1581
  %1583 = vmatmul.bf16.gmra.mxu0 %v914
  %v1584 = vpop.f32.mrf.mxu0
  %v1585 = vadd.f32 %v308, %v1584
  %v1586 = vpop.f32.mrf.mxu0
  %v1587 = vadd.f32 %v308, %v1586
  %1588 = vmatmul.bf16.gmra.mxu0 %v919
  %v1589 = vpop.f32.mrf.mxu0
  %v1590 = vadd.f32 %v308, %v1589
  %v1591 = vpop.f32.mrf.mxu0
  %v1592 = vadd.f32 %v308, %v1591
  %1593 = vmatmul.bf16.gmra.mxu0 %v924
  %v1594 = vpop.f32.mrf.mxu0
  %v1595 = vadd.f32 %v308, %v1594
  %v1596 = vpop.f32.mrf.mxu0
  %v1597 = vadd.f32 %v308, %v1596
  %1598 = vmatmul.bf16.gmra.mxu0 %v929
  %v1599 = vpop.f32.mrf.mxu0
  %v1600 = vadd.f32 %v308, %v1599
  %v1601 = vpop.f32.mrf.mxu0
  %v1602 = vadd.f32 %v308, %v1601
  %1603 = vmatmul.bf16.gmra.mxu0 %v934
  %v1604 = vpop.f32.mrf.mxu0
  %v1605 = vadd.f32 %v308, %v1604
  %v1606 = vpop.f32.mrf.mxu0
  %v1607 = vadd.f32 %v308, %v1606
  %1608 = vmatmul.bf16.gmra.mxu0 %v939
  %v1609 = vpop.f32.mrf.mxu0
  %v1610 = vadd.f32 %v308, %v1609
  %v1611 = vpop.f32.mrf.mxu0
  %v1612 = vadd.f32 %v308, %v1611
  %1613 = vmatmul.bf16.gmra.mxu0 %v944
  %v1614 = vpop.f32.mrf.mxu0
  %v1615 = vadd.f32 %v308, %v1614
  %v1616 = vpop.f32.mrf.mxu0
  %v1617 = vadd.f32 %v308, %v1616
  %1618 = vmatmul.bf16.gmra.mxu0 %v949
  %v1619 = vpop.f32.mrf.mxu0
  %v1620 = vadd.f32 %v308, %v1619
  %v1621 = vpop.f32.mrf.mxu0
  %v1622 = vadd.f32 %v308, %v1621
  %1623 = vmatmul.bf16.gmra.mxu0 %v954
  %v1624 = vpop.f32.mrf.mxu0
  %v1625 = vadd.f32 %v308, %v1624
  %v1626 = vpop.f32.mrf.mxu0
  %v1627 = vadd.f32 %v308, %v1626
  %1628 = vmatmul.bf16.gmra.mxu0 %v959
  %v1629 = vpop.f32.mrf.mxu0
  %v1630 = vadd.f32 %v308, %v1629
  %v1631 = vpop.f32.mrf.mxu0
  %v1632 = vadd.f32 %v308, %v1631
  %1633 = vmatmul.bf16.gmra.mxu0 %v964
  %v1634 = vpop.f32.mrf.mxu0
  %v1635 = vadd.f32 %v308, %v1634
  %v1636 = vpop.f32.mrf.mxu0
  %v1637 = vadd.f32 %v308, %v1636
  %1638 = vmatmul.bf16.gmra.mxu0 %v969
  %v1639 = vpop.f32.mrf.mxu0
  %v1640 = vadd.f32 %v308, %v1639
  %v1641 = vpop.f32.mrf.mxu0
  %v1642 = vadd.f32 %v308, %v1641
  %1643 = vmatmul.bf16.gmra.mxu0 %v974
  %v1644 = vpop.f32.mrf.mxu0
  %v1645 = vadd.f32 %v308, %v1644
  %v1646 = vpop.f32.mrf.mxu0
  %v1647 = vadd.f32 %v308, %v1646
  %1648 = vmatmul.bf16.gmra.mxu0 %v979
  %v1649 = vpop.f32.mrf.mxu0
  %v1650 = vadd.f32 %v308, %v1649
  %v1651 = vpop.f32.mrf.mxu0
  %v1652 = vadd.f32 %v308, %v1651
  %1653 = vmatmul.bf16.gmra.mxu0 %v984
  %v1654 = vpop.f32.mrf.mxu0
  %v1655 = vadd.f32 %v308, %v1654
  %v1656 = vpop.f32.mrf.mxu0
  %v1657 = vadd.f32 %v308, %v1656
  %1658 = vmatmul.bf16.gmra.mxu0 %v989
  %v1659 = vpop.f32.mrf.mxu0
  %v1660 = vadd.f32 %v308, %v1659
  %v1661 = vpop.f32.mrf.mxu0
  %v1662 = vadd.f32 %v308, %v1661
  %1663 = vmatmul.bf16.gmra.mxu0 %v994
  %v1664 = vpop.f32.mrf.mxu0
  %v1665 = vadd.f32 %v308, %v1664
  %v1666 = vpop.f32.mrf.mxu0
  %v1667 = vadd.f32 %v308, %v1666
  %1668 = vmatmul.bf16.gmra.mxu0 %v999
  %v1669 = vpop.f32.mrf.mxu0
  %v1670 = vadd.f32 %v308, %v1669
  %v1671 = vpop.f32.mrf.mxu0
  %v1672 = vadd.f32 %v308, %v1671
  %1673 = vmatmul.bf16.gmra.mxu0 %v1004
  %v1674 = vpop.f32.mrf.mxu0
  %v1675 = vadd.f32 %v308, %v1674
  %v1676 = vpop.f32.mrf.mxu0
  %v1677 = vadd.f32 %v308, %v1676
  %1678 = vmatmul.bf16.gmra.mxu0 %v1009
  %v1679 = vpop.f32.mrf.mxu0
  %v1680 = vadd.f32 %v308, %v1679
  %v1681 = vpop.f32.mrf.mxu0
  %v1682 = vadd.f32 %v308, %v1681
  %1683 = vmatmul.bf16.gmra.mxu0 %v1014
  %v1684 = vpop.f32.mrf.mxu0
  %v1685 = vadd.f32 %v308, %v1684
  %v1686 = vpop.f32.mrf.mxu0
  %v1687 = vadd.f32 %v308, %v1686
  %1688 = vmatmul.bf16.gmra.mxu0 %v1019
  %v1689 = vpop.f32.mrf.mxu0
  %v1690 = vadd.f32 %v308, %v1689
  %v1691 = vpop.f32.mrf.mxu0
  %v1692 = vadd.f32 %v308, %v1691
  %1693 = vmatmul.bf16.gmra.mxu0 %v1024
  %v1694 = vpop.f32.mrf.mxu0
  %v1695 = vadd.f32 %v308, %v1694
  %v1696 = vpop.f32.mrf.mxu0
  %v1697 = vadd.f32 %v308, %v1696
  %1698 = vmatmul.bf16.gmra.mxu0 %v1029
  %v1699 = vpop.f32.mrf.mxu0
  %v1700 = vadd.f32 %v308, %v1699
  %v1701 = vpop.f32.mrf.mxu0
  %v1702 = vadd.f32 %v308, %v1701
  %1703 = vmatmul.bf16.gmra.mxu0 %v1034
  %v1704 = vpop.f32.mrf.mxu0
  %v1705 = vadd.f32 %v308, %v1704
  %v1706 = vpop.f32.mrf.mxu0
  %v1707 = vadd.f32 %v308, %v1706
  %1708 = vmatmul.bf16.gmra.mxu0 %v1039
  %v1709 = vpop.f32.mrf.mxu0
  %v1710 = vadd.f32 %v308, %v1709
  %v1711 = vpop.f32.mrf.mxu0
  %v1712 = vadd.f32 %v308, %v1711
  %1713 = vmatmul.bf16.gmra.mxu0 %v1044
  %v1714 = vpop.f32.mrf.mxu0
  %v1715 = vadd.f32 %v308, %v1714
  %v1716 = vpop.f32.mrf.mxu0
  %v1717 = vadd.f32 %v308, %v1716
  %1718 = vmatmul.bf16.gmra.mxu0 %v1049
  %v1719 = vpop.f32.mrf.mxu0
  %v1720 = vadd.f32 %v308, %v1719
  %v1721 = vpop.f32.mrf.mxu0
  %v1722 = vadd.f32 %v308, %v1721
  %1723 = vmatmul.bf16.gmra.mxu0 %v1054
  %v1724 = vpop.f32.mrf.mxu0
  %v1725 = vadd.f32 %v308, %v1724
  %v1726 = vpop.f32.mrf.mxu0
  %v1727 = vadd.f32 %v308, %v1726
  %1728 = vmatmul.bf16.gmra.mxu0 %v1059
  %v1729 = vpop.f32.mrf.mxu0
  %v1730 = vadd.f32 %v308, %v1729
  %v1731 = vpop.f32.mrf.mxu0
  %v1732 = vadd.f32 %v308, %v1731
  %1733 = vmatmul.bf16.gmra.mxu0 %v1064
  %v1734 = vpop.f32.mrf.mxu0
  %v1735 = vadd.f32 %v308, %v1734
  %v1736 = vpop.f32.mrf.mxu0
  %v1737 = vadd.f32 %v308, %v1736
  %1738 = vmatmul.bf16.gmra.mxu0 %v1069
  %v1739 = vpop.f32.mrf.mxu0
  %v1740 = vadd.f32 %v308, %v1739
  %v1741 = vpop.f32.mrf.mxu0
  %v1742 = vadd.f32 %v308, %v1741
  %1743 = vmatmul.bf16.gmra.mxu0 %v1074
  %v1744 = vpop.f32.mrf.mxu0
  %v1745 = vadd.f32 %v308, %v1744
  %v1746 = vpop.f32.mrf.mxu0
  %1747 = vdwg.mxu0
  %1748 = vmatpush.bf16.msra.mxu0 %v1386
  %1749 = vmatpush.bf16.msra.mxu0 %v1385
  %1750 = vmatpush.bf16.msra.mxu0 %v1384
  %1751 = vmatpush.bf16.msra.mxu0 %v1383
  %1752 = vmatpush.bf16.msra.mxu0 %v1382
  %1753 = vmatpush.bf16.msra.mxu0 %v1381
  %1754 = vmatpush.bf16.msra.mxu0 %v1380
  %1755 = vmatpush.bf16.msra.mxu0 %v1379
  %1756 = vmatmul.bf16.gmra.mxu0 %v895
  %v1757 = vpop.f32.mrf.mxu0
  %v1758 = vadd.f32 %v1565, %v1757
  %v1759 = vpop.f32.mrf.mxu0
  %v1760 = vadd.f32 %v1567, %v1759
  %1761 = vmatmul.bf16.gmra.mxu0 %v900
  %v1762 = vpop.f32.mrf.mxu0
  %v1763 = vadd.f32 %v1570, %v1762
  %v1764 = vpop.f32.mrf.mxu0
  %v1765 = vadd.f32 %v1572, %v1764
  %1766 = vmatmul.bf16.gmra.mxu0 %v905
  %v1767 = vpop.f32.mrf.mxu0
  %v1768 = vadd.f32 %v1575, %v1767
  %v1769 = vpop.f32.mrf.mxu0
  %v1770 = vadd.f32 %v1577, %v1769
  %1771 = vmatmul.bf16.gmra.mxu0 %v910
  %v1772 = vpop.f32.mrf.mxu0
  %v1773 = vadd.f32 %v1580, %v1772
  %v1774 = vpop.f32.mrf.mxu0
  %v1775 = vadd.f32 %v1582, %v1774
  %1776 = vmatmul.bf16.gmra.mxu0 %v915
  %v1777 = vpop.f32.mrf.mxu0
  %v1778 = vadd.f32 %v1585, %v1777
  %v1779 = vpop.f32.mrf.mxu0
  %v1780 = vadd.f32 %v1587, %v1779
  %1781 = vmatmul.bf16.gmra.mxu0 %v920
  %v1782 = vpop.f32.mrf.mxu0
  %v1783 = vadd.f32 %v1590, %v1782
  %v1784 = vpop.f32.mrf.mxu0
  %v1785 = vadd.f32 %v1592, %v1784
  %1786 = vmatmul.bf16.gmra.mxu0 %v925
  %v1787 = vpop.f32.mrf.mxu0
  %v1788 = vadd.f32 %v1595, %v1787
  %v1789 = vpop.f32.mrf.mxu0
  %v1790 = vadd.f32 %v1597, %v1789
  %1791 = vmatmul.bf16.gmra.mxu0 %v930
  %v1792 = vpop.f32.mrf.mxu0
  %v1793 = vadd.f32 %v1600, %v1792
  %v1794 = vpop.f32.mrf.mxu0
  %v1795 = vadd.f32 %v1602, %v1794
  %1796 = vmatmul.bf16.gmra.mxu0 %v935
  %v1797 = vpop.f32.mrf.mxu0
  %v1798 = vadd.f32 %v1605, %v1797
  %v1799 = vpop.f32.mrf.mxu0
  %v1800 = vadd.f32 %v1607, %v1799
  %1801 = vmatmul.bf16.gmra.mxu0 %v940
  %v1802 = vpop.f32.mrf.mxu0
  %v1803 = vadd.f32 %v1610, %v1802
  %v1804 = vpop.f32.mrf.mxu0
  %v1805 = vadd.f32 %v1612, %v1804
  %1806 = vmatmul.bf16.gmra.mxu0 %v945
  %v1807 = vpop.f32.mrf.mxu0
  %v1808 = vadd.f32 %v1615, %v1807
  %v1809 = vpop.f32.mrf.mxu0
  %v1810 = vadd.f32 %v1617, %v1809
  %1811 = vmatmul.bf16.gmra.mxu0 %v950
  %v1812 = vpop.f32.mrf.mxu0
  %v1813 = vadd.f32 %v1620, %v1812
  %v1814 = vpop.f32.mrf.mxu0
  %v1815 = vadd.f32 %v1622, %v1814
  %1816 = vmatmul.bf16.gmra.mxu0 %v955
  %v1817 = vpop.f32.mrf.mxu0
  %v1818 = vadd.f32 %v1625, %v1817
  %v1819 = vpop.f32.mrf.mxu0
  %v1820 = vadd.f32 %v1627, %v1819
  %1821 = vmatmul.bf16.gmra.mxu0 %v960
  %v1822 = vpop.f32.mrf.mxu0
  %v1823 = vadd.f32 %v1630, %v1822
  %v1824 = vpop.f32.mrf.mxu0
  %v1825 = vadd.f32 %v1632, %v1824
  %1826 = vmatmul.bf16.gmra.mxu0 %v965
  %v1827 = vpop.f32.mrf.mxu0
  %v1828 = vadd.f32 %v1635, %v1827
  %v1829 = vpop.f32.mrf.mxu0
  %v1830 = vadd.f32 %v1637, %v1829
  %1831 = vmatmul.bf16.gmra.mxu0 %v970
  %v1832 = vpop.f32.mrf.mxu0
  %v1833 = vadd.f32 %v1640, %v1832
  %v1834 = vpop.f32.mrf.mxu0
  %v1835 = vadd.f32 %v1642, %v1834
  %1836 = vmatmul.bf16.gmra.mxu0 %v975
  %v1837 = vpop.f32.mrf.mxu0
  %v1838 = vadd.f32 %v1645, %v1837
  %v1839 = vpop.f32.mrf.mxu0
  %v1840 = vadd.f32 %v1647, %v1839
  %1841 = vmatmul.bf16.gmra.mxu0 %v980
  %v1842 = vpop.f32.mrf.mxu0
  %v1843 = vadd.f32 %v1650, %v1842
  %v1844 = vpop.f32.mrf.mxu0
  %v1845 = vadd.f32 %v1652, %v1844
  %1846 = vmatmul.bf16.gmra.mxu0 %v985
  %v1847 = vpop.f32.mrf.mxu0
  %v1848 = vadd.f32 %v1655, %v1847
  %v1849 = vpop.f32.mrf.mxu0
  %v1850 = vadd.f32 %v1657, %v1849
  %1851 = vmatmul.bf16.gmra.mxu0 %v990
  %v1852 = vpop.f32.mrf.mxu0
  %v1853 = vadd.f32 %v1660, %v1852
  %v1854 = vpop.f32.mrf.mxu0
  %v1855 = vadd.f32 %v1662, %v1854
  %1856 = vmatmul.bf16.gmra.mxu0 %v995
  %v1857 = vpop.f32.mrf.mxu0
  %v1858 = vadd.f32 %v1665, %v1857
  %v1859 = vpop.f32.mrf.mxu0
  %v1860 = vadd.f32 %v1667, %v1859
  %1861 = vmatmul.bf16.gmra.mxu0 %v1000
  %v1862 = vpop.f32.mrf.mxu0
  %v1863 = vadd.f32 %v1670, %v1862
  %v1864 = vpop.f32.mrf.mxu0
  %v1865 = vadd.f32 %v1672, %v1864
  %1866 = vmatmul.bf16.gmra.mxu0 %v1005
  %v1867 = vpop.f32.mrf.mxu0
  %v1868 = vadd.f32 %v1675, %v1867
  %v1869 = vpop.f32.mrf.mxu0
  %v1870 = vadd.f32 %v1677, %v1869
  %1871 = vmatmul.bf16.gmra.mxu0 %v1010
  %v1872 = vpop.f32.mrf.mxu0
  %v1873 = vadd.f32 %v1680, %v1872
  %v1874 = vpop.f32.mrf.mxu0
  %v1875 = vadd.f32 %v1682, %v1874
  %1876 = vmatmul.bf16.gmra.mxu0 %v1015
  %v1877 = vpop.f32.mrf.mxu0
  %v1878 = vadd.f32 %v1685, %v1877
  %v1879 = vpop.f32.mrf.mxu0
  %v1880 = vadd.f32 %v1687, %v1879
  %1881 = vmatmul.bf16.gmra.mxu0 %v1020
  %v1882 = vpop.f32.mrf.mxu0
  %v1883 = vadd.f32 %v1690, %v1882
  %v1884 = vpop.f32.mrf.mxu0
  %v1885 = vadd.f32 %v1692, %v1884
  %1886 = vmatmul.bf16.gmra.mxu0 %v1025
  %v1887 = vpop.f32.mrf.mxu0
  %v1888 = vadd.f32 %v1695, %v1887
  %v1889 = vpop.f32.mrf.mxu0
  %v1890 = vadd.f32 %v1697, %v1889
  %1891 = vmatmul.bf16.gmra.mxu0 %v1030
  %v1892 = vpop.f32.mrf.mxu0
  %v1893 = vadd.f32 %v1700, %v1892
  %v1894 = vpop.f32.mrf.mxu0
  %v1895 = vadd.f32 %v1702, %v1894
  %1896 = vmatmul.bf16.gmra.mxu0 %v1035
  %v1897 = vpop.f32.mrf.mxu0
  %v1898 = vadd.f32 %v1705, %v1897
  %v1899 = vpop.f32.mrf.mxu0
  %v1900 = vadd.f32 %v1707, %v1899
  %1901 = vmatmul.bf16.gmra.mxu0 %v1040
  %v1902 = vpop.f32.mrf.mxu0
  %v1903 = vadd.f32 %v1710, %v1902
  %v1904 = vpop.f32.mrf.mxu0
  %v1905 = vadd.f32 %v1712, %v1904
  %1906 = vmatmul.bf16.gmra.mxu0 %v1045
  %v1907 = vpop.f32.mrf.mxu0
  %v1908 = vadd.f32 %v1715, %v1907
  %v1909 = vpop.f32.mrf.mxu0
  %v1910 = vadd.f32 %v1717, %v1909
  %1911 = vmatmul.bf16.gmra.mxu0 %v1050
  %v1912 = vpop.f32.mrf.mxu0
  %v1913 = vadd.f32 %v1720, %v1912
  %v1914 = vpop.f32.mrf.mxu0
  %v1915 = vadd.f32 %v1722, %v1914
  %1916 = vmatmul.bf16.gmra.mxu0 %v1055
  %v1917 = vpop.f32.mrf.mxu0
  %v1918 = vadd.f32 %v1725, %v1917
  %v1919 = vpop.f32.mrf.mxu0
  %v1920 = vadd.f32 %v1727, %v1919
  %1921 = vmatmul.bf16.gmra.mxu0 %v1060
  %v1922 = vpop.f32.mrf.mxu0
  %v1923 = vadd.f32 %v1730, %v1922
  %v1924 = vpop.f32.mrf.mxu0
  %v1925 = vadd.f32 %v1732, %v1924
  %1926 = vmatmul.bf16.gmra.mxu0 %v1065
  %v1927 = vpop.f32.mrf.mxu0
  %v1928 = vadd.f32 %v1735, %v1927
  %v1929 = vpop.f32.mrf.mxu0
  %v1930 = vadd.f32 %v1737, %v1929
  %1931 = vmatmul.bf16.gmra.mxu0 %v1070
  %v1932 = vpop.f32.mrf.mxu0
  %v1933 = vadd.f32 %v1740, %v1932
  %v1934 = vpop.f32.mrf.mxu0
  %v1935 = vadd.f32 %v1742, %v1934
  %1936 = vmatmul.bf16.gmra.mxu0 %v1075
  %v1937 = vpop.f32.mrf.mxu0
  %v1938 = vadd.f32 %v1745, %v1937
  %v1939 = vpop.f32.mrf.mxu0
  %1940 = vdwg.mxu0
  %1941 = vmatpush.bf16.msra.mxu0 %v1394
  %1942 = vmatpush.bf16.msra.mxu0 %v1393
  %1943 = vmatpush.bf16.msra.mxu0 %v1392
  %1944 = vmatpush.bf16.msra.mxu0 %v1391
  %1945 = vmatpush.bf16.msra.mxu0 %v1390
  %1946 = vmatpush.bf16.msra.mxu0 %v1389
  %1947 = vmatpush.bf16.msra.mxu0 %v1388
  %1948 = vmatpush.bf16.msra.mxu0 %v1387
  %1949 = vmatmul.bf16.gmra.mxu0 %v896
  %v1950 = vpop.f32.mrf.mxu0
  %v1951 = vadd.f32 %v1758, %v1950
  %v1952 = vpop.f32.mrf.mxu0
  %v1953 = vadd.f32 %v1760, %v1952
  %1954 = vmatmul.bf16.gmra.mxu0 %v901
  %v1955 = vpop.f32.mrf.mxu0
  %v1956 = vadd.f32 %v1763, %v1955
  %v1957 = vpop.f32.mrf.mxu0
  %v1958 = vadd.f32 %v1765, %v1957
  %1959 = vmatmul.bf16.gmra.mxu0 %v906
  %v1960 = vpop.f32.mrf.mxu0
  %v1961 = vadd.f32 %v1768, %v1960
  %v1962 = vpop.f32.mrf.mxu0
  %v1963 = vadd.f32 %v1770, %v1962
  %1964 = vmatmul.bf16.gmra.mxu0 %v911
  %v1965 = vpop.f32.mrf.mxu0
  %v1966 = vadd.f32 %v1773, %v1965
  %v1967 = vpop.f32.mrf.mxu0
  %v1968 = vadd.f32 %v1775, %v1967
  %1969 = vmatmul.bf16.gmra.mxu0 %v916
  %v1970 = vpop.f32.mrf.mxu0
  %v1971 = vadd.f32 %v1778, %v1970
  %v1972 = vpop.f32.mrf.mxu0
  %v1973 = vadd.f32 %v1780, %v1972
  %1974 = vmatmul.bf16.gmra.mxu0 %v921
  %v1975 = vpop.f32.mrf.mxu0
  %v1976 = vadd.f32 %v1783, %v1975
  %v1977 = vpop.f32.mrf.mxu0
  %v1978 = vadd.f32 %v1785, %v1977
  %1979 = vmatmul.bf16.gmra.mxu0 %v926
  %v1980 = vpop.f32.mrf.mxu0
  %v1981 = vadd.f32 %v1788, %v1980
  %v1982 = vpop.f32.mrf.mxu0
  %v1983 = vadd.f32 %v1790, %v1982
  %1984 = vmatmul.bf16.gmra.mxu0 %v931
  %v1985 = vpop.f32.mrf.mxu0
  %v1986 = vadd.f32 %v1793, %v1985
  %v1987 = vpop.f32.mrf.mxu0
  %v1988 = vadd.f32 %v1795, %v1987
  %1989 = vmatmul.bf16.gmra.mxu0 %v936
  %v1990 = vpop.f32.mrf.mxu0
  %v1991 = vadd.f32 %v1798, %v1990
  %v1992 = vpop.f32.mrf.mxu0
  %v1993 = vadd.f32 %v1800, %v1992
  %1994 = vmatmul.bf16.gmra.mxu0 %v941
  %v1995 = vpop.f32.mrf.mxu0
  %v1996 = vadd.f32 %v1803, %v1995
  %v1997 = vpop.f32.mrf.mxu0
  %v1998 = vadd.f32 %v1805, %v1997
  %1999 = vmatmul.bf16.gmra.mxu0 %v946
  %v2000 = vpop.f32.mrf.mxu0
  %v2001 = vadd.f32 %v1808, %v2000
  %v2002 = vpop.f32.mrf.mxu0
  %v2003 = vadd.f32 %v1810, %v2002
  %2004 = vmatmul.bf16.gmra.mxu0 %v951
  %v2005 = vpop.f32.mrf.mxu0
  %v2006 = vadd.f32 %v1813, %v2005
  %v2007 = vpop.f32.mrf.mxu0
  %v2008 = vadd.f32 %v1815, %v2007
  %2009 = vmatmul.bf16.gmra.mxu0 %v956
  %v2010 = vpop.f32.mrf.mxu0
  %v2011 = vadd.f32 %v1818, %v2010
  %v2012 = vpop.f32.mrf.mxu0
  %v2013 = vadd.f32 %v1820, %v2012
  %2014 = vmatmul.bf16.gmra.mxu0 %v961
  %v2015 = vpop.f32.mrf.mxu0
  %v2016 = vadd.f32 %v1823, %v2015
  %v2017 = vpop.f32.mrf.mxu0
  %v2018 = vadd.f32 %v1825, %v2017
  %2019 = vmatmul.bf16.gmra.mxu0 %v966
  %v2020 = vpop.f32.mrf.mxu0
  %v2021 = vadd.f32 %v1828, %v2020
  %v2022 = vpop.f32.mrf.mxu0
  %v2023 = vadd.f32 %v1830, %v2022
  %2024 = vmatmul.bf16.gmra.mxu0 %v971
  %v2025 = vpop.f32.mrf.mxu0
  %v2026 = vadd.f32 %v1833, %v2025
  %v2027 = vpop.f32.mrf.mxu0
  %v2028 = vadd.f32 %v1835, %v2027
  %2029 = vmatmul.bf16.gmra.mxu0 %v976
  %v2030 = vpop.f32.mrf.mxu0
  %v2031 = vadd.f32 %v1838, %v2030
  %v2032 = vpop.f32.mrf.mxu0
  %v2033 = vadd.f32 %v1840, %v2032
  %2034 = vmatmul.bf16.gmra.mxu0 %v981
  %v2035 = vpop.f32.mrf.mxu0
  %v2036 = vadd.f32 %v1843, %v2035
  %v2037 = vpop.f32.mrf.mxu0
  %v2038 = vadd.f32 %v1845, %v2037
  %2039 = vmatmul.bf16.gmra.mxu0 %v986
  %v2040 = vpop.f32.mrf.mxu0
  %v2041 = vadd.f32 %v1848, %v2040
  %v2042 = vpop.f32.mrf.mxu0
  %v2043 = vadd.f32 %v1850, %v2042
  %2044 = vmatmul.bf16.gmra.mxu0 %v991
  %v2045 = vpop.f32.mrf.mxu0
  %v2046 = vadd.f32 %v1853, %v2045
  %v2047 = vpop.f32.mrf.mxu0
  %v2048 = vadd.f32 %v1855, %v2047
  %2049 = vmatmul.bf16.gmra.mxu0 %v996
  %v2050 = vpop.f32.mrf.mxu0
  %v2051 = vadd.f32 %v1858, %v2050
  %v2052 = vpop.f32.mrf.mxu0
  %v2053 = vadd.f32 %v1860, %v2052
  %2054 = vmatmul.bf16.gmra.mxu0 %v1001
  %v2055 = vpop.f32.mrf.mxu0
  %v2056 = vadd.f32 %v1863, %v2055
  %v2057 = vpop.f32.mrf.mxu0
  %v2058 = vadd.f32 %v1865, %v2057
  %2059 = vmatmul.bf16.gmra.mxu0 %v1006
  %v2060 = vpop.f32.mrf.mxu0
  %v2061 = vadd.f32 %v1868, %v2060
  %v2062 = vpop.f32.mrf.mxu0
  %v2063 = vadd.f32 %v1870, %v2062
  %2064 = vmatmul.bf16.gmra.mxu0 %v1011
  %v2065 = vpop.f32.mrf.mxu0
  %v2066 = vadd.f32 %v1873, %v2065
  %v2067 = vpop.f32.mrf.mxu0
  %v2068 = vadd.f32 %v1875, %v2067
  %2069 = vmatmul.bf16.gmra.mxu0 %v1016
  %v2070 = vpop.f32.mrf.mxu0
  %v2071 = vadd.f32 %v1878, %v2070
  %v2072 = vpop.f32.mrf.mxu0
  %v2073 = vadd.f32 %v1880, %v2072
  %2074 = vmatmul.bf16.gmra.mxu0 %v1021
  %v2075 = vpop.f32.mrf.mxu0
  %v2076 = vadd.f32 %v1883, %v2075
  %v2077 = vpop.f32.mrf.mxu0
  %v2078 = vadd.f32 %v1885, %v2077
  %2079 = vmatmul.bf16.gmra.mxu0 %v1026
  %v2080 = vpop.f32.mrf.mxu0
  %v2081 = vadd.f32 %v1888, %v2080
  %v2082 = vpop.f32.mrf.mxu0
  %v2083 = vadd.f32 %v1890, %v2082
  %2084 = vmatmul.bf16.gmra.mxu0 %v1031
  %v2085 = vpop.f32.mrf.mxu0
  %v2086 = vadd.f32 %v1893, %v2085
  %v2087 = vpop.f32.mrf.mxu0
  %v2088 = vadd.f32 %v1895, %v2087
  %2089 = vmatmul.bf16.gmra.mxu0 %v1036
  %v2090 = vpop.f32.mrf.mxu0
  %v2091 = vadd.f32 %v1898, %v2090
  %v2092 = vpop.f32.mrf.mxu0
  %v2093 = vadd.f32 %v1900, %v2092
  %2094 = vmatmul.bf16.gmra.mxu0 %v1041
  %v2095 = vpop.f32.mrf.mxu0
  %v2096 = vadd.f32 %v1903, %v2095
  %v2097 = vpop.f32.mrf.mxu0
  %v2098 = vadd.f32 %v1905, %v2097
  %2099 = vmatmul.bf16.gmra.mxu0 %v1046
  %v2100 = vpop.f32.mrf.mxu0
  %v2101 = vadd.f32 %v1908, %v2100
  %v2102 = vpop.f32.mrf.mxu0
  %v2103 = vadd.f32 %v1910, %v2102
  %2104 = vmatmul.bf16.gmra.mxu0 %v1051
  %v2105 = vpop.f32.mrf.mxu0
  %v2106 = vadd.f32 %v1913, %v2105
  %v2107 = vpop.f32.mrf.mxu0
  %v2108 = vadd.f32 %v1915, %v2107
  %2109 = vmatmul.bf16.gmra.mxu0 %v1056
  %v2110 = vpop.f32.mrf.mxu0
  %v2111 = vadd.f32 %v1918, %v2110
  %v2112 = vpop.f32.mrf.mxu0
  %v2113 = vadd.f32 %v1920, %v2112
  %2114 = vmatmul.bf16.gmra.mxu0 %v1061
  %v2115 = vpop.f32.mrf.mxu0
  %v2116 = vadd.f32 %v1923, %v2115
  %v2117 = vpop.f32.mrf.mxu0
  %v2118 = vadd.f32 %v1925, %v2117
  %2119 = vmatmul.bf16.gmra.mxu0 %v1066
  %v2120 = vpop.f32.mrf.mxu0
  %v2121 = vadd.f32 %v1928, %v2120
  %v2122 = vpop.f32.mrf.mxu0
  %v2123 = vadd.f32 %v1930, %v2122
  %2124 = vmatmul.bf16.gmra.mxu0 %v1071
  %v2125 = vpop.f32.mrf.mxu0
  %v2126 = vadd.f32 %v1933, %v2125
  %v2127 = vpop.f32.mrf.mxu0
  %v2128 = vadd.f32 %v1935, %v2127
  %2129 = vmatmul.bf16.gmra.mxu0 %v1076
  %v2130 = vpop.f32.mrf.mxu0
  %v2131 = vadd.f32 %v1938, %v2130
  %v2132 = vpop.f32.mrf.mxu0
  %2133 = vdwg.mxu0
  %2134 = vmatpush.bf16.msra.mxu0 %v1402
  %2135 = vmatpush.bf16.msra.mxu0 %v1401
  %2136 = vmatpush.bf16.msra.mxu0 %v1400
  %2137 = vmatpush.bf16.msra.mxu0 %v1399
  %2138 = vmatpush.bf16.msra.mxu0 %v1398
  %2139 = vmatpush.bf16.msra.mxu0 %v1397
  %2140 = vmatpush.bf16.msra.mxu0 %v1396
  %2141 = vmatpush.bf16.msra.mxu0 %v1395
  %2142 = vmatmul.bf16.gmra.mxu0 %v897
  %v2143 = vpop.f32.mrf.mxu0
  %v2144 = vadd.f32 %v1951, %v2143
  %v2145 = vpop.f32.mrf.mxu0
  %v2146 = vadd.f32 %v1953, %v2145
  %2147 = vmatmul.bf16.gmra.mxu0 %v902
  %v2148 = vpop.f32.mrf.mxu0
  %v2149 = vadd.f32 %v1956, %v2148
  %v2150 = vpop.f32.mrf.mxu0
  %v2151 = vadd.f32 %v1958, %v2150
  %2152 = vmatmul.bf16.gmra.mxu0 %v907
  %v2153 = vpop.f32.mrf.mxu0
  %v2154 = vadd.f32 %v1961, %v2153
  %v2155 = vpop.f32.mrf.mxu0
  %v2156 = vadd.f32 %v1963, %v2155
  %2157 = vmatmul.bf16.gmra.mxu0 %v912
  %v2158 = vpop.f32.mrf.mxu0
  %v2159 = vadd.f32 %v1966, %v2158
  %v2160 = vpop.f32.mrf.mxu0
  %v2161 = vadd.f32 %v1968, %v2160
  %2162 = vmatmul.bf16.gmra.mxu0 %v917
  %v2163 = vpop.f32.mrf.mxu0
  %v2164 = vadd.f32 %v1971, %v2163
  %v2165 = vpop.f32.mrf.mxu0
  %v2166 = vadd.f32 %v1973, %v2165
  %2167 = vmatmul.bf16.gmra.mxu0 %v922
  %v2168 = vpop.f32.mrf.mxu0
  %v2169 = vadd.f32 %v1976, %v2168
  %v2170 = vpop.f32.mrf.mxu0
  %v2171 = vadd.f32 %v1978, %v2170
  %2172 = vmatmul.bf16.gmra.mxu0 %v927
  %v2173 = vpop.f32.mrf.mxu0
  %v2174 = vadd.f32 %v1981, %v2173
  %v2175 = vpop.f32.mrf.mxu0
  %v2176 = vadd.f32 %v1983, %v2175
  %2177 = vmatmul.bf16.gmra.mxu0 %v932
  %v2178 = vpop.f32.mrf.mxu0
  %v2179 = vadd.f32 %v1986, %v2178
  %v2180 = vpop.f32.mrf.mxu0
  %v2181 = vadd.f32 %v1988, %v2180
  %2182 = vmatmul.bf16.gmra.mxu0 %v937
  %v2183 = vpop.f32.mrf.mxu0
  %v2184 = vadd.f32 %v1991, %v2183
  %v2185 = vpop.f32.mrf.mxu0
  %v2186 = vadd.f32 %v1993, %v2185
  %2187 = vmatmul.bf16.gmra.mxu0 %v942
  %v2188 = vpop.f32.mrf.mxu0
  %v2189 = vadd.f32 %v1996, %v2188
  %v2190 = vpop.f32.mrf.mxu0
  %v2191 = vadd.f32 %v1998, %v2190
  %2192 = vmatmul.bf16.gmra.mxu0 %v947
  %v2193 = vpop.f32.mrf.mxu0
  %v2194 = vadd.f32 %v2001, %v2193
  %v2195 = vpop.f32.mrf.mxu0
  %v2196 = vadd.f32 %v2003, %v2195
  %2197 = vmatmul.bf16.gmra.mxu0 %v952
  %v2198 = vpop.f32.mrf.mxu0
  %v2199 = vadd.f32 %v2006, %v2198
  %v2200 = vpop.f32.mrf.mxu0
  %v2201 = vadd.f32 %v2008, %v2200
  %2202 = vmatmul.bf16.gmra.mxu0 %v957
  %v2203 = vpop.f32.mrf.mxu0
  %v2204 = vadd.f32 %v2011, %v2203
  %v2205 = vpop.f32.mrf.mxu0
  %v2206 = vadd.f32 %v2013, %v2205
  %2207 = vmatmul.bf16.gmra.mxu0 %v962
  %v2208 = vpop.f32.mrf.mxu0
  %v2209 = vadd.f32 %v2016, %v2208
  %v2210 = vpop.f32.mrf.mxu0
  %v2211 = vadd.f32 %v2018, %v2210
  %2212 = vmatmul.bf16.gmra.mxu0 %v967
  %v2213 = vpop.f32.mrf.mxu0
  %v2214 = vadd.f32 %v2021, %v2213
  %v2215 = vpop.f32.mrf.mxu0
  %v2216 = vadd.f32 %v2023, %v2215
  %2217 = vmatmul.bf16.gmra.mxu0 %v972
  %v2218 = vpop.f32.mrf.mxu0
  %v2219 = vadd.f32 %v2026, %v2218
  %v2220 = vpop.f32.mrf.mxu0
  %v2221 = vadd.f32 %v2028, %v2220
  %2222 = vmatmul.bf16.gmra.mxu0 %v977
  %v2223 = vpop.f32.mrf.mxu0
  %v2224 = vadd.f32 %v2031, %v2223
  %v2225 = vpop.f32.mrf.mxu0
  %v2226 = vadd.f32 %v2033, %v2225
  %2227 = vmatmul.bf16.gmra.mxu0 %v982
  %v2228 = vpop.f32.mrf.mxu0
  %v2229 = vadd.f32 %v2036, %v2228
  %v2230 = vpop.f32.mrf.mxu0
  %v2231 = vadd.f32 %v2038, %v2230
  %2232 = vmatmul.bf16.gmra.mxu0 %v987
  %v2233 = vpop.f32.mrf.mxu0
  %v2234 = vadd.f32 %v2041, %v2233
  %v2235 = vpop.f32.mrf.mxu0
  %v2236 = vadd.f32 %v2043, %v2235
  %2237 = vmatmul.bf16.gmra.mxu0 %v992
  %v2238 = vpop.f32.mrf.mxu0
  %v2239 = vadd.f32 %v2046, %v2238
  %v2240 = vpop.f32.mrf.mxu0
  %v2241 = vadd.f32 %v2048, %v2240
  %2242 = vmatmul.bf16.gmra.mxu0 %v997
  %v2243 = vpop.f32.mrf.mxu0
  %v2244 = vadd.f32 %v2051, %v2243
  %v2245 = vpop.f32.mrf.mxu0
  %v2246 = vadd.f32 %v2053, %v2245
  %2247 = vmatmul.bf16.gmra.mxu0 %v1002
  %v2248 = vpop.f32.mrf.mxu0
  %v2249 = vadd.f32 %v2056, %v2248
  %v2250 = vpop.f32.mrf.mxu0
  %v2251 = vadd.f32 %v2058, %v2250
  %2252 = vmatmul.bf16.gmra.mxu0 %v1007
  %v2253 = vpop.f32.mrf.mxu0
  %v2254 = vadd.f32 %v2061, %v2253
  %v2255 = vpop.f32.mrf.mxu0
  %v2256 = vadd.f32 %v2063, %v2255
  %2257 = vmatmul.bf16.gmra.mxu0 %v1012
  %v2258 = vpop.f32.mrf.mxu0
  %v2259 = vadd.f32 %v2066, %v2258
  %v2260 = vpop.f32.mrf.mxu0
  %v2261 = vadd.f32 %v2068, %v2260
  %2262 = vmatmul.bf16.gmra.mxu0 %v1017
  %v2263 = vpop.f32.mrf.mxu0
  %v2264 = vadd.f32 %v2071, %v2263
  %v2265 = vpop.f32.mrf.mxu0
  %v2266 = vadd.f32 %v2073, %v2265
  %2267 = vmatmul.bf16.gmra.mxu0 %v1022
  %v2268 = vpop.f32.mrf.mxu0
  %v2269 = vadd.f32 %v2076, %v2268
  %v2270 = vpop.f32.mrf.mxu0
  %v2271 = vadd.f32 %v2078, %v2270
  %2272 = vmatmul.bf16.gmra.mxu0 %v1027
  %v2273 = vpop.f32.mrf.mxu0
  %v2274 = vadd.f32 %v2081, %v2273
  %v2275 = vpop.f32.mrf.mxu0
  %v2276 = vadd.f32 %v2083, %v2275
  %2277 = vmatmul.bf16.gmra.mxu0 %v1032
  %v2278 = vpop.f32.mrf.mxu0
  %v2279 = vadd.f32 %v2086, %v2278
  %v2280 = vpop.f32.mrf.mxu0
  %v2281 = vadd.f32 %v2088, %v2280
  %2282 = vmatmul.bf16.gmra.mxu0 %v1037
  %v2283 = vpop.f32.mrf.mxu0
  %v2284 = vadd.f32 %v2091, %v2283
  %v2285 = vpop.f32.mrf.mxu0
  %v2286 = vadd.f32 %v2093, %v2285
  %2287 = vmatmul.bf16.gmra.mxu0 %v1042
  %v2288 = vpop.f32.mrf.mxu0
  %v2289 = vadd.f32 %v2096, %v2288
  %v2290 = vpop.f32.mrf.mxu0
  %v2291 = vadd.f32 %v2098, %v2290
  %2292 = vmatmul.bf16.gmra.mxu0 %v1047
  %v2293 = vpop.f32.mrf.mxu0
  %v2294 = vadd.f32 %v2101, %v2293
  %v2295 = vpop.f32.mrf.mxu0
  %v2296 = vadd.f32 %v2103, %v2295
  %2297 = vmatmul.bf16.gmra.mxu0 %v1052
  %v2298 = vpop.f32.mrf.mxu0
  %v2299 = vadd.f32 %v2106, %v2298
  %v2300 = vpop.f32.mrf.mxu0
  %v2301 = vadd.f32 %v2108, %v2300
  %2302 = vmatmul.bf16.gmra.mxu0 %v1057
  %v2303 = vpop.f32.mrf.mxu0
  %v2304 = vadd.f32 %v2111, %v2303
  %v2305 = vpop.f32.mrf.mxu0
  %v2306 = vadd.f32 %v2113, %v2305
  %2307 = vmatmul.bf16.gmra.mxu0 %v1062
  %v2308 = vpop.f32.mrf.mxu0
  %v2309 = vadd.f32 %v2116, %v2308
  %v2310 = vpop.f32.mrf.mxu0
  %v2311 = vadd.f32 %v2118, %v2310
  %2312 = vmatmul.bf16.gmra.mxu0 %v1067
  %v2313 = vpop.f32.mrf.mxu0
  %v2314 = vadd.f32 %v2121, %v2313
  %v2315 = vpop.f32.mrf.mxu0
  %v2316 = vadd.f32 %v2123, %v2315
  %2317 = vmatmul.bf16.gmra.mxu0 %v1072
  %v2318 = vpop.f32.mrf.mxu0
  %v2319 = vadd.f32 %v2126, %v2318
  %v2320 = vpop.f32.mrf.mxu0
  %v2321 = vadd.f32 %v2128, %v2320
  %2322 = vmatmul.bf16.gmra.mxu0 %v1077
  %v2323 = vpop.f32.mrf.mxu0
  %v2324 = vadd.f32 %v2131, %v2323
  %v2325 = vpop.f32.mrf.mxu0
  %2326 = vdwg.mxu0
  %2327 = vmatpush.bf16.msra.mxu0 0
  %2328 = vmatpush.bf16.msra.mxu0 0
  %2329 = vmatpush.bf16.msra.mxu0 0
  %2330 = vmatpush.bf16.msra.mxu0 0
  %2331 = vmatpush.bf16.msra.mxu0 %v1406
  %2332 = vmatpush.bf16.msra.mxu0 %v1405
  %2333 = vmatpush.bf16.msra.mxu0 %v1404
  %2334 = vmatpush.bf16.msra.mxu0 %v1403
  %2335 = vmatmul.bf16.gmra.mxu0 %v1445
  %v2336 = vpop.f32.mrf.mxu0
  %v2337 = vadd.f32 %v2144, %v2336
  %v2338 = vpop.f32.mrf.mxu0
  %v2339 = vadd.f32 %v2146, %v2338
  %2340 = vmatmul.bf16.gmra.mxu0 %v1448
  %v2341 = vpop.f32.mrf.mxu0
  %v2342 = vadd.f32 %v2149, %v2341
  %v2343 = vpop.f32.mrf.mxu0
  %v2344 = vadd.f32 %v2151, %v2343
  %2345 = vmatmul.bf16.gmra.mxu0 %v1451
  %v2346 = vpop.f32.mrf.mxu0
  %v2347 = vadd.f32 %v2154, %v2346
  %v2348 = vpop.f32.mrf.mxu0
  %v2349 = vadd.f32 %v2156, %v2348
  %2350 = vmatmul.bf16.gmra.mxu0 %v1454
  %v2351 = vpop.f32.mrf.mxu0
  %v2352 = vadd.f32 %v2159, %v2351
  %v2353 = vpop.f32.mrf.mxu0
  %v2354 = vadd.f32 %v2161, %v2353
  %2355 = vmatmul.bf16.gmra.mxu0 %v1457
  %v2356 = vpop.f32.mrf.mxu0
  %v2357 = vadd.f32 %v2164, %v2356
  %v2358 = vpop.f32.mrf.mxu0
  %v2359 = vadd.f32 %v2166, %v2358
  %2360 = vmatmul.bf16.gmra.mxu0 %v1460
  %v2361 = vpop.f32.mrf.mxu0
  %v2362 = vadd.f32 %v2169, %v2361
  %v2363 = vpop.f32.mrf.mxu0
  %v2364 = vadd.f32 %v2171, %v2363
  %2365 = vmatmul.bf16.gmra.mxu0 %v1463
  %v2366 = vpop.f32.mrf.mxu0
  %v2367 = vadd.f32 %v2174, %v2366
  %v2368 = vpop.f32.mrf.mxu0
  %v2369 = vadd.f32 %v2176, %v2368
  %2370 = vmatmul.bf16.gmra.mxu0 %v1466
  %v2371 = vpop.f32.mrf.mxu0
  %v2372 = vadd.f32 %v2179, %v2371
  %v2373 = vpop.f32.mrf.mxu0
  %v2374 = vadd.f32 %v2181, %v2373
  %2375 = vmatmul.bf16.gmra.mxu0 %v1469
  %v2376 = vpop.f32.mrf.mxu0
  %v2377 = vadd.f32 %v2184, %v2376
  %v2378 = vpop.f32.mrf.mxu0
  %v2379 = vadd.f32 %v2186, %v2378
  %2380 = vmatmul.bf16.gmra.mxu0 %v1472
  %v2381 = vpop.f32.mrf.mxu0
  %v2382 = vadd.f32 %v2189, %v2381
  %v2383 = vpop.f32.mrf.mxu0
  %v2384 = vadd.f32 %v2191, %v2383
  %2385 = vmatmul.bf16.gmra.mxu0 %v1475
  %v2386 = vpop.f32.mrf.mxu0
  %v2387 = vadd.f32 %v2194, %v2386
  %v2388 = vpop.f32.mrf.mxu0
  %v2389 = vadd.f32 %v2196, %v2388
  %2390 = vmatmul.bf16.gmra.mxu0 %v1478
  %v2391 = vpop.f32.mrf.mxu0
  %v2392 = vadd.f32 %v2199, %v2391
  %v2393 = vpop.f32.mrf.mxu0
  %v2394 = vadd.f32 %v2201, %v2393
  %2395 = vmatmul.bf16.gmra.mxu0 %v1481
  %v2396 = vpop.f32.mrf.mxu0
  %v2397 = vadd.f32 %v2204, %v2396
  %v2398 = vpop.f32.mrf.mxu0
  %v2399 = vadd.f32 %v2206, %v2398
  %2400 = vmatmul.bf16.gmra.mxu0 %v1484
  %v2401 = vpop.f32.mrf.mxu0
  %v2402 = vadd.f32 %v2209, %v2401
  %v2403 = vpop.f32.mrf.mxu0
  %v2404 = vadd.f32 %v2211, %v2403
  %2405 = vmatmul.bf16.gmra.mxu0 %v1487
  %v2406 = vpop.f32.mrf.mxu0
  %v2407 = vadd.f32 %v2214, %v2406
  %v2408 = vpop.f32.mrf.mxu0
  %v2409 = vadd.f32 %v2216, %v2408
  %2410 = vmatmul.bf16.gmra.mxu0 %v1490
  %v2411 = vpop.f32.mrf.mxu0
  %v2412 = vadd.f32 %v2219, %v2411
  %v2413 = vpop.f32.mrf.mxu0
  %v2414 = vadd.f32 %v2221, %v2413
  %2415 = vmatmul.bf16.gmra.mxu0 %v1493
  %v2416 = vpop.f32.mrf.mxu0
  %v2417 = vadd.f32 %v2224, %v2416
  %v2418 = vpop.f32.mrf.mxu0
  %v2419 = vadd.f32 %v2226, %v2418
  %2420 = vmatmul.bf16.gmra.mxu0 %v1496
  %v2421 = vpop.f32.mrf.mxu0
  %v2422 = vadd.f32 %v2229, %v2421
  %v2423 = vpop.f32.mrf.mxu0
  %v2424 = vadd.f32 %v2231, %v2423
  %2425 = vmatmul.bf16.gmra.mxu0 %v1499
  %v2426 = vpop.f32.mrf.mxu0
  %v2427 = vadd.f32 %v2234, %v2426
  %v2428 = vpop.f32.mrf.mxu0
  %v2429 = vadd.f32 %v2236, %v2428
  %2430 = vmatmul.bf16.gmra.mxu0 %v1502
  %v2431 = vpop.f32.mrf.mxu0
  %v2432 = vadd.f32 %v2239, %v2431
  %v2433 = vpop.f32.mrf.mxu0
  %v2434 = vadd.f32 %v2241, %v2433
  %2435 = vmatmul.bf16.gmra.mxu0 %v1505
  %v2436 = vpop.f32.mrf.mxu0
  %v2437 = vadd.f32 %v2244, %v2436
  %v2438 = vpop.f32.mrf.mxu0
  %v2439 = vadd.f32 %v2246, %v2438
  %2440 = vmatmul.bf16.gmra.mxu0 %v1508
  %v2441 = vpop.f32.mrf.mxu0
  %v2442 = vadd.f32 %v2249, %v2441
  %v2443 = vpop.f32.mrf.mxu0
  %v2444 = vadd.f32 %v2251, %v2443
  %2445 = vmatmul.bf16.gmra.mxu0 %v1511
  %v2446 = vpop.f32.mrf.mxu0
  %v2447 = vadd.f32 %v2254, %v2446
  %v2448 = vpop.f32.mrf.mxu0
  %v2449 = vadd.f32 %v2256, %v2448
  %2450 = vmatmul.bf16.gmra.mxu0 %v1514
  %v2451 = vpop.f32.mrf.mxu0
  %v2452 = vadd.f32 %v2259, %v2451
  %v2453 = vpop.f32.mrf.mxu0
  %v2454 = vadd.f32 %v2261, %v2453
  %2455 = vmatmul.bf16.gmra.mxu0 %v1517
  %v2456 = vpop.f32.mrf.mxu0
  %v2457 = vadd.f32 %v2264, %v2456
  %v2458 = vpop.f32.mrf.mxu0
  %v2459 = vadd.f32 %v2266, %v2458
  %2460 = vmatmul.bf16.gmra.mxu0 %v1520
  %v2461 = vpop.f32.mrf.mxu0
  %v2462 = vadd.f32 %v2269, %v2461
  %v2463 = vpop.f32.mrf.mxu0
  %v2464 = vadd.f32 %v2271, %v2463
  %2465 = vmatmul.bf16.gmra.mxu0 %v1523
  %v2466 = vpop.f32.mrf.mxu0
  %v2467 = vadd.f32 %v2274, %v2466
  %v2468 = vpop.f32.mrf.mxu0
  %v2469 = vadd.f32 %v2276, %v2468
  %2470 = vmatmul.bf16.gmra.mxu0 %v1526
  %v2471 = vpop.f32.mrf.mxu0
  %v2472 = vadd.f32 %v2279, %v2471
  %v2473 = vpop.f32.mrf.mxu0
  %v2474 = vadd.f32 %v2281, %v2473
  %2475 = vmatmul.bf16.gmra.mxu0 %v1529
  %v2476 = vpop.f32.mrf.mxu0
  %v2477 = vadd.f32 %v2284, %v2476
  %v2478 = vpop.f32.mrf.mxu0
  %v2479 = vadd.f32 %v2286, %v2478
  %2480 = vmatmul.bf16.gmra.mxu0 %v1532
  %v2481 = vpop.f32.mrf.mxu0
  %v2482 = vadd.f32 %v2289, %v2481
  %v2483 = vpop.f32.mrf.mxu0
  %v2484 = vadd.f32 %v2291, %v2483
  %2485 = vmatmul.bf16.gmra.mxu0 %v1535
  %v2486 = vpop.f32.mrf.mxu0
  %v2487 = vadd.f32 %v2294, %v2486
  %v2488 = vpop.f32.mrf.mxu0
  %v2489 = vadd.f32 %v2296, %v2488
  %2490 = vmatmul.bf16.gmra.mxu0 %v1538
  %v2491 = vpop.f32.mrf.mxu0
  %v2492 = vadd.f32 %v2299, %v2491
  %v2493 = vpop.f32.mrf.mxu0
  %v2494 = vadd.f32 %v2301, %v2493
  %2495 = vmatmul.bf16.gmra.mxu0 %v1541
  %v2496 = vpop.f32.mrf.mxu0
  %v2497 = vadd.f32 %v2304, %v2496
  %v2498 = vpop.f32.mrf.mxu0
  %v2499 = vadd.f32 %v2306, %v2498
  %2500 = vmatmul.bf16.gmra.mxu0 %v1544
  %v2501 = vpop.f32.mrf.mxu0
  %v2502 = vadd.f32 %v2309, %v2501
  %v2503 = vpop.f32.mrf.mxu0
  %v2504 = vadd.f32 %v2311, %v2503
  %2505 = vmatmul.bf16.gmra.mxu0 %v1547
  %v2506 = vpop.f32.mrf.mxu0
  %v2507 = vadd.f32 %v2314, %v2506
  %v2508 = vpop.f32.mrf.mxu0
  %v2509 = vadd.f32 %v2316, %v2508
  %2510 = vmatmul.bf16.gmra.mxu0 %v1550
  %v2511 = vpop.f32.mrf.mxu0
  %v2512 = vadd.f32 %v2319, %v2511
  %v2513 = vpop.f32.mrf.mxu0
  %v2514 = vadd.f32 %v2321, %v2513
  %2515 = vmatmul.bf16.gmra.mxu0 %v1553
  %v2516 = vpop.f32.mrf.mxu0
  %v2517 = vadd.f32 %v2324, %v2516
  %v2518 = vpop.f32.mrf.mxu0
  %2519 = vdwg.mxu0
  %v2520 = vmax.f32 %v2337, 0.0
  %v2521 = vmax.f32 %v2339, 0.0
  %v2522 = vmax.f32 %v2342, 0.0
  %v2523 = vmax.f32 %v2344, 0.0
  %v2524 = vmax.f32 %v2347, 0.0
  %v2525 = vmax.f32 %v2349, 0.0
  %v2526 = vmax.f32 %v2352, 0.0
  %v2527 = vmax.f32 %v2354, 0.0
  %v2528 = vmax.f32 %v2357, 0.0
  %v2529 = vmax.f32 %v2359, 0.0
  %v2530 = vmax.f32 %v2362, 0.0
  %v2531 = vmax.f32 %v2364, 0.0
  %v2532 = vmax.f32 %v2367, 0.0
  %v2533 = vmax.f32 %v2369, 0.0
  %v2534 = vmax.f32 %v2372, 0.0
  %v2535 = vmax.f32 %v2374, 0.0
  %v2536 = vmax.f32 %v2377, 0.0
  %v2537 = vmax.f32 %v2379, 0.0
  %v2538 = vmax.f32 %v2382, 0.0
  %v2539 = vmax.f32 %v2384, 0.0
  %v2540 = vmax.f32 %v2387, 0.0
  %v2541 = vmax.f32 %v2389, 0.0
  %v2542 = vmax.f32 %v2392, 0.0
  %v2543 = vmax.f32 %v2394, 0.0
  %v2544 = vmax.f32 %v2397, 0.0
  %v2545 = vmax.f32 %v2399, 0.0
  %v2546 = vmax.f32 %v2402, 0.0
  %v2547 = vmax.f32 %v2404, 0.0
  %v2548 = vmax.f32 %v2407, 0.0
  %v2549 = vmax.f32 %v2409, 0.0
  %v2550 = vmax.f32 %v2412, 0.0
  %v2551 = vmax.f32 %v2414, 0.0
  %v2552 = vmax.f32 %v2417, 0.0
  %v2553 = vmax.f32 %v2419, 0.0
  %v2554 = vmax.f32 %v2422, 0.0
  %v2555 = vmax.f32 %v2424, 0.0
  %v2556 = vmax.f32 %v2427, 0.0
  %v2557 = vmax.f32 %v2429, 0.0
  %v2558 = vmax.f32 %v2432, 0.0
  %v2559 = vmax.f32 %v2434, 0.0
  %v2560 = vmax.f32 %v2437, 0.0
  %v2561 = vmax.f32 %v2439, 0.0
  %v2562 = vmax.f32 %v2442, 0.0
  %v2563 = vmax.f32 %v2444, 0.0
  %v2564 = vmax.f32 %v2447, 0.0
  %v2565 = vmax.f32 %v2449, 0.0
  %v2566 = vmax.f32 %v2452, 0.0
  %v2567 = vmax.f32 %v2454, 0.0
  %v2568 = vmax.f32 %v2457, 0.0
  %v2569 = vmax.f32 %v2459, 0.0
  %v2570 = vmax.f32 %v2462, 0.0
  %v2571 = vmax.f32 %v2464, 0.0
  %v2572 = vmax.f32 %v2467, 0.0
  %v2573 = vmax.f32 %v2469, 0.0
  %v2574 = vmax.f32 %v2472, 0.0
  %v2575 = vmax.f32 %v2474, 0.0
  %v2576 = vmax.f32 %v2477, 0.0
  %v2577 = vmax.f32 %v2479, 0.0
  %v2578 = vmax.f32 %v2482, 0.0
  %v2579 = vmax.f32 %v2484, 0.0
  %v2580 = vmax.f32 %v2487, 0.0
  %v2581 = vmax.f32 %v2489, 0.0
  %v2582 = vmax.f32 %v2492, 0.0
  %v2583 = vmax.f32 %v2494, 0.0
  %v2584 = vmax.f32 %v2497, 0.0
  %v2585 = vmax.f32 %v2499, 0.0
  %v2586 = vmax.f32 %v2502, 0.0
  %v2587 = vmax.f32 %v2504, 0.0
  %v2588 = vmax.f32 %v2507, 0.0
  %v2589 = vmax.f32 %v2509, 0.0
  %v2590 = vmax.f32 %v2512, 0.0
  %v2591 = vmax.f32 %v2514, 0.0
  %v2592 = vmax.f32 %v2517, 0.0
  %v2593 = vpack.c.bf16 %v2520, %v2520
  %v2594 = vpack.c.bf16 %v2521, %v2521
  %v2595 = vpack.c.bf16 %v2522, %v2522
  %v2596 = vpack.c.bf16 %v2523, %v2523
  %v2597 = vpack.c.bf16 %v2524, %v2524
  %v2598 = vpack.c.bf16 %v2525, %v2525
  %v2599 = vpack.c.bf16 %v2526, %v2526
  %v2600 = vpack.c.bf16 %v2527, %v2527
  %v2601 = vpack.c.bf16 %v2528, %v2528
  %v2602 = vpack.c.bf16 %v2529, %v2529
  %v2603 = vpack.c.bf16 %v2530, %v2530
  %v2604 = vpack.c.bf16 %v2531, %v2531
  %v2605 = vpack.c.bf16 %v2532, %v2532
  %v2606 = vpack.c.bf16 %v2533, %v2533
  %v2607 = vpack.c.bf16 %v2534, %v2534
  %v2608 = vpack.c.bf16 %v2535, %v2535
  %v2609 = vpack.c.bf16 %v2536, %v2536
  %v2610 = vpack.c.bf16 %v2537, %v2537
  %v2611 = vpack.c.bf16 %v2538, %v2538
  %v2612 = vpack.c.bf16 %v2539, %v2539
  %v2613 = vpack.c.bf16 %v2540, %v2540
  %v2614 = vpack.c.bf16 %v2541, %v2541
  %v2615 = vpack.c.bf16 %v2542, %v2542
  %v2616 = vpack.c.bf16 %v2543, %v2543
  %v2617 = vpack.c.bf16 %v2544, %v2544
  %v2618 = vpack.c.bf16 %v2545, %v2545
  %v2619 = vpack.c.bf16 %v2546, %v2546
  %v2620 = vpack.c.bf16 %v2547, %v2547
  %v2621 = vpack.c.bf16 %v2548, %v2548
  %v2622 = vpack.c.bf16 %v2549, %v2549
  %v2623 = vpack.c.bf16 %v2550, %v2550
  %v2624 = vpack.c.bf16 %v2551, %v2551
  %v2625 = vpack.c.bf16 %v2552, %v2552
  %v2626 = vpack.c.bf16 %v2553, %v2553
  %v2627 = vpack.c.bf16 %v2554, %v2554
  %v2628 = vpack.c.bf16 %v2555, %v2555
  %v2629 = vpack.c.bf16 %v2556, %v2556
  %v2630 = vpack.c.bf16 %v2557, %v2557
  %v2631 = vpack.c.bf16 %v2558, %v2558
  %v2632 = vpack.c.bf16 %v2559, %v2559
  %v2633 = vpack.c.bf16 %v2560, %v2560
  %v2634 = vpack.c.bf16 %v2561, %v2561
  %v2635 = vpack.c.bf16 %v2562, %v2562
  %v2636 = vpack.c.bf16 %v2563, %v2563
  %v2637 = vpack.c.bf16 %v2564, %v2564
  %v2638 = vpack.c.bf16 %v2565, %v2565
  %v2639 = vpack.c.bf16 %v2566, %v2566
  %v2640 = vpack.c.bf16 %v2567, %v2567
  %v2641 = vpack.c.bf16 %v2568, %v2568
  %v2642 = vpack.c.bf16 %v2569, %v2569
  %v2643 = vpack.c.bf16 %v2570, %v2570
  %v2644 = vpack.c.bf16 %v2571, %v2571
  %v2645 = vpack.c.bf16 %v2572, %v2572
  %v2646 = vpack.c.bf16 %v2573, %v2573
  %v2647 = vpack.c.bf16 %v2574, %v2574
  %v2648 = vpack.c.bf16 %v2575, %v2575
  %v2649 = vpack.c.bf16 %v2576, %v2576
  %v2650 = vpack.c.bf16 %v2577, %v2577
  %v2651 = vpack.c.bf16 %v2578, %v2578
  %v2652 = vpack.c.bf16 %v2579, %v2579
  %v2653 = vpack.c.bf16 %v2580, %v2580
  %v2654 = vpack.c.bf16 %v2581, %v2581
  %v2655 = vpack.c.bf16 %v2582, %v2582
  %v2656 = vpack.c.bf16 %v2583, %v2583
  %v2657 = vpack.c.bf16 %v2584, %v2584
  %v2658 = vpack.c.bf16 %v2585, %v2585
  %v2659 = vpack.c.bf16 %v2586, %v2586
  %v2660 = vpack.c.bf16 %v2587, %v2587
  %v2661 = vpack.c.bf16 %v2588, %v2588
  %v2662 = vpack.c.bf16 %v2589, %v2589
  %v2663 = vpack.c.bf16 %v2590, %v2590
  %v2664 = vpack.c.bf16 %v2591, %v2591
  %v2665 = vpack.c.bf16 %v2592, %v2592
  %2666 = vst [vmem:[%s3] sm:$0xf] %v2593
  %2667 = vst [vmem:[%s3 + $0x4] sm:$0xf] %v2594
  %2668 = vst [vmem:[%s3 + $0x8] sm:$0xf] %v2595
  %2669 = vst [vmem:[%s3 + $0xc] sm:$0xf] %v2596
  %2670 = vst [vmem:[%s3 + $0x10] sm:$0xf] %v2597
  %2671 = vst [vmem:[%s3 + $0x14] sm:$0xf] %v2598
  %2672 = vst [vmem:[%s3 + $0x18] sm:$0xf] %v2599
  %2673 = vst [vmem:[%s3 + $0x1c] sm:$0xf] %v2600
  %2674 = vst [vmem:[%s3 + $0x20] sm:$0xf] %v2601
  %2675 = vst [vmem:[%s3 + $0x24] sm:$0xf] %v2602
  %2676 = vst [vmem:[%s3 + $0x28] sm:$0xf] %v2603
  %2677 = vst [vmem:[%s3 + $0x2c] sm:$0xf] %v2604
  %2678 = vst [vmem:[%s3 + $0x30] sm:$0xf] %v2605
  %2679 = vst [vmem:[%s3 + $0x34] sm:$0xf] %v2606
  %2680 = vst [vmem:[%s3 + $0x38] sm:$0xf] %v2607
  %2681 = vst [vmem:[%s3 + $0x3c] sm:$0xf] %v2608
  %2682 = vst [vmem:[%s3 + $0x40] sm:$0xf] %v2609
  %2683 = vst [vmem:[%s3 + $0x44] sm:$0xf] %v2610
  %2684 = vst [vmem:[%s3 + $0x48] sm:$0xf] %v2611
  %2685 = vst [vmem:[%s3 + $0x4c] sm:$0xf] %v2612
  %2686 = vst [vmem:[%s3 + $0x50] sm:$0xf] %v2613
  %2687 = vst [vmem:[%s3 + $0x54] sm:$0xf] %v2614
  %2688 = vst [vmem:[%s3 + $0x58] sm:$0xf] %v2615
  %2689 = vst [vmem:[%s3 + $0x5c] sm:$0xf] %v2616
  %2690 = vst [vmem:[%s3 + $0x60] sm:$0xf] %v2617
  %2691 = vst [vmem:[%s3 + $0x64] sm:$0xf] %v2618
  %2692 = vst [vmem:[%s3 + $0x68] sm:$0xf] %v2619
  %2693 = vst [vmem:[%s3 + $0x6c] sm:$0xf] %v2620
  %2694 = vst [vmem:[%s3 + $0x70] sm:$0xf] %v2621
  %2695 = vst [vmem:[%s3 + $0x74] sm:$0xf] %v2622
  %2696 = vst [vmem:[%s3 + $0x78] sm:$0xf] %v2623
  %2697 = vst [vmem:[%s3 + $0x7c] sm:$0xf] %v2624
  %2698 = vst [vmem:[%s3 + $0x80] sm:$0xf] %v2625
  %2699 = vst [vmem:[%s3 + $0x84] sm:$0xf] %v2626
  %2700 = vst [vmem:[%s3 + $0x88] sm:$0xf] %v2627
  %2701 = vst [vmem:[%s3 + $0x8c] sm:$0xf] %v2628
  %2702 = vst [vmem:[%s3 + $0x90] sm:$0xf] %v2629
  %2703 = vst [vmem:[%s3 + $0x94] sm:$0xf] %v2630
  %2704 = vst [vmem:[%s3 + $0x98] sm:$0xf] %v2631
  %2705 = vst [vmem:[%s3 + $0x9c] sm:$0xf] %v2632
  %2706 = vst [vmem:[%s3 + $0xa0] sm:$0xf] %v2633
  %2707 = vst [vmem:[%s3 + $0xa4] sm:$0xf] %v2634
  %2708 = vst [vmem:[%s3 + $0xa8] sm:$0xf] %v2635
  %2709 = vst [vmem:[%s3 + $0xac] sm:$0xf] %v2636
  %2710 = vst [vmem:[%s3 + $0xb0] sm:$0xf] %v2637
  %2711 = vst [vmem:[%s3 + $0xb4] sm:$0xf] %v2638
  %2712 = vst [vmem:[%s3 + $0xb8] sm:$0xf] %v2639
  %2713 = vst [vmem:[%s3 + $0xbc] sm:$0xf] %v2640
  %2714 = vst [vmem:[%s3 + $0xc0] sm:$0xf] %v2641
  %2715 = vst [vmem:[%s3 + $0xc4] sm:$0xf] %v2642
  %2716 = vst [vmem:[%s3 + $0xc8] sm:$0xf] %v2643
  %2717 = vst [vmem:[%s3 + $0xcc] sm:$0xf] %v2644
  %2718 = vst [vmem:[%s3 + $0xd0] sm:$0xf] %v2645
  %2719 = vst [vmem:[%s3 + $0xd4] sm:$0xf] %v2646
  %2720 = vst [vmem:[%s3 + $0xd8] sm:$0xf] %v2647
  %2721 = vst [vmem:[%s3 + $0xdc] sm:$0xf] %v2648
  %2722 = vst [vmem:[%s3 + $0xe0] sm:$0xf] %v2649
  %2723 = vst [vmem:[%s3 + $0xe4] sm:$0xf] %v2650
  %2724 = vst [vmem:[%s3 + $0xe8] sm:$0xf] %v2651
  %2725 = vst [vmem:[%s3 + $0xec] sm:$0xf] %v2652
  %2726 = vst [vmem:[%s3 + $0xf0] sm:$0xf] %v2653
  %2727 = vst [vmem:[%s3 + $0xf4] sm:$0xf] %v2654
  %2728 = vst [vmem:[%s3 + $0xf8] sm:$0xf] %v2655
  %2729 = vst [vmem:[%s3 + $0xfc] sm:$0xf] %v2656
  %2730 = vst [vmem:[%s3 + $0x100] sm:$0xf] %v2657
  %2731 = vst [vmem:[%s3 + $0x104] sm:$0xf] %v2658
  %2732 = vst [vmem:[%s3 + $0x108] sm:$0xf] %v2659
  %2733 = vst [vmem:[%s3 + $0x10c] sm:$0xf] %v2660
  %2734 = vst [vmem:[%s3 + $0x110] sm:$0xf] %v2661
  %2735 = vst [vmem:[%s3 + $0x114] sm:$0xf] %v2662
  %2736 = vst [vmem:[%s3 + $0x118] sm:$0xf] %v2663
  %2737 = vst [vmem:[%s3 + $0x11c] sm:$0xf] %v2664
  %2738 = vst [vmem:[%s3 + $0x120] sm:$0x1] %v2665
  // Predicated region
  $region14: #{fcn_forward.3} parent=0 // pred_check
    _
  $region15: #{fcn_forward.3} parent=0 // pred_check_branch
    %2740 = sbr.rel (0) target = $region17
  $region16: #{fcn_forward.3} parent=0 // pred_region
    _
  $region17: #{fcn_forward.3} parent=0 // pred_fallthru
    _
  // Predicated region
  $region18: #{fcn_forward.3} parent=0 // pred_check
    _
  $region19: #{fcn_forward.3} parent=0 // pred_check_branch
    %2742 = sbr.rel (0) target = $region21
  $region20: #{fcn_forward.3} parent=0 // pred_region
    _
  $region21: #{fcn_forward.3} parent=0 // pred_fallthru
    _

// kernel: fcn_forward.4
$region0: #{fcn_forward.4}
  #allocation0 [shape = 'u32[]', space=smem, size = 0x4, offset = 0x4, fixed_abs, tag = 'smem constant byte address 0x4 - core index']
  #allocation1 [shape = 'u32[72,128]{1,0:T(1,128)}', space=vmem, size = 0x9000, scoped, tag = 'internal scratch']
  %s0 = inlined_call_operand.vmem [shape: bf16[50,8192], index: 0, kind: input, shape index: {}]
  %s1 = inlined_call_operand.vmem [shape: bf16[8192,128], index: 1, kind: input, shape index: {}]
  %s2 = inlined_call_operand.vmem [shape: f32[1,128], index: 2, kind: input, shape index: {}]
  %s3 = inlined_call_operand.vmem [shape: bf16[50,128], index: 3, kind: output, shape index: {}]
  %s4 = sld [smem:[#allocation0]]
  $region22: #{fcn_forward.4} parent=0
    _
  %s6 = ssub.s32 1, %s4
  %s7 = scalar_select 0, %s6, %s4
  // Predicated region
  $region2: #{fcn_forward.4} parent=0 // pred_check
    _
  $region3: #{fcn_forward.4} parent=0 // pred_check_branch
    %9 = sbr.rel (0) target = $region5
  $region4: #{fcn_forward.4} parent=0 // pred_region
    _
  $region5: #{fcn_forward.4} parent=0 // pred_fallthru
    _
  // Predicated region
  $region6: #{fcn_forward.4} parent=0 // pred_check
    _
  $region7: #{fcn_forward.4} parent=0 // pred_check_branch
    %11 = sbr.rel (0) target = $region9
  $region8: #{fcn_forward.4} parent=0 // pred_region
    _
  $region9: #{fcn_forward.4} parent=0 // pred_fallthru
    _
  // Predicated region
  $region10: #{fcn_forward.4} parent=0 // pred_check
    _
  $region11: #{fcn_forward.4} parent=0 // pred_check_branch
    %13 = sbr.rel (0) target = $region13
  $region12: #{fcn_forward.4} parent=0 // pred_region
    _
  $region13: #{fcn_forward.4} parent=0 // pred_fallthru
    _
  %v14 = vld [vmem:[%s0] sm:$0xff]
  %v15 = vld [vmem:[%s0 + $0x8] sm:$0xff]
  %v16 = vld [vmem:[%s0 + $0x10] sm:$0xff]
  %v17 = vld [vmem:[%s0 + $0x18] sm:$0xff]
  %v18 = vld [vmem:[%s0 + $0x20] sm:$0xff]
  %v19 = vld [vmem:[%s0 + $0x28] sm:$0xff]
  %v20 = vld [vmem:[%s0 + $0x30] sm:$0xff]
  %v21 = vld [vmem:[%s0 + $0x38] sm:$0xff]
  %v22 = vld [vmem:[%s0 + $0x40] sm:$0xff]
  %v23 = vld [vmem:[%s0 + $0x48] sm:$0xff]
  %v24 = vld [vmem:[%s0 + $0x50] sm:$0xff]
  %v25 = vld [vmem:[%s0 + $0x58] sm:$0xff]
  %v26 = vld [vmem:[%s0 + $0x60] sm:$0xff]
  %v27 = vld [vmem:[%s0 + $0x68] sm:$0xff]
  %v28 = vld [vmem:[%s0 + $0x70] sm:$0xff]
  %v29 = vld [vmem:[%s0 + $0x78] sm:$0xff]
  %v30 = vld [vmem:[%s0 + $0x80] sm:$0xff]
  %v31 = vld [vmem:[%s0 + $0x88] sm:$0xff]
  %v32 = vld [vmem:[%s0 + $0x90] sm:$0xff]
  %v33 = vld [vmem:[%s0 + $0x98] sm:$0xff]
  %v34 = vld [vmem:[%s0 + $0xa0] sm:$0xff]
  %v35 = vld [vmem:[%s0 + $0xa8] sm:$0xff]
  %v36 = vld [vmem:[%s0 + $0xb0] sm:$0xff]
  %v37 = vld [vmem:[%s0 + $0xb8] sm:$0xff]
  %v38 = vld [vmem:[%s0 + $0xc0] sm:$0xff]
  %v39 = vld [vmem:[%s0 + $0xc8] sm:$0xff]
  %v40 = vld [vmem:[%s0 + $0xd0] sm:$0xff]
  %v41 = vld [vmem:[%s0 + $0xd8] sm:$0xff]
  %v42 = vld [vmem:[%s0 + $0xe0] sm:$0xff]
  %v43 = vld [vmem:[%s0 + $0xe8] sm:$0xff]
  %v44 = vld [vmem:[%s0 + $0xf0] sm:$0xff]
  %v45 = vld [vmem:[%s0 + $0xf8] sm:$0xff]
  %v46 = vld [vmem:[%s0 + $0x100] sm:$0xff]
  %v47 = vld [vmem:[%s0 + $0x108] sm:$0xff]
  %v48 = vld [vmem:[%s0 + $0x110] sm:$0xff]
  %v49 = vld [vmem:[%s0 + $0x118] sm:$0xff]
  %v50 = vld [vmem:[%s0 + $0x120] sm:$0xff]
  %v51 = vld [vmem:[%s0 + $0x128] sm:$0xff]
  %v52 = vld [vmem:[%s0 + $0x130] sm:$0xff]
  %v53 = vld [vmem:[%s0 + $0x138] sm:$0xff]
  %v54 = vld [vmem:[%s0 + $0x140] sm:$0xff]
  %v55 = vld [vmem:[%s0 + $0x148] sm:$0xff]
  %v56 = vld [vmem:[%s0 + $0x150] sm:$0xff]
  %v57 = vld [vmem:[%s0 + $0x158] sm:$0xff]
  %v58 = vld [vmem:[%s0 + $0x160] sm:$0xff]
  %v59 = vld [vmem:[%s0 + $0x168] sm:$0xff]
  %v60 = vld [vmem:[%s0 + $0x170] sm:$0xff]
  %v61 = vld [vmem:[%s0 + $0x178] sm:$0xff]
  %v62 = vld [vmem:[%s0 + $0x180] sm:$0xff]
  %v63 = vld [vmem:[%s0 + $0x188] sm:$0xff]
  %v64 = vld [vmem:[%s0 + $0x190] sm:$0xff]
  %v65 = vld [vmem:[%s0 + $0x198] sm:$0xff]
  %v66 = vld [vmem:[%s0 + $0x1a0] sm:$0xff]
  %v67 = vld [vmem:[%s0 + $0x1a8] sm:$0xff]
  %v68 = vld [vmem:[%s0 + $0x1b0] sm:$0xff]
  %v69 = vld [vmem:[%s0 + $0x1b8] sm:$0xff]
  %v70 = vld [vmem:[%s0 + $0x1c0] sm:$0xff]
  %v71 = vld [vmem:[%s0 + $0x1c8] sm:$0xff]
  %v72 = vld [vmem:[%s0 + $0x1d0] sm:$0xff]
  %v73 = vld [vmem:[%s0 + $0x1d8] sm:$0xff]
  %v74 = vld [vmem:[%s0 + $0x1e0] sm:$0xff]
  %v75 = vld [vmem:[%s0 + $0x1e8] sm:$0xff]
  %v76 = vld [vmem:[%s0 + $0x1f0] sm:$0xff]
  %v77 = vld [vmem:[%s0 + $0x1f8] sm:$0xff]
  %v78 = vld [vmem:[%s0 + $0x200] sm:$0xff]
  %v79 = vld [vmem:[%s0 + $0x208] sm:$0xff]
  %v80 = vld [vmem:[%s0 + $0x210] sm:$0xff]
  %v81 = vld [vmem:[%s0 + $0x218] sm:$0xff]
  %v82 = vld [vmem:[%s0 + $0x220] sm:$0xff]
  %v83 = vld [vmem:[%s0 + $0x228] sm:$0xff]
  %v84 = vld [vmem:[%s0 + $0x230] sm:$0xff]
  %v85 = vld [vmem:[%s0 + $0x238] sm:$0xff]
  %v86 = vld [vmem:[%s0 + $0x240] sm:$0xff]
  %v87 = vld [vmem:[%s0 + $0x248] sm:$0xff]
  %v88 = vld [vmem:[%s0 + $0x250] sm:$0xff]
  %v89 = vld [vmem:[%s0 + $0x258] sm:$0xff]
  %v90 = vld [vmem:[%s0 + $0x260] sm:$0xff]
  %v91 = vld [vmem:[%s0 + $0x268] sm:$0xff]
  %v92 = vld [vmem:[%s0 + $0x270] sm:$0xff]
  %v93 = vld [vmem:[%s0 + $0x278] sm:$0xff]
  %v94 = vld [vmem:[%s0 + $0x280] sm:$0xff]
  %v95 = vld [vmem:[%s0 + $0x288] sm:$0xff]
  %v96 = vld [vmem:[%s0 + $0x290] sm:$0xff]
  %v97 = vld [vmem:[%s0 + $0x298] sm:$0xff]
  %v98 = vld [vmem:[%s0 + $0x2a0] sm:$0xff]
  %v99 = vld [vmem:[%s0 + $0x2a8] sm:$0xff]
  %v100 = vld [vmem:[%s0 + $0x2b0] sm:$0xff]
  %v101 = vld [vmem:[%s0 + $0x2b8] sm:$0xff]
  %v102 = vld [vmem:[%s0 + $0x2c0] sm:$0xff]
  %v103 = vld [vmem:[%s0 + $0x2c8] sm:$0xff]
  %v104 = vld [vmem:[%s0 + $0x2d0] sm:$0xff]
  %v105 = vld [vmem:[%s0 + $0x2d8] sm:$0xff]
  %v106 = vld [vmem:[%s0 + $0x2e0] sm:$0xff]
  %v107 = vld [vmem:[%s0 + $0x2e8] sm:$0xff]
  %v108 = vld [vmem:[%s0 + $0x2f0] sm:$0xff]
  %v109 = vld [vmem:[%s0 + $0x2f8] sm:$0xff]
  %v110 = vld [vmem:[%s0 + $0x300] sm:$0xff]
  %v111 = vld [vmem:[%s0 + $0x308] sm:$0xff]
  %v112 = vld [vmem:[%s0 + $0x310] sm:$0xff]
  %v113 = vld [vmem:[%s0 + $0x318] sm:$0xff]
  %v114 = vld [vmem:[%s0 + $0x320] sm:$0xff]
  %v115 = vld [vmem:[%s0 + $0x328] sm:$0xff]
  %v116 = vld [vmem:[%s0 + $0x330] sm:$0xff]
  %v117 = vld [vmem:[%s0 + $0x338] sm:$0xff]
  %v118 = vld [vmem:[%s0 + $0x340] sm:$0xff]
  %v119 = vld [vmem:[%s0 + $0x348] sm:$0xff]
  %v120 = vld [vmem:[%s0 + $0x350] sm:$0xff]
  %v121 = vld [vmem:[%s0 + $0x358] sm:$0xff]
  %v122 = vld [vmem:[%s0 + $0x360] sm:$0xff]
  %v123 = vld [vmem:[%s0 + $0x368] sm:$0xff]
  %v124 = vld [vmem:[%s0 + $0x370] sm:$0xff]
  %v125 = vld [vmem:[%s0 + $0x378] sm:$0xff]
  %v126 = vld [vmem:[%s0 + $0x380] sm:$0xff]
  %v127 = vld [vmem:[%s0 + $0x388] sm:$0xff]
  %v128 = vld [vmem:[%s0 + $0x390] sm:$0xff]
  %v129 = vld [vmem:[%s0 + $0x398] sm:$0xff]
  %v130 = vld [vmem:[%s0 + $0x3a0] sm:$0xff]
  %v131 = vld [vmem:[%s0 + $0x3a8] sm:$0xff]
  %v132 = vld [vmem:[%s0 + $0x3b0] sm:$0xff]
  %v133 = vld [vmem:[%s0 + $0x3b8] sm:$0xff]
  %v134 = vld [vmem:[%s0 + $0x3c0] sm:$0xff]
  %v135 = vld [vmem:[%s0 + $0x3c8] sm:$0xff]
  %v136 = vld [vmem:[%s0 + $0x3d0] sm:$0xff]
  %v137 = vld [vmem:[%s0 + $0x3d8] sm:$0xff]
  %v138 = vld [vmem:[%s0 + $0x3e0] sm:$0xff]
  %v139 = vld [vmem:[%s0 + $0x3e8] sm:$0xff]
  %v140 = vld [vmem:[%s0 + $0x3f0] sm:$0xff]
  %v141 = vld [vmem:[%s0 + $0x3f8] sm:$0xff]
  %v142 = vld [vmem:[%s0 + $0x400] sm:$0xff]
  %v143 = vld [vmem:[%s0 + $0x408] sm:$0xff]
  %v144 = vld [vmem:[%s0 + $0x410] sm:$0xff]
  %v145 = vld [vmem:[%s0 + $0x418] sm:$0xff]
  %v146 = vld [vmem:[%s0 + $0x420] sm:$0xff]
  %v147 = vld [vmem:[%s0 + $0x428] sm:$0xff]
  %v148 = vld [vmem:[%s0 + $0x430] sm:$0xff]
  %v149 = vld [vmem:[%s0 + $0x438] sm:$0xff]
  %v150 = vld [vmem:[%s0 + $0x440] sm:$0xff]
  %v151 = vld [vmem:[%s0 + $0x448] sm:$0xff]
  %v152 = vld [vmem:[%s0 + $0x450] sm:$0xff]
  %v153 = vld [vmem:[%s0 + $0x458] sm:$0xff]
  %v154 = vld [vmem:[%s0 + $0x460] sm:$0xff]
  %v155 = vld [vmem:[%s0 + $0x468] sm:$0xff]
  %v156 = vld [vmem:[%s0 + $0x470] sm:$0xff]
  %v157 = vld [vmem:[%s0 + $0x478] sm:$0xff]
  %v158 = vld [vmem:[%s0 + $0x480] sm:$0xff]
  %v159 = vld [vmem:[%s0 + $0x488] sm:$0xff]
  %v160 = vld [vmem:[%s0 + $0x490] sm:$0xff]
  %v161 = vld [vmem:[%s0 + $0x498] sm:$0xff]
  %v162 = vld [vmem:[%s0 + $0x4a0] sm:$0xff]
  %v163 = vld [vmem:[%s0 + $0x4a8] sm:$0xff]
  %v164 = vld [vmem:[%s0 + $0x4b0] sm:$0xff]
  %v165 = vld [vmem:[%s0 + $0x4b8] sm:$0xff]
  %v166 = vld [vmem:[%s0 + $0x4c0] sm:$0xff]
  %v167 = vld [vmem:[%s0 + $0x4c8] sm:$0xff]
  %v168 = vld [vmem:[%s0 + $0x4d0] sm:$0xff]
  %v169 = vld [vmem:[%s0 + $0x4d8] sm:$0xff]
  %v170 = vld [vmem:[%s0 + $0x4e0] sm:$0xff]
  %v171 = vld [vmem:[%s0 + $0x4e8] sm:$0xff]
  %v172 = vld [vmem:[%s0 + $0x4f0] sm:$0xff]
  %v173 = vld [vmem:[%s0 + $0x4f8] sm:$0xff]
  %v174 = vld [vmem:[%s0 + $0x500] sm:$0xff]
  %v175 = vld [vmem:[%s0 + $0x508] sm:$0xff]
  %v176 = vld [vmem:[%s0 + $0x510] sm:$0xff]
  %v177 = vld [vmem:[%s0 + $0x518] sm:$0xff]
  %v178 = vld [vmem:[%s0 + $0x520] sm:$0xff]
  %v179 = vld [vmem:[%s0 + $0x528] sm:$0xff]
  %v180 = vld [vmem:[%s0 + $0x530] sm:$0xff]
  %v181 = vld [vmem:[%s0 + $0x538] sm:$0xff]
  %v182 = vld [vmem:[%s0 + $0x540] sm:$0xff]
  %v183 = vld [vmem:[%s0 + $0x548] sm:$0xff]
  %v184 = vld [vmem:[%s0 + $0x550] sm:$0xff]
  %v185 = vld [vmem:[%s0 + $0x558] sm:$0xff]
  %v186 = vld [vmem:[%s0 + $0x560] sm:$0xff]
  %v187 = vld [vmem:[%s0 + $0x568] sm:$0xff]
  %v188 = vld [vmem:[%s0 + $0x570] sm:$0xff]
  %v189 = vld [vmem:[%s0 + $0x578] sm:$0xff]
  %v190 = vld [vmem:[%s0 + $0x580] sm:$0xff]
  %v191 = vld [vmem:[%s0 + $0x588] sm:$0xff]
  %v192 = vld [vmem:[%s0 + $0x590] sm:$0xff]
  %v193 = vld [vmem:[%s0 + $0x598] sm:$0xff]
  %v194 = vld [vmem:[%s0 + $0x5a0] sm:$0xff]
  %v195 = vld [vmem:[%s0 + $0x5a8] sm:$0xff]
  %v196 = vld [vmem:[%s0 + $0x5b0] sm:$0xff]
  %v197 = vld [vmem:[%s0 + $0x5b8] sm:$0xff]
  %v198 = vld [vmem:[%s0 + $0x5c0] sm:$0xff]
  %v199 = vld [vmem:[%s0 + $0x5c8] sm:$0xff]
  %v200 = vld [vmem:[%s0 + $0x5d0] sm:$0xff]
  %v201 = vld [vmem:[%s0 + $0x5d8] sm:$0xff]
  %v202 = vld [vmem:[%s0 + $0x5e0] sm:$0xff]
  %v203 = vld [vmem:[%s0 + $0x5e8] sm:$0xff]
  %v204 = vld [vmem:[%s0 + $0x5f0] sm:$0xff]
  %v205 = vld [vmem:[%s0 + $0x5f8] sm:$0xff]
  %v206 = vld [vmem:[%s0 + $0x600] sm:$0x11]
  %v207 = vld [vmem:[%s0 + $0x608] sm:$0x11]
  %v208 = vld [vmem:[%s0 + $0x610] sm:$0x11]
  %v209 = vld [vmem:[%s0 + $0x618] sm:$0x11]
  %v210 = vld [vmem:[%s0 + $0x620] sm:$0x11]
  %v211 = vld [vmem:[%s0 + $0x628] sm:$0x11]
  %v212 = vld [vmem:[%s0 + $0x630] sm:$0x11]
  %v213 = vld [vmem:[%s0 + $0x638] sm:$0x11]
  %v214 = vld [vmem:[%s0 + $0x640] sm:$0x11]
  %v215 = vld [vmem:[%s0 + $0x648] sm:$0x11]
  %v216 = vld [vmem:[%s0 + $0x650] sm:$0x11]
  %v217 = vld [vmem:[%s0 + $0x658] sm:$0x11]
  %v218 = vld [vmem:[%s0 + $0x660] sm:$0x11]
  %v219 = vld [vmem:[%s0 + $0x668] sm:$0x11]
  %v220 = vld [vmem:[%s0 + $0x670] sm:$0x11]
  %v221 = vld [vmem:[%s0 + $0x678] sm:$0x11]
  %v222 = vld [vmem:[%s0 + $0x680] sm:$0x11]
  %v223 = vld [vmem:[%s0 + $0x688] sm:$0x11]
  %v224 = vld [vmem:[%s0 + $0x690] sm:$0x11]
  %v225 = vld [vmem:[%s0 + $0x698] sm:$0x11]
  %v226 = vld [vmem:[%s0 + $0x6a0] sm:$0x11]
  %v227 = vld [vmem:[%s0 + $0x6a8] sm:$0x11]
  %v228 = vld [vmem:[%s0 + $0x6b0] sm:$0x11]
  %v229 = vld [vmem:[%s0 + $0x6b8] sm:$0x11]
  %v230 = vld [vmem:[%s0 + $0x6c0] sm:$0x11]
  %v231 = vld [vmem:[%s0 + $0x6c8] sm:$0x11]
  %v232 = vld [vmem:[%s0 + $0x6d0] sm:$0x11]
  %v233 = vld [vmem:[%s0 + $0x6d8] sm:$0x11]
  %v234 = vld [vmem:[%s0 + $0x6e0] sm:$0x11]
  %v235 = vld [vmem:[%s0 + $0x6e8] sm:$0x11]
  %v236 = vld [vmem:[%s0 + $0x6f0] sm:$0x11]
  %v237 = vld [vmem:[%s0 + $0x6f8] sm:$0x11]
  %v238 = vld [vmem:[%s1] sm:$0xf]
  %v239 = vld [vmem:[%s1 + $0x4] sm:$0xf]
  %v240 = vld [vmem:[%s1 + $0x8] sm:$0xf]
  %v241 = vld [vmem:[%s1 + $0xc] sm:$0xf]
  %v242 = vld [vmem:[%s1 + $0x10] sm:$0xf]
  %v243 = vld [vmem:[%s1 + $0x14] sm:$0xf]
  %v244 = vld [vmem:[%s1 + $0x18] sm:$0xf]
  %v245 = vld [vmem:[%s1 + $0x1c] sm:$0xf]
  %v246 = vld [vmem:[%s1 + $0x20] sm:$0xf]
  %v247 = vld [vmem:[%s1 + $0x24] sm:$0xf]
  %v248 = vld [vmem:[%s1 + $0x28] sm:$0xf]
  %v249 = vld [vmem:[%s1 + $0x2c] sm:$0xf]
  %v250 = vld [vmem:[%s1 + $0x30] sm:$0xf]
  %v251 = vld [vmem:[%s1 + $0x34] sm:$0xf]
  %v252 = vld [vmem:[%s1 + $0x38] sm:$0xf]
  %v253 = vld [vmem:[%s1 + $0x3c] sm:$0xf]
  %v254 = vld [vmem:[%s1 + $0x40] sm:$0xf]
  %v255 = vld [vmem:[%s1 + $0x44] sm:$0xf]
  %v256 = vld [vmem:[%s1 + $0x48] sm:$0xf]
  %v257 = vld [vmem:[%s1 + $0x4c] sm:$0xf]
  %v258 = vld [vmem:[%s1 + $0x50] sm:$0xf]
  %v259 = vld [vmem:[%s1 + $0x54] sm:$0xf]
  %v260 = vld [vmem:[%s1 + $0x58] sm:$0xf]
  %v261 = vld [vmem:[%s1 + $0x5c] sm:$0xf]
  %v262 = vld [vmem:[%s1 + $0x60] sm:$0xf]
  %v263 = vld [vmem:[%s1 + $0x64] sm:$0xf]
  %v264 = vld [vmem:[%s1 + $0x68] sm:$0xf]
  %v265 = vld [vmem:[%s1 + $0x6c] sm:$0xf]
  %v266 = vld [vmem:[%s1 + $0x70] sm:$0xf]
  %v267 = vld [vmem:[%s1 + $0x74] sm:$0xf]
  %v268 = vld [vmem:[%s1 + $0x78] sm:$0xf]
  %v269 = vld [vmem:[%s1 + $0x7c] sm:$0xf]
  %v270 = vld [vmem:[%s1 + $0x80] sm:$0xf]
  %v271 = vld [vmem:[%s1 + $0x84] sm:$0xf]
  %v272 = vld [vmem:[%s1 + $0x88] sm:$0xf]
  %v273 = vld [vmem:[%s1 + $0x8c] sm:$0xf]
  %v274 = vld [vmem:[%s1 + $0x90] sm:$0xf]
  %v275 = vld [vmem:[%s1 + $0x94] sm:$0xf]
  %v276 = vld [vmem:[%s1 + $0x98] sm:$0xf]
  %v277 = vld [vmem:[%s1 + $0x9c] sm:$0xf]
  %v278 = vld [vmem:[%s1 + $0xa0] sm:$0xf]
  %v279 = vld [vmem:[%s1 + $0xa4] sm:$0xf]
  %v280 = vld [vmem:[%s1 + $0xa8] sm:$0xf]
  %v281 = vld [vmem:[%s1 + $0xac] sm:$0xf]
  %v282 = vld [vmem:[%s1 + $0xb0] sm:$0xf]
  %v283 = vld [vmem:[%s1 + $0xb4] sm:$0xf]
  %v284 = vld [vmem:[%s1 + $0xb8] sm:$0xf]
  %v285 = vld [vmem:[%s1 + $0xbc] sm:$0xf]
  %v286 = vld [vmem:[%s1 + $0xc0] sm:$0xf]
  %v287 = vld [vmem:[%s1 + $0xc4] sm:$0xf]
  %v288 = vld [vmem:[%s1 + $0xc8] sm:$0xf]
  %v289 = vld [vmem:[%s1 + $0xcc] sm:$0xf]
  %v290 = vld [vmem:[%s1 + $0xd0] sm:$0xf]
  %v291 = vld [vmem:[%s1 + $0xd4] sm:$0xf]
  %v292 = vld [vmem:[%s1 + $0xd8] sm:$0xf]
  %v293 = vld [vmem:[%s1 + $0xdc] sm:$0xf]
  %v294 = vld [vmem:[%s1 + $0xe0] sm:$0xf]
  %v295 = vld [vmem:[%s1 + $0xe4] sm:$0xf]
  %v296 = vld [vmem:[%s1 + $0xe8] sm:$0xf]
  %v297 = vld [vmem:[%s1 + $0xec] sm:$0xf]
  %v298 = vld [vmem:[%s1 + $0xf0] sm:$0xf]
  %v299 = vld [vmem:[%s1 + $0xf4] sm:$0xf]
  %v300 = vld [vmem:[%s1 + $0xf8] sm:$0xf]
  %v301 = vld [vmem:[%s1 + $0xfc] sm:$0xf]
  %v302 = vld [vmem:[%s1 + $0x100] sm:$0xf]
  %v303 = vld [vmem:[%s1 + $0x104] sm:$0xf]
  %v304 = vld [vmem:[%s1 + $0x108] sm:$0xf]
  %v305 = vld [vmem:[%s1 + $0x10c] sm:$0xf]
  %v306 = vld [vmem:[%s1 + $0x110] sm:$0xf]
  %v307 = vld [vmem:[%s1 + $0x114] sm:$0xf]
  %v308 = vld [vmem:[%s1 + $0x118] sm:$0xf]
  %v309 = vld [vmem:[%s1 + $0x11c] sm:$0xf]
  %v310 = vld [vmem:[%s1 + $0x120] sm:$0xf]
  %v311 = vld [vmem:[%s1 + $0x124] sm:$0xf]
  %v312 = vld [vmem:[%s1 + $0x128] sm:$0xf]
  %v313 = vld [vmem:[%s1 + $0x12c] sm:$0xf]
  %v314 = vld [vmem:[%s1 + $0x130] sm:$0xf]
  %v315 = vld [vmem:[%s1 + $0x134] sm:$0xf]
  %v316 = vld [vmem:[%s1 + $0x138] sm:$0xf]
  %v317 = vld [vmem:[%s1 + $0x13c] sm:$0xf]
  %v318 = vld [vmem:[%s1 + $0x140] sm:$0xf]
  %v319 = vld [vmem:[%s1 + $0x144] sm:$0xf]
  %v320 = vld [vmem:[%s1 + $0x148] sm:$0xf]
  %v321 = vld [vmem:[%s1 + $0x14c] sm:$0xf]
  %v322 = vld [vmem:[%s1 + $0x150] sm:$0xf]
  %v323 = vld [vmem:[%s1 + $0x154] sm:$0xf]
  %v324 = vld [vmem:[%s1 + $0x158] sm:$0xf]
  %v325 = vld [vmem:[%s1 + $0x15c] sm:$0xf]
  %v326 = vld [vmem:[%s1 + $0x160] sm:$0xf]
  %v327 = vld [vmem:[%s1 + $0x164] sm:$0xf]
  %v328 = vld [vmem:[%s1 + $0x168] sm:$0xf]
  %v329 = vld [vmem:[%s1 + $0x16c] sm:$0xf]
  %v330 = vld [vmem:[%s1 + $0x170] sm:$0xf]
  %v331 = vld [vmem:[%s1 + $0x174] sm:$0xf]
  %v332 = vld [vmem:[%s1 + $0x178] sm:$0xf]
  %v333 = vld [vmem:[%s1 + $0x17c] sm:$0xf]
  %v334 = vld [vmem:[%s1 + $0x180] sm:$0xf]
  %v335 = vld [vmem:[%s1 + $0x184] sm:$0xf]
  %v336 = vld [vmem:[%s1 + $0x188] sm:$0xf]
  %v337 = vld [vmem:[%s1 + $0x18c] sm:$0xf]
  %v338 = vld [vmem:[%s1 + $0x190] sm:$0xf]
  %v339 = vld [vmem:[%s1 + $0x194] sm:$0xf]
  %v340 = vld [vmem:[%s1 + $0x198] sm:$0xf]
  %v341 = vld [vmem:[%s1 + $0x19c] sm:$0xf]
  %v342 = vld [vmem:[%s1 + $0x1a0] sm:$0xf]
  %v343 = vld [vmem:[%s1 + $0x1a4] sm:$0xf]
  %v344 = vld [vmem:[%s1 + $0x1a8] sm:$0xf]
  %v345 = vld [vmem:[%s1 + $0x1ac] sm:$0xf]
  %v346 = vld [vmem:[%s1 + $0x1b0] sm:$0xf]
  %v347 = vld [vmem:[%s1 + $0x1b4] sm:$0xf]
  %v348 = vld [vmem:[%s1 + $0x1b8] sm:$0xf]
  %v349 = vld [vmem:[%s1 + $0x1bc] sm:$0xf]
  %v350 = vld [vmem:[%s1 + $0x1c0] sm:$0xf]
  %v351 = vld [vmem:[%s1 + $0x1c4] sm:$0xf]
  %v352 = vld [vmem:[%s1 + $0x1c8] sm:$0xf]
  %v353 = vld [vmem:[%s1 + $0x1cc] sm:$0xf]
  %v354 = vld [vmem:[%s1 + $0x1d0] sm:$0xf]
  %v355 = vld [vmem:[%s1 + $0x1d4] sm:$0xf]
  %v356 = vld [vmem:[%s1 + $0x1d8] sm:$0xf]
  %v357 = vld [vmem:[%s1 + $0x1dc] sm:$0xf]
  %v358 = vld [vmem:[%s1 + $0x1e0] sm:$0xf]
  %v359 = vld [vmem:[%s1 + $0x1e4] sm:$0xf]
  %v360 = vld [vmem:[%s1 + $0x1e8] sm:$0xf]
  %v361 = vld [vmem:[%s1 + $0x1ec] sm:$0xf]
  %v362 = vld [vmem:[%s1 + $0x1f0] sm:$0xf]
  %v363 = vld [vmem:[%s1 + $0x1f4] sm:$0xf]
  %v364 = vld [vmem:[%s1 + $0x1f8] sm:$0xf]
  %v365 = vld [vmem:[%s1 + $0x1fc] sm:$0xf]
  %v366 = vld [vmem:[%s1 + $0x200] sm:$0xf]
  %v367 = vld [vmem:[%s1 + $0x204] sm:$0xf]
  %v368 = vld [vmem:[%s1 + $0x208] sm:$0xf]
  %v369 = vld [vmem:[%s1 + $0x20c] sm:$0xf]
  %v370 = vld [vmem:[%s1 + $0x210] sm:$0xf]
  %v371 = vld [vmem:[%s1 + $0x214] sm:$0xf]
  %v372 = vld [vmem:[%s1 + $0x218] sm:$0xf]
  %v373 = vld [vmem:[%s1 + $0x21c] sm:$0xf]
  %v374 = vld [vmem:[%s1 + $0x220] sm:$0xf]
  %v375 = vld [vmem:[%s1 + $0x224] sm:$0xf]
  %v376 = vld [vmem:[%s1 + $0x228] sm:$0xf]
  %v377 = vld [vmem:[%s1 + $0x22c] sm:$0xf]
  %v378 = vld [vmem:[%s1 + $0x230] sm:$0xf]
  %v379 = vld [vmem:[%s1 + $0x234] sm:$0xf]
  %v380 = vld [vmem:[%s1 + $0x238] sm:$0xf]
  %v381 = vld [vmem:[%s1 + $0x23c] sm:$0xf]
  %v382 = vld [vmem:[%s1 + $0x240] sm:$0xf]
  %v383 = vld [vmem:[%s1 + $0x244] sm:$0xf]
  %v384 = vld [vmem:[%s1 + $0x248] sm:$0xf]
  %v385 = vld [vmem:[%s1 + $0x24c] sm:$0xf]
  %v386 = vld [vmem:[%s1 + $0x250] sm:$0xf]
  %v387 = vld [vmem:[%s1 + $0x254] sm:$0xf]
  %v388 = vld [vmem:[%s1 + $0x258] sm:$0xf]
  %v389 = vld [vmem:[%s1 + $0x25c] sm:$0xf]
  %v390 = vld [vmem:[%s1 + $0x260] sm:$0xf]
  %v391 = vld [vmem:[%s1 + $0x264] sm:$0xf]
  %v392 = vld [vmem:[%s1 + $0x268] sm:$0xf]
  %v393 = vld [vmem:[%s1 + $0x26c] sm:$0xf]
  %v394 = vld [vmem:[%s1 + $0x270] sm:$0xf]
  %v395 = vld [vmem:[%s1 + $0x274] sm:$0xf]
  %v396 = vld [vmem:[%s1 + $0x278] sm:$0xf]
  %v397 = vld [vmem:[%s1 + $0x27c] sm:$0xf]
  %v398 = vld [vmem:[%s1 + $0x280] sm:$0xf]
  %v399 = vld [vmem:[%s1 + $0x284] sm:$0xf]
  %v400 = vld [vmem:[%s1 + $0x288] sm:$0xf]
  %v401 = vld [vmem:[%s1 + $0x28c] sm:$0xf]
  %v402 = vld [vmem:[%s1 + $0x290] sm:$0xf]
  %v403 = vld [vmem:[%s1 + $0x294] sm:$0xf]
  %v404 = vld [vmem:[%s1 + $0x298] sm:$0xf]
  %v405 = vld [vmem:[%s1 + $0x29c] sm:$0xf]
  %v406 = vld [vmem:[%s1 + $0x2a0] sm:$0xf]
  %v407 = vld [vmem:[%s1 + $0x2a4] sm:$0xf]
  %v408 = vld [vmem:[%s1 + $0x2a8] sm:$0xf]
  %v409 = vld [vmem:[%s1 + $0x2ac] sm:$0xf]
  %v410 = vld [vmem:[%s1 + $0x2b0] sm:$0xf]
  %v411 = vld [vmem:[%s1 + $0x2b4] sm:$0xf]
  %v412 = vld [vmem:[%s1 + $0x2b8] sm:$0xf]
  %v413 = vld [vmem:[%s1 + $0x2bc] sm:$0xf]
  %v414 = vld [vmem:[%s1 + $0x2c0] sm:$0xf]
  %v415 = vld [vmem:[%s1 + $0x2c4] sm:$0xf]
  %v416 = vld [vmem:[%s1 + $0x2c8] sm:$0xf]
  %v417 = vld [vmem:[%s1 + $0x2cc] sm:$0xf]
  %v418 = vld [vmem:[%s1 + $0x2d0] sm:$0xf]
  %v419 = vld [vmem:[%s1 + $0x2d4] sm:$0xf]
  %v420 = vld [vmem:[%s1 + $0x2d8] sm:$0xf]
  %v421 = vld [vmem:[%s1 + $0x2dc] sm:$0xf]
  %v422 = vld [vmem:[%s1 + $0x2e0] sm:$0xf]
  %v423 = vld [vmem:[%s1 + $0x2e4] sm:$0xf]
  %v424 = vld [vmem:[%s1 + $0x2e8] sm:$0xf]
  %v425 = vld [vmem:[%s1 + $0x2ec] sm:$0xf]
  %v426 = vld [vmem:[%s1 + $0x2f0] sm:$0xf]
  %v427 = vld [vmem:[%s1 + $0x2f4] sm:$0xf]
  %v428 = vld [vmem:[%s1 + $0x2f8] sm:$0xf]
  %v429 = vld [vmem:[%s1 + $0x2fc] sm:$0xf]
  %v430 = vld [vmem:[%s1 + $0x300] sm:$0xf]
  %v431 = vld [vmem:[%s1 + $0x304] sm:$0xf]
  %v432 = vld [vmem:[%s1 + $0x308] sm:$0xf]
  %v433 = vld [vmem:[%s1 + $0x30c] sm:$0xf]
  %v434 = vld [vmem:[%s1 + $0x310] sm:$0xf]
  %v435 = vld [vmem:[%s1 + $0x314] sm:$0xf]
  %v436 = vld [vmem:[%s1 + $0x318] sm:$0xf]
  %v437 = vld [vmem:[%s1 + $0x31c] sm:$0xf]
  %v438 = vld [vmem:[%s1 + $0x320] sm:$0xf]
  %v439 = vld [vmem:[%s1 + $0x324] sm:$0xf]
  %v440 = vld [vmem:[%s1 + $0x328] sm:$0xf]
  %v441 = vld [vmem:[%s1 + $0x32c] sm:$0xf]
  %v442 = vld [vmem:[%s1 + $0x330] sm:$0xf]
  %v443 = vld [vmem:[%s1 + $0x334] sm:$0xf]
  %v444 = vld [vmem:[%s1 + $0x338] sm:$0xf]
  %v445 = vld [vmem:[%s1 + $0x33c] sm:$0xf]
  %v446 = vld [vmem:[%s1 + $0x340] sm:$0xf]
  %v447 = vld [vmem:[%s1 + $0x344] sm:$0xf]
  %v448 = vld [vmem:[%s1 + $0x348] sm:$0xf]
  %v449 = vld [vmem:[%s1 + $0x34c] sm:$0xf]
  %v450 = vld [vmem:[%s1 + $0x350] sm:$0xf]
  %v451 = vld [vmem:[%s1 + $0x354] sm:$0xf]
  %v452 = vld [vmem:[%s1 + $0x358] sm:$0xf]
  %v453 = vld [vmem:[%s1 + $0x35c] sm:$0xf]
  %v454 = vld [vmem:[%s1 + $0x360] sm:$0xf]
  %v455 = vld [vmem:[%s1 + $0x364] sm:$0xf]
  %v456 = vld [vmem:[%s1 + $0x368] sm:$0xf]
  %v457 = vld [vmem:[%s1 + $0x36c] sm:$0xf]
  %v458 = vld [vmem:[%s1 + $0x370] sm:$0xf]
  %v459 = vld [vmem:[%s1 + $0x374] sm:$0xf]
  %v460 = vld [vmem:[%s1 + $0x378] sm:$0xf]
  %v461 = vld [vmem:[%s1 + $0x37c] sm:$0xf]
  %v462 = vld [vmem:[%s1 + $0x380] sm:$0xf]
  %v463 = vld [vmem:[%s1 + $0x384] sm:$0xf]
  %v464 = vld [vmem:[%s1 + $0x388] sm:$0xf]
  %v465 = vld [vmem:[%s1 + $0x38c] sm:$0xf]
  %v466 = vld [vmem:[%s1 + $0x390] sm:$0xf]
  %v467 = vld [vmem:[%s1 + $0x394] sm:$0xf]
  %v468 = vld [vmem:[%s1 + $0x398] sm:$0xf]
  %v469 = vld [vmem:[%s1 + $0x39c] sm:$0xf]
  %v470 = vld [vmem:[%s1 + $0x3a0] sm:$0xf]
  %v471 = vld [vmem:[%s1 + $0x3a4] sm:$0xf]
  %v472 = vld [vmem:[%s1 + $0x3a8] sm:$0xf]
  %v473 = vld [vmem:[%s1 + $0x3ac] sm:$0xf]
  %v474 = vld [vmem:[%s1 + $0x3b0] sm:$0xf]
  %v475 = vld [vmem:[%s1 + $0x3b4] sm:$0xf]
  %v476 = vld [vmem:[%s1 + $0x3b8] sm:$0xf]
  %v477 = vld [vmem:[%s1 + $0x3bc] sm:$0xf]
  %v478 = vld [vmem:[%s1 + $0x3c0] sm:$0xf]
  %v479 = vld [vmem:[%s1 + $0x3c4] sm:$0xf]
  %v480 = vld [vmem:[%s1 + $0x3c8] sm:$0xf]
  %v481 = vld [vmem:[%s1 + $0x3cc] sm:$0xf]
  %v482 = vld [vmem:[%s1 + $0x3d0] sm:$0xf]
  %v483 = vld [vmem:[%s1 + $0x3d4] sm:$0xf]
  %v484 = vld [vmem:[%s1 + $0x3d8] sm:$0xf]
  %v485 = vld [vmem:[%s1 + $0x3dc] sm:$0xf]
  %v486 = vld [vmem:[%s1 + $0x3e0] sm:$0xf]
  %v487 = vld [vmem:[%s1 + $0x3e4] sm:$0xf]
  %v488 = vld [vmem:[%s1 + $0x3e8] sm:$0xf]
  %v489 = vld [vmem:[%s1 + $0x3ec] sm:$0xf]
  %v490 = vld [vmem:[%s1 + $0x3f0] sm:$0xf]
  %v491 = vld [vmem:[%s1 + $0x3f4] sm:$0xf]
  %v492 = vld [vmem:[%s1 + $0x3f8] sm:$0xf]
  %v493 = vld [vmem:[%s1 + $0x3fc] sm:$0xf]
  %v494 = vld [vmem:[%s1 + $0x400] sm:$0xf]
  %v495 = vld [vmem:[%s1 + $0x404] sm:$0xf]
  %v496 = vld [vmem:[%s1 + $0x408] sm:$0xf]
  %v497 = vld [vmem:[%s1 + $0x40c] sm:$0xf]
  %v498 = vld [vmem:[%s1 + $0x410] sm:$0xf]
  %v499 = vld [vmem:[%s1 + $0x414] sm:$0xf]
  %v500 = vld [vmem:[%s1 + $0x418] sm:$0xf]
  %v501 = vld [vmem:[%s1 + $0x41c] sm:$0xf]
  %v502 = vld [vmem:[%s1 + $0x420] sm:$0xf]
  %v503 = vld [vmem:[%s1 + $0x424] sm:$0xf]
  %v504 = vld [vmem:[%s1 + $0x428] sm:$0xf]
  %v505 = vld [vmem:[%s1 + $0x42c] sm:$0xf]
  %v506 = vld [vmem:[%s1 + $0x430] sm:$0xf]
  %v507 = vld [vmem:[%s1 + $0x434] sm:$0xf]
  %v508 = vld [vmem:[%s1 + $0x438] sm:$0xf]
  %v509 = vld [vmem:[%s1 + $0x43c] sm:$0xf]
  %v510 = vld [vmem:[%s1 + $0x440] sm:$0xf]
  %v511 = vld [vmem:[%s1 + $0x444] sm:$0xf]
  %v512 = vld [vmem:[%s1 + $0x448] sm:$0xf]
  %v513 = vld [vmem:[%s1 + $0x44c] sm:$0xf]
  %v514 = vld [vmem:[%s1 + $0x450] sm:$0xf]
  %v515 = vld [vmem:[%s1 + $0x454] sm:$0xf]
  %v516 = vld [vmem:[%s1 + $0x458] sm:$0xf]
  %v517 = vld [vmem:[%s1 + $0x45c] sm:$0xf]
  %v518 = vld [vmem:[%s1 + $0x460] sm:$0xf]
  %v519 = vld [vmem:[%s1 + $0x464] sm:$0xf]
  %v520 = vld [vmem:[%s1 + $0x468] sm:$0xf]
  %v521 = vld [vmem:[%s1 + $0x46c] sm:$0xf]
  %v522 = vld [vmem:[%s1 + $0x470] sm:$0xf]
  %v523 = vld [vmem:[%s1 + $0x474] sm:$0xf]
  %v524 = vld [vmem:[%s1 + $0x478] sm:$0xf]
  %v525 = vld [vmem:[%s1 + $0x47c] sm:$0xf]
  %v526 = vld [vmem:[%s1 + $0x480] sm:$0xf]
  %v527 = vld [vmem:[%s1 + $0x484] sm:$0xf]
  %v528 = vld [vmem:[%s1 + $0x488] sm:$0xf]
  %v529 = vld [vmem:[%s1 + $0x48c] sm:$0xf]
  %v530 = vld [vmem:[%s1 + $0x490] sm:$0xf]
  %v531 = vld [vmem:[%s1 + $0x494] sm:$0xf]
  %v532 = vld [vmem:[%s1 + $0x498] sm:$0xf]
  %v533 = vld [vmem:[%s1 + $0x49c] sm:$0xf]
  %v534 = vld [vmem:[%s1 + $0x4a0] sm:$0xf]
  %v535 = vld [vmem:[%s1 + $0x4a4] sm:$0xf]
  %v536 = vld [vmem:[%s1 + $0x4a8] sm:$0xf]
  %v537 = vld [vmem:[%s1 + $0x4ac] sm:$0xf]
  %v538 = vld [vmem:[%s1 + $0x4b0] sm:$0xf]
  %v539 = vld [vmem:[%s1 + $0x4b4] sm:$0xf]
  %v540 = vld [vmem:[%s1 + $0x4b8] sm:$0xf]
  %v541 = vld [vmem:[%s1 + $0x4bc] sm:$0xf]
  %v542 = vld [vmem:[%s1 + $0x4c0] sm:$0xf]
  %v543 = vld [vmem:[%s1 + $0x4c4] sm:$0xf]
  %v544 = vld [vmem:[%s1 + $0x4c8] sm:$0xf]
  %v545 = vld [vmem:[%s1 + $0x4cc] sm:$0xf]
  %v546 = vld [vmem:[%s1 + $0x4d0] sm:$0xf]
  %v547 = vld [vmem:[%s1 + $0x4d4] sm:$0xf]
  %v548 = vld [vmem:[%s1 + $0x4d8] sm:$0xf]
  %v549 = vld [vmem:[%s1 + $0x4dc] sm:$0xf]
  %v550 = vld [vmem:[%s1 + $0x4e0] sm:$0xf]
  %v551 = vld [vmem:[%s1 + $0x4e4] sm:$0xf]
  %v552 = vld [vmem:[%s1 + $0x4e8] sm:$0xf]
  %v553 = vld [vmem:[%s1 + $0x4ec] sm:$0xf]
  %v554 = vld [vmem:[%s1 + $0x4f0] sm:$0xf]
  %v555 = vld [vmem:[%s1 + $0x4f4] sm:$0xf]
  %v556 = vld [vmem:[%s1 + $0x4f8] sm:$0xf]
  %v557 = vld [vmem:[%s1 + $0x4fc] sm:$0xf]
  %v558 = vld [vmem:[%s1 + $0x500] sm:$0xf]
  %v559 = vld [vmem:[%s1 + $0x504] sm:$0xf]
  %v560 = vld [vmem:[%s1 + $0x508] sm:$0xf]
  %v561 = vld [vmem:[%s1 + $0x50c] sm:$0xf]
  %v562 = vld [vmem:[%s1 + $0x510] sm:$0xf]
  %v563 = vld [vmem:[%s1 + $0x514] sm:$0xf]
  %v564 = vld [vmem:[%s1 + $0x518] sm:$0xf]
  %v565 = vld [vmem:[%s1 + $0x51c] sm:$0xf]
  %v566 = vld [vmem:[%s1 + $0x520] sm:$0xf]
  %v567 = vld [vmem:[%s1 + $0x524] sm:$0xf]
  %v568 = vld [vmem:[%s1 + $0x528] sm:$0xf]
  %v569 = vld [vmem:[%s1 + $0x52c] sm:$0xf]
  %v570 = vld [vmem:[%s1 + $0x530] sm:$0xf]
  %v571 = vld [vmem:[%s1 + $0x534] sm:$0xf]
  %v572 = vld [vmem:[%s1 + $0x538] sm:$0xf]
  %v573 = vld [vmem:[%s1 + $0x53c] sm:$0xf]
  %v574 = vld [vmem:[%s1 + $0x540] sm:$0xf]
  %v575 = vld [vmem:[%s1 + $0x544] sm:$0xf]
  %v576 = vld [vmem:[%s1 + $0x548] sm:$0xf]
  %v577 = vld [vmem:[%s1 + $0x54c] sm:$0xf]
  %v578 = vld [vmem:[%s1 + $0x550] sm:$0xf]
  %v579 = vld [vmem:[%s1 + $0x554] sm:$0xf]
  %v580 = vld [vmem:[%s1 + $0x558] sm:$0xf]
  %v581 = vld [vmem:[%s1 + $0x55c] sm:$0xf]
  %v582 = vld [vmem:[%s1 + $0x560] sm:$0xf]
  %v583 = vld [vmem:[%s1 + $0x564] sm:$0xf]
  %v584 = vld [vmem:[%s1 + $0x568] sm:$0xf]
  %v585 = vld [vmem:[%s1 + $0x56c] sm:$0xf]
  %v586 = vld [vmem:[%s1 + $0x570] sm:$0xf]
  %v587 = vld [vmem:[%s1 + $0x574] sm:$0xf]
  %v588 = vld [vmem:[%s1 + $0x578] sm:$0xf]
  %v589 = vld [vmem:[%s1 + $0x57c] sm:$0xf]
  %v590 = vld [vmem:[%s1 + $0x580] sm:$0xf]
  %v591 = vld [vmem:[%s1 + $0x584] sm:$0xf]
  %v592 = vld [vmem:[%s1 + $0x588] sm:$0xf]
  %v593 = vld [vmem:[%s1 + $0x58c] sm:$0xf]
  %v594 = vld [vmem:[%s1 + $0x590] sm:$0xf]
  %v595 = vld [vmem:[%s1 + $0x594] sm:$0xf]
  %v596 = vld [vmem:[%s1 + $0x598] sm:$0xf]
  %v597 = vld [vmem:[%s1 + $0x59c] sm:$0xf]
  %v598 = vld [vmem:[%s1 + $0x5a0] sm:$0xf]
  %v599 = vld [vmem:[%s1 + $0x5a4] sm:$0xf]
  %v600 = vld [vmem:[%s1 + $0x5a8] sm:$0xf]
  %v601 = vld [vmem:[%s1 + $0x5ac] sm:$0xf]
  %v602 = vld [vmem:[%s1 + $0x5b0] sm:$0xf]
  %v603 = vld [vmem:[%s1 + $0x5b4] sm:$0xf]
  %v604 = vld [vmem:[%s1 + $0x5b8] sm:$0xf]
  %v605 = vld [vmem:[%s1 + $0x5bc] sm:$0xf]
  %v606 = vld [vmem:[%s1 + $0x5c0] sm:$0xf]
  %v607 = vld [vmem:[%s1 + $0x5c4] sm:$0xf]
  %v608 = vld [vmem:[%s1 + $0x5c8] sm:$0xf]
  %v609 = vld [vmem:[%s1 + $0x5cc] sm:$0xf]
  %v610 = vld [vmem:[%s1 + $0x5d0] sm:$0xf]
  %v611 = vld [vmem:[%s1 + $0x5d4] sm:$0xf]
  %v612 = vld [vmem:[%s1 + $0x5d8] sm:$0xf]
  %v613 = vld [vmem:[%s1 + $0x5dc] sm:$0xf]
  %v614 = vld [vmem:[%s1 + $0x5e0] sm:$0xf]
  %v615 = vld [vmem:[%s1 + $0x5e4] sm:$0xf]
  %v616 = vld [vmem:[%s1 + $0x5e8] sm:$0xf]
  %v617 = vld [vmem:[%s1 + $0x5ec] sm:$0xf]
  %v618 = vld [vmem:[%s1 + $0x5f0] sm:$0xf]
  %v619 = vld [vmem:[%s1 + $0x5f4] sm:$0xf]
  %v620 = vld [vmem:[%s1 + $0x5f8] sm:$0xf]
  %v621 = vld [vmem:[%s1 + $0x5fc] sm:$0xf]
  %v622 = vld [vmem:[%s1 + $0x600] sm:$0xf]
  %v623 = vld [vmem:[%s1 + $0x604] sm:$0xf]
  %v624 = vld [vmem:[%s1 + $0x608] sm:$0xf]
  %v625 = vld [vmem:[%s1 + $0x60c] sm:$0xf]
  %v626 = vld [vmem:[%s1 + $0x610] sm:$0xf]
  %v627 = vld [vmem:[%s1 + $0x614] sm:$0xf]
  %v628 = vld [vmem:[%s1 + $0x618] sm:$0xf]
  %v629 = vld [vmem:[%s1 + $0x61c] sm:$0xf]
  %v630 = vld [vmem:[%s1 + $0x620] sm:$0xf]
  %v631 = vld [vmem:[%s1 + $0x624] sm:$0xf]
  %v632 = vld [vmem:[%s1 + $0x628] sm:$0xf]
  %v633 = vld [vmem:[%s1 + $0x62c] sm:$0xf]
  %v634 = vld [vmem:[%s1 + $0x630] sm:$0xf]
  %v635 = vld [vmem:[%s1 + $0x634] sm:$0xf]
  %v636 = vld [vmem:[%s1 + $0x638] sm:$0xf]
  %v637 = vld [vmem:[%s1 + $0x63c] sm:$0xf]
  %v638 = vld [vmem:[%s1 + $0x640] sm:$0xf]
  %v639 = vld [vmem:[%s1 + $0x644] sm:$0xf]
  %v640 = vld [vmem:[%s1 + $0x648] sm:$0xf]
  %v641 = vld [vmem:[%s1 + $0x64c] sm:$0xf]
  %v642 = vld [vmem:[%s1 + $0x650] sm:$0xf]
  %v643 = vld [vmem:[%s1 + $0x654] sm:$0xf]
  %v644 = vld [vmem:[%s1 + $0x658] sm:$0xf]
  %v645 = vld [vmem:[%s1 + $0x65c] sm:$0xf]
  %v646 = vld [vmem:[%s1 + $0x660] sm:$0xf]
  %v647 = vld [vmem:[%s1 + $0x664] sm:$0xf]
  %v648 = vld [vmem:[%s1 + $0x668] sm:$0xf]
  %v649 = vld [vmem:[%s1 + $0x66c] sm:$0xf]
  %v650 = vld [vmem:[%s1 + $0x670] sm:$0xf]
  %v651 = vld [vmem:[%s1 + $0x674] sm:$0xf]
  %v652 = vld [vmem:[%s1 + $0x678] sm:$0xf]
  %v653 = vld [vmem:[%s1 + $0x67c] sm:$0xf]
  %v654 = vld [vmem:[%s1 + $0x680] sm:$0xf]
  %v655 = vld [vmem:[%s1 + $0x684] sm:$0xf]
  %v656 = vld [vmem:[%s1 + $0x688] sm:$0xf]
  %v657 = vld [vmem:[%s1 + $0x68c] sm:$0xf]
  %v658 = vld [vmem:[%s1 + $0x690] sm:$0xf]
  %v659 = vld [vmem:[%s1 + $0x694] sm:$0xf]
  %v660 = vld [vmem:[%s1 + $0x698] sm:$0xf]
  %v661 = vld [vmem:[%s1 + $0x69c] sm:$0xf]
  %v662 = vld [vmem:[%s1 + $0x6a0] sm:$0xf]
  %v663 = vld [vmem:[%s1 + $0x6a4] sm:$0xf]
  %v664 = vld [vmem:[%s1 + $0x6a8] sm:$0xf]
  %v665 = vld [vmem:[%s1 + $0x6ac] sm:$0xf]
  %v666 = vld [vmem:[%s1 + $0x6b0] sm:$0xf]
  %v667 = vld [vmem:[%s1 + $0x6b4] sm:$0xf]
  %v668 = vld [vmem:[%s1 + $0x6b8] sm:$0xf]
  %v669 = vld [vmem:[%s1 + $0x6bc] sm:$0xf]
  %v670 = vld [vmem:[%s1 + $0x6c0] sm:$0xf]
  %v671 = vld [vmem:[%s1 + $0x6c4] sm:$0xf]
  %v672 = vld [vmem:[%s1 + $0x6c8] sm:$0xf]
  %v673 = vld [vmem:[%s1 + $0x6cc] sm:$0xf]
  %v674 = vld [vmem:[%s1 + $0x6d0] sm:$0xf]
  %v675 = vld [vmem:[%s1 + $0x6d4] sm:$0xf]
  %v676 = vld [vmem:[%s1 + $0x6d8] sm:$0xf]
  %v677 = vld [vmem:[%s1 + $0x6dc] sm:$0xf]
  %v678 = vld [vmem:[%s1 + $0x6e0] sm:$0xf]
  %v679 = vld [vmem:[%s1 + $0x6e4] sm:$0xf]
  %v680 = vld [vmem:[%s1 + $0x6e8] sm:$0xf]
  %v681 = vld [vmem:[%s1 + $0x6ec] sm:$0xf]
  %v682 = vld [vmem:[%s1 + $0x6f0] sm:$0xf]
  %v683 = vld [vmem:[%s1 + $0x6f4] sm:$0xf]
  %v684 = vld [vmem:[%s1 + $0x6f8] sm:$0xf]
  %v685 = vld [vmem:[%s1 + $0x6fc] sm:$0xf]
  %v686 = vld [vmem:[%s1 + $0x700] sm:$0xf]
  %v687 = vld [vmem:[%s1 + $0x704] sm:$0xf]
  %v688 = vld [vmem:[%s1 + $0x708] sm:$0xf]
  %v689 = vld [vmem:[%s1 + $0x70c] sm:$0xf]
  %v690 = vld [vmem:[%s1 + $0x710] sm:$0xf]
  %v691 = vld [vmem:[%s1 + $0x714] sm:$0xf]
  %v692 = vld [vmem:[%s1 + $0x718] sm:$0xf]
  %v693 = vld [vmem:[%s1 + $0x71c] sm:$0xf]
  %v694 = vld [vmem:[%s1 + $0x720] sm:$0xf]
  %v695 = vld [vmem:[%s1 + $0x724] sm:$0xf]
  %v696 = vld [vmem:[%s1 + $0x728] sm:$0xf]
  %v697 = vld [vmem:[%s1 + $0x72c] sm:$0xf]
  %v698 = vld [vmem:[%s1 + $0x730] sm:$0xf]
  %v699 = vld [vmem:[%s1 + $0x734] sm:$0xf]
  %v700 = vld [vmem:[%s1 + $0x738] sm:$0xf]
  %v701 = vld [vmem:[%s1 + $0x73c] sm:$0xf]
  %v702 = vld [vmem:[%s1 + $0x740] sm:$0xf]
  %v703 = vld [vmem:[%s1 + $0x744] sm:$0xf]
  %v704 = vld [vmem:[%s1 + $0x748] sm:$0xf]
  %v705 = vld [vmem:[%s1 + $0x74c] sm:$0xf]
  %v706 = vld [vmem:[%s1 + $0x750] sm:$0xf]
  %v707 = vld [vmem:[%s1 + $0x754] sm:$0xf]
  %v708 = vld [vmem:[%s1 + $0x758] sm:$0xf]
  %v709 = vld [vmem:[%s1 + $0x75c] sm:$0xf]
  %v710 = vld [vmem:[%s1 + $0x760] sm:$0xf]
  %v711 = vld [vmem:[%s1 + $0x764] sm:$0xf]
  %v712 = vld [vmem:[%s1 + $0x768] sm:$0xf]
  %v713 = vld [vmem:[%s1 + $0x76c] sm:$0xf]
  %v714 = vld [vmem:[%s1 + $0x770] sm:$0xf]
  %v715 = vld [vmem:[%s1 + $0x774] sm:$0xf]
  %v716 = vld [vmem:[%s1 + $0x778] sm:$0xf]
  %v717 = vld [vmem:[%s1 + $0x77c] sm:$0xf]
  %v718 = vld [vmem:[%s1 + $0x780] sm:$0xf]
  %v719 = vld [vmem:[%s1 + $0x784] sm:$0xf]
  %v720 = vld [vmem:[%s1 + $0x788] sm:$0xf]
  %v721 = vld [vmem:[%s1 + $0x78c] sm:$0xf]
  %v722 = vld [vmem:[%s1 + $0x790] sm:$0xf]
  %v723 = vld [vmem:[%s1 + $0x794] sm:$0xf]
  %v724 = vld [vmem:[%s1 + $0x798] sm:$0xf]
  %v725 = vld [vmem:[%s1 + $0x79c] sm:$0xf]
  %v726 = vld [vmem:[%s1 + $0x7a0] sm:$0xf]
  %v727 = vld [vmem:[%s1 + $0x7a4] sm:$0xf]
  %v728 = vld [vmem:[%s1 + $0x7a8] sm:$0xf]
  %v729 = vld [vmem:[%s1 + $0x7ac] sm:$0xf]
  %v730 = vld [vmem:[%s1 + $0x7b0] sm:$0xf]
  %v731 = vld [vmem:[%s1 + $0x7b4] sm:$0xf]
  %v732 = vld [vmem:[%s1 + $0x7b8] sm:$0xf]
  %v733 = vld [vmem:[%s1 + $0x7bc] sm:$0xf]
  %v734 = vld [vmem:[%s1 + $0x7c0] sm:$0xf]
  %v735 = vld [vmem:[%s1 + $0x7c4] sm:$0xf]
  %v736 = vld [vmem:[%s1 + $0x7c8] sm:$0xf]
  %v737 = vld [vmem:[%s1 + $0x7cc] sm:$0xf]
  %v738 = vld [vmem:[%s1 + $0x7d0] sm:$0xf]
  %v739 = vld [vmem:[%s1 + $0x7d4] sm:$0xf]
  %v740 = vld [vmem:[%s1 + $0x7d8] sm:$0xf]
  %v741 = vld [vmem:[%s1 + $0x7dc] sm:$0xf]
  %v742 = vld [vmem:[%s1 + $0x7e0] sm:$0xf]
  %v743 = vld [vmem:[%s1 + $0x7e4] sm:$0xf]
  %v744 = vld [vmem:[%s1 + $0x7e8] sm:$0xf]
  %v745 = vld [vmem:[%s1 + $0x7ec] sm:$0xf]
  %v746 = vld [vmem:[%s1 + $0x7f0] sm:$0xf]
  %v747 = vld [vmem:[%s1 + $0x7f4] sm:$0xf]
  %v748 = vld [vmem:[%s1 + $0x7f8] sm:$0xf]
  %v749 = vld [vmem:[%s1 + $0x7fc] sm:$0xf]
  %v750 = vld [vmem:[%s1 + $0x800] sm:$0xf]
  %v751 = vld [vmem:[%s1 + $0x804] sm:$0xf]
  %v752 = vld [vmem:[%s1 + $0x808] sm:$0xf]
  %v753 = vld [vmem:[%s1 + $0x80c] sm:$0xf]
  %v754 = vld [vmem:[%s1 + $0x810] sm:$0xf]
  %v755 = vld [vmem:[%s1 + $0x814] sm:$0xf]
  %v756 = vld [vmem:[%s1 + $0x818] sm:$0xf]
  %v757 = vld [vmem:[%s1 + $0x81c] sm:$0xf]
  %v758 = vld [vmem:[%s1 + $0x820] sm:$0xf]
  %v759 = vld [vmem:[%s1 + $0x824] sm:$0xf]
  %v760 = vld [vmem:[%s1 + $0x828] sm:$0xf]
  %v761 = vld [vmem:[%s1 + $0x82c] sm:$0xf]
  %v762 = vld [vmem:[%s1 + $0x830] sm:$0xf]
  %v763 = vld [vmem:[%s1 + $0x834] sm:$0xf]
  %v764 = vld [vmem:[%s1 + $0x838] sm:$0xf]
  %v765 = vld [vmem:[%s1 + $0x83c] sm:$0xf]
  %v766 = vld [vmem:[%s1 + $0x840] sm:$0xf]
  %v767 = vld [vmem:[%s1 + $0x844] sm:$0xf]
  %v768 = vld [vmem:[%s1 + $0x848] sm:$0xf]
  %v769 = vld [vmem:[%s1 + $0x84c] sm:$0xf]
  %v770 = vld [vmem:[%s1 + $0x850] sm:$0xf]
  %v771 = vld [vmem:[%s1 + $0x854] sm:$0xf]
  %v772 = vld [vmem:[%s1 + $0x858] sm:$0xf]
  %v773 = vld [vmem:[%s1 + $0x85c] sm:$0xf]
  %v774 = vld [vmem:[%s1 + $0x860] sm:$0xf]
  %v775 = vld [vmem:[%s1 + $0x864] sm:$0xf]
  %v776 = vld [vmem:[%s1 + $0x868] sm:$0xf]
  %v777 = vld [vmem:[%s1 + $0x86c] sm:$0xf]
  %v778 = vld [vmem:[%s1 + $0x870] sm:$0xf]
  %v779 = vld [vmem:[%s1 + $0x874] sm:$0xf]
  %v780 = vld [vmem:[%s1 + $0x878] sm:$0xf]
  %v781 = vld [vmem:[%s1 + $0x87c] sm:$0xf]
  %v782 = vld [vmem:[%s1 + $0x880] sm:$0xf]
  %v783 = vld [vmem:[%s1 + $0x884] sm:$0xf]
  %v784 = vld [vmem:[%s1 + $0x888] sm:$0xf]
  %v785 = vld [vmem:[%s1 + $0x88c] sm:$0xf]
  %v786 = vld [vmem:[%s1 + $0x890] sm:$0xf]
  %v787 = vld [vmem:[%s1 + $0x894] sm:$0xf]
  %v788 = vld [vmem:[%s1 + $0x898] sm:$0xf]
  %v789 = vld [vmem:[%s1 + $0x89c] sm:$0xf]
  %v790 = vld [vmem:[%s1 + $0x8a0] sm:$0xf]
  %v791 = vld [vmem:[%s1 + $0x8a4] sm:$0xf]
  %v792 = vld [vmem:[%s1 + $0x8a8] sm:$0xf]
  %v793 = vld [vmem:[%s1 + $0x8ac] sm:$0xf]
  %v794 = vld [vmem:[%s1 + $0x8b0] sm:$0xf]
  %v795 = vld [vmem:[%s1 + $0x8b4] sm:$0xf]
  %v796 = vld [vmem:[%s1 + $0x8b8] sm:$0xf]
  %v797 = vld [vmem:[%s1 + $0x8bc] sm:$0xf]
  %v798 = vld [vmem:[%s1 + $0x8c0] sm:$0xf]
  %v799 = vld [vmem:[%s1 + $0x8c4] sm:$0xf]
  %v800 = vld [vmem:[%s1 + $0x8c8] sm:$0xf]
  %v801 = vld [vmem:[%s1 + $0x8cc] sm:$0xf]
  %v802 = vld [vmem:[%s1 + $0x8d0] sm:$0xf]
  %v803 = vld [vmem:[%s1 + $0x8d4] sm:$0xf]
  %v804 = vld [vmem:[%s1 + $0x8d8] sm:$0xf]
  %v805 = vld [vmem:[%s1 + $0x8dc] sm:$0xf]
  %v806 = vld [vmem:[%s1 + $0x8e0] sm:$0xf]
  %v807 = vld [vmem:[%s1 + $0x8e4] sm:$0xf]
  %v808 = vld [vmem:[%s1 + $0x8e8] sm:$0xf]
  %v809 = vld [vmem:[%s1 + $0x8ec] sm:$0xf]
  %v810 = vld [vmem:[%s1 + $0x8f0] sm:$0xf]
  %v811 = vld [vmem:[%s1 + $0x8f4] sm:$0xf]
  %v812 = vld [vmem:[%s1 + $0x8f8] sm:$0xf]
  %v813 = vld [vmem:[%s1 + $0x8fc] sm:$0xf]
  %v814 = vld [vmem:[%s1 + $0x900] sm:$0xf]
  %v815 = vld [vmem:[%s1 + $0x904] sm:$0xf]
  %v816 = vld [vmem:[%s1 + $0x908] sm:$0xf]
  %v817 = vld [vmem:[%s1 + $0x90c] sm:$0xf]
  %v818 = vld [vmem:[%s1 + $0x910] sm:$0xf]
  %v819 = vld [vmem:[%s1 + $0x914] sm:$0xf]
  %v820 = vld [vmem:[%s1 + $0x918] sm:$0xf]
  %v821 = vld [vmem:[%s1 + $0x91c] sm:$0xf]
  %v822 = vld [vmem:[%s1 + $0x920] sm:$0xf]
  %v823 = vld [vmem:[%s1 + $0x924] sm:$0xf]
  %v824 = vld [vmem:[%s1 + $0x928] sm:$0xf]
  %v825 = vld [vmem:[%s1 + $0x92c] sm:$0xf]
  %v826 = vld [vmem:[%s1 + $0x930] sm:$0xf]
  %v827 = vld [vmem:[%s1 + $0x934] sm:$0xf]
  %v828 = vld [vmem:[%s1 + $0x938] sm:$0xf]
  %v829 = vld [vmem:[%s1 + $0x93c] sm:$0xf]
  %v830 = vld [vmem:[%s1 + $0x940] sm:$0xf]
  %v831 = vld [vmem:[%s1 + $0x944] sm:$0xf]
  %v832 = vld [vmem:[%s1 + $0x948] sm:$0xf]
  %v833 = vld [vmem:[%s1 + $0x94c] sm:$0xf]
  %v834 = vld [vmem:[%s1 + $0x950] sm:$0xf]
  %v835 = vld [vmem:[%s1 + $0x954] sm:$0xf]
  %v836 = vld [vmem:[%s1 + $0x958] sm:$0xf]
  %v837 = vld [vmem:[%s1 + $0x95c] sm:$0xf]
  %v838 = vld [vmem:[%s1 + $0x960] sm:$0xf]
  %v839 = vld [vmem:[%s1 + $0x964] sm:$0xf]
  %v840 = vld [vmem:[%s1 + $0x968] sm:$0xf]
  %v841 = vld [vmem:[%s1 + $0x96c] sm:$0xf]
  %v842 = vld [vmem:[%s1 + $0x970] sm:$0xf]
  %v843 = vld [vmem:[%s1 + $0x974] sm:$0xf]
  %v844 = vld [vmem:[%s1 + $0x978] sm:$0xf]
  %v845 = vld [vmem:[%s1 + $0x97c] sm:$0xf]
  %v846 = vld [vmem:[%s1 + $0x980] sm:$0xf]
  %v847 = vld [vmem:[%s1 + $0x984] sm:$0xf]
  %v848 = vld [vmem:[%s1 + $0x988] sm:$0xf]
  %v849 = vld [vmem:[%s1 + $0x98c] sm:$0xf]
  %v850 = vld [vmem:[%s1 + $0x990] sm:$0xf]
  %v851 = vld [vmem:[%s1 + $0x994] sm:$0xf]
  %v852 = vld [vmem:[%s1 + $0x998] sm:$0xf]
  %v853 = vld [vmem:[%s1 + $0x99c] sm:$0xf]
  %v854 = vld [vmem:[%s1 + $0x9a0] sm:$0xf]
  %v855 = vld [vmem:[%s1 + $0x9a4] sm:$0xf]
  %v856 = vld [vmem:[%s1 + $0x9a8] sm:$0xf]
  %v857 = vld [vmem:[%s1 + $0x9ac] sm:$0xf]
  %v858 = vld [vmem:[%s1 + $0x9b0] sm:$0xf]
  %v859 = vld [vmem:[%s1 + $0x9b4] sm:$0xf]
  %v860 = vld [vmem:[%s1 + $0x9b8] sm:$0xf]
  %v861 = vld [vmem:[%s1 + $0x9bc] sm:$0xf]
  %v862 = vld [vmem:[%s1 + $0x9c0] sm:$0xf]
  %v863 = vld [vmem:[%s1 + $0x9c4] sm:$0xf]
  %v864 = vld [vmem:[%s1 + $0x9c8] sm:$0xf]
  %v865 = vld [vmem:[%s1 + $0x9cc] sm:$0xf]
  %v866 = vld [vmem:[%s1 + $0x9d0] sm:$0xf]
  %v867 = vld [vmem:[%s1 + $0x9d4] sm:$0xf]
  %v868 = vld [vmem:[%s1 + $0x9d8] sm:$0xf]
  %v869 = vld [vmem:[%s1 + $0x9dc] sm:$0xf]
  %v870 = vld [vmem:[%s1 + $0x9e0] sm:$0xf]
  %v871 = vld [vmem:[%s1 + $0x9e4] sm:$0xf]
  %v872 = vld [vmem:[%s1 + $0x9e8] sm:$0xf]
  %v873 = vld [vmem:[%s1 + $0x9ec] sm:$0xf]
  %v874 = vld [vmem:[%s1 + $0x9f0] sm:$0xf]
  %v875 = vld [vmem:[%s1 + $0x9f4] sm:$0xf]
  %v876 = vld [vmem:[%s1 + $0x9f8] sm:$0xf]
  %v877 = vld [vmem:[%s1 + $0x9fc] sm:$0xf]
  %v878 = vld [vmem:[%s1 + $0xa00] sm:$0xf]
  %v879 = vld [vmem:[%s1 + $0xa04] sm:$0xf]
  %v880 = vld [vmem:[%s1 + $0xa08] sm:$0xf]
  %v881 = vld [vmem:[%s1 + $0xa0c] sm:$0xf]
  %v882 = vld [vmem:[%s1 + $0xa10] sm:$0xf]
  %v883 = vld [vmem:[%s1 + $0xa14] sm:$0xf]
  %v884 = vld [vmem:[%s1 + $0xa18] sm:$0xf]
  %v885 = vld [vmem:[%s1 + $0xa1c] sm:$0xf]
  %v886 = vld [vmem:[%s1 + $0xa20] sm:$0xf]
  %v887 = vld [vmem:[%s1 + $0xa24] sm:$0xf]
  %v888 = vld [vmem:[%s1 + $0xa28] sm:$0xf]
  %v889 = vld [vmem:[%s1 + $0xa2c] sm:$0xf]
  %v890 = vld [vmem:[%s1 + $0xa30] sm:$0xf]
  %v891 = vld [vmem:[%s1 + $0xa34] sm:$0xf]
  %v892 = vld [vmem:[%s1 + $0xa38] sm:$0xf]
  %v893 = vld [vmem:[%s1 + $0xa3c] sm:$0xf]
  %v894 = vld [vmem:[%s1 + $0xa40] sm:$0xf]
  %v895 = vld [vmem:[%s1 + $0xa44] sm:$0xf]
  %v896 = vld [vmem:[%s1 + $0xa48] sm:$0xf]
  %v897 = vld [vmem:[%s1 + $0xa4c] sm:$0xf]
  %v898 = vld [vmem:[%s1 + $0xa50] sm:$0xf]
  %v899 = vld [vmem:[%s1 + $0xa54] sm:$0xf]
  %v900 = vld [vmem:[%s1 + $0xa58] sm:$0xf]
  %v901 = vld [vmem:[%s1 + $0xa5c] sm:$0xf]
  %v902 = vld [vmem:[%s1 + $0xa60] sm:$0xf]
  %v903 = vld [vmem:[%s1 + $0xa64] sm:$0xf]
  %v904 = vld [vmem:[%s1 + $0xa68] sm:$0xf]
  %v905 = vld [vmem:[%s1 + $0xa6c] sm:$0xf]
  %v906 = vld [vmem:[%s1 + $0xa70] sm:$0xf]
  %v907 = vld [vmem:[%s1 + $0xa74] sm:$0xf]
  %v908 = vld [vmem:[%s1 + $0xa78] sm:$0xf]
  %v909 = vld [vmem:[%s1 + $0xa7c] sm:$0xf]
  %v910 = vld [vmem:[%s1 + $0xa80] sm:$0xf]
  %v911 = vld [vmem:[%s1 + $0xa84] sm:$0xf]
  %v912 = vld [vmem:[%s1 + $0xa88] sm:$0xf]
  %v913 = vld [vmem:[%s1 + $0xa8c] sm:$0xf]
  %v914 = vld [vmem:[%s1 + $0xa90] sm:$0xf]
  %v915 = vld [vmem:[%s1 + $0xa94] sm:$0xf]
  %v916 = vld [vmem:[%s1 + $0xa98] sm:$0xf]
  %v917 = vld [vmem:[%s1 + $0xa9c] sm:$0xf]
  %v918 = vld [vmem:[%s1 + $0xaa0] sm:$0xf]
  %v919 = vld [vmem:[%s1 + $0xaa4] sm:$0xf]
  %v920 = vld [vmem:[%s1 + $0xaa8] sm:$0xf]
  %v921 = vld [vmem:[%s1 + $0xaac] sm:$0xf]
  %v922 = vld [vmem:[%s1 + $0xab0] sm:$0xf]
  %v923 = vld [vmem:[%s1 + $0xab4] sm:$0xf]
  %v924 = vld [vmem:[%s1 + $0xab8] sm:$0xf]
  %v925 = vld [vmem:[%s1 + $0xabc] sm:$0xf]
  %v926 = vld [vmem:[%s1 + $0xac0] sm:$0xf]
  %v927 = vld [vmem:[%s1 + $0xac4] sm:$0xf]
  %v928 = vld [vmem:[%s1 + $0xac8] sm:$0xf]
  %v929 = vld [vmem:[%s1 + $0xacc] sm:$0xf]
  %v930 = vld [vmem:[%s1 + $0xad0] sm:$0xf]
  %v931 = vld [vmem:[%s1 + $0xad4] sm:$0xf]
  %v932 = vld [vmem:[%s1 + $0xad8] sm:$0xf]
  %v933 = vld [vmem:[%s1 + $0xadc] sm:$0xf]
  %v934 = vld [vmem:[%s1 + $0xae0] sm:$0xf]
  %v935 = vld [vmem:[%s1 + $0xae4] sm:$0xf]
  %v936 = vld [vmem:[%s1 + $0xae8] sm:$0xf]
  %v937 = vld [vmem:[%s1 + $0xaec] sm:$0xf]
  %v938 = vld [vmem:[%s1 + $0xaf0] sm:$0xf]
  %v939 = vld [vmem:[%s1 + $0xaf4] sm:$0xf]
  %v940 = vld [vmem:[%s1 + $0xaf8] sm:$0xf]
  %v941 = vld [vmem:[%s1 + $0xafc] sm:$0xf]
  %v942 = vld [vmem:[%s1 + $0xb00] sm:$0xf]
  %v943 = vld [vmem:[%s1 + $0xb04] sm:$0xf]
  %v944 = vld [vmem:[%s1 + $0xb08] sm:$0xf]
  %v945 = vld [vmem:[%s1 + $0xb0c] sm:$0xf]
  %v946 = vld [vmem:[%s1 + $0xb10] sm:$0xf]
  %v947 = vld [vmem:[%s1 + $0xb14] sm:$0xf]
  %v948 = vld [vmem:[%s1 + $0xb18] sm:$0xf]
  %v949 = vld [vmem:[%s1 + $0xb1c] sm:$0xf]
  %v950 = vld [vmem:[%s1 + $0xb20] sm:$0xf]
  %v951 = vld [vmem:[%s1 + $0xb24] sm:$0xf]
  %v952 = vld [vmem:[%s1 + $0xb28] sm:$0xf]
  %v953 = vld [vmem:[%s1 + $0xb2c] sm:$0xf]
  %v954 = vld [vmem:[%s1 + $0xb30] sm:$0xf]
  %v955 = vld [vmem:[%s1 + $0xb34] sm:$0xf]
  %v956 = vld [vmem:[%s1 + $0xb38] sm:$0xf]
  %v957 = vld [vmem:[%s1 + $0xb3c] sm:$0xf]
  %v958 = vld [vmem:[%s1 + $0xb40] sm:$0xf]
  %v959 = vld [vmem:[%s1 + $0xb44] sm:$0xf]
  %v960 = vld [vmem:[%s1 + $0xb48] sm:$0xf]
  %v961 = vld [vmem:[%s1 + $0xb4c] sm:$0xf]
  %v962 = vld [vmem:[%s1 + $0xb50] sm:$0xf]
  %v963 = vld [vmem:[%s1 + $0xb54] sm:$0xf]
  %v964 = vld [vmem:[%s1 + $0xb58] sm:$0xf]
  %v965 = vld [vmem:[%s1 + $0xb5c] sm:$0xf]
  %v966 = vld [vmem:[%s1 + $0xb60] sm:$0xf]
  %v967 = vld [vmem:[%s1 + $0xb64] sm:$0xf]
  %v968 = vld [vmem:[%s1 + $0xb68] sm:$0xf]
  %v969 = vld [vmem:[%s1 + $0xb6c] sm:$0xf]
  %v970 = vld [vmem:[%s1 + $0xb70] sm:$0xf]
  %v971 = vld [vmem:[%s1 + $0xb74] sm:$0xf]
  %v972 = vld [vmem:[%s1 + $0xb78] sm:$0xf]
  %v973 = vld [vmem:[%s1 + $0xb7c] sm:$0xf]
  %v974 = vld [vmem:[%s1 + $0xb80] sm:$0xf]
  %v975 = vld [vmem:[%s1 + $0xb84] sm:$0xf]
  %v976 = vld [vmem:[%s1 + $0xb88] sm:$0xf]
  %v977 = vld [vmem:[%s1 + $0xb8c] sm:$0xf]
  %v978 = vld [vmem:[%s1 + $0xb90] sm:$0xf]
  %v979 = vld [vmem:[%s1 + $0xb94] sm:$0xf]
  %v980 = vld [vmem:[%s1 + $0xb98] sm:$0xf]
  %v981 = vld [vmem:[%s1 + $0xb9c] sm:$0xf]
  %v982 = vld [vmem:[%s1 + $0xba0] sm:$0xf]
  %v983 = vld [vmem:[%s1 + $0xba4] sm:$0xf]
  %v984 = vld [vmem:[%s1 + $0xba8] sm:$0xf]
  %v985 = vld [vmem:[%s1 + $0xbac] sm:$0xf]
  %v986 = vld [vmem:[%s1 + $0xbb0] sm:$0xf]
  %v987 = vld [vmem:[%s1 + $0xbb4] sm:$0xf]
  %v988 = vld [vmem:[%s1 + $0xbb8] sm:$0xf]
  %v989 = vld [vmem:[%s1 + $0xbbc] sm:$0xf]
  %v990 = vld [vmem:[%s1 + $0xbc0] sm:$0xf]
  %v991 = vld [vmem:[%s1 + $0xbc4] sm:$0xf]
  %v992 = vld [vmem:[%s1 + $0xbc8] sm:$0xf]
  %v993 = vld [vmem:[%s1 + $0xbcc] sm:$0xf]
  %v994 = vld [vmem:[%s1 + $0xbd0] sm:$0xf]
  %v995 = vld [vmem:[%s1 + $0xbd4] sm:$0xf]
  %v996 = vld [vmem:[%s1 + $0xbd8] sm:$0xf]
  %v997 = vld [vmem:[%s1 + $0xbdc] sm:$0xf]
  %v998 = vld [vmem:[%s1 + $0xbe0] sm:$0xf]
  %v999 = vld [vmem:[%s1 + $0xbe4] sm:$0xf]
  %v1000 = vld [vmem:[%s1 + $0xbe8] sm:$0xf]
  %v1001 = vld [vmem:[%s1 + $0xbec] sm:$0xf]
  %v1002 = vld [vmem:[%s1 + $0xbf0] sm:$0xf]
  %v1003 = vld [vmem:[%s1 + $0xbf4] sm:$0xf]
  %v1004 = vld [vmem:[%s1 + $0xbf8] sm:$0xf]
  %v1005 = vld [vmem:[%s1 + $0xbfc] sm:$0xf]
  %v1006 = vld [vmem:[%s1 + $0xc00] sm:$0xf]
  %v1007 = vld [vmem:[%s1 + $0xc04] sm:$0xf]
  %v1008 = vld [vmem:[%s1 + $0xc08] sm:$0xf]
  %v1009 = vld [vmem:[%s1 + $0xc0c] sm:$0xf]
  %v1010 = vld [vmem:[%s1 + $0xc10] sm:$0xf]
  %v1011 = vld [vmem:[%s1 + $0xc14] sm:$0xf]
  %v1012 = vld [vmem:[%s1 + $0xc18] sm:$0xf]
  %v1013 = vld [vmem:[%s1 + $0xc1c] sm:$0xf]
  %v1014 = vld [vmem:[%s1 + $0xc20] sm:$0xf]
  %v1015 = vld [vmem:[%s1 + $0xc24] sm:$0xf]
  %v1016 = vld [vmem:[%s1 + $0xc28] sm:$0xf]
  %v1017 = vld [vmem:[%s1 + $0xc2c] sm:$0xf]
  %v1018 = vld [vmem:[%s1 + $0xc30] sm:$0xf]
  %v1019 = vld [vmem:[%s1 + $0xc34] sm:$0xf]
  %v1020 = vld [vmem:[%s1 + $0xc38] sm:$0xf]
  %v1021 = vld [vmem:[%s1 + $0xc3c] sm:$0xf]
  %v1022 = vld [vmem:[%s1 + $0xc40] sm:$0xf]
  %v1023 = vld [vmem:[%s1 + $0xc44] sm:$0xf]
  %v1024 = vld [vmem:[%s1 + $0xc48] sm:$0xf]
  %v1025 = vld [vmem:[%s1 + $0xc4c] sm:$0xf]
  %v1026 = vld [vmem:[%s1 + $0xc50] sm:$0xf]
  %v1027 = vld [vmem:[%s1 + $0xc54] sm:$0xf]
  %v1028 = vld [vmem:[%s1 + $0xc58] sm:$0xf]
  %v1029 = vld [vmem:[%s1 + $0xc5c] sm:$0xf]
  %v1030 = vld [vmem:[%s1 + $0xc60] sm:$0xf]
  %v1031 = vld [vmem:[%s1 + $0xc64] sm:$0xf]
  %v1032 = vld [vmem:[%s1 + $0xc68] sm:$0xf]
  %v1033 = vld [vmem:[%s1 + $0xc6c] sm:$0xf]
  %v1034 = vld [vmem:[%s1 + $0xc70] sm:$0xf]
  %v1035 = vld [vmem:[%s1 + $0xc74] sm:$0xf]
  %v1036 = vld [vmem:[%s1 + $0xc78] sm:$0xf]
  %v1037 = vld [vmem:[%s1 + $0xc7c] sm:$0xf]
  %v1038 = vld [vmem:[%s1 + $0xc80] sm:$0xf]
  %v1039 = vld [vmem:[%s1 + $0xc84] sm:$0xf]
  %v1040 = vld [vmem:[%s1 + $0xc88] sm:$0xf]
  %v1041 = vld [vmem:[%s1 + $0xc8c] sm:$0xf]
  %v1042 = vld [vmem:[%s1 + $0xc90] sm:$0xf]
  %v1043 = vld [vmem:[%s1 + $0xc94] sm:$0xf]
  %v1044 = vld [vmem:[%s1 + $0xc98] sm:$0xf]
  %v1045 = vld [vmem:[%s1 + $0xc9c] sm:$0xf]
  %v1046 = vld [vmem:[%s1 + $0xca0] sm:$0xf]
  %v1047 = vld [vmem:[%s1 + $0xca4] sm:$0xf]
  %v1048 = vld [vmem:[%s1 + $0xca8] sm:$0xf]
  %v1049 = vld [vmem:[%s1 + $0xcac] sm:$0xf]
  %v1050 = vld [vmem:[%s1 + $0xcb0] sm:$0xf]
  %v1051 = vld [vmem:[%s1 + $0xcb4] sm:$0xf]
  %v1052 = vld [vmem:[%s1 + $0xcb8] sm:$0xf]
  %v1053 = vld [vmem:[%s1 + $0xcbc] sm:$0xf]
  %v1054 = vld [vmem:[%s1 + $0xcc0] sm:$0xf]
  %v1055 = vld [vmem:[%s1 + $0xcc4] sm:$0xf]
  %v1056 = vld [vmem:[%s1 + $0xcc8] sm:$0xf]
  %v1057 = vld [vmem:[%s1 + $0xccc] sm:$0xf]
  %v1058 = vld [vmem:[%s1 + $0xcd0] sm:$0xf]
  %v1059 = vld [vmem:[%s1 + $0xcd4] sm:$0xf]
  %v1060 = vld [vmem:[%s1 + $0xcd8] sm:$0xf]
  %v1061 = vld [vmem:[%s1 + $0xcdc] sm:$0xf]
  %v1062 = vld [vmem:[%s1 + $0xce0] sm:$0xf]
  %v1063 = vld [vmem:[%s1 + $0xce4] sm:$0xf]
  %v1064 = vld [vmem:[%s1 + $0xce8] sm:$0xf]
  %v1065 = vld [vmem:[%s1 + $0xcec] sm:$0xf]
  %v1066 = vld [vmem:[%s1 + $0xcf0] sm:$0xf]
  %v1067 = vld [vmem:[%s1 + $0xcf4] sm:$0xf]
  %v1068 = vld [vmem:[%s1 + $0xcf8] sm:$0xf]
  %v1069 = vld [vmem:[%s1 + $0xcfc] sm:$0xf]
  %v1070 = vld [vmem:[%s1 + $0xd00] sm:$0xf]
  %v1071 = vld [vmem:[%s1 + $0xd04] sm:$0xf]
  %v1072 = vld [vmem:[%s1 + $0xd08] sm:$0xf]
  %v1073 = vld [vmem:[%s1 + $0xd0c] sm:$0xf]
  %v1074 = vld [vmem:[%s1 + $0xd10] sm:$0xf]
  %v1075 = vld [vmem:[%s1 + $0xd14] sm:$0xf]
  %v1076 = vld [vmem:[%s1 + $0xd18] sm:$0xf]
  %v1077 = vld [vmem:[%s1 + $0xd1c] sm:$0xf]
  %v1078 = vld [vmem:[%s1 + $0xd20] sm:$0xf]
  %v1079 = vld [vmem:[%s1 + $0xd24] sm:$0xf]
  %v1080 = vld [vmem:[%s1 + $0xd28] sm:$0xf]
  %v1081 = vld [vmem:[%s1 + $0xd2c] sm:$0xf]
  %v1082 = vld [vmem:[%s1 + $0xd30] sm:$0xf]
  %v1083 = vld [vmem:[%s1 + $0xd34] sm:$0xf]
  %v1084 = vld [vmem:[%s1 + $0xd38] sm:$0xf]
  %v1085 = vld [vmem:[%s1 + $0xd3c] sm:$0xf]
  %v1086 = vld [vmem:[%s1 + $0xd40] sm:$0xf]
  %v1087 = vld [vmem:[%s1 + $0xd44] sm:$0xf]
  %v1088 = vld [vmem:[%s1 + $0xd48] sm:$0xf]
  %v1089 = vld [vmem:[%s1 + $0xd4c] sm:$0xf]
  %v1090 = vld [vmem:[%s1 + $0xd50] sm:$0xf]
  %v1091 = vld [vmem:[%s1 + $0xd54] sm:$0xf]
  %v1092 = vld [vmem:[%s1 + $0xd58] sm:$0xf]
  %v1093 = vld [vmem:[%s1 + $0xd5c] sm:$0xf]
  %v1094 = vld [vmem:[%s1 + $0xd60] sm:$0xf]
  %v1095 = vld [vmem:[%s1 + $0xd64] sm:$0xf]
  %v1096 = vld [vmem:[%s1 + $0xd68] sm:$0xf]
  %v1097 = vld [vmem:[%s1 + $0xd6c] sm:$0xf]
  %v1098 = vld [vmem:[%s1 + $0xd70] sm:$0xf]
  %v1099 = vld [vmem:[%s1 + $0xd74] sm:$0xf]
  %v1100 = vld [vmem:[%s1 + $0xd78] sm:$0xf]
  %v1101 = vld [vmem:[%s1 + $0xd7c] sm:$0xf]
  %v1102 = vld [vmem:[%s1 + $0xd80] sm:$0xf]
  %v1103 = vld [vmem:[%s1 + $0xd84] sm:$0xf]
  %v1104 = vld [vmem:[%s1 + $0xd88] sm:$0xf]
  %v1105 = vld [vmem:[%s1 + $0xd8c] sm:$0xf]
  %v1106 = vld [vmem:[%s1 + $0xd90] sm:$0xf]
  %v1107 = vld [vmem:[%s1 + $0xd94] sm:$0xf]
  %v1108 = vld [vmem:[%s1 + $0xd98] sm:$0xf]
  %v1109 = vld [vmem:[%s1 + $0xd9c] sm:$0xf]
  %v1110 = vld [vmem:[%s1 + $0xda0] sm:$0xf]
  %v1111 = vld [vmem:[%s1 + $0xda4] sm:$0xf]
  %v1112 = vld [vmem:[%s1 + $0xda8] sm:$0xf]
  %v1113 = vld [vmem:[%s1 + $0xdac] sm:$0xf]
  %v1114 = vld [vmem:[%s1 + $0xdb0] sm:$0xf]
  %v1115 = vld [vmem:[%s1 + $0xdb4] sm:$0xf]
  %v1116 = vld [vmem:[%s1 + $0xdb8] sm:$0xf]
  %v1117 = vld [vmem:[%s1 + $0xdbc] sm:$0xf]
  %v1118 = vld [vmem:[%s1 + $0xdc0] sm:$0xf]
  %v1119 = vld [vmem:[%s1 + $0xdc4] sm:$0xf]
  %v1120 = vld [vmem:[%s1 + $0xdc8] sm:$0xf]
  %v1121 = vld [vmem:[%s1 + $0xdcc] sm:$0xf]
  %v1122 = vld [vmem:[%s1 + $0xdd0] sm:$0xf]
  %v1123 = vld [vmem:[%s1 + $0xdd4] sm:$0xf]
  %v1124 = vld [vmem:[%s1 + $0xdd8] sm:$0xf]
  %v1125 = vld [vmem:[%s1 + $0xddc] sm:$0xf]
  %v1126 = vld [vmem:[%s1 + $0xde0] sm:$0xf]
  %v1127 = vld [vmem:[%s1 + $0xde4] sm:$0xf]
  %v1128 = vld [vmem:[%s1 + $0xde8] sm:$0xf]
  %v1129 = vld [vmem:[%s1 + $0xdec] sm:$0xf]
  %v1130 = vld [vmem:[%s1 + $0xdf0] sm:$0xf]
  %v1131 = vld [vmem:[%s1 + $0xdf4] sm:$0xf]
  %v1132 = vld [vmem:[%s1 + $0xdf8] sm:$0xf]
  %v1133 = vld [vmem:[%s1 + $0xdfc] sm:$0xf]
  %v1134 = vld [vmem:[%s1 + $0xe00] sm:$0xf]
  %v1135 = vld [vmem:[%s1 + $0xe04] sm:$0xf]
  %v1136 = vld [vmem:[%s1 + $0xe08] sm:$0xf]
  %v1137 = vld [vmem:[%s1 + $0xe0c] sm:$0xf]
  %v1138 = vld [vmem:[%s1 + $0xe10] sm:$0xf]
  %v1139 = vld [vmem:[%s1 + $0xe14] sm:$0xf]
  %v1140 = vld [vmem:[%s1 + $0xe18] sm:$0xf]
  %v1141 = vld [vmem:[%s1 + $0xe1c] sm:$0xf]
  %v1142 = vld [vmem:[%s1 + $0xe20] sm:$0xf]
  %v1143 = vld [vmem:[%s1 + $0xe24] sm:$0xf]
  %v1144 = vld [vmem:[%s1 + $0xe28] sm:$0xf]
  %v1145 = vld [vmem:[%s1 + $0xe2c] sm:$0xf]
  %v1146 = vld [vmem:[%s1 + $0xe30] sm:$0xf]
  %v1147 = vld [vmem:[%s1 + $0xe34] sm:$0xf]
  %v1148 = vld [vmem:[%s1 + $0xe38] sm:$0xf]
  %v1149 = vld [vmem:[%s1 + $0xe3c] sm:$0xf]
  %v1150 = vld [vmem:[%s1 + $0xe40] sm:$0xf]
  %v1151 = vld [vmem:[%s1 + $0xe44] sm:$0xf]
  %v1152 = vld [vmem:[%s1 + $0xe48] sm:$0xf]
  %v1153 = vld [vmem:[%s1 + $0xe4c] sm:$0xf]
  %v1154 = vld [vmem:[%s1 + $0xe50] sm:$0xf]
  %v1155 = vld [vmem:[%s1 + $0xe54] sm:$0xf]
  %v1156 = vld [vmem:[%s1 + $0xe58] sm:$0xf]
  %v1157 = vld [vmem:[%s1 + $0xe5c] sm:$0xf]
  %v1158 = vld [vmem:[%s1 + $0xe60] sm:$0xf]
  %v1159 = vld [vmem:[%s1 + $0xe64] sm:$0xf]
  %v1160 = vld [vmem:[%s1 + $0xe68] sm:$0xf]
  %v1161 = vld [vmem:[%s1 + $0xe6c] sm:$0xf]
  %v1162 = vld [vmem:[%s1 + $0xe70] sm:$0xf]
  %v1163 = vld [vmem:[%s1 + $0xe74] sm:$0xf]
  %v1164 = vld [vmem:[%s1 + $0xe78] sm:$0xf]
  %v1165 = vld [vmem:[%s1 + $0xe7c] sm:$0xf]
  %v1166 = vld [vmem:[%s1 + $0xe80] sm:$0xf]
  %v1167 = vld [vmem:[%s1 + $0xe84] sm:$0xf]
  %v1168 = vld [vmem:[%s1 + $0xe88] sm:$0xf]
  %v1169 = vld [vmem:[%s1 + $0xe8c] sm:$0xf]
  %v1170 = vld [vmem:[%s1 + $0xe90] sm:$0xf]
  %v1171 = vld [vmem:[%s1 + $0xe94] sm:$0xf]
  %v1172 = vld [vmem:[%s1 + $0xe98] sm:$0xf]
  %v1173 = vld [vmem:[%s1 + $0xe9c] sm:$0xf]
  %v1174 = vld [vmem:[%s1 + $0xea0] sm:$0xf]
  %v1175 = vld [vmem:[%s1 + $0xea4] sm:$0xf]
  %v1176 = vld [vmem:[%s1 + $0xea8] sm:$0xf]
  %v1177 = vld [vmem:[%s1 + $0xeac] sm:$0xf]
  %v1178 = vld [vmem:[%s1 + $0xeb0] sm:$0xf]
  %v1179 = vld [vmem:[%s1 + $0xeb4] sm:$0xf]
  %v1180 = vld [vmem:[%s1 + $0xeb8] sm:$0xf]
  %v1181 = vld [vmem:[%s1 + $0xebc] sm:$0xf]
  %v1182 = vld [vmem:[%s1 + $0xec0] sm:$0xf]
  %v1183 = vld [vmem:[%s1 + $0xec4] sm:$0xf]
  %v1184 = vld [vmem:[%s1 + $0xec8] sm:$0xf]
  %v1185 = vld [vmem:[%s1 + $0xecc] sm:$0xf]
  %v1186 = vld [vmem:[%s1 + $0xed0] sm:$0xf]
  %v1187 = vld [vmem:[%s1 + $0xed4] sm:$0xf]
  %v1188 = vld [vmem:[%s1 + $0xed8] sm:$0xf]
  %v1189 = vld [vmem:[%s1 + $0xedc] sm:$0xf]
  %v1190 = vld [vmem:[%s1 + $0xee0] sm:$0xf]
  %v1191 = vld [vmem:[%s1 + $0xee4] sm:$0xf]
  %v1192 = vld [vmem:[%s1 + $0xee8] sm:$0xf]
  %v1193 = vld [vmem:[%s1 + $0xeec] sm:$0xf]
  %v1194 = vld [vmem:[%s1 + $0xef0] sm:$0xf]
  %v1195 = vld [vmem:[%s1 + $0xef4] sm:$0xf]
  %v1196 = vld [vmem:[%s1 + $0xef8] sm:$0xf]
  %v1197 = vld [vmem:[%s1 + $0xefc] sm:$0xf]
  %v1198 = vld [vmem:[%s1 + $0xf00] sm:$0xf]
  %v1199 = vld [vmem:[%s1 + $0xf04] sm:$0xf]
  %v1200 = vld [vmem:[%s1 + $0xf08] sm:$0xf]
  %v1201 = vld [vmem:[%s1 + $0xf0c] sm:$0xf]
  %v1202 = vld [vmem:[%s1 + $0xf10] sm:$0xf]
  %v1203 = vld [vmem:[%s1 + $0xf14] sm:$0xf]
  %v1204 = vld [vmem:[%s1 + $0xf18] sm:$0xf]
  %v1205 = vld [vmem:[%s1 + $0xf1c] sm:$0xf]
  %v1206 = vld [vmem:[%s1 + $0xf20] sm:$0xf]
  %v1207 = vld [vmem:[%s1 + $0xf24] sm:$0xf]
  %v1208 = vld [vmem:[%s1 + $0xf28] sm:$0xf]
  %v1209 = vld [vmem:[%s1 + $0xf2c] sm:$0xf]
  %v1210 = vld [vmem:[%s1 + $0xf30] sm:$0xf]
  %v1211 = vld [vmem:[%s1 + $0xf34] sm:$0xf]
  %v1212 = vld [vmem:[%s1 + $0xf38] sm:$0xf]
  %v1213 = vld [vmem:[%s1 + $0xf3c] sm:$0xf]
  %v1214 = vld [vmem:[%s1 + $0xf40] sm:$0xf]
  %v1215 = vld [vmem:[%s1 + $0xf44] sm:$0xf]
  %v1216 = vld [vmem:[%s1 + $0xf48] sm:$0xf]
  %v1217 = vld [vmem:[%s1 + $0xf4c] sm:$0xf]
  %v1218 = vld [vmem:[%s1 + $0xf50] sm:$0xf]
  %v1219 = vld [vmem:[%s1 + $0xf54] sm:$0xf]
  %v1220 = vld [vmem:[%s1 + $0xf58] sm:$0xf]
  %v1221 = vld [vmem:[%s1 + $0xf5c] sm:$0xf]
  %v1222 = vld [vmem:[%s1 + $0xf60] sm:$0xf]
  %v1223 = vld [vmem:[%s1 + $0xf64] sm:$0xf]
  %v1224 = vld [vmem:[%s1 + $0xf68] sm:$0xf]
  %v1225 = vld [vmem:[%s1 + $0xf6c] sm:$0xf]
  %v1226 = vld [vmem:[%s1 + $0xf70] sm:$0xf]
  %v1227 = vld [vmem:[%s1 + $0xf74] sm:$0xf]
  %v1228 = vld [vmem:[%s1 + $0xf78] sm:$0xf]
  %v1229 = vld [vmem:[%s1 + $0xf7c] sm:$0xf]
  %v1230 = vld [vmem:[%s1 + $0xf80] sm:$0xf]
  %v1231 = vld [vmem:[%s1 + $0xf84] sm:$0xf]
  %v1232 = vld [vmem:[%s1 + $0xf88] sm:$0xf]
  %v1233 = vld [vmem:[%s1 + $0xf8c] sm:$0xf]
  %v1234 = vld [vmem:[%s1 + $0xf90] sm:$0xf]
  %v1235 = vld [vmem:[%s1 + $0xf94] sm:$0xf]
  %v1236 = vld [vmem:[%s1 + $0xf98] sm:$0xf]
  %v1237 = vld [vmem:[%s1 + $0xf9c] sm:$0xf]
  %v1238 = vld [vmem:[%s1 + $0xfa0] sm:$0xf]
  %v1239 = vld [vmem:[%s1 + $0xfa4] sm:$0xf]
  %v1240 = vld [vmem:[%s1 + $0xfa8] sm:$0xf]
  %v1241 = vld [vmem:[%s1 + $0xfac] sm:$0xf]
  %v1242 = vld [vmem:[%s1 + $0xfb0] sm:$0xf]
  %v1243 = vld [vmem:[%s1 + $0xfb4] sm:$0xf]
  %v1244 = vld [vmem:[%s1 + $0xfb8] sm:$0xf]
  %v1245 = vld [vmem:[%s1 + $0xfbc] sm:$0xf]
  %v1246 = vld [vmem:[%s1 + $0xfc0] sm:$0xf]
  %v1247 = vld [vmem:[%s1 + $0xfc4] sm:$0xf]
  %v1248 = vld [vmem:[%s1 + $0xfc8] sm:$0xf]
  %v1249 = vld [vmem:[%s1 + $0xfcc] sm:$0xf]
  %v1250 = vld [vmem:[%s1 + $0xfd0] sm:$0xf]
  %v1251 = vld [vmem:[%s1 + $0xfd4] sm:$0xf]
  %v1252 = vld [vmem:[%s1 + $0xfd8] sm:$0xf]
  %v1253 = vld [vmem:[%s1 + $0xfdc] sm:$0xf]
  %v1254 = vld [vmem:[%s1 + $0xfe0] sm:$0xf]
  %v1255 = vld [vmem:[%s1 + $0xfe4] sm:$0xf]
  %v1256 = vld [vmem:[%s1 + $0xfe8] sm:$0xf]
  %v1257 = vld [vmem:[%s1 + $0xfec] sm:$0xf]
  %v1258 = vld [vmem:[%s1 + $0xff0] sm:$0xf]
  %v1259 = vld [vmem:[%s1 + $0xff4] sm:$0xf]
  %v1260 = vld [vmem:[%s1 + $0xff8] sm:$0xf]
  %v1261 = vld [vmem:[%s1 + $0xffc] sm:$0xf]
  %v1262 = vld [vmem:[%s2] sm:$0x1]
  %v1264 = vperm.slane %v1262, 0
  %v1490 = vunpack.c.l.b16 %v14
  %v1491 = vunpack.c.h.b16 %v14
  %v1492 = vunpack.c.l.b16 %v15
  %v1493 = vunpack.c.h.b16 %v15
  %v1494 = vunpack.c.l.b16 %v16
  %v1495 = vunpack.c.h.b16 %v16
  %v1496 = vunpack.c.l.b16 %v17
  %v1497 = vunpack.c.h.b16 %v17
  %v1498 = vunpack.c.l.b16 %v18
  %v1499 = vunpack.c.h.b16 %v18
  %v1500 = vunpack.c.l.b16 %v19
  %v1501 = vunpack.c.h.b16 %v19
  %v1502 = vunpack.c.l.b16 %v20
  %v1503 = vunpack.c.h.b16 %v20
  %v1504 = vunpack.c.l.b16 %v21
  %v1505 = vunpack.c.h.b16 %v21
  %v1506 = vunpack.c.l.b16 %v22
  %v1507 = vunpack.c.h.b16 %v22
  %v1508 = vunpack.c.l.b16 %v23
  %v1509 = vunpack.c.h.b16 %v23
  %v1510 = vunpack.c.l.b16 %v24
  %v1511 = vunpack.c.h.b16 %v24
  %v1512 = vunpack.c.l.b16 %v25
  %v1513 = vunpack.c.h.b16 %v25
  %v1514 = vunpack.c.l.b16 %v26
  %v1515 = vunpack.c.h.b16 %v26
  %v1516 = vunpack.c.l.b16 %v27
  %v1517 = vunpack.c.h.b16 %v27
  %v1518 = vunpack.c.l.b16 %v28
  %v1519 = vunpack.c.h.b16 %v28
  %v1520 = vunpack.c.l.b16 %v29
  %v1521 = vunpack.c.h.b16 %v29
  %v1522 = vunpack.c.l.b16 %v30
  %v1523 = vunpack.c.h.b16 %v30
  %v1524 = vunpack.c.l.b16 %v31
  %v1525 = vunpack.c.h.b16 %v31
  %v1526 = vunpack.c.l.b16 %v32
  %v1527 = vunpack.c.h.b16 %v32
  %v1528 = vunpack.c.l.b16 %v33
  %v1529 = vunpack.c.h.b16 %v33
  %v1530 = vunpack.c.l.b16 %v34
  %v1531 = vunpack.c.h.b16 %v34
  %v1532 = vunpack.c.l.b16 %v35
  %v1533 = vunpack.c.h.b16 %v35
  %v1534 = vunpack.c.l.b16 %v36
  %v1535 = vunpack.c.h.b16 %v36
  %v1536 = vunpack.c.l.b16 %v37
  %v1537 = vunpack.c.h.b16 %v37
  %v1538 = vunpack.c.l.b16 %v38
  %v1539 = vunpack.c.h.b16 %v38
  %v1540 = vunpack.c.l.b16 %v39
  %v1541 = vunpack.c.h.b16 %v39
  %v1542 = vunpack.c.l.b16 %v40
  %v1543 = vunpack.c.h.b16 %v40
  %v1544 = vunpack.c.l.b16 %v41
  %v1545 = vunpack.c.h.b16 %v41
  %v1546 = vunpack.c.l.b16 %v42
  %v1547 = vunpack.c.h.b16 %v42
  %v1548 = vunpack.c.l.b16 %v43
  %v1549 = vunpack.c.h.b16 %v43
  %v1550 = vunpack.c.l.b16 %v44
  %v1551 = vunpack.c.h.b16 %v44
  %v1552 = vunpack.c.l.b16 %v45
  %v1553 = vunpack.c.h.b16 %v45
  %v1554 = vunpack.c.l.b16 %v46
  %v1555 = vunpack.c.h.b16 %v46
  %v1556 = vunpack.c.l.b16 %v47
  %v1557 = vunpack.c.h.b16 %v47
  %v1558 = vunpack.c.l.b16 %v48
  %v1559 = vunpack.c.h.b16 %v48
  %v1560 = vunpack.c.l.b16 %v49
  %v1561 = vunpack.c.h.b16 %v49
  %v1562 = vunpack.c.l.b16 %v50
  %v1563 = vunpack.c.h.b16 %v50
  %v1564 = vunpack.c.l.b16 %v51
  %v1565 = vunpack.c.h.b16 %v51
  %v1566 = vunpack.c.l.b16 %v52
  %v1567 = vunpack.c.h.b16 %v52
  %v1568 = vunpack.c.l.b16 %v53
  %v1569 = vunpack.c.h.b16 %v53
  %v1570 = vunpack.c.l.b16 %v54
  %v1571 = vunpack.c.h.b16 %v54
  %v1572 = vunpack.c.l.b16 %v55
  %v1573 = vunpack.c.h.b16 %v55
  %v1574 = vunpack.c.l.b16 %v56
  %v1575 = vunpack.c.h.b16 %v56
  %v1576 = vunpack.c.l.b16 %v57
  %v1577 = vunpack.c.h.b16 %v57
  %v1578 = vunpack.c.l.b16 %v58
  %v1579 = vunpack.c.h.b16 %v58
  %v1580 = vunpack.c.l.b16 %v59
  %v1581 = vunpack.c.h.b16 %v59
  %v1582 = vunpack.c.l.b16 %v60
  %v1583 = vunpack.c.h.b16 %v60
  %v1584 = vunpack.c.l.b16 %v61
  %v1585 = vunpack.c.h.b16 %v61
  %v1586 = vunpack.c.l.b16 %v62
  %v1587 = vunpack.c.h.b16 %v62
  %v1588 = vunpack.c.l.b16 %v63
  %v1589 = vunpack.c.h.b16 %v63
  %v1590 = vunpack.c.l.b16 %v64
  %v1591 = vunpack.c.h.b16 %v64
  %v1592 = vunpack.c.l.b16 %v65
  %v1593 = vunpack.c.h.b16 %v65
  %v1594 = vunpack.c.l.b16 %v66
  %v1595 = vunpack.c.h.b16 %v66
  %v1596 = vunpack.c.l.b16 %v67
  %v1597 = vunpack.c.h.b16 %v67
  %v1598 = vunpack.c.l.b16 %v68
  %v1599 = vunpack.c.h.b16 %v68
  %v1600 = vunpack.c.l.b16 %v69
  %v1601 = vunpack.c.h.b16 %v69
  %v1602 = vunpack.c.l.b16 %v70
  %v1603 = vunpack.c.h.b16 %v70
  %v1604 = vunpack.c.l.b16 %v71
  %v1605 = vunpack.c.h.b16 %v71
  %v1606 = vunpack.c.l.b16 %v72
  %v1607 = vunpack.c.h.b16 %v72
  %v1608 = vunpack.c.l.b16 %v73
  %v1609 = vunpack.c.h.b16 %v73
  %v1610 = vunpack.c.l.b16 %v74
  %v1611 = vunpack.c.h.b16 %v74
  %v1612 = vunpack.c.l.b16 %v75
  %v1613 = vunpack.c.h.b16 %v75
  %v1614 = vunpack.c.l.b16 %v76
  %v1615 = vunpack.c.h.b16 %v76
  %v1616 = vunpack.c.l.b16 %v77
  %v1617 = vunpack.c.h.b16 %v77
  %v1618 = vunpack.c.l.b16 %v78
  %v1619 = vunpack.c.h.b16 %v78
  %v1620 = vunpack.c.l.b16 %v79
  %v1621 = vunpack.c.h.b16 %v79
  %v1622 = vunpack.c.l.b16 %v80
  %v1623 = vunpack.c.h.b16 %v80
  %v1624 = vunpack.c.l.b16 %v81
  %v1625 = vunpack.c.h.b16 %v81
  %v1626 = vunpack.c.l.b16 %v82
  %v1627 = vunpack.c.h.b16 %v82
  %v1628 = vunpack.c.l.b16 %v83
  %v1629 = vunpack.c.h.b16 %v83
  %v1630 = vunpack.c.l.b16 %v84
  %v1631 = vunpack.c.h.b16 %v84
  %v1632 = vunpack.c.l.b16 %v85
  %v1633 = vunpack.c.h.b16 %v85
  %v1634 = vunpack.c.l.b16 %v86
  %v1635 = vunpack.c.h.b16 %v86
  %v1636 = vunpack.c.l.b16 %v87
  %v1637 = vunpack.c.h.b16 %v87
  %v1638 = vunpack.c.l.b16 %v88
  %v1639 = vunpack.c.h.b16 %v88
  %v1640 = vunpack.c.l.b16 %v89
  %v1641 = vunpack.c.h.b16 %v89
  %v1642 = vunpack.c.l.b16 %v90
  %v1643 = vunpack.c.h.b16 %v90
  %v1644 = vunpack.c.l.b16 %v91
  %v1645 = vunpack.c.h.b16 %v91
  %v1646 = vunpack.c.l.b16 %v92
  %v1647 = vunpack.c.h.b16 %v92
  %v1648 = vunpack.c.l.b16 %v93
  %v1649 = vunpack.c.h.b16 %v93
  %v1650 = vunpack.c.l.b16 %v94
  %v1651 = vunpack.c.h.b16 %v94
  %v1652 = vunpack.c.l.b16 %v95
  %v1653 = vunpack.c.h.b16 %v95
  %v1654 = vunpack.c.l.b16 %v96
  %v1655 = vunpack.c.h.b16 %v96
  %v1656 = vunpack.c.l.b16 %v97
  %v1657 = vunpack.c.h.b16 %v97
  %v1658 = vunpack.c.l.b16 %v98
  %v1659 = vunpack.c.h.b16 %v98
  %v1660 = vunpack.c.l.b16 %v99
  %v1661 = vunpack.c.h.b16 %v99
  %v1662 = vunpack.c.l.b16 %v100
  %v1663 = vunpack.c.h.b16 %v100
  %v1664 = vunpack.c.l.b16 %v101
  %v1665 = vunpack.c.h.b16 %v101
  %v1666 = vunpack.c.l.b16 %v102
  %v1667 = vunpack.c.h.b16 %v102
  %v1668 = vunpack.c.l.b16 %v103
  %v1669 = vunpack.c.h.b16 %v103
  %v1670 = vunpack.c.l.b16 %v104
  %v1671 = vunpack.c.h.b16 %v104
  %v1672 = vunpack.c.l.b16 %v105
  %v1673 = vunpack.c.h.b16 %v105
  %v1674 = vunpack.c.l.b16 %v106
  %v1675 = vunpack.c.h.b16 %v106
  %v1676 = vunpack.c.l.b16 %v107
  %v1677 = vunpack.c.h.b16 %v107
  %v1678 = vunpack.c.l.b16 %v108
  %v1679 = vunpack.c.h.b16 %v108
  %v1680 = vunpack.c.l.b16 %v109
  %v1681 = vunpack.c.h.b16 %v109
  %v1682 = vunpack.c.l.b16 %v110
  %v1683 = vunpack.c.h.b16 %v110
  %v1684 = vunpack.c.l.b16 %v111
  %v1685 = vunpack.c.h.b16 %v111
  %v1686 = vunpack.c.l.b16 %v112
  %v1687 = vunpack.c.h.b16 %v112
  %v1688 = vunpack.c.l.b16 %v113
  %v1689 = vunpack.c.h.b16 %v113
  %v1690 = vunpack.c.l.b16 %v114
  %v1691 = vunpack.c.h.b16 %v114
  %v1692 = vunpack.c.l.b16 %v115
  %v1693 = vunpack.c.h.b16 %v115
  %v1694 = vunpack.c.l.b16 %v116
  %v1695 = vunpack.c.h.b16 %v116
  %v1696 = vunpack.c.l.b16 %v117
  %v1697 = vunpack.c.h.b16 %v117
  %v1698 = vunpack.c.l.b16 %v118
  %v1699 = vunpack.c.h.b16 %v118
  %v1700 = vunpack.c.l.b16 %v119
  %v1701 = vunpack.c.h.b16 %v119
  %v1702 = vunpack.c.l.b16 %v120
  %v1703 = vunpack.c.h.b16 %v120
  %v1704 = vunpack.c.l.b16 %v121
  %v1705 = vunpack.c.h.b16 %v121
  %v1706 = vunpack.c.l.b16 %v122
  %v1707 = vunpack.c.h.b16 %v122
  %v1708 = vunpack.c.l.b16 %v123
  %v1709 = vunpack.c.h.b16 %v123
  %v1710 = vunpack.c.l.b16 %v124
  %v1711 = vunpack.c.h.b16 %v124
  %v1712 = vunpack.c.l.b16 %v125
  %v1713 = vunpack.c.h.b16 %v125
  %v1714 = vunpack.c.l.b16 %v126
  %v1715 = vunpack.c.h.b16 %v126
  %v1716 = vunpack.c.l.b16 %v127
  %v1717 = vunpack.c.h.b16 %v127
  %v1718 = vunpack.c.l.b16 %v128
  %v1719 = vunpack.c.h.b16 %v128
  %v1720 = vunpack.c.l.b16 %v129
  %v1721 = vunpack.c.h.b16 %v129
  %v1722 = vunpack.c.l.b16 %v130
  %v1723 = vunpack.c.h.b16 %v130
  %v1724 = vunpack.c.l.b16 %v131
  %v1725 = vunpack.c.h.b16 %v131
  %v1726 = vunpack.c.l.b16 %v132
  %v1727 = vunpack.c.h.b16 %v132
  %v1728 = vunpack.c.l.b16 %v133
  %v1729 = vunpack.c.h.b16 %v133
  %v1730 = vunpack.c.l.b16 %v134
  %v1731 = vunpack.c.h.b16 %v134
  %v1732 = vunpack.c.l.b16 %v135
  %v1733 = vunpack.c.h.b16 %v135
  %v1734 = vunpack.c.l.b16 %v136
  %v1735 = vunpack.c.h.b16 %v136
  %v1736 = vunpack.c.l.b16 %v137
  %v1737 = vunpack.c.h.b16 %v137
  %v1738 = vunpack.c.l.b16 %v138
  %v1739 = vunpack.c.h.b16 %v138
  %v1740 = vunpack.c.l.b16 %v139
  %v1741 = vunpack.c.h.b16 %v139
  %v1742 = vunpack.c.l.b16 %v140
  %v1743 = vunpack.c.h.b16 %v140
  %v1744 = vunpack.c.l.b16 %v141
  %v1745 = vunpack.c.h.b16 %v141
  %v1746 = vunpack.c.l.b16 %v142
  %v1747 = vunpack.c.h.b16 %v142
  %v1748 = vunpack.c.l.b16 %v143
  %v1749 = vunpack.c.h.b16 %v143
  %v1750 = vunpack.c.l.b16 %v144
  %v1751 = vunpack.c.h.b16 %v144
  %v1752 = vunpack.c.l.b16 %v145
  %v1753 = vunpack.c.h.b16 %v145
  %v1754 = vunpack.c.l.b16 %v146
  %v1755 = vunpack.c.h.b16 %v146
  %v1756 = vunpack.c.l.b16 %v147
  %v1757 = vunpack.c.h.b16 %v147
  %v1758 = vunpack.c.l.b16 %v148
  %v1759 = vunpack.c.h.b16 %v148
  %v1760 = vunpack.c.l.b16 %v149
  %v1761 = vunpack.c.h.b16 %v149
  %v1762 = vunpack.c.l.b16 %v150
  %v1763 = vunpack.c.h.b16 %v150
  %v1764 = vunpack.c.l.b16 %v151
  %v1765 = vunpack.c.h.b16 %v151
  %v1766 = vunpack.c.l.b16 %v152
  %v1767 = vunpack.c.h.b16 %v152
  %v1768 = vunpack.c.l.b16 %v153
  %v1769 = vunpack.c.h.b16 %v153
  %v1770 = vunpack.c.l.b16 %v154
  %v1771 = vunpack.c.h.b16 %v154
  %v1772 = vunpack.c.l.b16 %v155
  %v1773 = vunpack.c.h.b16 %v155
  %v1774 = vunpack.c.l.b16 %v156
  %v1775 = vunpack.c.h.b16 %v156
  %v1776 = vunpack.c.l.b16 %v157
  %v1777 = vunpack.c.h.b16 %v157
  %v1778 = vunpack.c.l.b16 %v158
  %v1779 = vunpack.c.h.b16 %v158
  %v1780 = vunpack.c.l.b16 %v159
  %v1781 = vunpack.c.h.b16 %v159
  %v1782 = vunpack.c.l.b16 %v160
  %v1783 = vunpack.c.h.b16 %v160
  %v1784 = vunpack.c.l.b16 %v161
  %v1785 = vunpack.c.h.b16 %v161
  %v1786 = vunpack.c.l.b16 %v162
  %v1787 = vunpack.c.h.b16 %v162
  %v1788 = vunpack.c.l.b16 %v163
  %v1789 = vunpack.c.h.b16 %v163
  %v1790 = vunpack.c.l.b16 %v164
  %v1791 = vunpack.c.h.b16 %v164
  %v1792 = vunpack.c.l.b16 %v165
  %v1793 = vunpack.c.h.b16 %v165
  %v1794 = vunpack.c.l.b16 %v166
  %v1795 = vunpack.c.h.b16 %v166
  %v1796 = vunpack.c.l.b16 %v167
  %v1797 = vunpack.c.h.b16 %v167
  %v1798 = vunpack.c.l.b16 %v168
  %v1799 = vunpack.c.h.b16 %v168
  %v1800 = vunpack.c.l.b16 %v169
  %v1801 = vunpack.c.h.b16 %v169
  %v1802 = vunpack.c.l.b16 %v170
  %v1803 = vunpack.c.h.b16 %v170
  %v1804 = vunpack.c.l.b16 %v171
  %v1805 = vunpack.c.h.b16 %v171
  %v1806 = vunpack.c.l.b16 %v172
  %v1807 = vunpack.c.h.b16 %v172
  %v1808 = vunpack.c.l.b16 %v173
  %v1809 = vunpack.c.h.b16 %v173
  %v1810 = vunpack.c.l.b16 %v174
  %v1811 = vunpack.c.h.b16 %v174
  %v1812 = vunpack.c.l.b16 %v175
  %v1813 = vunpack.c.h.b16 %v175
  %v1814 = vunpack.c.l.b16 %v176
  %v1815 = vunpack.c.h.b16 %v176
  %v1816 = vunpack.c.l.b16 %v177
  %v1817 = vunpack.c.h.b16 %v177
  %v1818 = vunpack.c.l.b16 %v178
  %v1819 = vunpack.c.h.b16 %v178
  %v1820 = vunpack.c.l.b16 %v179
  %v1821 = vunpack.c.h.b16 %v179
  %v1822 = vunpack.c.l.b16 %v180
  %v1823 = vunpack.c.h.b16 %v180
  %v1824 = vunpack.c.l.b16 %v181
  %v1825 = vunpack.c.h.b16 %v181
  %v1826 = vunpack.c.l.b16 %v182
  %v1827 = vunpack.c.h.b16 %v182
  %v1828 = vunpack.c.l.b16 %v183
  %v1829 = vunpack.c.h.b16 %v183
  %v1830 = vunpack.c.l.b16 %v184
  %v1831 = vunpack.c.h.b16 %v184
  %v1832 = vunpack.c.l.b16 %v185
  %v1833 = vunpack.c.h.b16 %v185
  %v1834 = vunpack.c.l.b16 %v186
  %v1835 = vunpack.c.h.b16 %v186
  %v1836 = vunpack.c.l.b16 %v187
  %v1837 = vunpack.c.h.b16 %v187
  %v1838 = vunpack.c.l.b16 %v188
  %v1839 = vunpack.c.h.b16 %v188
  %v1840 = vunpack.c.l.b16 %v189
  %v1841 = vunpack.c.h.b16 %v189
  %v1842 = vunpack.c.l.b16 %v190
  %v1843 = vunpack.c.h.b16 %v190
  %v1844 = vunpack.c.l.b16 %v191
  %v1845 = vunpack.c.h.b16 %v191
  %v1846 = vunpack.c.l.b16 %v192
  %v1847 = vunpack.c.h.b16 %v192
  %v1848 = vunpack.c.l.b16 %v193
  %v1849 = vunpack.c.h.b16 %v193
  %v1850 = vunpack.c.l.b16 %v194
  %v1851 = vunpack.c.h.b16 %v194
  %v1852 = vunpack.c.l.b16 %v195
  %v1853 = vunpack.c.h.b16 %v195
  %v1854 = vunpack.c.l.b16 %v196
  %v1855 = vunpack.c.h.b16 %v196
  %v1856 = vunpack.c.l.b16 %v197
  %v1857 = vunpack.c.h.b16 %v197
  %v1858 = vunpack.c.l.b16 %v198
  %v1859 = vunpack.c.h.b16 %v198
  %v1860 = vunpack.c.l.b16 %v199
  %v1861 = vunpack.c.h.b16 %v199
  %v1862 = vunpack.c.l.b16 %v200
  %v1863 = vunpack.c.h.b16 %v200
  %v1864 = vunpack.c.l.b16 %v201
  %v1865 = vunpack.c.h.b16 %v201
  %v1866 = vunpack.c.l.b16 %v202
  %v1867 = vunpack.c.h.b16 %v202
  %v1868 = vunpack.c.l.b16 %v203
  %v1869 = vunpack.c.h.b16 %v203
  %v1870 = vunpack.c.l.b16 %v204
  %v1871 = vunpack.c.h.b16 %v204
  %v1872 = vunpack.c.l.b16 %v205
  %v1873 = vunpack.c.h.b16 %v205
  %v1874 = vunpack.c.l.b16 %v206
  %v1875 = vunpack.c.h.b16 %v206
  %v1876 = vunpack.c.l.b16 %v207
  %v1877 = vunpack.c.h.b16 %v207
  %v1878 = vunpack.c.l.b16 %v208
  %v1879 = vunpack.c.h.b16 %v208
  %v1880 = vunpack.c.l.b16 %v209
  %v1881 = vunpack.c.h.b16 %v209
  %v1882 = vunpack.c.l.b16 %v210
  %v1883 = vunpack.c.h.b16 %v210
  %v1884 = vunpack.c.l.b16 %v211
  %v1885 = vunpack.c.h.b16 %v211
  %v1886 = vunpack.c.l.b16 %v212
  %v1887 = vunpack.c.h.b16 %v212
  %v1888 = vunpack.c.l.b16 %v213
  %v1889 = vunpack.c.h.b16 %v213
  %v1890 = vunpack.c.l.b16 %v214
  %v1891 = vunpack.c.h.b16 %v214
  %v1892 = vunpack.c.l.b16 %v215
  %v1893 = vunpack.c.h.b16 %v215
  %v1894 = vunpack.c.l.b16 %v216
  %v1895 = vunpack.c.h.b16 %v216
  %v1896 = vunpack.c.l.b16 %v217
  %v1897 = vunpack.c.h.b16 %v217
  %v1898 = vunpack.c.l.b16 %v218
  %v1899 = vunpack.c.h.b16 %v218
  %v1900 = vunpack.c.l.b16 %v219
  %v1901 = vunpack.c.h.b16 %v219
  %v1902 = vunpack.c.l.b16 %v220
  %v1903 = vunpack.c.h.b16 %v220
  %v1904 = vunpack.c.l.b16 %v221
  %v1905 = vunpack.c.h.b16 %v221
  %v1906 = vunpack.c.l.b16 %v222
  %v1907 = vunpack.c.h.b16 %v222
  %v1908 = vunpack.c.l.b16 %v223
  %v1909 = vunpack.c.h.b16 %v223
  %v1910 = vunpack.c.l.b16 %v224
  %v1911 = vunpack.c.h.b16 %v224
  %v1912 = vunpack.c.l.b16 %v225
  %v1913 = vunpack.c.h.b16 %v225
  %v1914 = vunpack.c.l.b16 %v226
  %v1915 = vunpack.c.h.b16 %v226
  %v1916 = vunpack.c.l.b16 %v227
  %v1917 = vunpack.c.h.b16 %v227
  %v1918 = vunpack.c.l.b16 %v228
  %v1919 = vunpack.c.h.b16 %v228
  %v1920 = vunpack.c.l.b16 %v229
  %v1921 = vunpack.c.h.b16 %v229
  %v1922 = vunpack.c.l.b16 %v230
  %v1923 = vunpack.c.h.b16 %v230
  %v1924 = vunpack.c.l.b16 %v231
  %v1925 = vunpack.c.h.b16 %v231
  %v1926 = vunpack.c.l.b16 %v232
  %v1927 = vunpack.c.h.b16 %v232
  %v1928 = vunpack.c.l.b16 %v233
  %v1929 = vunpack.c.h.b16 %v233
  %v1930 = vunpack.c.l.b16 %v234
  %v1931 = vunpack.c.h.b16 %v234
  %v1932 = vunpack.c.l.b16 %v235
  %v1933 = vunpack.c.h.b16 %v235
  %v1934 = vunpack.c.l.b16 %v236
  %v1935 = vunpack.c.h.b16 %v236
  %v1936 = vunpack.c.l.b16 %v237
  %v1937 = vunpack.c.h.b16 %v237
  %v1938 = vpack.c.b16 %v1554, %v1490
  %v1939 = vpack.c.b16 %v1555, %v1491
  %v1940 = vpack.c.b16 %v1556, %v1492
  %v1941 = vpack.c.b16 %v1557, %v1493
  %v1942 = vpack.c.b16 %v1558, %v1494
  %v1943 = vpack.c.b16 %v1559, %v1495
  %v1944 = vpack.c.b16 %v1560, %v1496
  %v1945 = vpack.c.b16 %v1561, %v1497
  %v1946 = vpack.c.b16 %v1562, %v1498
  %v1947 = vpack.c.b16 %v1563, %v1499
  %v1948 = vpack.c.b16 %v1564, %v1500
  %v1949 = vpack.c.b16 %v1565, %v1501
  %v1950 = vpack.c.b16 %v1566, %v1502
  %v1951 = vpack.c.b16 %v1567, %v1503
  %v1952 = vpack.c.b16 %v1568, %v1504
  %v1953 = vpack.c.b16 %v1569, %v1505
  %v1954 = vpack.c.b16 %v1570, %v1506
  %v1955 = vpack.c.b16 %v1571, %v1507
  %v1956 = vpack.c.b16 %v1572, %v1508
  %v1957 = vpack.c.b16 %v1573, %v1509
  %v1958 = vpack.c.b16 %v1574, %v1510
  %v1959 = vpack.c.b16 %v1575, %v1511
  %v1960 = vpack.c.b16 %v1576, %v1512
  %v1961 = vpack.c.b16 %v1577, %v1513
  %v1962 = vpack.c.b16 %v1578, %v1514
  %v1963 = vpack.c.b16 %v1579, %v1515
  %v1964 = vpack.c.b16 %v1580, %v1516
  %v1965 = vpack.c.b16 %v1581, %v1517
  %v1966 = vpack.c.b16 %v1582, %v1518
  %v1967 = vpack.c.b16 %v1583, %v1519
  %v1968 = vpack.c.b16 %v1584, %v1520
  %v1969 = vpack.c.b16 %v1585, %v1521
  %v1970 = vpack.c.b16 %v1586, %v1522
  %v1971 = vpack.c.b16 %v1587, %v1523
  %v1972 = vpack.c.b16 %v1588, %v1524
  %v1973 = vpack.c.b16 %v1589, %v1525
  %v1974 = vpack.c.b16 %v1590, %v1526
  %v1975 = vpack.c.b16 %v1591, %v1527
  %v1976 = vpack.c.b16 %v1592, %v1528
  %v1977 = vpack.c.b16 %v1593, %v1529
  %v1978 = vpack.c.b16 %v1594, %v1530
  %v1979 = vpack.c.b16 %v1595, %v1531
  %v1980 = vpack.c.b16 %v1596, %v1532
  %v1981 = vpack.c.b16 %v1597, %v1533
  %v1982 = vpack.c.b16 %v1598, %v1534
  %v1983 = vpack.c.b16 %v1599, %v1535
  %v1984 = vpack.c.b16 %v1600, %v1536
  %v1985 = vpack.c.b16 %v1601, %v1537
  %v1986 = vpack.c.b16 %v1602, %v1538
  %v1987 = vpack.c.b16 %v1603, %v1539
  %v1988 = vpack.c.b16 %v1604, %v1540
  %v1989 = vpack.c.b16 %v1605, %v1541
  %v1990 = vpack.c.b16 %v1606, %v1542
  %v1991 = vpack.c.b16 %v1607, %v1543
  %v1992 = vpack.c.b16 %v1608, %v1544
  %v1993 = vpack.c.b16 %v1609, %v1545
  %v1994 = vpack.c.b16 %v1610, %v1546
  %v1995 = vpack.c.b16 %v1611, %v1547
  %v1996 = vpack.c.b16 %v1612, %v1548
  %v1997 = vpack.c.b16 %v1613, %v1549
  %v1998 = vpack.c.b16 %v1614, %v1550
  %v1999 = vpack.c.b16 %v1615, %v1551
  %v2000 = vpack.c.b16 %v1616, %v1552
  %v2001 = vpack.c.b16 %v1617, %v1553
  %v2002 = vpack.c.b16 %v1682, %v1618
  %v2003 = vpack.c.b16 %v1683, %v1619
  %v2004 = vpack.c.b16 %v1684, %v1620
  %v2005 = vpack.c.b16 %v1685, %v1621
  %v2006 = vpack.c.b16 %v1686, %v1622
  %v2007 = vpack.c.b16 %v1687, %v1623
  %v2008 = vpack.c.b16 %v1688, %v1624
  %v2009 = vpack.c.b16 %v1689, %v1625
  %v2010 = vpack.c.b16 %v1690, %v1626
  %v2011 = vpack.c.b16 %v1691, %v1627
  %v2012 = vpack.c.b16 %v1692, %v1628
  %v2013 = vpack.c.b16 %v1693, %v1629
  %v2014 = vpack.c.b16 %v1694, %v1630
  %v2015 = vpack.c.b16 %v1695, %v1631
  %v2016 = vpack.c.b16 %v1696, %v1632
  %v2017 = vpack.c.b16 %v1697, %v1633
  %v2018 = vpack.c.b16 %v1698, %v1634
  %v2019 = vpack.c.b16 %v1699, %v1635
  %v2020 = vpack.c.b16 %v1700, %v1636
  %v2021 = vpack.c.b16 %v1701, %v1637
  %v2022 = vpack.c.b16 %v1702, %v1638
  %v2023 = vpack.c.b16 %v1703, %v1639
  %v2024 = vpack.c.b16 %v1704, %v1640
  %v2025 = vpack.c.b16 %v1705, %v1641
  %v2026 = vpack.c.b16 %v1706, %v1642
  %v2027 = vpack.c.b16 %v1707, %v1643
  %v2028 = vpack.c.b16 %v1708, %v1644
  %v2029 = vpack.c.b16 %v1709, %v1645
  %v2030 = vpack.c.b16 %v1710, %v1646
  %v2031 = vpack.c.b16 %v1711, %v1647
  %v2032 = vpack.c.b16 %v1712, %v1648
  %v2033 = vpack.c.b16 %v1713, %v1649
  %v2034 = vpack.c.b16 %v1714, %v1650
  %v2035 = vpack.c.b16 %v1715, %v1651
  %v2036 = vpack.c.b16 %v1716, %v1652
  %v2037 = vpack.c.b16 %v1717, %v1653
  %v2038 = vpack.c.b16 %v1718, %v1654
  %v2039 = vpack.c.b16 %v1719, %v1655
  %v2040 = vpack.c.b16 %v1720, %v1656
  %v2041 = vpack.c.b16 %v1721, %v1657
  %v2042 = vpack.c.b16 %v1722, %v1658
  %v2043 = vpack.c.b16 %v1723, %v1659
  %v2044 = vpack.c.b16 %v1724, %v1660
  %v2045 = vpack.c.b16 %v1725, %v1661
  %v2046 = vpack.c.b16 %v1726, %v1662
  %v2047 = vpack.c.b16 %v1727, %v1663
  %v2048 = vpack.c.b16 %v1728, %v1664
  %v2049 = vpack.c.b16 %v1729, %v1665
  %v2050 = vpack.c.b16 %v1730, %v1666
  %v2051 = vpack.c.b16 %v1731, %v1667
  %v2052 = vpack.c.b16 %v1732, %v1668
  %v2053 = vpack.c.b16 %v1733, %v1669
  %v2054 = vpack.c.b16 %v1734, %v1670
  %v2055 = vpack.c.b16 %v1735, %v1671
  %v2056 = vpack.c.b16 %v1736, %v1672
  %v2057 = vpack.c.b16 %v1737, %v1673
  %v2058 = vpack.c.b16 %v1738, %v1674
  %v2059 = vpack.c.b16 %v1739, %v1675
  %v2060 = vpack.c.b16 %v1740, %v1676
  %v2061 = vpack.c.b16 %v1741, %v1677
  %v2062 = vpack.c.b16 %v1742, %v1678
  %v2063 = vpack.c.b16 %v1743, %v1679
  %v2064 = vpack.c.b16 %v1744, %v1680
  %v2065 = vpack.c.b16 %v1745, %v1681
  %v2066 = vpack.c.b16 %v1810, %v1746
  %v2067 = vpack.c.b16 %v1811, %v1747
  %v2068 = vpack.c.b16 %v1812, %v1748
  %v2069 = vpack.c.b16 %v1813, %v1749
  %v2070 = vpack.c.b16 %v1814, %v1750
  %v2071 = vpack.c.b16 %v1815, %v1751
  %v2072 = vpack.c.b16 %v1816, %v1752
  %v2073 = vpack.c.b16 %v1817, %v1753
  %v2074 = vpack.c.b16 %v1818, %v1754
  %v2075 = vpack.c.b16 %v1819, %v1755
  %v2076 = vpack.c.b16 %v1820, %v1756
  %v2077 = vpack.c.b16 %v1821, %v1757
  %v2078 = vpack.c.b16 %v1822, %v1758
  %v2079 = vpack.c.b16 %v1823, %v1759
  %v2080 = vpack.c.b16 %v1824, %v1760
  %v2081 = vpack.c.b16 %v1825, %v1761
  %v2082 = vpack.c.b16 %v1826, %v1762
  %v2083 = vpack.c.b16 %v1827, %v1763
  %v2084 = vpack.c.b16 %v1828, %v1764
  %v2085 = vpack.c.b16 %v1829, %v1765
  %v2086 = vpack.c.b16 %v1830, %v1766
  %v2087 = vpack.c.b16 %v1831, %v1767
  %v2088 = vpack.c.b16 %v1832, %v1768
  %v2089 = vpack.c.b16 %v1833, %v1769
  %v2090 = vpack.c.b16 %v1834, %v1770
  %v2091 = vpack.c.b16 %v1835, %v1771
  %v2092 = vpack.c.b16 %v1836, %v1772
  %v2093 = vpack.c.b16 %v1837, %v1773
  %v2094 = vpack.c.b16 %v1838, %v1774
  %v2095 = vpack.c.b16 %v1839, %v1775
  %v2096 = vpack.c.b16 %v1840, %v1776
  %v2097 = vpack.c.b16 %v1841, %v1777
  %v2098 = vpack.c.b16 %v1842, %v1778
  %v2099 = vpack.c.b16 %v1843, %v1779
  %v2100 = vpack.c.b16 %v1844, %v1780
  %v2101 = vpack.c.b16 %v1845, %v1781
  %v2102 = vpack.c.b16 %v1846, %v1782
  %v2103 = vpack.c.b16 %v1847, %v1783
  %v2104 = vpack.c.b16 %v1848, %v1784
  %v2105 = vpack.c.b16 %v1849, %v1785
  %v2106 = vpack.c.b16 %v1850, %v1786
  %v2107 = vpack.c.b16 %v1851, %v1787
  %v2108 = vpack.c.b16 %v1852, %v1788
  %v2109 = vpack.c.b16 %v1853, %v1789
  %v2110 = vpack.c.b16 %v1854, %v1790
  %v2111 = vpack.c.b16 %v1855, %v1791
  %v2112 = vpack.c.b16 %v1856, %v1792
  %v2113 = vpack.c.b16 %v1857, %v1793
  %v2114 = vpack.c.b16 %v1858, %v1794
  %v2115 = vpack.c.b16 %v1859, %v1795
  %v2116 = vpack.c.b16 %v1860, %v1796
  %v2117 = vpack.c.b16 %v1861, %v1797
  %v2118 = vpack.c.b16 %v1862, %v1798
  %v2119 = vpack.c.b16 %v1863, %v1799
  %v2120 = vpack.c.b16 %v1864, %v1800
  %v2121 = vpack.c.b16 %v1865, %v1801
  %v2122 = vpack.c.b16 %v1866, %v1802
  %v2123 = vpack.c.b16 %v1867, %v1803
  %v2124 = vpack.c.b16 %v1868, %v1804
  %v2125 = vpack.c.b16 %v1869, %v1805
  %v2126 = vpack.c.b16 %v1870, %v1806
  %v2127 = vpack.c.b16 %v1871, %v1807
  %v2128 = vpack.c.b16 %v1872, %v1808
  %v2129 = vpack.c.b16 %v1873, %v1809
  %v2130 = vpack.c.b16 %v1874, %v1874
  %v2131 = vpack.c.b16 %v1875, %v1875
  %v2132 = vpack.c.b16 %v1876, %v1876
  %v2133 = vpack.c.b16 %v1877, %v1877
  %v2134 = vpack.c.b16 %v1878, %v1878
  %v2135 = vpack.c.b16 %v1879, %v1879
  %v2136 = vpack.c.b16 %v1880, %v1880
  %v2137 = vpack.c.b16 %v1881, %v1881
  %v2138 = vpack.c.b16 %v1882, %v1882
  %v2139 = vpack.c.b16 %v1883, %v1883
  %v2140 = vpack.c.b16 %v1884, %v1884
  %v2141 = vpack.c.b16 %v1885, %v1885
  %v2142 = vpack.c.b16 %v1886, %v1886
  %v2143 = vpack.c.b16 %v1887, %v1887
  %v2144 = vpack.c.b16 %v1888, %v1888
  %v2145 = vpack.c.b16 %v1889, %v1889
  %v2146 = vpack.c.b16 %v1890, %v1890
  %v2147 = vpack.c.b16 %v1891, %v1891
  %v2148 = vpack.c.b16 %v1892, %v1892
  %v2149 = vpack.c.b16 %v1893, %v1893
  %v2150 = vpack.c.b16 %v1894, %v1894
  %v2151 = vpack.c.b16 %v1895, %v1895
  %v2152 = vpack.c.b16 %v1896, %v1896
  %v2153 = vpack.c.b16 %v1897, %v1897
  %v2154 = vpack.c.b16 %v1898, %v1898
  %v2155 = vpack.c.b16 %v1899, %v1899
  %v2156 = vpack.c.b16 %v1900, %v1900
  %v2157 = vpack.c.b16 %v1901, %v1901
  %v2158 = vpack.c.b16 %v1902, %v1902
  %v2159 = vpack.c.b16 %v1903, %v1903
  %v2160 = vpack.c.b16 %v1904, %v1904
  %v2161 = vpack.c.b16 %v1905, %v1905
  %v2162 = vpack.c.b16 %v1906, %v1906
  %v2163 = vpack.c.b16 %v1907, %v1907
  %v2164 = vpack.c.b16 %v1908, %v1908
  %v2165 = vpack.c.b16 %v1909, %v1909
  %v2166 = vpack.c.b16 %v1910, %v1910
  %v2167 = vpack.c.b16 %v1911, %v1911
  %v2168 = vpack.c.b16 %v1912, %v1912
  %v2169 = vpack.c.b16 %v1913, %v1913
  %v2170 = vpack.c.b16 %v1914, %v1914
  %v2171 = vpack.c.b16 %v1915, %v1915
  %v2172 = vpack.c.b16 %v1916, %v1916
  %v2173 = vpack.c.b16 %v1917, %v1917
  %v2174 = vpack.c.b16 %v1918, %v1918
  %v2175 = vpack.c.b16 %v1919, %v1919
  %v2176 = vpack.c.b16 %v1920, %v1920
  %v2177 = vpack.c.b16 %v1921, %v1921
  %v2178 = vpack.c.b16 %v1922, %v1922
  %v2179 = vpack.c.b16 %v1923, %v1923
  %v2180 = vpack.c.b16 %v1924, %v1924
  %v2181 = vpack.c.b16 %v1925, %v1925
  %v2182 = vpack.c.b16 %v1926, %v1926
  %v2183 = vpack.c.b16 %v1927, %v1927
  %v2184 = vpack.c.b16 %v1928, %v1928
  %v2185 = vpack.c.b16 %v1929, %v1929
  %v2186 = vpack.c.b16 %v1930, %v1930
  %v2187 = vpack.c.b16 %v1931, %v1931
  %v2188 = vpack.c.b16 %v1932, %v1932
  %v2189 = vpack.c.b16 %v1933, %v1933
  %v2190 = vpack.c.b16 %v1934, %v1934
  %v2191 = vpack.c.b16 %v1935, %v1935
  %v2192 = vpack.c.b16 %v1936, %v1936
  %v2193 = vpack.c.b16 %v1937, %v1937
  %v3474 = vunpack.c.l.b16 %v238
  %v3475 = vunpack.c.l.b16 %v239
  %v3476 = vunpack.c.l.b16 %v240
  %v3477 = vunpack.c.l.b16 %v241
  %v3478 = vunpack.c.l.b16 %v242
  %v3479 = vunpack.c.l.b16 %v243
  %v3480 = vunpack.c.l.b16 %v244
  %v3481 = vunpack.c.l.b16 %v245
  %v3482 = vunpack.c.l.b16 %v246
  %v3483 = vunpack.c.l.b16 %v247
  %v3484 = vunpack.c.l.b16 %v248
  %v3485 = vunpack.c.l.b16 %v249
  %v3486 = vunpack.c.l.b16 %v250
  %v3487 = vunpack.c.l.b16 %v251
  %v3488 = vunpack.c.l.b16 %v252
  %v3489 = vunpack.c.l.b16 %v253
  %v3490 = vunpack.c.l.b16 %v254
  %v3491 = vunpack.c.l.b16 %v255
  %v3492 = vunpack.c.l.b16 %v256
  %v3493 = vunpack.c.l.b16 %v257
  %v3494 = vunpack.c.l.b16 %v258
  %v3495 = vunpack.c.l.b16 %v259
  %v3496 = vunpack.c.l.b16 %v260
  %v3497 = vunpack.c.l.b16 %v261
  %v3498 = vunpack.c.l.b16 %v262
  %v3499 = vunpack.c.l.b16 %v263
  %v3500 = vunpack.c.l.b16 %v264
  %v3501 = vunpack.c.l.b16 %v265
  %v3502 = vunpack.c.l.b16 %v266
  %v3503 = vunpack.c.l.b16 %v267
  %v3504 = vunpack.c.l.b16 %v268
  %v3505 = vunpack.c.l.b16 %v269
  %v3506 = vunpack.c.l.b16 %v270
  %v3507 = vunpack.c.l.b16 %v271
  %v3508 = vunpack.c.l.b16 %v272
  %v3509 = vunpack.c.l.b16 %v273
  %v3510 = vunpack.c.l.b16 %v274
  %v3511 = vunpack.c.l.b16 %v275
  %v3512 = vunpack.c.l.b16 %v276
  %v3513 = vunpack.c.l.b16 %v277
  %v3514 = vunpack.c.l.b16 %v278
  %v3515 = vunpack.c.l.b16 %v279
  %v3516 = vunpack.c.l.b16 %v280
  %v3517 = vunpack.c.l.b16 %v281
  %v3518 = vunpack.c.l.b16 %v282
  %v3519 = vunpack.c.l.b16 %v283
  %v3520 = vunpack.c.l.b16 %v284
  %v3521 = vunpack.c.l.b16 %v285
  %v3522 = vunpack.c.l.b16 %v286
  %v3523 = vunpack.c.l.b16 %v287
  %v3524 = vunpack.c.l.b16 %v288
  %v3525 = vunpack.c.l.b16 %v289
  %v3526 = vunpack.c.l.b16 %v290
  %v3527 = vunpack.c.l.b16 %v291
  %v3528 = vunpack.c.l.b16 %v292
  %v3529 = vunpack.c.l.b16 %v293
  %v3530 = vunpack.c.l.b16 %v294
  %v3531 = vunpack.c.l.b16 %v295
  %v3532 = vunpack.c.l.b16 %v296
  %v3533 = vunpack.c.l.b16 %v297
  %v3534 = vunpack.c.l.b16 %v298
  %v3535 = vunpack.c.l.b16 %v299
  %v3536 = vunpack.c.l.b16 %v300
  %v3537 = vunpack.c.l.b16 %v301
  %v3538 = vunpack.c.l.b16 %v302
  %v3539 = vunpack.c.l.b16 %v303
  %v3540 = vunpack.c.l.b16 %v304
  %v3541 = vunpack.c.l.b16 %v305
  %v3542 = vunpack.c.l.b16 %v306
  %v3543 = vunpack.c.l.b16 %v307
  %v3544 = vunpack.c.l.b16 %v308
  %v3545 = vunpack.c.l.b16 %v309
  %v3546 = vunpack.c.l.b16 %v310
  %v3547 = vunpack.c.l.b16 %v311
  %v3548 = vunpack.c.l.b16 %v312
  %v3549 = vunpack.c.l.b16 %v313
  %v3550 = vunpack.c.l.b16 %v314
  %v3551 = vunpack.c.l.b16 %v315
  %v3552 = vunpack.c.l.b16 %v316
  %v3553 = vunpack.c.l.b16 %v317
  %v3554 = vunpack.c.l.b16 %v318
  %v3555 = vunpack.c.l.b16 %v319
  %v3556 = vunpack.c.l.b16 %v320
  %v3557 = vunpack.c.l.b16 %v321
  %v3558 = vunpack.c.l.b16 %v322
  %v3559 = vunpack.c.l.b16 %v323
  %v3560 = vunpack.c.l.b16 %v324
  %v3561 = vunpack.c.l.b16 %v325
  %v3562 = vunpack.c.l.b16 %v326
  %v3563 = vunpack.c.l.b16 %v327
  %v3564 = vunpack.c.l.b16 %v328
  %v3565 = vunpack.c.l.b16 %v329
  %v3566 = vunpack.c.l.b16 %v330
  %v3567 = vunpack.c.l.b16 %v331
  %v3568 = vunpack.c.l.b16 %v332
  %v3569 = vunpack.c.l.b16 %v333
  %v3570 = vunpack.c.l.b16 %v334
  %v3571 = vunpack.c.l.b16 %v335
  %v3572 = vunpack.c.l.b16 %v336
  %v3573 = vunpack.c.l.b16 %v337
  %v3574 = vunpack.c.l.b16 %v338
  %v3575 = vunpack.c.l.b16 %v339
  %v3576 = vunpack.c.l.b16 %v340
  %v3577 = vunpack.c.l.b16 %v341
  %v3578 = vunpack.c.l.b16 %v342
  %v3579 = vunpack.c.l.b16 %v343
  %v3580 = vunpack.c.l.b16 %v344
  %v3581 = vunpack.c.l.b16 %v345
  %v3582 = vunpack.c.l.b16 %v346
  %v3583 = vunpack.c.l.b16 %v347
  %v3584 = vunpack.c.l.b16 %v348
  %v3585 = vunpack.c.l.b16 %v349
  %v3586 = vunpack.c.l.b16 %v350
  %v3587 = vunpack.c.l.b16 %v351
  %v3588 = vunpack.c.l.b16 %v352
  %v3589 = vunpack.c.l.b16 %v353
  %v3590 = vunpack.c.l.b16 %v354
  %v3591 = vunpack.c.l.b16 %v355
  %v3592 = vunpack.c.l.b16 %v356
  %v3593 = vunpack.c.l.b16 %v357
  %v3594 = vunpack.c.l.b16 %v358
  %v3595 = vunpack.c.l.b16 %v359
  %v3596 = vunpack.c.l.b16 %v360
  %v3597 = vunpack.c.l.b16 %v361
  %v3598 = vunpack.c.l.b16 %v362
  %v3599 = vunpack.c.l.b16 %v363
  %v3600 = vunpack.c.l.b16 %v364
  %v3601 = vunpack.c.l.b16 %v365
  %v3602 = vunpack.c.l.b16 %v366
  %v3603 = vunpack.c.l.b16 %v367
  %v3604 = vunpack.c.l.b16 %v368
  %v3605 = vunpack.c.l.b16 %v369
  %v3606 = vunpack.c.l.b16 %v370
  %v3607 = vunpack.c.l.b16 %v371
  %v3608 = vunpack.c.l.b16 %v372
  %v3609 = vunpack.c.l.b16 %v373
  %v3610 = vunpack.c.l.b16 %v374
  %v3611 = vunpack.c.l.b16 %v375
  %v3612 = vunpack.c.l.b16 %v376
  %v3613 = vunpack.c.l.b16 %v377
  %v3614 = vunpack.c.l.b16 %v378
  %v3615 = vunpack.c.l.b16 %v379
  %v3616 = vunpack.c.l.b16 %v380
  %v3617 = vunpack.c.l.b16 %v381
  %v3618 = vunpack.c.l.b16 %v382
  %v3619 = vunpack.c.l.b16 %v383
  %v3620 = vunpack.c.l.b16 %v384
  %v3621 = vunpack.c.l.b16 %v385
  %v3622 = vunpack.c.l.b16 %v386
  %v3623 = vunpack.c.l.b16 %v387
  %v3624 = vunpack.c.l.b16 %v388
  %v3625 = vunpack.c.l.b16 %v389
  %v3626 = vunpack.c.l.b16 %v390
  %v3627 = vunpack.c.l.b16 %v391
  %v3628 = vunpack.c.l.b16 %v392
  %v3629 = vunpack.c.l.b16 %v393
  %v3630 = vunpack.c.l.b16 %v394
  %v3631 = vunpack.c.l.b16 %v395
  %v3632 = vunpack.c.l.b16 %v396
  %v3633 = vunpack.c.l.b16 %v397
  %v3634 = vunpack.c.l.b16 %v398
  %v3635 = vunpack.c.l.b16 %v399
  %v3636 = vunpack.c.l.b16 %v400
  %v3637 = vunpack.c.l.b16 %v401
  %v3638 = vunpack.c.l.b16 %v402
  %v3639 = vunpack.c.l.b16 %v403
  %v3640 = vunpack.c.l.b16 %v404
  %v3641 = vunpack.c.l.b16 %v405
  %v3642 = vunpack.c.l.b16 %v406
  %v3643 = vunpack.c.l.b16 %v407
  %v3644 = vunpack.c.l.b16 %v408
  %v3645 = vunpack.c.l.b16 %v409
  %v3646 = vunpack.c.l.b16 %v410
  %v3647 = vunpack.c.l.b16 %v411
  %v3648 = vunpack.c.l.b16 %v412
  %v3649 = vunpack.c.l.b16 %v413
  %v3650 = vunpack.c.l.b16 %v414
  %v3651 = vunpack.c.l.b16 %v415
  %v3652 = vunpack.c.l.b16 %v416
  %v3653 = vunpack.c.l.b16 %v417
  %v3654 = vunpack.c.l.b16 %v418
  %v3655 = vunpack.c.l.b16 %v419
  %v3656 = vunpack.c.l.b16 %v420
  %v3657 = vunpack.c.l.b16 %v421
  %v3658 = vunpack.c.l.b16 %v422
  %v3659 = vunpack.c.l.b16 %v423
  %v3660 = vunpack.c.l.b16 %v424
  %v3661 = vunpack.c.l.b16 %v425
  %v3662 = vunpack.c.l.b16 %v426
  %v3663 = vunpack.c.l.b16 %v427
  %v3664 = vunpack.c.l.b16 %v428
  %v3665 = vunpack.c.l.b16 %v429
  %v3666 = vunpack.c.l.b16 %v430
  %v3667 = vunpack.c.l.b16 %v431
  %v3668 = vunpack.c.l.b16 %v432
  %v3669 = vunpack.c.l.b16 %v433
  %v3670 = vunpack.c.l.b16 %v434
  %v3671 = vunpack.c.l.b16 %v435
  %v3672 = vunpack.c.l.b16 %v436
  %v3673 = vunpack.c.l.b16 %v437
  %v3674 = vunpack.c.l.b16 %v438
  %v3675 = vunpack.c.l.b16 %v439
  %v3676 = vunpack.c.l.b16 %v440
  %v3677 = vunpack.c.l.b16 %v441
  %v3678 = vunpack.c.l.b16 %v442
  %v3679 = vunpack.c.l.b16 %v443
  %v3680 = vunpack.c.l.b16 %v444
  %v3681 = vunpack.c.l.b16 %v445
  %v3682 = vunpack.c.l.b16 %v446
  %v3683 = vunpack.c.l.b16 %v447
  %v3684 = vunpack.c.l.b16 %v448
  %v3685 = vunpack.c.l.b16 %v449
  %v3686 = vunpack.c.l.b16 %v450
  %v3687 = vunpack.c.l.b16 %v451
  %v3688 = vunpack.c.l.b16 %v452
  %v3689 = vunpack.c.l.b16 %v453
  %v3690 = vunpack.c.l.b16 %v454
  %v3691 = vunpack.c.l.b16 %v455
  %v3692 = vunpack.c.l.b16 %v456
  %v3693 = vunpack.c.l.b16 %v457
  %v3694 = vunpack.c.l.b16 %v458
  %v3695 = vunpack.c.l.b16 %v459
  %v3696 = vunpack.c.l.b16 %v460
  %v3697 = vunpack.c.l.b16 %v461
  %v3698 = vunpack.c.l.b16 %v462
  %v3699 = vunpack.c.l.b16 %v463
  %v3700 = vunpack.c.l.b16 %v464
  %v3701 = vunpack.c.l.b16 %v465
  %v3702 = vunpack.c.l.b16 %v466
  %v3703 = vunpack.c.l.b16 %v467
  %v3704 = vunpack.c.l.b16 %v468
  %v3705 = vunpack.c.l.b16 %v469
  %v3706 = vunpack.c.l.b16 %v470
  %v3707 = vunpack.c.l.b16 %v471
  %v3708 = vunpack.c.l.b16 %v472
  %v3709 = vunpack.c.l.b16 %v473
  %v3710 = vunpack.c.l.b16 %v474
  %v3711 = vunpack.c.l.b16 %v475
  %v3712 = vunpack.c.l.b16 %v476
  %v3713 = vunpack.c.l.b16 %v477
  %v3714 = vunpack.c.l.b16 %v478
  %v3715 = vunpack.c.l.b16 %v479
  %v3716 = vunpack.c.l.b16 %v480
  %v3717 = vunpack.c.l.b16 %v481
  %v3718 = vunpack.c.l.b16 %v482
  %v3719 = vunpack.c.l.b16 %v483
  %v3720 = vunpack.c.l.b16 %v484
  %v3721 = vunpack.c.l.b16 %v485
  %v3722 = vunpack.c.l.b16 %v486
  %v3723 = vunpack.c.l.b16 %v487
  %v3724 = vunpack.c.l.b16 %v488
  %v3725 = vunpack.c.l.b16 %v489
  %v3726 = vunpack.c.l.b16 %v490
  %v3727 = vunpack.c.l.b16 %v491
  %v3728 = vunpack.c.l.b16 %v492
  %v3729 = vunpack.c.l.b16 %v493
  %v3730 = vunpack.c.l.b16 %v494
  %v3731 = vunpack.c.l.b16 %v495
  %v3732 = vunpack.c.l.b16 %v496
  %v3733 = vunpack.c.l.b16 %v497
  %v3734 = vunpack.c.l.b16 %v498
  %v3735 = vunpack.c.l.b16 %v499
  %v3736 = vunpack.c.l.b16 %v500
  %v3737 = vunpack.c.l.b16 %v501
  %v3738 = vunpack.c.l.b16 %v502
  %v3739 = vunpack.c.l.b16 %v503
  %v3740 = vunpack.c.l.b16 %v504
  %v3741 = vunpack.c.l.b16 %v505
  %v3742 = vunpack.c.l.b16 %v506
  %v3743 = vunpack.c.l.b16 %v507
  %v3744 = vunpack.c.l.b16 %v508
  %v3745 = vunpack.c.l.b16 %v509
  %v3746 = vunpack.c.l.b16 %v510
  %v3747 = vunpack.c.l.b16 %v511
  %v3748 = vunpack.c.l.b16 %v512
  %v3749 = vunpack.c.l.b16 %v513
  %v3750 = vunpack.c.l.b16 %v514
  %v3751 = vunpack.c.l.b16 %v515
  %v3752 = vunpack.c.l.b16 %v516
  %v3753 = vunpack.c.l.b16 %v517
  %v3754 = vunpack.c.l.b16 %v518
  %v3755 = vunpack.c.l.b16 %v519
  %v3756 = vunpack.c.l.b16 %v520
  %v3757 = vunpack.c.l.b16 %v521
  %v3758 = vunpack.c.l.b16 %v522
  %v3759 = vunpack.c.l.b16 %v523
  %v3760 = vunpack.c.l.b16 %v524
  %v3761 = vunpack.c.l.b16 %v525
  %v3762 = vunpack.c.l.b16 %v526
  %v3763 = vunpack.c.l.b16 %v527
  %v3764 = vunpack.c.l.b16 %v528
  %v3765 = vunpack.c.l.b16 %v529
  %v3766 = vunpack.c.l.b16 %v530
  %v3767 = vunpack.c.l.b16 %v531
  %v3768 = vunpack.c.l.b16 %v532
  %v3769 = vunpack.c.l.b16 %v533
  %v3770 = vunpack.c.l.b16 %v534
  %v3771 = vunpack.c.l.b16 %v535
  %v3772 = vunpack.c.l.b16 %v536
  %v3773 = vunpack.c.l.b16 %v537
  %v3774 = vunpack.c.l.b16 %v538
  %v3775 = vunpack.c.l.b16 %v539
  %v3776 = vunpack.c.l.b16 %v540
  %v3777 = vunpack.c.l.b16 %v541
  %v3778 = vunpack.c.l.b16 %v542
  %v3779 = vunpack.c.l.b16 %v543
  %v3780 = vunpack.c.l.b16 %v544
  %v3781 = vunpack.c.l.b16 %v545
  %v3782 = vunpack.c.l.b16 %v546
  %v3783 = vunpack.c.l.b16 %v547
  %v3784 = vunpack.c.l.b16 %v548
  %v3785 = vunpack.c.l.b16 %v549
  %v3786 = vunpack.c.l.b16 %v550
  %v3787 = vunpack.c.l.b16 %v551
  %v3788 = vunpack.c.l.b16 %v552
  %v3789 = vunpack.c.l.b16 %v553
  %v3790 = vunpack.c.l.b16 %v554
  %v3791 = vunpack.c.l.b16 %v555
  %v3792 = vunpack.c.l.b16 %v556
  %v3793 = vunpack.c.l.b16 %v557
  %v3794 = vunpack.c.l.b16 %v558
  %v3795 = vunpack.c.l.b16 %v559
  %v3796 = vunpack.c.l.b16 %v560
  %v3797 = vunpack.c.l.b16 %v561
  %v3798 = vunpack.c.l.b16 %v562
  %v3799 = vunpack.c.l.b16 %v563
  %v3800 = vunpack.c.l.b16 %v564
  %v3801 = vunpack.c.l.b16 %v565
  %v3802 = vunpack.c.l.b16 %v566
  %v3803 = vunpack.c.l.b16 %v567
  %v3804 = vunpack.c.l.b16 %v568
  %v3805 = vunpack.c.l.b16 %v569
  %v3806 = vunpack.c.l.b16 %v570
  %v3807 = vunpack.c.l.b16 %v571
  %v3808 = vunpack.c.l.b16 %v572
  %v3809 = vunpack.c.l.b16 %v573
  %v3810 = vunpack.c.l.b16 %v574
  %v3811 = vunpack.c.l.b16 %v575
  %v3812 = vunpack.c.l.b16 %v576
  %v3813 = vunpack.c.l.b16 %v577
  %v3814 = vunpack.c.l.b16 %v578
  %v3815 = vunpack.c.l.b16 %v579
  %v3816 = vunpack.c.l.b16 %v580
  %v3817 = vunpack.c.l.b16 %v581
  %v3818 = vunpack.c.l.b16 %v582
  %v3819 = vunpack.c.l.b16 %v583
  %v3820 = vunpack.c.l.b16 %v584
  %v3821 = vunpack.c.l.b16 %v585
  %v3822 = vunpack.c.l.b16 %v586
  %v3823 = vunpack.c.l.b16 %v587
  %v3824 = vunpack.c.l.b16 %v588
  %v3825 = vunpack.c.l.b16 %v589
  %v3826 = vunpack.c.l.b16 %v590
  %v3827 = vunpack.c.l.b16 %v591
  %v3828 = vunpack.c.l.b16 %v592
  %v3829 = vunpack.c.l.b16 %v593
  %v3830 = vunpack.c.l.b16 %v594
  %v3831 = vunpack.c.l.b16 %v595
  %v3832 = vunpack.c.l.b16 %v596
  %v3833 = vunpack.c.l.b16 %v597
  %v3834 = vunpack.c.l.b16 %v598
  %v3835 = vunpack.c.l.b16 %v599
  %v3836 = vunpack.c.l.b16 %v600
  %v3837 = vunpack.c.l.b16 %v601
  %v3838 = vunpack.c.l.b16 %v602
  %v3839 = vunpack.c.l.b16 %v603
  %v3840 = vunpack.c.l.b16 %v604
  %v3841 = vunpack.c.l.b16 %v605
  %v3842 = vunpack.c.l.b16 %v606
  %v3843 = vunpack.c.l.b16 %v607
  %v3844 = vunpack.c.l.b16 %v608
  %v3845 = vunpack.c.l.b16 %v609
  %v3846 = vunpack.c.l.b16 %v610
  %v3847 = vunpack.c.l.b16 %v611
  %v3848 = vunpack.c.l.b16 %v612
  %v3849 = vunpack.c.l.b16 %v613
  %v3850 = vunpack.c.l.b16 %v614
  %v3851 = vunpack.c.l.b16 %v615
  %v3852 = vunpack.c.l.b16 %v616
  %v3853 = vunpack.c.l.b16 %v617
  %v3854 = vunpack.c.l.b16 %v618
  %v3855 = vunpack.c.l.b16 %v619
  %v3856 = vunpack.c.l.b16 %v620
  %v3857 = vunpack.c.l.b16 %v621
  %v3858 = vunpack.c.l.b16 %v622
  %v3859 = vunpack.c.l.b16 %v623
  %v3860 = vunpack.c.l.b16 %v624
  %v3861 = vunpack.c.l.b16 %v625
  %v3862 = vunpack.c.l.b16 %v626
  %v3863 = vunpack.c.l.b16 %v627
  %v3864 = vunpack.c.l.b16 %v628
  %v3865 = vunpack.c.l.b16 %v629
  %v3866 = vunpack.c.l.b16 %v630
  %v3867 = vunpack.c.l.b16 %v631
  %v3868 = vunpack.c.l.b16 %v632
  %v3869 = vunpack.c.l.b16 %v633
  %v3870 = vunpack.c.l.b16 %v634
  %v3871 = vunpack.c.l.b16 %v635
  %v3872 = vunpack.c.l.b16 %v636
  %v3873 = vunpack.c.l.b16 %v637
  %v3874 = vunpack.c.l.b16 %v638
  %v3875 = vunpack.c.l.b16 %v639
  %v3876 = vunpack.c.l.b16 %v640
  %v3877 = vunpack.c.l.b16 %v641
  %v3878 = vunpack.c.l.b16 %v642
  %v3879 = vunpack.c.l.b16 %v643
  %v3880 = vunpack.c.l.b16 %v644
  %v3881 = vunpack.c.l.b16 %v645
  %v3882 = vunpack.c.l.b16 %v646
  %v3883 = vunpack.c.l.b16 %v647
  %v3884 = vunpack.c.l.b16 %v648
  %v3885 = vunpack.c.l.b16 %v649
  %v3886 = vunpack.c.l.b16 %v650
  %v3887 = vunpack.c.l.b16 %v651
  %v3888 = vunpack.c.l.b16 %v652
  %v3889 = vunpack.c.l.b16 %v653
  %v3890 = vunpack.c.l.b16 %v654
  %v3891 = vunpack.c.l.b16 %v655
  %v3892 = vunpack.c.l.b16 %v656
  %v3893 = vunpack.c.l.b16 %v657
  %v3894 = vunpack.c.l.b16 %v658
  %v3895 = vunpack.c.l.b16 %v659
  %v3896 = vunpack.c.l.b16 %v660
  %v3897 = vunpack.c.l.b16 %v661
  %v3898 = vunpack.c.l.b16 %v662
  %v3899 = vunpack.c.l.b16 %v663
  %v3900 = vunpack.c.l.b16 %v664
  %v3901 = vunpack.c.l.b16 %v665
  %v3902 = vunpack.c.l.b16 %v666
  %v3903 = vunpack.c.l.b16 %v667
  %v3904 = vunpack.c.l.b16 %v668
  %v3905 = vunpack.c.l.b16 %v669
  %v3906 = vunpack.c.l.b16 %v670
  %v3907 = vunpack.c.l.b16 %v671
  %v3908 = vunpack.c.l.b16 %v672
  %v3909 = vunpack.c.l.b16 %v673
  %v3910 = vunpack.c.l.b16 %v674
  %v3911 = vunpack.c.l.b16 %v675
  %v3912 = vunpack.c.l.b16 %v676
  %v3913 = vunpack.c.l.b16 %v677
  %v3914 = vunpack.c.l.b16 %v678
  %v3915 = vunpack.c.l.b16 %v679
  %v3916 = vunpack.c.l.b16 %v680
  %v3917 = vunpack.c.l.b16 %v681
  %v3918 = vunpack.c.l.b16 %v682
  %v3919 = vunpack.c.l.b16 %v683
  %v3920 = vunpack.c.l.b16 %v684
  %v3921 = vunpack.c.l.b16 %v685
  %v3922 = vunpack.c.l.b16 %v686
  %v3923 = vunpack.c.l.b16 %v687
  %v3924 = vunpack.c.l.b16 %v688
  %v3925 = vunpack.c.l.b16 %v689
  %v3926 = vunpack.c.l.b16 %v690
  %v3927 = vunpack.c.l.b16 %v691
  %v3928 = vunpack.c.l.b16 %v692
  %v3929 = vunpack.c.l.b16 %v693
  %v3930 = vunpack.c.l.b16 %v694
  %v3931 = vunpack.c.l.b16 %v695
  %v3932 = vunpack.c.l.b16 %v696
  %v3933 = vunpack.c.l.b16 %v697
  %v3934 = vunpack.c.l.b16 %v698
  %v3935 = vunpack.c.l.b16 %v699
  %v3936 = vunpack.c.l.b16 %v700
  %v3937 = vunpack.c.l.b16 %v701
  %v3938 = vunpack.c.l.b16 %v702
  %v3939 = vunpack.c.l.b16 %v703
  %v3940 = vunpack.c.l.b16 %v704
  %v3941 = vunpack.c.l.b16 %v705
  %v3942 = vunpack.c.l.b16 %v706
  %v3943 = vunpack.c.l.b16 %v707
  %v3944 = vunpack.c.l.b16 %v708
  %v3945 = vunpack.c.l.b16 %v709
  %v3946 = vunpack.c.l.b16 %v710
  %v3947 = vunpack.c.l.b16 %v711
  %v3948 = vunpack.c.l.b16 %v712
  %v3949 = vunpack.c.l.b16 %v713
  %v3950 = vunpack.c.l.b16 %v714
  %v3951 = vunpack.c.l.b16 %v715
  %v3952 = vunpack.c.l.b16 %v716
  %v3953 = vunpack.c.l.b16 %v717
  %v3954 = vunpack.c.l.b16 %v718
  %v3955 = vunpack.c.l.b16 %v719
  %v3956 = vunpack.c.l.b16 %v720
  %v3957 = vunpack.c.l.b16 %v721
  %v3958 = vunpack.c.l.b16 %v722
  %v3959 = vunpack.c.l.b16 %v723
  %v3960 = vunpack.c.l.b16 %v724
  %v3961 = vunpack.c.l.b16 %v725
  %v3962 = vunpack.c.l.b16 %v726
  %v3963 = vunpack.c.l.b16 %v727
  %v3964 = vunpack.c.l.b16 %v728
  %v3965 = vunpack.c.l.b16 %v729
  %v3966 = vunpack.c.l.b16 %v730
  %v3967 = vunpack.c.l.b16 %v731
  %v3968 = vunpack.c.l.b16 %v732
  %v3969 = vunpack.c.l.b16 %v733
  %v3970 = vunpack.c.l.b16 %v734
  %v3971 = vunpack.c.l.b16 %v735
  %v3972 = vunpack.c.l.b16 %v736
  %v3973 = vunpack.c.l.b16 %v737
  %v3974 = vunpack.c.l.b16 %v738
  %v3975 = vunpack.c.l.b16 %v739
  %v3976 = vunpack.c.l.b16 %v740
  %v3977 = vunpack.c.l.b16 %v741
  %v3978 = vunpack.c.l.b16 %v742
  %v3979 = vunpack.c.l.b16 %v743
  %v3980 = vunpack.c.l.b16 %v744
  %v3981 = vunpack.c.l.b16 %v745
  %v3982 = vunpack.c.l.b16 %v746
  %v3983 = vunpack.c.l.b16 %v747
  %v3984 = vunpack.c.l.b16 %v748
  %v3985 = vunpack.c.l.b16 %v749
  %v3986 = vunpack.c.l.b16 %v750
  %v3987 = vunpack.c.l.b16 %v751
  %v3988 = vunpack.c.l.b16 %v752
  %v3989 = vunpack.c.l.b16 %v753
  %v3990 = vunpack.c.l.b16 %v754
  %v3991 = vunpack.c.l.b16 %v755
  %v3992 = vunpack.c.l.b16 %v756
  %v3993 = vunpack.c.l.b16 %v757
  %v3994 = vunpack.c.l.b16 %v758
  %v3995 = vunpack.c.l.b16 %v759
  %v3996 = vunpack.c.l.b16 %v760
  %v3997 = vunpack.c.l.b16 %v761
  %v3998 = vunpack.c.l.b16 %v762
  %v3999 = vunpack.c.l.b16 %v763
  %v4000 = vunpack.c.l.b16 %v764
  %v4001 = vunpack.c.l.b16 %v765
  %v4002 = vunpack.c.l.b16 %v766
  %v4003 = vunpack.c.l.b16 %v767
  %v4004 = vunpack.c.l.b16 %v768
  %v4005 = vunpack.c.l.b16 %v769
  %v4006 = vunpack.c.l.b16 %v770
  %v4007 = vunpack.c.l.b16 %v771
  %v4008 = vunpack.c.l.b16 %v772
  %v4009 = vunpack.c.l.b16 %v773
  %v4010 = vunpack.c.l.b16 %v774
  %v4011 = vunpack.c.l.b16 %v775
  %v4012 = vunpack.c.l.b16 %v776
  %v4013 = vunpack.c.l.b16 %v777
  %v4014 = vunpack.c.l.b16 %v778
  %v4015 = vunpack.c.l.b16 %v779
  %v4016 = vunpack.c.l.b16 %v780
  %v4017 = vunpack.c.l.b16 %v781
  %v4018 = vunpack.c.l.b16 %v782
  %v4019 = vunpack.c.l.b16 %v783
  %v4020 = vunpack.c.l.b16 %v784
  %v4021 = vunpack.c.l.b16 %v785
  %v4022 = vunpack.c.l.b16 %v786
  %v4023 = vunpack.c.l.b16 %v787
  %v4024 = vunpack.c.l.b16 %v788
  %v4025 = vunpack.c.l.b16 %v789
  %v4026 = vunpack.c.l.b16 %v790
  %v4027 = vunpack.c.l.b16 %v791
  %v4028 = vunpack.c.l.b16 %v792
  %v4029 = vunpack.c.l.b16 %v793
  %v4030 = vunpack.c.l.b16 %v794
  %v4031 = vunpack.c.l.b16 %v795
  %v4032 = vunpack.c.l.b16 %v796
  %v4033 = vunpack.c.l.b16 %v797
  %v4034 = vunpack.c.l.b16 %v798
  %v4035 = vunpack.c.l.b16 %v799
  %v4036 = vunpack.c.l.b16 %v800
  %v4037 = vunpack.c.l.b16 %v801
  %v4038 = vunpack.c.l.b16 %v802
  %v4039 = vunpack.c.l.b16 %v803
  %v4040 = vunpack.c.l.b16 %v804
  %v4041 = vunpack.c.l.b16 %v805
  %v4042 = vunpack.c.l.b16 %v806
  %v4043 = vunpack.c.l.b16 %v807
  %v4044 = vunpack.c.l.b16 %v808
  %v4045 = vunpack.c.l.b16 %v809
  %v4046 = vunpack.c.l.b16 %v810
  %v4047 = vunpack.c.l.b16 %v811
  %v4048 = vunpack.c.l.b16 %v812
  %v4049 = vunpack.c.l.b16 %v813
  %v4050 = vunpack.c.l.b16 %v814
  %v4051 = vunpack.c.l.b16 %v815
  %v4052 = vunpack.c.l.b16 %v816
  %v4053 = vunpack.c.l.b16 %v817
  %v4054 = vunpack.c.l.b16 %v818
  %v4055 = vunpack.c.l.b16 %v819
  %v4056 = vunpack.c.l.b16 %v820
  %v4057 = vunpack.c.l.b16 %v821
  %v4058 = vunpack.c.l.b16 %v822
  %v4059 = vunpack.c.l.b16 %v823
  %v4060 = vunpack.c.l.b16 %v824
  %v4061 = vunpack.c.l.b16 %v825
  %v4062 = vunpack.c.l.b16 %v826
  %v4063 = vunpack.c.l.b16 %v827
  %v4064 = vunpack.c.l.b16 %v828
  %v4065 = vunpack.c.l.b16 %v829
  %v4066 = vunpack.c.l.b16 %v830
  %v4067 = vunpack.c.l.b16 %v831
  %v4068 = vunpack.c.l.b16 %v832
  %v4069 = vunpack.c.l.b16 %v833
  %v4070 = vunpack.c.l.b16 %v834
  %v4071 = vunpack.c.l.b16 %v835
  %v4072 = vunpack.c.l.b16 %v836
  %v4073 = vunpack.c.l.b16 %v837
  %v4074 = vunpack.c.l.b16 %v838
  %v4075 = vunpack.c.l.b16 %v839
  %v4076 = vunpack.c.l.b16 %v840
  %v4077 = vunpack.c.l.b16 %v841
  %v4078 = vunpack.c.l.b16 %v842
  %v4079 = vunpack.c.l.b16 %v843
  %v4080 = vunpack.c.l.b16 %v844
  %v4081 = vunpack.c.l.b16 %v845
  %v4082 = vunpack.c.l.b16 %v846
  %v4083 = vunpack.c.l.b16 %v847
  %v4084 = vunpack.c.l.b16 %v848
  %v4085 = vunpack.c.l.b16 %v849
  %v4086 = vunpack.c.l.b16 %v850
  %v4087 = vunpack.c.l.b16 %v851
  %v4088 = vunpack.c.l.b16 %v852
  %v4089 = vunpack.c.l.b16 %v853
  %v4090 = vunpack.c.l.b16 %v854
  %v4091 = vunpack.c.l.b16 %v855
  %v4092 = vunpack.c.l.b16 %v856
  %v4093 = vunpack.c.l.b16 %v857
  %v4094 = vunpack.c.l.b16 %v858
  %v4095 = vunpack.c.l.b16 %v859
  %v4096 = vunpack.c.l.b16 %v860
  %v4097 = vunpack.c.l.b16 %v861
  %v4098 = vunpack.c.l.b16 %v862
  %v4099 = vunpack.c.l.b16 %v863
  %v4100 = vunpack.c.l.b16 %v864
  %v4101 = vunpack.c.l.b16 %v865
  %v4102 = vunpack.c.l.b16 %v866
  %v4103 = vunpack.c.l.b16 %v867
  %v4104 = vunpack.c.l.b16 %v868
  %v4105 = vunpack.c.l.b16 %v869
  %v4106 = vunpack.c.l.b16 %v870
  %v4107 = vunpack.c.l.b16 %v871
  %v4108 = vunpack.c.l.b16 %v872
  %v4109 = vunpack.c.l.b16 %v873
  %v4110 = vunpack.c.l.b16 %v874
  %v4111 = vunpack.c.l.b16 %v875
  %v4112 = vunpack.c.l.b16 %v876
  %v4113 = vunpack.c.l.b16 %v877
  %v4114 = vunpack.c.l.b16 %v878
  %v4115 = vunpack.c.l.b16 %v879
  %v4116 = vunpack.c.l.b16 %v880
  %v4117 = vunpack.c.l.b16 %v881
  %v4118 = vunpack.c.l.b16 %v882
  %v4119 = vunpack.c.l.b16 %v883
  %v4120 = vunpack.c.l.b16 %v884
  %v4121 = vunpack.c.l.b16 %v885
  %v4122 = vunpack.c.l.b16 %v886
  %v4123 = vunpack.c.l.b16 %v887
  %v4124 = vunpack.c.l.b16 %v888
  %v4125 = vunpack.c.l.b16 %v889
  %v4126 = vunpack.c.l.b16 %v890
  %v4127 = vunpack.c.l.b16 %v891
  %v4128 = vunpack.c.l.b16 %v892
  %v4129 = vunpack.c.l.b16 %v893
  %v4130 = vunpack.c.l.b16 %v894
  %v4131 = vunpack.c.l.b16 %v895
  %v4132 = vunpack.c.l.b16 %v896
  %v4133 = vunpack.c.l.b16 %v897
  %v4134 = vunpack.c.l.b16 %v898
  %v4135 = vunpack.c.l.b16 %v899
  %v4136 = vunpack.c.l.b16 %v900
  %v4137 = vunpack.c.l.b16 %v901
  %v4138 = vunpack.c.l.b16 %v902
  %v4139 = vunpack.c.l.b16 %v903
  %v4140 = vunpack.c.l.b16 %v904
  %v4141 = vunpack.c.l.b16 %v905
  %v4142 = vunpack.c.l.b16 %v906
  %v4143 = vunpack.c.l.b16 %v907
  %v4144 = vunpack.c.l.b16 %v908
  %v4145 = vunpack.c.l.b16 %v909
  %v4146 = vunpack.c.l.b16 %v910
  %v4147 = vunpack.c.l.b16 %v911
  %v4148 = vunpack.c.l.b16 %v912
  %v4149 = vunpack.c.l.b16 %v913
  %v4150 = vunpack.c.l.b16 %v914
  %v4151 = vunpack.c.l.b16 %v915
  %v4152 = vunpack.c.l.b16 %v916
  %v4153 = vunpack.c.l.b16 %v917
  %v4154 = vunpack.c.l.b16 %v918
  %v4155 = vunpack.c.l.b16 %v919
  %v4156 = vunpack.c.l.b16 %v920
  %v4157 = vunpack.c.l.b16 %v921
  %v4158 = vunpack.c.l.b16 %v922
  %v4159 = vunpack.c.l.b16 %v923
  %v4160 = vunpack.c.l.b16 %v924
  %v4161 = vunpack.c.l.b16 %v925
  %v4162 = vunpack.c.l.b16 %v926
  %v4163 = vunpack.c.l.b16 %v927
  %v4164 = vunpack.c.l.b16 %v928
  %v4165 = vunpack.c.l.b16 %v929
  %v4166 = vunpack.c.l.b16 %v930
  %v4167 = vunpack.c.l.b16 %v931
  %v4168 = vunpack.c.l.b16 %v932
  %v4169 = vunpack.c.l.b16 %v933
  %v4170 = vunpack.c.l.b16 %v934
  %v4171 = vunpack.c.l.b16 %v935
  %v4172 = vunpack.c.l.b16 %v936
  %v4173 = vunpack.c.l.b16 %v937
  %v4174 = vunpack.c.l.b16 %v938
  %v4175 = vunpack.c.l.b16 %v939
  %v4176 = vunpack.c.l.b16 %v940
  %v4177 = vunpack.c.l.b16 %v941
  %v4178 = vunpack.c.l.b16 %v942
  %v4179 = vunpack.c.l.b16 %v943
  %v4180 = vunpack.c.l.b16 %v944
  %v4181 = vunpack.c.l.b16 %v945
  %v4182 = vunpack.c.l.b16 %v946
  %v4183 = vunpack.c.l.b16 %v947
  %v4184 = vunpack.c.l.b16 %v948
  %v4185 = vunpack.c.l.b16 %v949
  %v4186 = vunpack.c.l.b16 %v950
  %v4187 = vunpack.c.l.b16 %v951
  %v4188 = vunpack.c.l.b16 %v952
  %v4189 = vunpack.c.l.b16 %v953
  %v4190 = vunpack.c.l.b16 %v954
  %v4191 = vunpack.c.l.b16 %v955
  %v4192 = vunpack.c.l.b16 %v956
  %v4193 = vunpack.c.l.b16 %v957
  %v4194 = vunpack.c.l.b16 %v958
  %v4195 = vunpack.c.l.b16 %v959
  %v4196 = vunpack.c.l.b16 %v960
  %v4197 = vunpack.c.l.b16 %v961
  %v4198 = vunpack.c.l.b16 %v962
  %v4199 = vunpack.c.l.b16 %v963
  %v4200 = vunpack.c.l.b16 %v964
  %v4201 = vunpack.c.l.b16 %v965
  %v4202 = vunpack.c.l.b16 %v966
  %v4203 = vunpack.c.l.b16 %v967
  %v4204 = vunpack.c.l.b16 %v968
  %v4205 = vunpack.c.l.b16 %v969
  %v4206 = vunpack.c.l.b16 %v970
  %v4207 = vunpack.c.l.b16 %v971
  %v4208 = vunpack.c.l.b16 %v972
  %v4209 = vunpack.c.l.b16 %v973
  %v4210 = vunpack.c.l.b16 %v974
  %v4211 = vunpack.c.l.b16 %v975
  %v4212 = vunpack.c.l.b16 %v976
  %v4213 = vunpack.c.l.b16 %v977
  %v4214 = vunpack.c.l.b16 %v978
  %v4215 = vunpack.c.l.b16 %v979
  %v4216 = vunpack.c.l.b16 %v980
  %v4217 = vunpack.c.l.b16 %v981
  %v4218 = vunpack.c.l.b16 %v982
  %v4219 = vunpack.c.l.b16 %v983
  %v4220 = vunpack.c.l.b16 %v984
  %v4221 = vunpack.c.l.b16 %v985
  %v4222 = vunpack.c.l.b16 %v986
  %v4223 = vunpack.c.l.b16 %v987
  %v4224 = vunpack.c.l.b16 %v988
  %v4225 = vunpack.c.l.b16 %v989
  %v4226 = vunpack.c.l.b16 %v990
  %v4227 = vunpack.c.l.b16 %v991
  %v4228 = vunpack.c.l.b16 %v992
  %v4229 = vunpack.c.l.b16 %v993
  %v4230 = vunpack.c.l.b16 %v994
  %v4231 = vunpack.c.l.b16 %v995
  %v4232 = vunpack.c.l.b16 %v996
  %v4233 = vunpack.c.l.b16 %v997
  %v4234 = vunpack.c.l.b16 %v998
  %v4235 = vunpack.c.l.b16 %v999
  %v4236 = vunpack.c.l.b16 %v1000
  %v4237 = vunpack.c.l.b16 %v1001
  %v4238 = vunpack.c.l.b16 %v1002
  %v4239 = vunpack.c.l.b16 %v1003
  %v4240 = vunpack.c.l.b16 %v1004
  %v4241 = vunpack.c.l.b16 %v1005
  %v4242 = vunpack.c.l.b16 %v1006
  %v4243 = vunpack.c.l.b16 %v1007
  %v4244 = vunpack.c.l.b16 %v1008
  %v4245 = vunpack.c.l.b16 %v1009
  %v4246 = vunpack.c.l.b16 %v1010
  %v4247 = vunpack.c.l.b16 %v1011
  %v4248 = vunpack.c.l.b16 %v1012
  %v4249 = vunpack.c.l.b16 %v1013
  %v4250 = vunpack.c.l.b16 %v1014
  %v4251 = vunpack.c.l.b16 %v1015
  %v4252 = vunpack.c.l.b16 %v1016
  %v4253 = vunpack.c.l.b16 %v1017
  %v4254 = vunpack.c.l.b16 %v1018
  %v4255 = vunpack.c.l.b16 %v1019
  %v4256 = vunpack.c.l.b16 %v1020
  %v4257 = vunpack.c.l.b16 %v1021
  %v4258 = vunpack.c.l.b16 %v1022
  %v4259 = vunpack.c.l.b16 %v1023
  %v4260 = vunpack.c.l.b16 %v1024
  %v4261 = vunpack.c.l.b16 %v1025
  %v4262 = vunpack.c.l.b16 %v1026
  %v4263 = vunpack.c.l.b16 %v1027
  %v4264 = vunpack.c.l.b16 %v1028
  %v4265 = vunpack.c.l.b16 %v1029
  %v4266 = vunpack.c.l.b16 %v1030
  %v4267 = vunpack.c.l.b16 %v1031
  %v4268 = vunpack.c.l.b16 %v1032
  %v4269 = vunpack.c.l.b16 %v1033
  %v4270 = vunpack.c.l.b16 %v1034
  %v4271 = vunpack.c.l.b16 %v1035
  %v4272 = vunpack.c.l.b16 %v1036
  %v4273 = vunpack.c.l.b16 %v1037
  %v4274 = vunpack.c.l.b16 %v1038
  %v4275 = vunpack.c.l.b16 %v1039
  %v4276 = vunpack.c.l.b16 %v1040
  %v4277 = vunpack.c.l.b16 %v1041
  %v4278 = vunpack.c.l.b16 %v1042
  %v4279 = vunpack.c.l.b16 %v1043
  %v4280 = vunpack.c.l.b16 %v1044
  %v4281 = vunpack.c.l.b16 %v1045
  %v4282 = vunpack.c.l.b16 %v1046
  %v4283 = vunpack.c.l.b16 %v1047
  %v4284 = vunpack.c.l.b16 %v1048
  %v4285 = vunpack.c.l.b16 %v1049
  %v4286 = vunpack.c.l.b16 %v1050
  %v4287 = vunpack.c.l.b16 %v1051
  %v4288 = vunpack.c.l.b16 %v1052
  %v4289 = vunpack.c.l.b16 %v1053
  %v4290 = vunpack.c.l.b16 %v1054
  %v4291 = vunpack.c.l.b16 %v1055
  %v4292 = vunpack.c.l.b16 %v1056
  %v4293 = vunpack.c.l.b16 %v1057
  %v4294 = vunpack.c.l.b16 %v1058
  %v4295 = vunpack.c.l.b16 %v1059
  %v4296 = vunpack.c.l.b16 %v1060
  %v4297 = vunpack.c.l.b16 %v1061
  %v4298 = vunpack.c.l.b16 %v1062
  %v4299 = vunpack.c.l.b16 %v1063
  %v4300 = vunpack.c.l.b16 %v1064
  %v4301 = vunpack.c.l.b16 %v1065
  %v4302 = vunpack.c.l.b16 %v1066
  %v4303 = vunpack.c.l.b16 %v1067
  %v4304 = vunpack.c.l.b16 %v1068
  %v4305 = vunpack.c.l.b16 %v1069
  %v4306 = vunpack.c.l.b16 %v1070
  %v4307 = vunpack.c.l.b16 %v1071
  %v4308 = vunpack.c.l.b16 %v1072
  %v4309 = vunpack.c.l.b16 %v1073
  %v4310 = vunpack.c.l.b16 %v1074
  %v4311 = vunpack.c.l.b16 %v1075
  %v4312 = vunpack.c.l.b16 %v1076
  %v4313 = vunpack.c.l.b16 %v1077
  %v4314 = vunpack.c.l.b16 %v1078
  %v4315 = vunpack.c.l.b16 %v1079
  %v4316 = vunpack.c.l.b16 %v1080
  %v4317 = vunpack.c.l.b16 %v1081
  %v4318 = vunpack.c.l.b16 %v1082
  %v4319 = vunpack.c.l.b16 %v1083
  %v4320 = vunpack.c.l.b16 %v1084
  %v4321 = vunpack.c.l.b16 %v1085
  %v4322 = vunpack.c.l.b16 %v1086
  %v4323 = vunpack.c.l.b16 %v1087
  %v4324 = vunpack.c.l.b16 %v1088
  %v4325 = vunpack.c.l.b16 %v1089
  %v4326 = vunpack.c.l.b16 %v1090
  %v4327 = vunpack.c.l.b16 %v1091
  %v4328 = vunpack.c.l.b16 %v1092
  %v4329 = vunpack.c.l.b16 %v1093
  %v4330 = vunpack.c.l.b16 %v1094
  %v4331 = vunpack.c.l.b16 %v1095
  %v4332 = vunpack.c.l.b16 %v1096
  %v4333 = vunpack.c.l.b16 %v1097
  %v4334 = vunpack.c.l.b16 %v1098
  %v4335 = vunpack.c.l.b16 %v1099
  %v4336 = vunpack.c.l.b16 %v1100
  %v4337 = vunpack.c.l.b16 %v1101
  %v4338 = vunpack.c.l.b16 %v1102
  %v4339 = vunpack.c.l.b16 %v1103
  %v4340 = vunpack.c.l.b16 %v1104
  %v4341 = vunpack.c.l.b16 %v1105
  %v4342 = vunpack.c.l.b16 %v1106
  %v4343 = vunpack.c.l.b16 %v1107
  %v4344 = vunpack.c.l.b16 %v1108
  %v4345 = vunpack.c.l.b16 %v1109
  %v4346 = vunpack.c.l.b16 %v1110
  %v4347 = vunpack.c.l.b16 %v1111
  %v4348 = vunpack.c.l.b16 %v1112
  %v4349 = vunpack.c.l.b16 %v1113
  %v4350 = vunpack.c.l.b16 %v1114
  %v4351 = vunpack.c.l.b16 %v1115
  %v4352 = vunpack.c.l.b16 %v1116
  %v4353 = vunpack.c.l.b16 %v1117
  %v4354 = vunpack.c.l.b16 %v1118
  %v4355 = vunpack.c.l.b16 %v1119
  %v4356 = vunpack.c.l.b16 %v1120
  %v4357 = vunpack.c.l.b16 %v1121
  %v4358 = vunpack.c.l.b16 %v1122
  %v4359 = vunpack.c.l.b16 %v1123
  %v4360 = vunpack.c.l.b16 %v1124
  %v4361 = vunpack.c.l.b16 %v1125
  %v4362 = vunpack.c.l.b16 %v1126
  %v4363 = vunpack.c.l.b16 %v1127
  %v4364 = vunpack.c.l.b16 %v1128
  %v4365 = vunpack.c.l.b16 %v1129
  %v4366 = vunpack.c.l.b16 %v1130
  %v4367 = vunpack.c.l.b16 %v1131
  %v4368 = vunpack.c.l.b16 %v1132
  %v4369 = vunpack.c.l.b16 %v1133
  %v4370 = vunpack.c.l.b16 %v1134
  %v4371 = vunpack.c.l.b16 %v1135
  %v4372 = vunpack.c.l.b16 %v1136
  %v4373 = vunpack.c.l.b16 %v1137
  %v4374 = vunpack.c.l.b16 %v1138
  %v4375 = vunpack.c.l.b16 %v1139
  %v4376 = vunpack.c.l.b16 %v1140
  %v4377 = vunpack.c.l.b16 %v1141
  %v4378 = vunpack.c.l.b16 %v1142
  %v4379 = vunpack.c.l.b16 %v1143
  %v4380 = vunpack.c.l.b16 %v1144
  %v4381 = vunpack.c.l.b16 %v1145
  %v4382 = vunpack.c.l.b16 %v1146
  %v4383 = vunpack.c.l.b16 %v1147
  %v4384 = vunpack.c.l.b16 %v1148
  %v4385 = vunpack.c.l.b16 %v1149
  %v4386 = vunpack.c.l.b16 %v1150
  %v4387 = vunpack.c.l.b16 %v1151
  %v4388 = vunpack.c.l.b16 %v1152
  %v4389 = vunpack.c.l.b16 %v1153
  %v4390 = vunpack.c.l.b16 %v1154
  %v4391 = vunpack.c.l.b16 %v1155
  %v4392 = vunpack.c.l.b16 %v1156
  %v4393 = vunpack.c.l.b16 %v1157
  %v4394 = vunpack.c.l.b16 %v1158
  %v4395 = vunpack.c.l.b16 %v1159
  %v4396 = vunpack.c.l.b16 %v1160
  %v4397 = vunpack.c.l.b16 %v1161
  %v4398 = vunpack.c.l.b16 %v1162
  %v4399 = vunpack.c.l.b16 %v1163
  %v4400 = vunpack.c.l.b16 %v1164
  %v4401 = vunpack.c.l.b16 %v1165
  %v4402 = vunpack.c.l.b16 %v1166
  %v4403 = vunpack.c.l.b16 %v1167
  %v4404 = vunpack.c.l.b16 %v1168
  %v4405 = vunpack.c.l.b16 %v1169
  %v4406 = vunpack.c.l.b16 %v1170
  %v4407 = vunpack.c.l.b16 %v1171
  %v4408 = vunpack.c.l.b16 %v1172
  %v4409 = vunpack.c.l.b16 %v1173
  %v4410 = vunpack.c.l.b16 %v1174
  %v4411 = vunpack.c.l.b16 %v1175
  %v4412 = vunpack.c.l.b16 %v1176
  %v4413 = vunpack.c.l.b16 %v1177
  %v4414 = vunpack.c.l.b16 %v1178
  %v4415 = vunpack.c.l.b16 %v1179
  %v4416 = vunpack.c.l.b16 %v1180
  %v4417 = vunpack.c.l.b16 %v1181
  %v4418 = vunpack.c.l.b16 %v1182
  %v4419 = vunpack.c.l.b16 %v1183
  %v4420 = vunpack.c.l.b16 %v1184
  %v4421 = vunpack.c.l.b16 %v1185
  %v4422 = vunpack.c.l.b16 %v1186
  %v4423 = vunpack.c.l.b16 %v1187
  %v4424 = vunpack.c.l.b16 %v1188
  %v4425 = vunpack.c.l.b16 %v1189
  %v4426 = vunpack.c.l.b16 %v1190
  %v4427 = vunpack.c.l.b16 %v1191
  %v4428 = vunpack.c.l.b16 %v1192
  %v4429 = vunpack.c.l.b16 %v1193
  %v4430 = vunpack.c.l.b16 %v1194
  %v4431 = vunpack.c.l.b16 %v1195
  %v4432 = vunpack.c.l.b16 %v1196
  %v4433 = vunpack.c.l.b16 %v1197
  %v4434 = vunpack.c.l.b16 %v1198
  %v4435 = vunpack.c.l.b16 %v1199
  %v4436 = vunpack.c.l.b16 %v1200
  %v4437 = vunpack.c.l.b16 %v1201
  %v4438 = vunpack.c.l.b16 %v1202
  %v4439 = vunpack.c.l.b16 %v1203
  %v4440 = vunpack.c.l.b16 %v1204
  %v4441 = vunpack.c.l.b16 %v1205
  %v4442 = vunpack.c.l.b16 %v1206
  %v4443 = vunpack.c.l.b16 %v1207
  %v4444 = vunpack.c.l.b16 %v1208
  %v4445 = vunpack.c.l.b16 %v1209
  %v4446 = vunpack.c.l.b16 %v1210
  %v4447 = vunpack.c.l.b16 %v1211
  %v4448 = vunpack.c.l.b16 %v1212
  %v4449 = vunpack.c.l.b16 %v1213
  %v4450 = vunpack.c.l.b16 %v1214
  %v4451 = vunpack.c.l.b16 %v1215
  %v4452 = vunpack.c.l.b16 %v1216
  %v4453 = vunpack.c.l.b16 %v1217
  %v4454 = vunpack.c.l.b16 %v1218
  %v4455 = vunpack.c.l.b16 %v1219
  %v4456 = vunpack.c.l.b16 %v1220
  %v4457 = vunpack.c.l.b16 %v1221
  %v4458 = vunpack.c.l.b16 %v1222
  %v4459 = vunpack.c.l.b16 %v1223
  %v4460 = vunpack.c.l.b16 %v1224
  %v4461 = vunpack.c.l.b16 %v1225
  %v4462 = vunpack.c.l.b16 %v1226
  %v4463 = vunpack.c.l.b16 %v1227
  %v4464 = vunpack.c.l.b16 %v1228
  %v4465 = vunpack.c.l.b16 %v1229
  %v4466 = vunpack.c.l.b16 %v1230
  %v4467 = vunpack.c.l.b16 %v1231
  %v4468 = vunpack.c.l.b16 %v1232
  %v4469 = vunpack.c.l.b16 %v1233
  %v4470 = vunpack.c.l.b16 %v1234
  %v4471 = vunpack.c.l.b16 %v1235
  %v4472 = vunpack.c.l.b16 %v1236
  %v4473 = vunpack.c.l.b16 %v1237
  %v4474 = vunpack.c.l.b16 %v1238
  %v4475 = vunpack.c.l.b16 %v1239
  %v4476 = vunpack.c.l.b16 %v1240
  %v4477 = vunpack.c.l.b16 %v1241
  %v4478 = vunpack.c.l.b16 %v1242
  %v4479 = vunpack.c.l.b16 %v1243
  %v4480 = vunpack.c.l.b16 %v1244
  %v4481 = vunpack.c.l.b16 %v1245
  %v4482 = vunpack.c.l.b16 %v1246
  %v4483 = vunpack.c.l.b16 %v1247
  %v4484 = vunpack.c.l.b16 %v1248
  %v4485 = vunpack.c.l.b16 %v1249
  %v4486 = vunpack.c.l.b16 %v1250
  %v4487 = vunpack.c.l.b16 %v1251
  %v4488 = vunpack.c.l.b16 %v1252
  %v4489 = vunpack.c.l.b16 %v1253
  %v4490 = vunpack.c.l.b16 %v1254
  %v4491 = vunpack.c.l.b16 %v1255
  %v4492 = vunpack.c.l.b16 %v1256
  %v4493 = vunpack.c.l.b16 %v1257
  %v4494 = vunpack.c.l.b16 %v1258
  %v4495 = vunpack.c.l.b16 %v1259
  %v4496 = vunpack.c.l.b16 %v1260
  %v4497 = vunpack.c.l.b16 %v1261
  %v4498 = vpack.c.b16 %v3475, %v3474
  %v4499 = vpack.c.b16 %v3477, %v3476
  %v4500 = vpack.c.b16 %v3479, %v3478
  %v4501 = vpack.c.b16 %v3481, %v3480
  %v4502 = vpack.c.b16 %v3483, %v3482
  %v4503 = vpack.c.b16 %v3485, %v3484
  %v4504 = vpack.c.b16 %v3487, %v3486
  %v4505 = vpack.c.b16 %v3489, %v3488
  %v4506 = vpack.c.b16 %v3491, %v3490
  %v4507 = vpack.c.b16 %v3493, %v3492
  %v4508 = vpack.c.b16 %v3495, %v3494
  %v4509 = vpack.c.b16 %v3497, %v3496
  %v4510 = vpack.c.b16 %v3499, %v3498
  %v4511 = vpack.c.b16 %v3501, %v3500
  %v4512 = vpack.c.b16 %v3503, %v3502
  %v4513 = vpack.c.b16 %v3505, %v3504
  %v4514 = vpack.c.b16 %v3507, %v3506
  %v4515 = vpack.c.b16 %v3509, %v3508
  %v4516 = vpack.c.b16 %v3511, %v3510
  %v4517 = vpack.c.b16 %v3513, %v3512
  %v4518 = vpack.c.b16 %v3515, %v3514
  %v4519 = vpack.c.b16 %v3517, %v3516
  %v4520 = vpack.c.b16 %v3519, %v3518
  %v4521 = vpack.c.b16 %v3521, %v3520
  %v4522 = vpack.c.b16 %v3523, %v3522
  %v4523 = vpack.c.b16 %v3525, %v3524
  %v4524 = vpack.c.b16 %v3527, %v3526
  %v4525 = vpack.c.b16 %v3529, %v3528
  %v4526 = vpack.c.b16 %v3531, %v3530
  %v4527 = vpack.c.b16 %v3533, %v3532
  %v4528 = vpack.c.b16 %v3535, %v3534
  %v4529 = vpack.c.b16 %v3537, %v3536
  %v4530 = vpack.c.b16 %v3539, %v3538
  %v4531 = vpack.c.b16 %v3541, %v3540
  %v4532 = vpack.c.b16 %v3543, %v3542
  %v4533 = vpack.c.b16 %v3545, %v3544
  %v4534 = vpack.c.b16 %v3547, %v3546
  %v4535 = vpack.c.b16 %v3549, %v3548
  %v4536 = vpack.c.b16 %v3551, %v3550
  %v4537 = vpack.c.b16 %v3553, %v3552
  %v4538 = vpack.c.b16 %v3555, %v3554
  %v4539 = vpack.c.b16 %v3557, %v3556
  %v4540 = vpack.c.b16 %v3559, %v3558
  %v4541 = vpack.c.b16 %v3561, %v3560
  %v4542 = vpack.c.b16 %v3563, %v3562
  %v4543 = vpack.c.b16 %v3565, %v3564
  %v4544 = vpack.c.b16 %v3567, %v3566
  %v4545 = vpack.c.b16 %v3569, %v3568
  %v4546 = vpack.c.b16 %v3571, %v3570
  %v4547 = vpack.c.b16 %v3573, %v3572
  %v4548 = vpack.c.b16 %v3575, %v3574
  %v4549 = vpack.c.b16 %v3577, %v3576
  %v4550 = vpack.c.b16 %v3579, %v3578
  %v4551 = vpack.c.b16 %v3581, %v3580
  %v4552 = vpack.c.b16 %v3583, %v3582
  %v4553 = vpack.c.b16 %v3585, %v3584
  %v4554 = vpack.c.b16 %v3587, %v3586
  %v4555 = vpack.c.b16 %v3589, %v3588
  %v4556 = vpack.c.b16 %v3591, %v3590
  %v4557 = vpack.c.b16 %v3593, %v3592
  %v4558 = vpack.c.b16 %v3595, %v3594
  %v4559 = vpack.c.b16 %v3597, %v3596
  %v4560 = vpack.c.b16 %v3599, %v3598
  %v4561 = vpack.c.b16 %v3601, %v3600
  %v4562 = vpack.c.b16 %v3603, %v3602
  %v4563 = vpack.c.b16 %v3605, %v3604
  %v4564 = vpack.c.b16 %v3607, %v3606
  %v4565 = vpack.c.b16 %v3609, %v3608
  %v4566 = vpack.c.b16 %v3611, %v3610
  %v4567 = vpack.c.b16 %v3613, %v3612
  %v4568 = vpack.c.b16 %v3615, %v3614
  %v4569 = vpack.c.b16 %v3617, %v3616
  %v4570 = vpack.c.b16 %v3619, %v3618
  %v4571 = vpack.c.b16 %v3621, %v3620
  %v4572 = vpack.c.b16 %v3623, %v3622
  %v4573 = vpack.c.b16 %v3625, %v3624
  %v4574 = vpack.c.b16 %v3627, %v3626
  %v4575 = vpack.c.b16 %v3629, %v3628
  %v4576 = vpack.c.b16 %v3631, %v3630
  %v4577 = vpack.c.b16 %v3633, %v3632
  %v4578 = vpack.c.b16 %v3635, %v3634
  %v4579 = vpack.c.b16 %v3637, %v3636
  %v4580 = vpack.c.b16 %v3639, %v3638
  %v4581 = vpack.c.b16 %v3641, %v3640
  %v4582 = vpack.c.b16 %v3643, %v3642
  %v4583 = vpack.c.b16 %v3645, %v3644
  %v4584 = vpack.c.b16 %v3647, %v3646
  %v4585 = vpack.c.b16 %v3649, %v3648
  %v4586 = vpack.c.b16 %v3651, %v3650
  %v4587 = vpack.c.b16 %v3653, %v3652
  %v4588 = vpack.c.b16 %v3655, %v3654
  %v4589 = vpack.c.b16 %v3657, %v3656
  %v4590 = vpack.c.b16 %v3659, %v3658
  %v4591 = vpack.c.b16 %v3661, %v3660
  %v4592 = vpack.c.b16 %v3663, %v3662
  %v4593 = vpack.c.b16 %v3665, %v3664
  %v4594 = vpack.c.b16 %v3667, %v3666
  %v4595 = vpack.c.b16 %v3669, %v3668
  %v4596 = vpack.c.b16 %v3671, %v3670
  %v4597 = vpack.c.b16 %v3673, %v3672
  %v4598 = vpack.c.b16 %v3675, %v3674
  %v4599 = vpack.c.b16 %v3677, %v3676
  %v4600 = vpack.c.b16 %v3679, %v3678
  %v4601 = vpack.c.b16 %v3681, %v3680
  %v4602 = vpack.c.b16 %v3683, %v3682
  %v4603 = vpack.c.b16 %v3685, %v3684
  %v4604 = vpack.c.b16 %v3687, %v3686
  %v4605 = vpack.c.b16 %v3689, %v3688
  %v4606 = vpack.c.b16 %v3691, %v3690
  %v4607 = vpack.c.b16 %v3693, %v3692
  %v4608 = vpack.c.b16 %v3695, %v3694
  %v4609 = vpack.c.b16 %v3697, %v3696
  %v4610 = vpack.c.b16 %v3699, %v3698
  %v4611 = vpack.c.b16 %v3701, %v3700
  %v4612 = vpack.c.b16 %v3703, %v3702
  %v4613 = vpack.c.b16 %v3705, %v3704
  %v4614 = vpack.c.b16 %v3707, %v3706
  %v4615 = vpack.c.b16 %v3709, %v3708
  %v4616 = vpack.c.b16 %v3711, %v3710
  %v4617 = vpack.c.b16 %v3713, %v3712
  %v4618 = vpack.c.b16 %v3715, %v3714
  %v4619 = vpack.c.b16 %v3717, %v3716
  %v4620 = vpack.c.b16 %v3719, %v3718
  %v4621 = vpack.c.b16 %v3721, %v3720
  %v4622 = vpack.c.b16 %v3723, %v3722
  %v4623 = vpack.c.b16 %v3725, %v3724
  %v4624 = vpack.c.b16 %v3727, %v3726
  %v4625 = vpack.c.b16 %v3729, %v3728
  %v4626 = vpack.c.b16 %v3731, %v3730
  %v4627 = vpack.c.b16 %v3733, %v3732
  %v4628 = vpack.c.b16 %v3735, %v3734
  %v4629 = vpack.c.b16 %v3737, %v3736
  %v4630 = vpack.c.b16 %v3739, %v3738
  %v4631 = vpack.c.b16 %v3741, %v3740
  %v4632 = vpack.c.b16 %v3743, %v3742
  %v4633 = vpack.c.b16 %v3745, %v3744
  %v4634 = vpack.c.b16 %v3747, %v3746
  %v4635 = vpack.c.b16 %v3749, %v3748
  %v4636 = vpack.c.b16 %v3751, %v3750
  %v4637 = vpack.c.b16 %v3753, %v3752
  %v4638 = vpack.c.b16 %v3755, %v3754
  %v4639 = vpack.c.b16 %v3757, %v3756
  %v4640 = vpack.c.b16 %v3759, %v3758
  %v4641 = vpack.c.b16 %v3761, %v3760
  %v4642 = vpack.c.b16 %v3763, %v3762
  %v4643 = vpack.c.b16 %v3765, %v3764
  %v4644 = vpack.c.b16 %v3767, %v3766
  %v4645 = vpack.c.b16 %v3769, %v3768
  %v4646 = vpack.c.b16 %v3771, %v3770
  %v4647 = vpack.c.b16 %v3773, %v3772
  %v4648 = vpack.c.b16 %v3775, %v3774
  %v4649 = vpack.c.b16 %v3777, %v3776
  %v4650 = vpack.c.b16 %v3779, %v3778
  %v4651 = vpack.c.b16 %v3781, %v3780
  %v4652 = vpack.c.b16 %v3783, %v3782
  %v4653 = vpack.c.b16 %v3785, %v3784
  %v4654 = vpack.c.b16 %v3787, %v3786
  %v4655 = vpack.c.b16 %v3789, %v3788
  %v4656 = vpack.c.b16 %v3791, %v3790
  %v4657 = vpack.c.b16 %v3793, %v3792
  %v4658 = vpack.c.b16 %v3795, %v3794
  %v4659 = vpack.c.b16 %v3797, %v3796
  %v4660 = vpack.c.b16 %v3799, %v3798
  %v4661 = vpack.c.b16 %v3801, %v3800
  %v4662 = vpack.c.b16 %v3803, %v3802
  %v4663 = vpack.c.b16 %v3805, %v3804
  %v4664 = vpack.c.b16 %v3807, %v3806
  %v4665 = vpack.c.b16 %v3809, %v3808
  %v4666 = vpack.c.b16 %v3811, %v3810
  %v4667 = vpack.c.b16 %v3813, %v3812
  %v4668 = vpack.c.b16 %v3815, %v3814
  %v4669 = vpack.c.b16 %v3817, %v3816
  %v4670 = vpack.c.b16 %v3819, %v3818
  %v4671 = vpack.c.b16 %v3821, %v3820
  %v4672 = vpack.c.b16 %v3823, %v3822
  %v4673 = vpack.c.b16 %v3825, %v3824
  %v4674 = vpack.c.b16 %v3827, %v3826
  %v4675 = vpack.c.b16 %v3829, %v3828
  %v4676 = vpack.c.b16 %v3831, %v3830
  %v4677 = vpack.c.b16 %v3833, %v3832
  %v4678 = vpack.c.b16 %v3835, %v3834
  %v4679 = vpack.c.b16 %v3837, %v3836
  %v4680 = vpack.c.b16 %v3839, %v3838
  %v4681 = vpack.c.b16 %v3841, %v3840
  %v4682 = vpack.c.b16 %v3843, %v3842
  %v4683 = vpack.c.b16 %v3845, %v3844
  %v4684 = vpack.c.b16 %v3847, %v3846
  %v4685 = vpack.c.b16 %v3849, %v3848
  %v4686 = vpack.c.b16 %v3851, %v3850
  %v4687 = vpack.c.b16 %v3853, %v3852
  %v4688 = vpack.c.b16 %v3855, %v3854
  %v4689 = vpack.c.b16 %v3857, %v3856
  %v4690 = vpack.c.b16 %v3859, %v3858
  %v4691 = vpack.c.b16 %v3861, %v3860
  %v4692 = vpack.c.b16 %v3863, %v3862
  %v4693 = vpack.c.b16 %v3865, %v3864
  %v4694 = vpack.c.b16 %v3867, %v3866
  %v4695 = vpack.c.b16 %v3869, %v3868
  %v4696 = vpack.c.b16 %v3871, %v3870
  %v4697 = vpack.c.b16 %v3873, %v3872
  %v4698 = vpack.c.b16 %v3875, %v3874
  %v4699 = vpack.c.b16 %v3877, %v3876
  %v4700 = vpack.c.b16 %v3879, %v3878
  %v4701 = vpack.c.b16 %v3881, %v3880
  %v4702 = vpack.c.b16 %v3883, %v3882
  %v4703 = vpack.c.b16 %v3885, %v3884
  %v4704 = vpack.c.b16 %v3887, %v3886
  %v4705 = vpack.c.b16 %v3889, %v3888
  %v4706 = vpack.c.b16 %v3891, %v3890
  %v4707 = vpack.c.b16 %v3893, %v3892
  %v4708 = vpack.c.b16 %v3895, %v3894
  %v4709 = vpack.c.b16 %v3897, %v3896
  %v4710 = vpack.c.b16 %v3899, %v3898
  %v4711 = vpack.c.b16 %v3901, %v3900
  %v4712 = vpack.c.b16 %v3903, %v3902
  %v4713 = vpack.c.b16 %v3905, %v3904
  %v4714 = vpack.c.b16 %v3907, %v3906
  %v4715 = vpack.c.b16 %v3909, %v3908
  %v4716 = vpack.c.b16 %v3911, %v3910
  %v4717 = vpack.c.b16 %v3913, %v3912
  %v4718 = vpack.c.b16 %v3915, %v3914
  %v4719 = vpack.c.b16 %v3917, %v3916
  %v4720 = vpack.c.b16 %v3919, %v3918
  %v4721 = vpack.c.b16 %v3921, %v3920
  %v4722 = vpack.c.b16 %v3923, %v3922
  %v4723 = vpack.c.b16 %v3925, %v3924
  %v4724 = vpack.c.b16 %v3927, %v3926
  %v4725 = vpack.c.b16 %v3929, %v3928
  %v4726 = vpack.c.b16 %v3931, %v3930
  %v4727 = vpack.c.b16 %v3933, %v3932
  %v4728 = vpack.c.b16 %v3935, %v3934
  %v4729 = vpack.c.b16 %v3937, %v3936
  %v4730 = vpack.c.b16 %v3939, %v3938
  %v4731 = vpack.c.b16 %v3941, %v3940
  %v4732 = vpack.c.b16 %v3943, %v3942
  %v4733 = vpack.c.b16 %v3945, %v3944
  %v4734 = vpack.c.b16 %v3947, %v3946
  %v4735 = vpack.c.b16 %v3949, %v3948
  %v4736 = vpack.c.b16 %v3951, %v3950
  %v4737 = vpack.c.b16 %v3953, %v3952
  %v4738 = vpack.c.b16 %v3955, %v3954
  %v4739 = vpack.c.b16 %v3957, %v3956
  %v4740 = vpack.c.b16 %v3959, %v3958
  %v4741 = vpack.c.b16 %v3961, %v3960
  %v4742 = vpack.c.b16 %v3963, %v3962
  %v4743 = vpack.c.b16 %v3965, %v3964
  %v4744 = vpack.c.b16 %v3967, %v3966
  %v4745 = vpack.c.b16 %v3969, %v3968
  %v4746 = vpack.c.b16 %v3971, %v3970
  %v4747 = vpack.c.b16 %v3973, %v3972
  %v4748 = vpack.c.b16 %v3975, %v3974
  %v4749 = vpack.c.b16 %v3977, %v3976
  %v4750 = vpack.c.b16 %v3979, %v3978
  %v4751 = vpack.c.b16 %v3981, %v3980
  %v4752 = vpack.c.b16 %v3983, %v3982
  %v4753 = vpack.c.b16 %v3985, %v3984
  %v4754 = vpack.c.b16 %v3987, %v3986
  %v4755 = vpack.c.b16 %v3989, %v3988
  %v4756 = vpack.c.b16 %v3991, %v3990
  %v4757 = vpack.c.b16 %v3993, %v3992
  %v4758 = vpack.c.b16 %v3995, %v3994
  %v4759 = vpack.c.b16 %v3997, %v3996
  %v4760 = vpack.c.b16 %v3999, %v3998
  %v4761 = vpack.c.b16 %v4001, %v4000
  %v4762 = vpack.c.b16 %v4003, %v4002
  %v4763 = vpack.c.b16 %v4005, %v4004
  %v4764 = vpack.c.b16 %v4007, %v4006
  %v4765 = vpack.c.b16 %v4009, %v4008
  %v4766 = vpack.c.b16 %v4011, %v4010
  %v4767 = vpack.c.b16 %v4013, %v4012
  %v4768 = vpack.c.b16 %v4015, %v4014
  %v4769 = vpack.c.b16 %v4017, %v4016
  %v4770 = vpack.c.b16 %v4019, %v4018
  %v4771 = vpack.c.b16 %v4021, %v4020
  %v4772 = vpack.c.b16 %v4023, %v4022
  %v4773 = vpack.c.b16 %v4025, %v4024
  %v4774 = vpack.c.b16 %v4027, %v4026
  %v4775 = vpack.c.b16 %v4029, %v4028
  %v4776 = vpack.c.b16 %v4031, %v4030
  %v4777 = vpack.c.b16 %v4033, %v4032
  %v4778 = vpack.c.b16 %v4035, %v4034
  %v4779 = vpack.c.b16 %v4037, %v4036
  %v4780 = vpack.c.b16 %v4039, %v4038
  %v4781 = vpack.c.b16 %v4041, %v4040
  %v4782 = vpack.c.b16 %v4043, %v4042
  %v4783 = vpack.c.b16 %v4045, %v4044
  %v4784 = vpack.c.b16 %v4047, %v4046
  %v4785 = vpack.c.b16 %v4049, %v4048
  %v4786 = vpack.c.b16 %v4051, %v4050
  %v4787 = vpack.c.b16 %v4053, %v4052
  %v4788 = vpack.c.b16 %v4055, %v4054
  %v4789 = vpack.c.b16 %v4057, %v4056
  %v4790 = vpack.c.b16 %v4059, %v4058
  %v4791 = vpack.c.b16 %v4061, %v4060
  %v4792 = vpack.c.b16 %v4063, %v4062
  %v4793 = vpack.c.b16 %v4065, %v4064
  %v4794 = vpack.c.b16 %v4067, %v4066
  %v4795 = vpack.c.b16 %v4069, %v4068
  %v4796 = vpack.c.b16 %v4071, %v4070
  %v4797 = vpack.c.b16 %v4073, %v4072
  %v4798 = vpack.c.b16 %v4075, %v4074
  %v4799 = vpack.c.b16 %v4077, %v4076
  %v4800 = vpack.c.b16 %v4079, %v4078
  %v4801 = vpack.c.b16 %v4081, %v4080
  %v4802 = vpack.c.b16 %v4083, %v4082
  %v4803 = vpack.c.b16 %v4085, %v4084
  %v4804 = vpack.c.b16 %v4087, %v4086
  %v4805 = vpack.c.b16 %v4089, %v4088
  %v4806 = vpack.c.b16 %v4091, %v4090
  %v4807 = vpack.c.b16 %v4093, %v4092
  %v4808 = vpack.c.b16 %v4095, %v4094
  %v4809 = vpack.c.b16 %v4097, %v4096
  %v4810 = vpack.c.b16 %v4099, %v4098
  %v4811 = vpack.c.b16 %v4101, %v4100
  %v4812 = vpack.c.b16 %v4103, %v4102
  %v4813 = vpack.c.b16 %v4105, %v4104
  %v4814 = vpack.c.b16 %v4107, %v4106
  %v4815 = vpack.c.b16 %v4109, %v4108
  %v4816 = vpack.c.b16 %v4111, %v4110
  %v4817 = vpack.c.b16 %v4113, %v4112
  %v4818 = vpack.c.b16 %v4115, %v4114
  %v4819 = vpack.c.b16 %v4117, %v4116
  %v4820 = vpack.c.b16 %v4119, %v4118
  %v4821 = vpack.c.b16 %v4121, %v4120
  %v4822 = vpack.c.b16 %v4123, %v4122
  %v4823 = vpack.c.b16 %v4125, %v4124
  %v4824 = vpack.c.b16 %v4127, %v4126
  %v4825 = vpack.c.b16 %v4129, %v4128
  %v4826 = vpack.c.b16 %v4131, %v4130
  %v4827 = vpack.c.b16 %v4133, %v4132
  %v4828 = vpack.c.b16 %v4135, %v4134
  %v4829 = vpack.c.b16 %v4137, %v4136
  %v4830 = vpack.c.b16 %v4139, %v4138
  %v4831 = vpack.c.b16 %v4141, %v4140
  %v4832 = vpack.c.b16 %v4143, %v4142
  %v4833 = vpack.c.b16 %v4145, %v4144
  %v4834 = vpack.c.b16 %v4147, %v4146
  %v4835 = vpack.c.b16 %v4149, %v4148
  %v4836 = vpack.c.b16 %v4151, %v4150
  %v4837 = vpack.c.b16 %v4153, %v4152
  %v4838 = vpack.c.b16 %v4155, %v4154
  %v4839 = vpack.c.b16 %v4157, %v4156
  %v4840 = vpack.c.b16 %v4159, %v4158
  %v4841 = vpack.c.b16 %v4161, %v4160
  %v4842 = vpack.c.b16 %v4163, %v4162
  %v4843 = vpack.c.b16 %v4165, %v4164
  %v4844 = vpack.c.b16 %v4167, %v4166
  %v4845 = vpack.c.b16 %v4169, %v4168
  %v4846 = vpack.c.b16 %v4171, %v4170
  %v4847 = vpack.c.b16 %v4173, %v4172
  %v4848 = vpack.c.b16 %v4175, %v4174
  %v4849 = vpack.c.b16 %v4177, %v4176
  %v4850 = vpack.c.b16 %v4179, %v4178
  %v4851 = vpack.c.b16 %v4181, %v4180
  %v4852 = vpack.c.b16 %v4183, %v4182
  %v4853 = vpack.c.b16 %v4185, %v4184
  %v4854 = vpack.c.b16 %v4187, %v4186
  %v4855 = vpack.c.b16 %v4189, %v4188
  %v4856 = vpack.c.b16 %v4191, %v4190
  %v4857 = vpack.c.b16 %v4193, %v4192
  %v4858 = vpack.c.b16 %v4195, %v4194
  %v4859 = vpack.c.b16 %v4197, %v4196
  %v4860 = vpack.c.b16 %v4199, %v4198
  %v4861 = vpack.c.b16 %v4201, %v4200
  %v4862 = vpack.c.b16 %v4203, %v4202
  %v4863 = vpack.c.b16 %v4205, %v4204
  %v4864 = vpack.c.b16 %v4207, %v4206
  %v4865 = vpack.c.b16 %v4209, %v4208
  %v4866 = vpack.c.b16 %v4211, %v4210
  %v4867 = vpack.c.b16 %v4213, %v4212
  %v4868 = vpack.c.b16 %v4215, %v4214
  %v4869 = vpack.c.b16 %v4217, %v4216
  %v4870 = vpack.c.b16 %v4219, %v4218
  %v4871 = vpack.c.b16 %v4221, %v4220
  %v4872 = vpack.c.b16 %v4223, %v4222
  %v4873 = vpack.c.b16 %v4225, %v4224
  %v4874 = vpack.c.b16 %v4227, %v4226
  %v4875 = vpack.c.b16 %v4229, %v4228
  %v4876 = vpack.c.b16 %v4231, %v4230
  %v4877 = vpack.c.b16 %v4233, %v4232
  %v4878 = vpack.c.b16 %v4235, %v4234
  %v4879 = vpack.c.b16 %v4237, %v4236
  %v4880 = vpack.c.b16 %v4239, %v4238
  %v4881 = vpack.c.b16 %v4241, %v4240
  %v4882 = vpack.c.b16 %v4243, %v4242
  %v4883 = vpack.c.b16 %v4245, %v4244
  %v4884 = vpack.c.b16 %v4247, %v4246
  %v4885 = vpack.c.b16 %v4249, %v4248
  %v4886 = vpack.c.b16 %v4251, %v4250
  %v4887 = vpack.c.b16 %v4253, %v4252
  %v4888 = vpack.c.b16 %v4255, %v4254
  %v4889 = vpack.c.b16 %v4257, %v4256
  %v4890 = vpack.c.b16 %v4259, %v4258
  %v4891 = vpack.c.b16 %v4261, %v4260
  %v4892 = vpack.c.b16 %v4263, %v4262
  %v4893 = vpack.c.b16 %v4265, %v4264
  %v4894 = vpack.c.b16 %v4267, %v4266
  %v4895 = vpack.c.b16 %v4269, %v4268
  %v4896 = vpack.c.b16 %v4271, %v4270
  %v4897 = vpack.c.b16 %v4273, %v4272
  %v4898 = vpack.c.b16 %v4275, %v4274
  %v4899 = vpack.c.b16 %v4277, %v4276
  %v4900 = vpack.c.b16 %v4279, %v4278
  %v4901 = vpack.c.b16 %v4281, %v4280
  %v4902 = vpack.c.b16 %v4283, %v4282
  %v4903 = vpack.c.b16 %v4285, %v4284
  %v4904 = vpack.c.b16 %v4287, %v4286
  %v4905 = vpack.c.b16 %v4289, %v4288
  %v4906 = vpack.c.b16 %v4291, %v4290
  %v4907 = vpack.c.b16 %v4293, %v4292
  %v4908 = vpack.c.b16 %v4295, %v4294
  %v4909 = vpack.c.b16 %v4297, %v4296
  %v4910 = vpack.c.b16 %v4299, %v4298
  %v4911 = vpack.c.b16 %v4301, %v4300
  %v4912 = vpack.c.b16 %v4303, %v4302
  %v4913 = vpack.c.b16 %v4305, %v4304
  %v4914 = vpack.c.b16 %v4307, %v4306
  %v4915 = vpack.c.b16 %v4309, %v4308
  %v4916 = vpack.c.b16 %v4311, %v4310
  %v4917 = vpack.c.b16 %v4313, %v4312
  %v4918 = vpack.c.b16 %v4315, %v4314
  %v4919 = vpack.c.b16 %v4317, %v4316
  %v4920 = vpack.c.b16 %v4319, %v4318
  %v4921 = vpack.c.b16 %v4321, %v4320
  %v4922 = vpack.c.b16 %v4323, %v4322
  %v4923 = vpack.c.b16 %v4325, %v4324
  %v4924 = vpack.c.b16 %v4327, %v4326
  %v4925 = vpack.c.b16 %v4329, %v4328
  %v4926 = vpack.c.b16 %v4331, %v4330
  %v4927 = vpack.c.b16 %v4333, %v4332
  %v4928 = vpack.c.b16 %v4335, %v4334
  %v4929 = vpack.c.b16 %v4337, %v4336
  %v4930 = vpack.c.b16 %v4339, %v4338
  %v4931 = vpack.c.b16 %v4341, %v4340
  %v4932 = vpack.c.b16 %v4343, %v4342
  %v4933 = vpack.c.b16 %v4345, %v4344
  %v4934 = vpack.c.b16 %v4347, %v4346
  %v4935 = vpack.c.b16 %v4349, %v4348
  %v4936 = vpack.c.b16 %v4351, %v4350
  %v4937 = vpack.c.b16 %v4353, %v4352
  %v4938 = vpack.c.b16 %v4355, %v4354
  %v4939 = vpack.c.b16 %v4357, %v4356
  %v4940 = vpack.c.b16 %v4359, %v4358
  %v4941 = vpack.c.b16 %v4361, %v4360
  %v4942 = vpack.c.b16 %v4363, %v4362
  %v4943 = vpack.c.b16 %v4365, %v4364
  %v4944 = vpack.c.b16 %v4367, %v4366
  %v4945 = vpack.c.b16 %v4369, %v4368
  %v4946 = vpack.c.b16 %v4371, %v4370
  %v4947 = vpack.c.b16 %v4373, %v4372
  %v4948 = vpack.c.b16 %v4375, %v4374
  %v4949 = vpack.c.b16 %v4377, %v4376
  %v4950 = vpack.c.b16 %v4379, %v4378
  %v4951 = vpack.c.b16 %v4381, %v4380
  %v4952 = vpack.c.b16 %v4383, %v4382
  %v4953 = vpack.c.b16 %v4385, %v4384
  %v4954 = vpack.c.b16 %v4387, %v4386
  %v4955 = vpack.c.b16 %v4389, %v4388
  %v4956 = vpack.c.b16 %v4391, %v4390
  %v4957 = vpack.c.b16 %v4393, %v4392
  %v4958 = vpack.c.b16 %v4395, %v4394
  %v4959 = vpack.c.b16 %v4397, %v4396
  %v4960 = vpack.c.b16 %v4399, %v4398
  %v4961 = vpack.c.b16 %v4401, %v4400
  %v4962 = vpack.c.b16 %v4403, %v4402
  %v4963 = vpack.c.b16 %v4405, %v4404
  %v4964 = vpack.c.b16 %v4407, %v4406
  %v4965 = vpack.c.b16 %v4409, %v4408
  %v4966 = vpack.c.b16 %v4411, %v4410
  %v4967 = vpack.c.b16 %v4413, %v4412
  %v4968 = vpack.c.b16 %v4415, %v4414
  %v4969 = vpack.c.b16 %v4417, %v4416
  %v4970 = vpack.c.b16 %v4419, %v4418
  %v4971 = vpack.c.b16 %v4421, %v4420
  %v4972 = vpack.c.b16 %v4423, %v4422
  %v4973 = vpack.c.b16 %v4425, %v4424
  %v4974 = vpack.c.b16 %v4427, %v4426
  %v4975 = vpack.c.b16 %v4429, %v4428
  %v4976 = vpack.c.b16 %v4431, %v4430
  %v4977 = vpack.c.b16 %v4433, %v4432
  %v4978 = vpack.c.b16 %v4435, %v4434
  %v4979 = vpack.c.b16 %v4437, %v4436
  %v4980 = vpack.c.b16 %v4439, %v4438
  %v4981 = vpack.c.b16 %v4441, %v4440
  %v4982 = vpack.c.b16 %v4443, %v4442
  %v4983 = vpack.c.b16 %v4445, %v4444
  %v4984 = vpack.c.b16 %v4447, %v4446
  %v4985 = vpack.c.b16 %v4449, %v4448
  %v4986 = vpack.c.b16 %v4451, %v4450
  %v4987 = vpack.c.b16 %v4453, %v4452
  %v4988 = vpack.c.b16 %v4455, %v4454
  %v4989 = vpack.c.b16 %v4457, %v4456
  %v4990 = vpack.c.b16 %v4459, %v4458
  %v4991 = vpack.c.b16 %v4461, %v4460
  %v4992 = vpack.c.b16 %v4463, %v4462
  %v4993 = vpack.c.b16 %v4465, %v4464
  %v4994 = vpack.c.b16 %v4467, %v4466
  %v4995 = vpack.c.b16 %v4469, %v4468
  %v4996 = vpack.c.b16 %v4471, %v4470
  %v4997 = vpack.c.b16 %v4473, %v4472
  %v4998 = vpack.c.b16 %v4475, %v4474
  %v4999 = vpack.c.b16 %v4477, %v4476
  %v5000 = vpack.c.b16 %v4479, %v4478
  %v5001 = vpack.c.b16 %v4481, %v4480
  %v5002 = vpack.c.b16 %v4483, %v4482
  %v5003 = vpack.c.b16 %v4485, %v4484
  %v5004 = vpack.c.b16 %v4487, %v4486
  %v5005 = vpack.c.b16 %v4489, %v4488
  %v5006 = vpack.c.b16 %v4491, %v4490
  %v5007 = vpack.c.b16 %v4493, %v4492
  %v5008 = vpack.c.b16 %v4495, %v4494
  %v5009 = vpack.c.b16 %v4497, %v4496
  %5522 = vmatpush.bf16.msra.mxu0 %v4505
  %5523 = vmatpush.bf16.msra.mxu0 %v4504
  %5524 = vmatpush.bf16.msra.mxu0 %v4503
  %5525 = vmatpush.bf16.msra.mxu0 %v4502
  %5526 = vmatpush.bf16.msra.mxu0 %v4501
  %5527 = vmatpush.bf16.msra.mxu0 %v4500
  %5528 = vmatpush.bf16.msra.mxu0 %v4499
  %5529 = vmatpush.bf16.msra.mxu0 %v4498
  %5530 = vmatmul.bf16.gmra.mxu0 %v1938
  %v5531 = vpop.f32.mrf.mxu0
  %v5532 = vadd.f32 %v1264, %v5531
  %v5533 = vpop.f32.mrf.mxu0
  %v5534 = vadd.f32 %v1264, %v5533
  %5535 = vmatmul.bf16.gmra.mxu0 %v2002
  %v5536 = vpop.f32.mrf.mxu0
  %v5537 = vadd.f32 %v1264, %v5536
  %v5538 = vpop.f32.mrf.mxu0
  %v5539 = vadd.f32 %v1264, %v5538
  %5540 = vmatmul.bf16.gmra.mxu0 %v2066
  %v5541 = vpop.f32.mrf.mxu0
  %v5542 = vadd.f32 %v1264, %v5541
  %v5543 = vpop.f32.mrf.mxu0
  %v5544 = vadd.f32 %v1264, %v5543
  %5545 = vmatmul.bf16.gmra.mxu0 %v2130
  %v5546 = vpop.f32.mrf.mxu0
  %v5547 = vadd.f32 %v1264, %v5546
  %v5548 = vpop.f32.mrf.mxu0
  %5549 = vdwg.mxu0
  %5550 = vmatpush.bf16.msra.mxu0 %v4513
  %5551 = vmatpush.bf16.msra.mxu0 %v4512
  %5552 = vmatpush.bf16.msra.mxu0 %v4511
  %5553 = vmatpush.bf16.msra.mxu0 %v4510
  %5554 = vmatpush.bf16.msra.mxu0 %v4509
  %5555 = vmatpush.bf16.msra.mxu0 %v4508
  %5556 = vmatpush.bf16.msra.mxu0 %v4507
  %5557 = vmatpush.bf16.msra.mxu0 %v4506
  %5558 = vmatmul.bf16.gmra.mxu0 %v1939
  %v5559 = vpop.f32.mrf.mxu0
  %v5560 = vadd.f32 %v5532, %v5559
  %v5561 = vpop.f32.mrf.mxu0
  %v5562 = vadd.f32 %v5534, %v5561
  %5563 = vmatmul.bf16.gmra.mxu0 %v2003
  %v5564 = vpop.f32.mrf.mxu0
  %v5565 = vadd.f32 %v5537, %v5564
  %v5566 = vpop.f32.mrf.mxu0
  %v5567 = vadd.f32 %v5539, %v5566
  %5568 = vmatmul.bf16.gmra.mxu0 %v2067
  %v5569 = vpop.f32.mrf.mxu0
  %v5570 = vadd.f32 %v5542, %v5569
  %v5571 = vpop.f32.mrf.mxu0
  %v5572 = vadd.f32 %v5544, %v5571
  %5573 = vmatmul.bf16.gmra.mxu0 %v2131
  %v5574 = vpop.f32.mrf.mxu0
  %v5575 = vadd.f32 %v5547, %v5574
  %v5576 = vpop.f32.mrf.mxu0
  %5577 = vdwg.mxu0
  %5578 = vmatpush.bf16.msra.mxu0 %v4521
  %5579 = vmatpush.bf16.msra.mxu0 %v4520
  %5580 = vmatpush.bf16.msra.mxu0 %v4519
  %5581 = vmatpush.bf16.msra.mxu0 %v4518
  %5582 = vmatpush.bf16.msra.mxu0 %v4517
  %5583 = vmatpush.bf16.msra.mxu0 %v4516
  %5584 = vmatpush.bf16.msra.mxu0 %v4515
  %5585 = vmatpush.bf16.msra.mxu0 %v4514
  %5586 = vmatmul.bf16.gmra.mxu0 %v1940
  %v5587 = vpop.f32.mrf.mxu0
  %v5588 = vadd.f32 %v5560, %v5587
  %v5589 = vpop.f32.mrf.mxu0
  %v5590 = vadd.f32 %v5562, %v5589
  %5591 = vmatmul.bf16.gmra.mxu0 %v2004
  %v5592 = vpop.f32.mrf.mxu0
  %v5593 = vadd.f32 %v5565, %v5592
  %v5594 = vpop.f32.mrf.mxu0
  %v5595 = vadd.f32 %v5567, %v5594
  %5596 = vmatmul.bf16.gmra.mxu0 %v2068
  %v5597 = vpop.f32.mrf.mxu0
  %v5598 = vadd.f32 %v5570, %v5597
  %v5599 = vpop.f32.mrf.mxu0
  %v5600 = vadd.f32 %v5572, %v5599
  %5601 = vmatmul.bf16.gmra.mxu0 %v2132
  %v5602 = vpop.f32.mrf.mxu0
  %v5603 = vadd.f32 %v5575, %v5602
  %v5604 = vpop.f32.mrf.mxu0
  %5605 = vdwg.mxu0
  %5606 = vmatpush.bf16.msra.mxu0 %v4529
  %5607 = vmatpush.bf16.msra.mxu0 %v4528
  %5608 = vmatpush.bf16.msra.mxu0 %v4527
  %5609 = vmatpush.bf16.msra.mxu0 %v4526
  %5610 = vmatpush.bf16.msra.mxu0 %v4525
  %5611 = vmatpush.bf16.msra.mxu0 %v4524
  %5612 = vmatpush.bf16.msra.mxu0 %v4523
  %5613 = vmatpush.bf16.msra.mxu0 %v4522
  %5614 = vmatmul.bf16.gmra.mxu0 %v1941
  %v5615 = vpop.f32.mrf.mxu0
  %v5616 = vadd.f32 %v5588, %v5615
  %v5617 = vpop.f32.mrf.mxu0
  %v5618 = vadd.f32 %v5590, %v5617
  %5619 = vmatmul.bf16.gmra.mxu0 %v2005
  %v5620 = vpop.f32.mrf.mxu0
  %v5621 = vadd.f32 %v5593, %v5620
  %v5622 = vpop.f32.mrf.mxu0
  %v5623 = vadd.f32 %v5595, %v5622
  %5624 = vmatmul.bf16.gmra.mxu0 %v2069
  %v5625 = vpop.f32.mrf.mxu0
  %v5626 = vadd.f32 %v5598, %v5625
  %v5627 = vpop.f32.mrf.mxu0
  %v5628 = vadd.f32 %v5600, %v5627
  %5629 = vmatmul.bf16.gmra.mxu0 %v2133
  %v5630 = vpop.f32.mrf.mxu0
  %v5631 = vadd.f32 %v5603, %v5630
  %v5632 = vpop.f32.mrf.mxu0
  %5633 = vdwg.mxu0
  %5634 = vmatpush.bf16.msra.mxu0 %v4537
  %5635 = vmatpush.bf16.msra.mxu0 %v4536
  %5636 = vmatpush.bf16.msra.mxu0 %v4535
  %5637 = vmatpush.bf16.msra.mxu0 %v4534
  %5638 = vmatpush.bf16.msra.mxu0 %v4533
  %5639 = vmatpush.bf16.msra.mxu0 %v4532
  %5640 = vmatpush.bf16.msra.mxu0 %v4531
  %5641 = vmatpush.bf16.msra.mxu0 %v4530
  %5642 = vmatmul.bf16.gmra.mxu0 %v1942
  %v5643 = vpop.f32.mrf.mxu0
  %v5644 = vadd.f32 %v5616, %v5643
  %v5645 = vpop.f32.mrf.mxu0
  %v5646 = vadd.f32 %v5618, %v5645
  %5647 = vmatmul.bf16.gmra.mxu0 %v2006
  %v5648 = vpop.f32.mrf.mxu0
  %v5649 = vadd.f32 %v5621, %v5648
  %v5650 = vpop.f32.mrf.mxu0
  %v5651 = vadd.f32 %v5623, %v5650
  %5652 = vmatmul.bf16.gmra.mxu0 %v2070
  %v5653 = vpop.f32.mrf.mxu0
  %v5654 = vadd.f32 %v5626, %v5653
  %v5655 = vpop.f32.mrf.mxu0
  %v5656 = vadd.f32 %v5628, %v5655
  %5657 = vmatmul.bf16.gmra.mxu0 %v2134
  %v5658 = vpop.f32.mrf.mxu0
  %v5659 = vadd.f32 %v5631, %v5658
  %v5660 = vpop.f32.mrf.mxu0
  %5661 = vdwg.mxu0
  %5662 = vmatpush.bf16.msra.mxu0 %v4545
  %5663 = vmatpush.bf16.msra.mxu0 %v4544
  %5664 = vmatpush.bf16.msra.mxu0 %v4543
  %5665 = vmatpush.bf16.msra.mxu0 %v4542
  %5666 = vmatpush.bf16.msra.mxu0 %v4541
  %5667 = vmatpush.bf16.msra.mxu0 %v4540
  %5668 = vmatpush.bf16.msra.mxu0 %v4539
  %5669 = vmatpush.bf16.msra.mxu0 %v4538
  %5670 = vmatmul.bf16.gmra.mxu0 %v1943
  %v5671 = vpop.f32.mrf.mxu0
  %v5672 = vadd.f32 %v5644, %v5671
  %v5673 = vpop.f32.mrf.mxu0
  %v5674 = vadd.f32 %v5646, %v5673
  %5675 = vmatmul.bf16.gmra.mxu0 %v2007
  %v5676 = vpop.f32.mrf.mxu0
  %v5677 = vadd.f32 %v5649, %v5676
  %v5678 = vpop.f32.mrf.mxu0
  %v5679 = vadd.f32 %v5651, %v5678
  %5680 = vmatmul.bf16.gmra.mxu0 %v2071
  %v5681 = vpop.f32.mrf.mxu0
  %v5682 = vadd.f32 %v5654, %v5681
  %v5683 = vpop.f32.mrf.mxu0
  %v5684 = vadd.f32 %v5656, %v5683
  %5685 = vmatmul.bf16.gmra.mxu0 %v2135
  %v5686 = vpop.f32.mrf.mxu0
  %v5687 = vadd.f32 %v5659, %v5686
  %v5688 = vpop.f32.mrf.mxu0
  %5689 = vdwg.mxu0
  %5690 = vmatpush.bf16.msra.mxu0 %v4553
  %5691 = vmatpush.bf16.msra.mxu0 %v4552
  %5692 = vmatpush.bf16.msra.mxu0 %v4551
  %5693 = vmatpush.bf16.msra.mxu0 %v4550
  %5694 = vmatpush.bf16.msra.mxu0 %v4549
  %5695 = vmatpush.bf16.msra.mxu0 %v4548
  %5696 = vmatpush.bf16.msra.mxu0 %v4547
  %5697 = vmatpush.bf16.msra.mxu0 %v4546
  %5698 = vmatmul.bf16.gmra.mxu0 %v1944
  %v5699 = vpop.f32.mrf.mxu0
  %v5700 = vadd.f32 %v5672, %v5699
  %v5701 = vpop.f32.mrf.mxu0
  %v5702 = vadd.f32 %v5674, %v5701
  %5703 = vmatmul.bf16.gmra.mxu0 %v2008
  %v5704 = vpop.f32.mrf.mxu0
  %v5705 = vadd.f32 %v5677, %v5704
  %v5706 = vpop.f32.mrf.mxu0
  %v5707 = vadd.f32 %v5679, %v5706
  %5708 = vmatmul.bf16.gmra.mxu0 %v2072
  %v5709 = vpop.f32.mrf.mxu0
  %v5710 = vadd.f32 %v5682, %v5709
  %v5711 = vpop.f32.mrf.mxu0
  %v5712 = vadd.f32 %v5684, %v5711
  %5713 = vmatmul.bf16.gmra.mxu0 %v2136
  %v5714 = vpop.f32.mrf.mxu0
  %v5715 = vadd.f32 %v5687, %v5714
  %v5716 = vpop.f32.mrf.mxu0
  %5717 = vdwg.mxu0
  %5718 = vmatpush.bf16.msra.mxu0 %v4561
  %5719 = vmatpush.bf16.msra.mxu0 %v4560
  %5720 = vmatpush.bf16.msra.mxu0 %v4559
  %5721 = vmatpush.bf16.msra.mxu0 %v4558
  %5722 = vmatpush.bf16.msra.mxu0 %v4557
  %5723 = vmatpush.bf16.msra.mxu0 %v4556
  %5724 = vmatpush.bf16.msra.mxu0 %v4555
  %5725 = vmatpush.bf16.msra.mxu0 %v4554
  %5726 = vmatmul.bf16.gmra.mxu0 %v1945
  %v5727 = vpop.f32.mrf.mxu0
  %v5728 = vadd.f32 %v5700, %v5727
  %v5729 = vpop.f32.mrf.mxu0
  %v5730 = vadd.f32 %v5702, %v5729
  %5731 = vmatmul.bf16.gmra.mxu0 %v2009
  %v5732 = vpop.f32.mrf.mxu0
  %v5733 = vadd.f32 %v5705, %v5732
  %v5734 = vpop.f32.mrf.mxu0
  %v5735 = vadd.f32 %v5707, %v5734
  %5736 = vmatmul.bf16.gmra.mxu0 %v2073
  %v5737 = vpop.f32.mrf.mxu0
  %v5738 = vadd.f32 %v5710, %v5737
  %v5739 = vpop.f32.mrf.mxu0
  %v5740 = vadd.f32 %v5712, %v5739
  %5741 = vmatmul.bf16.gmra.mxu0 %v2137
  %v5742 = vpop.f32.mrf.mxu0
  %v5743 = vadd.f32 %v5715, %v5742
  %v5744 = vpop.f32.mrf.mxu0
  %5745 = vdwg.mxu0
  %5746 = vmatpush.bf16.msra.mxu0 %v4569
  %5747 = vmatpush.bf16.msra.mxu0 %v4568
  %5748 = vmatpush.bf16.msra.mxu0 %v4567
  %5749 = vmatpush.bf16.msra.mxu0 %v4566
  %5750 = vmatpush.bf16.msra.mxu0 %v4565
  %5751 = vmatpush.bf16.msra.mxu0 %v4564
  %5752 = vmatpush.bf16.msra.mxu0 %v4563
  %5753 = vmatpush.bf16.msra.mxu0 %v4562
  %5754 = vmatmul.bf16.gmra.mxu0 %v1946
  %v5755 = vpop.f32.mrf.mxu0
  %v5756 = vadd.f32 %v5728, %v5755
  %v5757 = vpop.f32.mrf.mxu0
  %v5758 = vadd.f32 %v5730, %v5757
  %5759 = vmatmul.bf16.gmra.mxu0 %v2010
  %v5760 = vpop.f32.mrf.mxu0
  %v5761 = vadd.f32 %v5733, %v5760
  %v5762 = vpop.f32.mrf.mxu0
  %v5763 = vadd.f32 %v5735, %v5762
  %5764 = vmatmul.bf16.gmra.mxu0 %v2074
  %v5765 = vpop.f32.mrf.mxu0
  %v5766 = vadd.f32 %v5738, %v5765
  %v5767 = vpop.f32.mrf.mxu0
  %v5768 = vadd.f32 %v5740, %v5767
  %5769 = vmatmul.bf16.gmra.mxu0 %v2138
  %v5770 = vpop.f32.mrf.mxu0
  %v5771 = vadd.f32 %v5743, %v5770
  %v5772 = vpop.f32.mrf.mxu0
  %5773 = vdwg.mxu0
  %5774 = vmatpush.bf16.msra.mxu0 %v4577
  %5775 = vmatpush.bf16.msra.mxu0 %v4576
  %5776 = vmatpush.bf16.msra.mxu0 %v4575
  %5777 = vmatpush.bf16.msra.mxu0 %v4574
  %5778 = vmatpush.bf16.msra.mxu0 %v4573
  %5779 = vmatpush.bf16.msra.mxu0 %v4572
  %5780 = vmatpush.bf16.msra.mxu0 %v4571
  %5781 = vmatpush.bf16.msra.mxu0 %v4570
  %5782 = vmatmul.bf16.gmra.mxu0 %v1947
  %v5783 = vpop.f32.mrf.mxu0
  %v5784 = vadd.f32 %v5756, %v5783
  %v5785 = vpop.f32.mrf.mxu0
  %v5786 = vadd.f32 %v5758, %v5785
  %5787 = vmatmul.bf16.gmra.mxu0 %v2011
  %v5788 = vpop.f32.mrf.mxu0
  %v5789 = vadd.f32 %v5761, %v5788
  %v5790 = vpop.f32.mrf.mxu0
  %v5791 = vadd.f32 %v5763, %v5790
  %5792 = vmatmul.bf16.gmra.mxu0 %v2075
  %v5793 = vpop.f32.mrf.mxu0
  %v5794 = vadd.f32 %v5766, %v5793
  %v5795 = vpop.f32.mrf.mxu0
  %v5796 = vadd.f32 %v5768, %v5795
  %5797 = vmatmul.bf16.gmra.mxu0 %v2139
  %v5798 = vpop.f32.mrf.mxu0
  %v5799 = vadd.f32 %v5771, %v5798
  %v5800 = vpop.f32.mrf.mxu0
  %5801 = vdwg.mxu0
  %5802 = vmatpush.bf16.msra.mxu0 %v4585
  %5803 = vmatpush.bf16.msra.mxu0 %v4584
  %5804 = vmatpush.bf16.msra.mxu0 %v4583
  %5805 = vmatpush.bf16.msra.mxu0 %v4582
  %5806 = vmatpush.bf16.msra.mxu0 %v4581
  %5807 = vmatpush.bf16.msra.mxu0 %v4580
  %5808 = vmatpush.bf16.msra.mxu0 %v4579
  %5809 = vmatpush.bf16.msra.mxu0 %v4578
  %5810 = vmatmul.bf16.gmra.mxu0 %v1948
  %v5811 = vpop.f32.mrf.mxu0
  %v5812 = vadd.f32 %v5784, %v5811
  %v5813 = vpop.f32.mrf.mxu0
  %v5814 = vadd.f32 %v5786, %v5813
  %5815 = vmatmul.bf16.gmra.mxu0 %v2012
  %v5816 = vpop.f32.mrf.mxu0
  %v5817 = vadd.f32 %v5789, %v5816
  %v5818 = vpop.f32.mrf.mxu0
  %v5819 = vadd.f32 %v5791, %v5818
  %5820 = vmatmul.bf16.gmra.mxu0 %v2076
  %v5821 = vpop.f32.mrf.mxu0
  %v5822 = vadd.f32 %v5794, %v5821
  %v5823 = vpop.f32.mrf.mxu0
  %v5824 = vadd.f32 %v5796, %v5823
  %5825 = vmatmul.bf16.gmra.mxu0 %v2140
  %v5826 = vpop.f32.mrf.mxu0
  %v5827 = vadd.f32 %v5799, %v5826
  %v5828 = vpop.f32.mrf.mxu0
  %5829 = vdwg.mxu0
  %5830 = vmatpush.bf16.msra.mxu0 %v4593
  %5831 = vmatpush.bf16.msra.mxu0 %v4592
  %5832 = vmatpush.bf16.msra.mxu0 %v4591
  %5833 = vmatpush.bf16.msra.mxu0 %v4590
  %5834 = vmatpush.bf16.msra.mxu0 %v4589
  %5835 = vmatpush.bf16.msra.mxu0 %v4588
  %5836 = vmatpush.bf16.msra.mxu0 %v4587
  %5837 = vmatpush.bf16.msra.mxu0 %v4586
  %5838 = vmatmul.bf16.gmra.mxu0 %v1949
  %v5839 = vpop.f32.mrf.mxu0
  %v5840 = vadd.f32 %v5812, %v5839
  %v5841 = vpop.f32.mrf.mxu0
  %v5842 = vadd.f32 %v5814, %v5841
  %5843 = vmatmul.bf16.gmra.mxu0 %v2013
  %v5844 = vpop.f32.mrf.mxu0
  %v5845 = vadd.f32 %v5817, %v5844
  %v5846 = vpop.f32.mrf.mxu0
  %v5847 = vadd.f32 %v5819, %v5846
  %5848 = vmatmul.bf16.gmra.mxu0 %v2077
  %v5849 = vpop.f32.mrf.mxu0
  %v5850 = vadd.f32 %v5822, %v5849
  %v5851 = vpop.f32.mrf.mxu0
  %v5852 = vadd.f32 %v5824, %v5851
  %5853 = vmatmul.bf16.gmra.mxu0 %v2141
  %v5854 = vpop.f32.mrf.mxu0
  %v5855 = vadd.f32 %v5827, %v5854
  %v5856 = vpop.f32.mrf.mxu0
  %5857 = vdwg.mxu0
  %5858 = vmatpush.bf16.msra.mxu0 %v4601
  %5859 = vmatpush.bf16.msra.mxu0 %v4600
  %5860 = vmatpush.bf16.msra.mxu0 %v4599
  %5861 = vmatpush.bf16.msra.mxu0 %v4598
  %5862 = vmatpush.bf16.msra.mxu0 %v4597
  %5863 = vmatpush.bf16.msra.mxu0 %v4596
  %5864 = vmatpush.bf16.msra.mxu0 %v4595
  %5865 = vmatpush.bf16.msra.mxu0 %v4594
  %5866 = vmatmul.bf16.gmra.mxu0 %v1950
  %v5867 = vpop.f32.mrf.mxu0
  %v5868 = vadd.f32 %v5840, %v5867
  %v5869 = vpop.f32.mrf.mxu0
  %v5870 = vadd.f32 %v5842, %v5869
  %5871 = vmatmul.bf16.gmra.mxu0 %v2014
  %v5872 = vpop.f32.mrf.mxu0
  %v5873 = vadd.f32 %v5845, %v5872
  %v5874 = vpop.f32.mrf.mxu0
  %v5875 = vadd.f32 %v5847, %v5874
  %5876 = vmatmul.bf16.gmra.mxu0 %v2078
  %v5877 = vpop.f32.mrf.mxu0
  %v5878 = vadd.f32 %v5850, %v5877
  %v5879 = vpop.f32.mrf.mxu0
  %v5880 = vadd.f32 %v5852, %v5879
  %5881 = vmatmul.bf16.gmra.mxu0 %v2142
  %v5882 = vpop.f32.mrf.mxu0
  %v5883 = vadd.f32 %v5855, %v5882
  %v5884 = vpop.f32.mrf.mxu0
  %5885 = vdwg.mxu0
  %5886 = vmatpush.bf16.msra.mxu0 %v4609
  %5887 = vmatpush.bf16.msra.mxu0 %v4608
  %5888 = vmatpush.bf16.msra.mxu0 %v4607
  %5889 = vmatpush.bf16.msra.mxu0 %v4606
  %5890 = vmatpush.bf16.msra.mxu0 %v4605
  %5891 = vmatpush.bf16.msra.mxu0 %v4604
  %5892 = vmatpush.bf16.msra.mxu0 %v4603
  %5893 = vmatpush.bf16.msra.mxu0 %v4602
  %5894 = vmatmul.bf16.gmra.mxu0 %v1951
  %v5895 = vpop.f32.mrf.mxu0
  %v5896 = vadd.f32 %v5868, %v5895
  %v5897 = vpop.f32.mrf.mxu0
  %v5898 = vadd.f32 %v5870, %v5897
  %5899 = vmatmul.bf16.gmra.mxu0 %v2015
  %v5900 = vpop.f32.mrf.mxu0
  %v5901 = vadd.f32 %v5873, %v5900
  %v5902 = vpop.f32.mrf.mxu0
  %v5903 = vadd.f32 %v5875, %v5902
  %5904 = vmatmul.bf16.gmra.mxu0 %v2079
  %v5905 = vpop.f32.mrf.mxu0
  %v5906 = vadd.f32 %v5878, %v5905
  %v5907 = vpop.f32.mrf.mxu0
  %v5908 = vadd.f32 %v5880, %v5907
  %5909 = vmatmul.bf16.gmra.mxu0 %v2143
  %v5910 = vpop.f32.mrf.mxu0
  %v5911 = vadd.f32 %v5883, %v5910
  %v5912 = vpop.f32.mrf.mxu0
  %5913 = vdwg.mxu0
  %5914 = vmatpush.bf16.msra.mxu0 %v4617
  %5915 = vmatpush.bf16.msra.mxu0 %v4616
  %5916 = vmatpush.bf16.msra.mxu0 %v4615
  %5917 = vmatpush.bf16.msra.mxu0 %v4614
  %5918 = vmatpush.bf16.msra.mxu0 %v4613
  %5919 = vmatpush.bf16.msra.mxu0 %v4612
  %5920 = vmatpush.bf16.msra.mxu0 %v4611
  %5921 = vmatpush.bf16.msra.mxu0 %v4610
  %5922 = vmatmul.bf16.gmra.mxu0 %v1952
  %v5923 = vpop.f32.mrf.mxu0
  %v5924 = vadd.f32 %v5896, %v5923
  %v5925 = vpop.f32.mrf.mxu0
  %v5926 = vadd.f32 %v5898, %v5925
  %5927 = vmatmul.bf16.gmra.mxu0 %v2016
  %v5928 = vpop.f32.mrf.mxu0
  %v5929 = vadd.f32 %v5901, %v5928
  %v5930 = vpop.f32.mrf.mxu0
  %v5931 = vadd.f32 %v5903, %v5930
  %5932 = vmatmul.bf16.gmra.mxu0 %v2080
  %v5933 = vpop.f32.mrf.mxu0
  %v5934 = vadd.f32 %v5906, %v5933
  %v5935 = vpop.f32.mrf.mxu0
  %v5936 = vadd.f32 %v5908, %v5935
  %5937 = vmatmul.bf16.gmra.mxu0 %v2144
  %v5938 = vpop.f32.mrf.mxu0
  %v5939 = vadd.f32 %v5911, %v5938
  %v5940 = vpop.f32.mrf.mxu0
  %5941 = vdwg.mxu0
  %5942 = vmatpush.bf16.msra.mxu0 %v4625
  %5943 = vmatpush.bf16.msra.mxu0 %v4624
  %5944 = vmatpush.bf16.msra.mxu0 %v4623
  %5945 = vmatpush.bf16.msra.mxu0 %v4622
  %5946 = vmatpush.bf16.msra.mxu0 %v4621
  %5947 = vmatpush.bf16.msra.mxu0 %v4620
  %5948 = vmatpush.bf16.msra.mxu0 %v4619
  %5949 = vmatpush.bf16.msra.mxu0 %v4618
  %5950 = vmatmul.bf16.gmra.mxu0 %v1953
  %v5951 = vpop.f32.mrf.mxu0
  %v5952 = vadd.f32 %v5924, %v5951
  %v5953 = vpop.f32.mrf.mxu0
  %v5954 = vadd.f32 %v5926, %v5953
  %5955 = vmatmul.bf16.gmra.mxu0 %v2017
  %v5956 = vpop.f32.mrf.mxu0
  %v5957 = vadd.f32 %v5929, %v5956
  %v5958 = vpop.f32.mrf.mxu0
  %v5959 = vadd.f32 %v5931, %v5958
  %5960 = vmatmul.bf16.gmra.mxu0 %v2081
  %v5961 = vpop.f32.mrf.mxu0
  %v5962 = vadd.f32 %v5934, %v5961
  %v5963 = vpop.f32.mrf.mxu0
  %v5964 = vadd.f32 %v5936, %v5963
  %5965 = vmatmul.bf16.gmra.mxu0 %v2145
  %v5966 = vpop.f32.mrf.mxu0
  %v5967 = vadd.f32 %v5939, %v5966
  %v5968 = vpop.f32.mrf.mxu0
  %5969 = vdwg.mxu0
  %5970 = vmatpush.bf16.msra.mxu0 %v4633
  %5971 = vmatpush.bf16.msra.mxu0 %v4632
  %5972 = vmatpush.bf16.msra.mxu0 %v4631
  %5973 = vmatpush.bf16.msra.mxu0 %v4630
  %5974 = vmatpush.bf16.msra.mxu0 %v4629
  %5975 = vmatpush.bf16.msra.mxu0 %v4628
  %5976 = vmatpush.bf16.msra.mxu0 %v4627
  %5977 = vmatpush.bf16.msra.mxu0 %v4626
  %5978 = vmatmul.bf16.gmra.mxu0 %v1954
  %v5979 = vpop.f32.mrf.mxu0
  %v5980 = vadd.f32 %v5952, %v5979
  %v5981 = vpop.f32.mrf.mxu0
  %v5982 = vadd.f32 %v5954, %v5981
  %5983 = vmatmul.bf16.gmra.mxu0 %v2018
  %v5984 = vpop.f32.mrf.mxu0
  %v5985 = vadd.f32 %v5957, %v5984
  %v5986 = vpop.f32.mrf.mxu0
  %v5987 = vadd.f32 %v5959, %v5986
  %5988 = vmatmul.bf16.gmra.mxu0 %v2082
  %v5989 = vpop.f32.mrf.mxu0
  %v5990 = vadd.f32 %v5962, %v5989
  %v5991 = vpop.f32.mrf.mxu0
  %v5992 = vadd.f32 %v5964, %v5991
  %5993 = vmatmul.bf16.gmra.mxu0 %v2146
  %v5994 = vpop.f32.mrf.mxu0
  %v5995 = vadd.f32 %v5967, %v5994
  %v5996 = vpop.f32.mrf.mxu0
  %5997 = vdwg.mxu0
  %5998 = vmatpush.bf16.msra.mxu0 %v4641
  %5999 = vmatpush.bf16.msra.mxu0 %v4640
  %6000 = vmatpush.bf16.msra.mxu0 %v4639
  %6001 = vmatpush.bf16.msra.mxu0 %v4638
  %6002 = vmatpush.bf16.msra.mxu0 %v4637
  %6003 = vmatpush.bf16.msra.mxu0 %v4636
  %6004 = vmatpush.bf16.msra.mxu0 %v4635
  %6005 = vmatpush.bf16.msra.mxu0 %v4634
  %6006 = vmatmul.bf16.gmra.mxu0 %v1955
  %v6007 = vpop.f32.mrf.mxu0
  %v6008 = vadd.f32 %v5980, %v6007
  %v6009 = vpop.f32.mrf.mxu0
  %v6010 = vadd.f32 %v5982, %v6009
  %6011 = vmatmul.bf16.gmra.mxu0 %v2019
  %v6012 = vpop.f32.mrf.mxu0
  %v6013 = vadd.f32 %v5985, %v6012
  %v6014 = vpop.f32.mrf.mxu0
  %v6015 = vadd.f32 %v5987, %v6014
  %6016 = vmatmul.bf16.gmra.mxu0 %v2083
  %v6017 = vpop.f32.mrf.mxu0
  %v6018 = vadd.f32 %v5990, %v6017
  %v6019 = vpop.f32.mrf.mxu0
  %v6020 = vadd.f32 %v5992, %v6019
  %6021 = vmatmul.bf16.gmra.mxu0 %v2147
  %v6022 = vpop.f32.mrf.mxu0
  %v6023 = vadd.f32 %v5995, %v6022
  %v6024 = vpop.f32.mrf.mxu0
  %6025 = vdwg.mxu0
  %6026 = vmatpush.bf16.msra.mxu0 %v4649
  %6027 = vmatpush.bf16.msra.mxu0 %v4648
  %6028 = vmatpush.bf16.msra.mxu0 %v4647
  %6029 = vmatpush.bf16.msra.mxu0 %v4646
  %6030 = vmatpush.bf16.msra.mxu0 %v4645
  %6031 = vmatpush.bf16.msra.mxu0 %v4644
  %6032 = vmatpush.bf16.msra.mxu0 %v4643
  %6033 = vmatpush.bf16.msra.mxu0 %v4642
  %6034 = vmatmul.bf16.gmra.mxu0 %v1956
  %v6035 = vpop.f32.mrf.mxu0
  %v6036 = vadd.f32 %v6008, %v6035
  %v6037 = vpop.f32.mrf.mxu0
  %v6038 = vadd.f32 %v6010, %v6037
  %6039 = vmatmul.bf16.gmra.mxu0 %v2020
  %v6040 = vpop.f32.mrf.mxu0
  %v6041 = vadd.f32 %v6013, %v6040
  %v6042 = vpop.f32.mrf.mxu0
  %v6043 = vadd.f32 %v6015, %v6042
  %6044 = vmatmul.bf16.gmra.mxu0 %v2084
  %v6045 = vpop.f32.mrf.mxu0
  %v6046 = vadd.f32 %v6018, %v6045
  %v6047 = vpop.f32.mrf.mxu0
  %v6048 = vadd.f32 %v6020, %v6047
  %6049 = vmatmul.bf16.gmra.mxu0 %v2148
  %v6050 = vpop.f32.mrf.mxu0
  %v6051 = vadd.f32 %v6023, %v6050
  %v6052 = vpop.f32.mrf.mxu0
  %6053 = vdwg.mxu0
  %6054 = vmatpush.bf16.msra.mxu0 %v4657
  %6055 = vmatpush.bf16.msra.mxu0 %v4656
  %6056 = vmatpush.bf16.msra.mxu0 %v4655
  %6057 = vmatpush.bf16.msra.mxu0 %v4654
  %6058 = vmatpush.bf16.msra.mxu0 %v4653
  %6059 = vmatpush.bf16.msra.mxu0 %v4652
  %6060 = vmatpush.bf16.msra.mxu0 %v4651
  %6061 = vmatpush.bf16.msra.mxu0 %v4650
  %6062 = vmatmul.bf16.gmra.mxu0 %v1957
  %v6063 = vpop.f32.mrf.mxu0
  %v6064 = vadd.f32 %v6036, %v6063
  %v6065 = vpop.f32.mrf.mxu0
  %v6066 = vadd.f32 %v6038, %v6065
  %6067 = vmatmul.bf16.gmra.mxu0 %v2021
  %v6068 = vpop.f32.mrf.mxu0
  %v6069 = vadd.f32 %v6041, %v6068
  %v6070 = vpop.f32.mrf.mxu0
  %v6071 = vadd.f32 %v6043, %v6070
  %6072 = vmatmul.bf16.gmra.mxu0 %v2085
  %v6073 = vpop.f32.mrf.mxu0
  %v6074 = vadd.f32 %v6046, %v6073
  %v6075 = vpop.f32.mrf.mxu0
  %v6076 = vadd.f32 %v6048, %v6075
  %6077 = vmatmul.bf16.gmra.mxu0 %v2149
  %v6078 = vpop.f32.mrf.mxu0
  %v6079 = vadd.f32 %v6051, %v6078
  %v6080 = vpop.f32.mrf.mxu0
  %6081 = vdwg.mxu0
  %6082 = vmatpush.bf16.msra.mxu0 %v4665
  %6083 = vmatpush.bf16.msra.mxu0 %v4664
  %6084 = vmatpush.bf16.msra.mxu0 %v4663
  %6085 = vmatpush.bf16.msra.mxu0 %v4662
  %6086 = vmatpush.bf16.msra.mxu0 %v4661
  %6087 = vmatpush.bf16.msra.mxu0 %v4660
  %6088 = vmatpush.bf16.msra.mxu0 %v4659
  %6089 = vmatpush.bf16.msra.mxu0 %v4658
  %6090 = vmatmul.bf16.gmra.mxu0 %v1958
  %v6091 = vpop.f32.mrf.mxu0
  %v6092 = vadd.f32 %v6064, %v6091
  %v6093 = vpop.f32.mrf.mxu0
  %v6094 = vadd.f32 %v6066, %v6093
  %6095 = vmatmul.bf16.gmra.mxu0 %v2022
  %v6096 = vpop.f32.mrf.mxu0
  %v6097 = vadd.f32 %v6069, %v6096
  %v6098 = vpop.f32.mrf.mxu0
  %v6099 = vadd.f32 %v6071, %v6098
  %6100 = vmatmul.bf16.gmra.mxu0 %v2086
  %v6101 = vpop.f32.mrf.mxu0
  %v6102 = vadd.f32 %v6074, %v6101
  %v6103 = vpop.f32.mrf.mxu0
  %v6104 = vadd.f32 %v6076, %v6103
  %6105 = vmatmul.bf16.gmra.mxu0 %v2150
  %v6106 = vpop.f32.mrf.mxu0
  %v6107 = vadd.f32 %v6079, %v6106
  %v6108 = vpop.f32.mrf.mxu0
  %6109 = vdwg.mxu0
  %6110 = vmatpush.bf16.msra.mxu0 %v4673
  %6111 = vmatpush.bf16.msra.mxu0 %v4672
  %6112 = vmatpush.bf16.msra.mxu0 %v4671
  %6113 = vmatpush.bf16.msra.mxu0 %v4670
  %6114 = vmatpush.bf16.msra.mxu0 %v4669
  %6115 = vmatpush.bf16.msra.mxu0 %v4668
  %6116 = vmatpush.bf16.msra.mxu0 %v4667
  %6117 = vmatpush.bf16.msra.mxu0 %v4666
  %6118 = vmatmul.bf16.gmra.mxu0 %v1959
  %v6119 = vpop.f32.mrf.mxu0
  %v6120 = vadd.f32 %v6092, %v6119
  %v6121 = vpop.f32.mrf.mxu0
  %v6122 = vadd.f32 %v6094, %v6121
  %6123 = vmatmul.bf16.gmra.mxu0 %v2023
  %v6124 = vpop.f32.mrf.mxu0
  %v6125 = vadd.f32 %v6097, %v6124
  %v6126 = vpop.f32.mrf.mxu0
  %v6127 = vadd.f32 %v6099, %v6126
  %6128 = vmatmul.bf16.gmra.mxu0 %v2087
  %v6129 = vpop.f32.mrf.mxu0
  %v6130 = vadd.f32 %v6102, %v6129
  %v6131 = vpop.f32.mrf.mxu0
  %v6132 = vadd.f32 %v6104, %v6131
  %6133 = vmatmul.bf16.gmra.mxu0 %v2151
  %v6134 = vpop.f32.mrf.mxu0
  %v6135 = vadd.f32 %v6107, %v6134
  %v6136 = vpop.f32.mrf.mxu0
  %6137 = vdwg.mxu0
  %6138 = vmatpush.bf16.msra.mxu0 %v4681
  %6139 = vmatpush.bf16.msra.mxu0 %v4680
  %6140 = vmatpush.bf16.msra.mxu0 %v4679
  %6141 = vmatpush.bf16.msra.mxu0 %v4678
  %6142 = vmatpush.bf16.msra.mxu0 %v4677
  %6143 = vmatpush.bf16.msra.mxu0 %v4676
  %6144 = vmatpush.bf16.msra.mxu0 %v4675
  %6145 = vmatpush.bf16.msra.mxu0 %v4674
  %6146 = vmatmul.bf16.gmra.mxu0 %v1960
  %v6147 = vpop.f32.mrf.mxu0
  %v6148 = vadd.f32 %v6120, %v6147
  %v6149 = vpop.f32.mrf.mxu0
  %v6150 = vadd.f32 %v6122, %v6149
  %6151 = vmatmul.bf16.gmra.mxu0 %v2024
  %v6152 = vpop.f32.mrf.mxu0
  %v6153 = vadd.f32 %v6125, %v6152
  %v6154 = vpop.f32.mrf.mxu0
  %v6155 = vadd.f32 %v6127, %v6154
  %6156 = vmatmul.bf16.gmra.mxu0 %v2088
  %v6157 = vpop.f32.mrf.mxu0
  %v6158 = vadd.f32 %v6130, %v6157
  %v6159 = vpop.f32.mrf.mxu0
  %v6160 = vadd.f32 %v6132, %v6159
  %6161 = vmatmul.bf16.gmra.mxu0 %v2152
  %v6162 = vpop.f32.mrf.mxu0
  %v6163 = vadd.f32 %v6135, %v6162
  %v6164 = vpop.f32.mrf.mxu0
  %6165 = vdwg.mxu0
  %6166 = vmatpush.bf16.msra.mxu0 %v4689
  %6167 = vmatpush.bf16.msra.mxu0 %v4688
  %6168 = vmatpush.bf16.msra.mxu0 %v4687
  %6169 = vmatpush.bf16.msra.mxu0 %v4686
  %6170 = vmatpush.bf16.msra.mxu0 %v4685
  %6171 = vmatpush.bf16.msra.mxu0 %v4684
  %6172 = vmatpush.bf16.msra.mxu0 %v4683
  %6173 = vmatpush.bf16.msra.mxu0 %v4682
  %6174 = vmatmul.bf16.gmra.mxu0 %v1961
  %v6175 = vpop.f32.mrf.mxu0
  %v6176 = vadd.f32 %v6148, %v6175
  %v6177 = vpop.f32.mrf.mxu0
  %v6178 = vadd.f32 %v6150, %v6177
  %6179 = vmatmul.bf16.gmra.mxu0 %v2025
  %v6180 = vpop.f32.mrf.mxu0
  %v6181 = vadd.f32 %v6153, %v6180
  %v6182 = vpop.f32.mrf.mxu0
  %v6183 = vadd.f32 %v6155, %v6182
  %6184 = vmatmul.bf16.gmra.mxu0 %v2089
  %v6185 = vpop.f32.mrf.mxu0
  %v6186 = vadd.f32 %v6158, %v6185
  %v6187 = vpop.f32.mrf.mxu0
  %v6188 = vadd.f32 %v6160, %v6187
  %6189 = vmatmul.bf16.gmra.mxu0 %v2153
  %v6190 = vpop.f32.mrf.mxu0
  %v6191 = vadd.f32 %v6163, %v6190
  %v6192 = vpop.f32.mrf.mxu0
  %6193 = vdwg.mxu0
  %6194 = vmatpush.bf16.msra.mxu0 %v4697
  %6195 = vmatpush.bf16.msra.mxu0 %v4696
  %6196 = vmatpush.bf16.msra.mxu0 %v4695
  %6197 = vmatpush.bf16.msra.mxu0 %v4694
  %6198 = vmatpush.bf16.msra.mxu0 %v4693
  %6199 = vmatpush.bf16.msra.mxu0 %v4692
  %6200 = vmatpush.bf16.msra.mxu0 %v4691
  %6201 = vmatpush.bf16.msra.mxu0 %v4690
  %6202 = vmatmul.bf16.gmra.mxu0 %v1962
  %v6203 = vpop.f32.mrf.mxu0
  %v6204 = vadd.f32 %v6176, %v6203
  %v6205 = vpop.f32.mrf.mxu0
  %v6206 = vadd.f32 %v6178, %v6205
  %6207 = vmatmul.bf16.gmra.mxu0 %v2026
  %v6208 = vpop.f32.mrf.mxu0
  %v6209 = vadd.f32 %v6181, %v6208
  %v6210 = vpop.f32.mrf.mxu0
  %v6211 = vadd.f32 %v6183, %v6210
  %6212 = vmatmul.bf16.gmra.mxu0 %v2090
  %v6213 = vpop.f32.mrf.mxu0
  %v6214 = vadd.f32 %v6186, %v6213
  %v6215 = vpop.f32.mrf.mxu0
  %v6216 = vadd.f32 %v6188, %v6215
  %6217 = vmatmul.bf16.gmra.mxu0 %v2154
  %v6218 = vpop.f32.mrf.mxu0
  %v6219 = vadd.f32 %v6191, %v6218
  %v6220 = vpop.f32.mrf.mxu0
  %6221 = vdwg.mxu0
  %6222 = vmatpush.bf16.msra.mxu0 %v4705
  %6223 = vmatpush.bf16.msra.mxu0 %v4704
  %6224 = vmatpush.bf16.msra.mxu0 %v4703
  %6225 = vmatpush.bf16.msra.mxu0 %v4702
  %6226 = vmatpush.bf16.msra.mxu0 %v4701
  %6227 = vmatpush.bf16.msra.mxu0 %v4700
  %6228 = vmatpush.bf16.msra.mxu0 %v4699
  %6229 = vmatpush.bf16.msra.mxu0 %v4698
  %6230 = vmatmul.bf16.gmra.mxu0 %v1963
  %v6231 = vpop.f32.mrf.mxu0
  %v6232 = vadd.f32 %v6204, %v6231
  %v6233 = vpop.f32.mrf.mxu0
  %v6234 = vadd.f32 %v6206, %v6233
  %6235 = vmatmul.bf16.gmra.mxu0 %v2027
  %v6236 = vpop.f32.mrf.mxu0
  %v6237 = vadd.f32 %v6209, %v6236
  %v6238 = vpop.f32.mrf.mxu0
  %v6239 = vadd.f32 %v6211, %v6238
  %6240 = vmatmul.bf16.gmra.mxu0 %v2091
  %v6241 = vpop.f32.mrf.mxu0
  %v6242 = vadd.f32 %v6214, %v6241
  %v6243 = vpop.f32.mrf.mxu0
  %v6244 = vadd.f32 %v6216, %v6243
  %6245 = vmatmul.bf16.gmra.mxu0 %v2155
  %v6246 = vpop.f32.mrf.mxu0
  %v6247 = vadd.f32 %v6219, %v6246
  %v6248 = vpop.f32.mrf.mxu0
  %6249 = vdwg.mxu0
  %6250 = vmatpush.bf16.msra.mxu0 %v4713
  %6251 = vmatpush.bf16.msra.mxu0 %v4712
  %6252 = vmatpush.bf16.msra.mxu0 %v4711
  %6253 = vmatpush.bf16.msra.mxu0 %v4710
  %6254 = vmatpush.bf16.msra.mxu0 %v4709
  %6255 = vmatpush.bf16.msra.mxu0 %v4708
  %6256 = vmatpush.bf16.msra.mxu0 %v4707
  %6257 = vmatpush.bf16.msra.mxu0 %v4706
  %6258 = vmatmul.bf16.gmra.mxu0 %v1964
  %v6259 = vpop.f32.mrf.mxu0
  %v6260 = vadd.f32 %v6232, %v6259
  %v6261 = vpop.f32.mrf.mxu0
  %v6262 = vadd.f32 %v6234, %v6261
  %6263 = vmatmul.bf16.gmra.mxu0 %v2028
  %v6264 = vpop.f32.mrf.mxu0
  %v6265 = vadd.f32 %v6237, %v6264
  %v6266 = vpop.f32.mrf.mxu0
  %v6267 = vadd.f32 %v6239, %v6266
  %6268 = vmatmul.bf16.gmra.mxu0 %v2092
  %v6269 = vpop.f32.mrf.mxu0
  %v6270 = vadd.f32 %v6242, %v6269
  %v6271 = vpop.f32.mrf.mxu0
  %v6272 = vadd.f32 %v6244, %v6271
  %6273 = vmatmul.bf16.gmra.mxu0 %v2156
  %v6274 = vpop.f32.mrf.mxu0
  %v6275 = vadd.f32 %v6247, %v6274
  %v6276 = vpop.f32.mrf.mxu0
  %6277 = vdwg.mxu0
  %6278 = vmatpush.bf16.msra.mxu0 %v4721
  %6279 = vmatpush.bf16.msra.mxu0 %v4720
  %6280 = vmatpush.bf16.msra.mxu0 %v4719
  %6281 = vmatpush.bf16.msra.mxu0 %v4718
  %6282 = vmatpush.bf16.msra.mxu0 %v4717
  %6283 = vmatpush.bf16.msra.mxu0 %v4716
  %6284 = vmatpush.bf16.msra.mxu0 %v4715
  %6285 = vmatpush.bf16.msra.mxu0 %v4714
  %6286 = vmatmul.bf16.gmra.mxu0 %v1965
  %v6287 = vpop.f32.mrf.mxu0
  %v6288 = vadd.f32 %v6260, %v6287
  %v6289 = vpop.f32.mrf.mxu0
  %v6290 = vadd.f32 %v6262, %v6289
  %6291 = vmatmul.bf16.gmra.mxu0 %v2029
  %v6292 = vpop.f32.mrf.mxu0
  %v6293 = vadd.f32 %v6265, %v6292
  %v6294 = vpop.f32.mrf.mxu0
  %v6295 = vadd.f32 %v6267, %v6294
  %6296 = vmatmul.bf16.gmra.mxu0 %v2093
  %v6297 = vpop.f32.mrf.mxu0
  %v6298 = vadd.f32 %v6270, %v6297
  %v6299 = vpop.f32.mrf.mxu0
  %v6300 = vadd.f32 %v6272, %v6299
  %6301 = vmatmul.bf16.gmra.mxu0 %v2157
  %v6302 = vpop.f32.mrf.mxu0
  %v6303 = vadd.f32 %v6275, %v6302
  %v6304 = vpop.f32.mrf.mxu0
  %6305 = vdwg.mxu0
  %6306 = vmatpush.bf16.msra.mxu0 %v4729
  %6307 = vmatpush.bf16.msra.mxu0 %v4728
  %6308 = vmatpush.bf16.msra.mxu0 %v4727
  %6309 = vmatpush.bf16.msra.mxu0 %v4726
  %6310 = vmatpush.bf16.msra.mxu0 %v4725
  %6311 = vmatpush.bf16.msra.mxu0 %v4724
  %6312 = vmatpush.bf16.msra.mxu0 %v4723
  %6313 = vmatpush.bf16.msra.mxu0 %v4722
  %6314 = vmatmul.bf16.gmra.mxu0 %v1966
  %v6315 = vpop.f32.mrf.mxu0
  %v6316 = vadd.f32 %v6288, %v6315
  %v6317 = vpop.f32.mrf.mxu0
  %v6318 = vadd.f32 %v6290, %v6317
  %6319 = vmatmul.bf16.gmra.mxu0 %v2030
  %v6320 = vpop.f32.mrf.mxu0
  %v6321 = vadd.f32 %v6293, %v6320
  %v6322 = vpop.f32.mrf.mxu0
  %v6323 = vadd.f32 %v6295, %v6322
  %6324 = vmatmul.bf16.gmra.mxu0 %v2094
  %v6325 = vpop.f32.mrf.mxu0
  %v6326 = vadd.f32 %v6298, %v6325
  %v6327 = vpop.f32.mrf.mxu0
  %v6328 = vadd.f32 %v6300, %v6327
  %6329 = vmatmul.bf16.gmra.mxu0 %v2158
  %v6330 = vpop.f32.mrf.mxu0
  %v6331 = vadd.f32 %v6303, %v6330
  %v6332 = vpop.f32.mrf.mxu0
  %6333 = vdwg.mxu0
  %6334 = vmatpush.bf16.msra.mxu0 %v4737
  %6335 = vmatpush.bf16.msra.mxu0 %v4736
  %6336 = vmatpush.bf16.msra.mxu0 %v4735
  %6337 = vmatpush.bf16.msra.mxu0 %v4734
  %6338 = vmatpush.bf16.msra.mxu0 %v4733
  %6339 = vmatpush.bf16.msra.mxu0 %v4732
  %6340 = vmatpush.bf16.msra.mxu0 %v4731
  %6341 = vmatpush.bf16.msra.mxu0 %v4730
  %6342 = vmatmul.bf16.gmra.mxu0 %v1967
  %v6343 = vpop.f32.mrf.mxu0
  %v6344 = vadd.f32 %v6316, %v6343
  %v6345 = vpop.f32.mrf.mxu0
  %v6346 = vadd.f32 %v6318, %v6345
  %6347 = vmatmul.bf16.gmra.mxu0 %v2031
  %v6348 = vpop.f32.mrf.mxu0
  %v6349 = vadd.f32 %v6321, %v6348
  %v6350 = vpop.f32.mrf.mxu0
  %v6351 = vadd.f32 %v6323, %v6350
  %6352 = vmatmul.bf16.gmra.mxu0 %v2095
  %v6353 = vpop.f32.mrf.mxu0
  %v6354 = vadd.f32 %v6326, %v6353
  %v6355 = vpop.f32.mrf.mxu0
  %v6356 = vadd.f32 %v6328, %v6355
  %6357 = vmatmul.bf16.gmra.mxu0 %v2159
  %v6358 = vpop.f32.mrf.mxu0
  %v6359 = vadd.f32 %v6331, %v6358
  %v6360 = vpop.f32.mrf.mxu0
  %6361 = vdwg.mxu0
  %6362 = vmatpush.bf16.msra.mxu0 %v4745
  %6363 = vmatpush.bf16.msra.mxu0 %v4744
  %6364 = vmatpush.bf16.msra.mxu0 %v4743
  %6365 = vmatpush.bf16.msra.mxu0 %v4742
  %6366 = vmatpush.bf16.msra.mxu0 %v4741
  %6367 = vmatpush.bf16.msra.mxu0 %v4740
  %6368 = vmatpush.bf16.msra.mxu0 %v4739
  %6369 = vmatpush.bf16.msra.mxu0 %v4738
  %6370 = vmatmul.bf16.gmra.mxu0 %v1968
  %v6371 = vpop.f32.mrf.mxu0
  %v6372 = vadd.f32 %v6344, %v6371
  %v6373 = vpop.f32.mrf.mxu0
  %v6374 = vadd.f32 %v6346, %v6373
  %6375 = vmatmul.bf16.gmra.mxu0 %v2032
  %v6376 = vpop.f32.mrf.mxu0
  %v6377 = vadd.f32 %v6349, %v6376
  %v6378 = vpop.f32.mrf.mxu0
  %v6379 = vadd.f32 %v6351, %v6378
  %6380 = vmatmul.bf16.gmra.mxu0 %v2096
  %v6381 = vpop.f32.mrf.mxu0
  %v6382 = vadd.f32 %v6354, %v6381
  %v6383 = vpop.f32.mrf.mxu0
  %v6384 = vadd.f32 %v6356, %v6383
  %6385 = vmatmul.bf16.gmra.mxu0 %v2160
  %v6386 = vpop.f32.mrf.mxu0
  %v6387 = vadd.f32 %v6359, %v6386
  %v6388 = vpop.f32.mrf.mxu0
  %6389 = vdwg.mxu0
  %6390 = vmatpush.bf16.msra.mxu0 %v4753
  %6391 = vmatpush.bf16.msra.mxu0 %v4752
  %6392 = vmatpush.bf16.msra.mxu0 %v4751
  %6393 = vmatpush.bf16.msra.mxu0 %v4750
  %6394 = vmatpush.bf16.msra.mxu0 %v4749
  %6395 = vmatpush.bf16.msra.mxu0 %v4748
  %6396 = vmatpush.bf16.msra.mxu0 %v4747
  %6397 = vmatpush.bf16.msra.mxu0 %v4746
  %6398 = vmatmul.bf16.gmra.mxu0 %v1969
  %v6399 = vpop.f32.mrf.mxu0
  %v6400 = vadd.f32 %v6372, %v6399
  %v6401 = vpop.f32.mrf.mxu0
  %v6402 = vadd.f32 %v6374, %v6401
  %6403 = vmatmul.bf16.gmra.mxu0 %v2033
  %v6404 = vpop.f32.mrf.mxu0
  %v6405 = vadd.f32 %v6377, %v6404
  %v6406 = vpop.f32.mrf.mxu0
  %v6407 = vadd.f32 %v6379, %v6406
  %6408 = vmatmul.bf16.gmra.mxu0 %v2097
  %v6409 = vpop.f32.mrf.mxu0
  %v6410 = vadd.f32 %v6382, %v6409
  %v6411 = vpop.f32.mrf.mxu0
  %v6412 = vadd.f32 %v6384, %v6411
  %6413 = vmatmul.bf16.gmra.mxu0 %v2161
  %v6414 = vpop.f32.mrf.mxu0
  %v6415 = vadd.f32 %v6387, %v6414
  %v6416 = vpop.f32.mrf.mxu0
  %6417 = vdwg.mxu0
  %6418 = vmatpush.bf16.msra.mxu0 %v4761
  %6419 = vmatpush.bf16.msra.mxu0 %v4760
  %6420 = vmatpush.bf16.msra.mxu0 %v4759
  %6421 = vmatpush.bf16.msra.mxu0 %v4758
  %6422 = vmatpush.bf16.msra.mxu0 %v4757
  %6423 = vmatpush.bf16.msra.mxu0 %v4756
  %6424 = vmatpush.bf16.msra.mxu0 %v4755
  %6425 = vmatpush.bf16.msra.mxu0 %v4754
  %6426 = vmatmul.bf16.gmra.mxu0 %v1970
  %v6427 = vpop.f32.mrf.mxu0
  %v6428 = vadd.f32 %v6400, %v6427
  %v6429 = vpop.f32.mrf.mxu0
  %v6430 = vadd.f32 %v6402, %v6429
  %6431 = vmatmul.bf16.gmra.mxu0 %v2034
  %v6432 = vpop.f32.mrf.mxu0
  %v6433 = vadd.f32 %v6405, %v6432
  %v6434 = vpop.f32.mrf.mxu0
  %v6435 = vadd.f32 %v6407, %v6434
  %6436 = vmatmul.bf16.gmra.mxu0 %v2098
  %v6437 = vpop.f32.mrf.mxu0
  %v6438 = vadd.f32 %v6410, %v6437
  %v6439 = vpop.f32.mrf.mxu0
  %v6440 = vadd.f32 %v6412, %v6439
  %6441 = vmatmul.bf16.gmra.mxu0 %v2162
  %v6442 = vpop.f32.mrf.mxu0
  %v6443 = vadd.f32 %v6415, %v6442
  %v6444 = vpop.f32.mrf.mxu0
  %6445 = vdwg.mxu0
  %6446 = vmatpush.bf16.msra.mxu0 %v4769
  %6447 = vmatpush.bf16.msra.mxu0 %v4768
  %6448 = vmatpush.bf16.msra.mxu0 %v4767
  %6449 = vmatpush.bf16.msra.mxu0 %v4766
  %6450 = vmatpush.bf16.msra.mxu0 %v4765
  %6451 = vmatpush.bf16.msra.mxu0 %v4764
  %6452 = vmatpush.bf16.msra.mxu0 %v4763
  %6453 = vmatpush.bf16.msra.mxu0 %v4762
  %6454 = vmatmul.bf16.gmra.mxu0 %v1971
  %v6455 = vpop.f32.mrf.mxu0
  %v6456 = vadd.f32 %v6428, %v6455
  %v6457 = vpop.f32.mrf.mxu0
  %v6458 = vadd.f32 %v6430, %v6457
  %6459 = vmatmul.bf16.gmra.mxu0 %v2035
  %v6460 = vpop.f32.mrf.mxu0
  %v6461 = vadd.f32 %v6433, %v6460
  %v6462 = vpop.f32.mrf.mxu0
  %v6463 = vadd.f32 %v6435, %v6462
  %6464 = vmatmul.bf16.gmra.mxu0 %v2099
  %v6465 = vpop.f32.mrf.mxu0
  %v6466 = vadd.f32 %v6438, %v6465
  %v6467 = vpop.f32.mrf.mxu0
  %v6468 = vadd.f32 %v6440, %v6467
  %6469 = vmatmul.bf16.gmra.mxu0 %v2163
  %v6470 = vpop.f32.mrf.mxu0
  %v6471 = vadd.f32 %v6443, %v6470
  %v6472 = vpop.f32.mrf.mxu0
  %6473 = vdwg.mxu0
  %6474 = vmatpush.bf16.msra.mxu0 %v4777
  %6475 = vmatpush.bf16.msra.mxu0 %v4776
  %6476 = vmatpush.bf16.msra.mxu0 %v4775
  %6477 = vmatpush.bf16.msra.mxu0 %v4774
  %6478 = vmatpush.bf16.msra.mxu0 %v4773
  %6479 = vmatpush.bf16.msra.mxu0 %v4772
  %6480 = vmatpush.bf16.msra.mxu0 %v4771
  %6481 = vmatpush.bf16.msra.mxu0 %v4770
  %6482 = vmatmul.bf16.gmra.mxu0 %v1972
  %v6483 = vpop.f32.mrf.mxu0
  %v6484 = vadd.f32 %v6456, %v6483
  %v6485 = vpop.f32.mrf.mxu0
  %v6486 = vadd.f32 %v6458, %v6485
  %6487 = vmatmul.bf16.gmra.mxu0 %v2036
  %v6488 = vpop.f32.mrf.mxu0
  %v6489 = vadd.f32 %v6461, %v6488
  %v6490 = vpop.f32.mrf.mxu0
  %v6491 = vadd.f32 %v6463, %v6490
  %6492 = vmatmul.bf16.gmra.mxu0 %v2100
  %v6493 = vpop.f32.mrf.mxu0
  %v6494 = vadd.f32 %v6466, %v6493
  %v6495 = vpop.f32.mrf.mxu0
  %v6496 = vadd.f32 %v6468, %v6495
  %6497 = vmatmul.bf16.gmra.mxu0 %v2164
  %v6498 = vpop.f32.mrf.mxu0
  %v6499 = vadd.f32 %v6471, %v6498
  %v6500 = vpop.f32.mrf.mxu0
  %6501 = vdwg.mxu0
  %6502 = vmatpush.bf16.msra.mxu0 %v4785
  %6503 = vmatpush.bf16.msra.mxu0 %v4784
  %6504 = vmatpush.bf16.msra.mxu0 %v4783
  %6505 = vmatpush.bf16.msra.mxu0 %v4782
  %6506 = vmatpush.bf16.msra.mxu0 %v4781
  %6507 = vmatpush.bf16.msra.mxu0 %v4780
  %6508 = vmatpush.bf16.msra.mxu0 %v4779
  %6509 = vmatpush.bf16.msra.mxu0 %v4778
  %6510 = vmatmul.bf16.gmra.mxu0 %v1973
  %v6511 = vpop.f32.mrf.mxu0
  %v6512 = vadd.f32 %v6484, %v6511
  %v6513 = vpop.f32.mrf.mxu0
  %v6514 = vadd.f32 %v6486, %v6513
  %6515 = vmatmul.bf16.gmra.mxu0 %v2037
  %v6516 = vpop.f32.mrf.mxu0
  %v6517 = vadd.f32 %v6489, %v6516
  %v6518 = vpop.f32.mrf.mxu0
  %v6519 = vadd.f32 %v6491, %v6518
  %6520 = vmatmul.bf16.gmra.mxu0 %v2101
  %v6521 = vpop.f32.mrf.mxu0
  %v6522 = vadd.f32 %v6494, %v6521
  %v6523 = vpop.f32.mrf.mxu0
  %v6524 = vadd.f32 %v6496, %v6523
  %6525 = vmatmul.bf16.gmra.mxu0 %v2165
  %v6526 = vpop.f32.mrf.mxu0
  %v6527 = vadd.f32 %v6499, %v6526
  %v6528 = vpop.f32.mrf.mxu0
  %6529 = vdwg.mxu0
  %6530 = vmatpush.bf16.msra.mxu0 %v4793
  %6531 = vmatpush.bf16.msra.mxu0 %v4792
  %6532 = vmatpush.bf16.msra.mxu0 %v4791
  %6533 = vmatpush.bf16.msra.mxu0 %v4790
  %6534 = vmatpush.bf16.msra.mxu0 %v4789
  %6535 = vmatpush.bf16.msra.mxu0 %v4788
  %6536 = vmatpush.bf16.msra.mxu0 %v4787
  %6537 = vmatpush.bf16.msra.mxu0 %v4786
  %6538 = vmatmul.bf16.gmra.mxu0 %v1974
  %v6539 = vpop.f32.mrf.mxu0
  %v6540 = vadd.f32 %v6512, %v6539
  %v6541 = vpop.f32.mrf.mxu0
  %v6542 = vadd.f32 %v6514, %v6541
  %6543 = vmatmul.bf16.gmra.mxu0 %v2038
  %v6544 = vpop.f32.mrf.mxu0
  %v6545 = vadd.f32 %v6517, %v6544
  %v6546 = vpop.f32.mrf.mxu0
  %v6547 = vadd.f32 %v6519, %v6546
  %6548 = vmatmul.bf16.gmra.mxu0 %v2102
  %v6549 = vpop.f32.mrf.mxu0
  %v6550 = vadd.f32 %v6522, %v6549
  %v6551 = vpop.f32.mrf.mxu0
  %v6552 = vadd.f32 %v6524, %v6551
  %6553 = vmatmul.bf16.gmra.mxu0 %v2166
  %v6554 = vpop.f32.mrf.mxu0
  %v6555 = vadd.f32 %v6527, %v6554
  %v6556 = vpop.f32.mrf.mxu0
  %6557 = vdwg.mxu0
  %6558 = vmatpush.bf16.msra.mxu0 %v4801
  %6559 = vmatpush.bf16.msra.mxu0 %v4800
  %6560 = vmatpush.bf16.msra.mxu0 %v4799
  %6561 = vmatpush.bf16.msra.mxu0 %v4798
  %6562 = vmatpush.bf16.msra.mxu0 %v4797
  %6563 = vmatpush.bf16.msra.mxu0 %v4796
  %6564 = vmatpush.bf16.msra.mxu0 %v4795
  %6565 = vmatpush.bf16.msra.mxu0 %v4794
  %6566 = vmatmul.bf16.gmra.mxu0 %v1975
  %v6567 = vpop.f32.mrf.mxu0
  %v6568 = vadd.f32 %v6540, %v6567
  %v6569 = vpop.f32.mrf.mxu0
  %v6570 = vadd.f32 %v6542, %v6569
  %6571 = vmatmul.bf16.gmra.mxu0 %v2039
  %v6572 = vpop.f32.mrf.mxu0
  %v6573 = vadd.f32 %v6545, %v6572
  %v6574 = vpop.f32.mrf.mxu0
  %v6575 = vadd.f32 %v6547, %v6574
  %6576 = vmatmul.bf16.gmra.mxu0 %v2103
  %v6577 = vpop.f32.mrf.mxu0
  %v6578 = vadd.f32 %v6550, %v6577
  %v6579 = vpop.f32.mrf.mxu0
  %v6580 = vadd.f32 %v6552, %v6579
  %6581 = vmatmul.bf16.gmra.mxu0 %v2167
  %v6582 = vpop.f32.mrf.mxu0
  %v6583 = vadd.f32 %v6555, %v6582
  %v6584 = vpop.f32.mrf.mxu0
  %6585 = vdwg.mxu0
  %6586 = vmatpush.bf16.msra.mxu0 %v4809
  %6587 = vmatpush.bf16.msra.mxu0 %v4808
  %6588 = vmatpush.bf16.msra.mxu0 %v4807
  %6589 = vmatpush.bf16.msra.mxu0 %v4806
  %6590 = vmatpush.bf16.msra.mxu0 %v4805
  %6591 = vmatpush.bf16.msra.mxu0 %v4804
  %6592 = vmatpush.bf16.msra.mxu0 %v4803
  %6593 = vmatpush.bf16.msra.mxu0 %v4802
  %6594 = vmatmul.bf16.gmra.mxu0 %v1976
  %v6595 = vpop.f32.mrf.mxu0
  %v6596 = vadd.f32 %v6568, %v6595
  %v6597 = vpop.f32.mrf.mxu0
  %v6598 = vadd.f32 %v6570, %v6597
  %6599 = vmatmul.bf16.gmra.mxu0 %v2040
  %v6600 = vpop.f32.mrf.mxu0
  %v6601 = vadd.f32 %v6573, %v6600
  %v6602 = vpop.f32.mrf.mxu0
  %v6603 = vadd.f32 %v6575, %v6602
  %6604 = vmatmul.bf16.gmra.mxu0 %v2104
  %v6605 = vpop.f32.mrf.mxu0
  %v6606 = vadd.f32 %v6578, %v6605
  %v6607 = vpop.f32.mrf.mxu0
  %v6608 = vadd.f32 %v6580, %v6607
  %6609 = vmatmul.bf16.gmra.mxu0 %v2168
  %v6610 = vpop.f32.mrf.mxu0
  %v6611 = vadd.f32 %v6583, %v6610
  %v6612 = vpop.f32.mrf.mxu0
  %6613 = vdwg.mxu0
  %6614 = vmatpush.bf16.msra.mxu0 %v4817
  %6615 = vmatpush.bf16.msra.mxu0 %v4816
  %6616 = vmatpush.bf16.msra.mxu0 %v4815
  %6617 = vmatpush.bf16.msra.mxu0 %v4814
  %6618 = vmatpush.bf16.msra.mxu0 %v4813
  %6619 = vmatpush.bf16.msra.mxu0 %v4812
  %6620 = vmatpush.bf16.msra.mxu0 %v4811
  %6621 = vmatpush.bf16.msra.mxu0 %v4810
  %6622 = vmatmul.bf16.gmra.mxu0 %v1977
  %v6623 = vpop.f32.mrf.mxu0
  %v6624 = vadd.f32 %v6596, %v6623
  %v6625 = vpop.f32.mrf.mxu0
  %v6626 = vadd.f32 %v6598, %v6625
  %6627 = vmatmul.bf16.gmra.mxu0 %v2041
  %v6628 = vpop.f32.mrf.mxu0
  %v6629 = vadd.f32 %v6601, %v6628
  %v6630 = vpop.f32.mrf.mxu0
  %v6631 = vadd.f32 %v6603, %v6630
  %6632 = vmatmul.bf16.gmra.mxu0 %v2105
  %v6633 = vpop.f32.mrf.mxu0
  %v6634 = vadd.f32 %v6606, %v6633
  %v6635 = vpop.f32.mrf.mxu0
  %v6636 = vadd.f32 %v6608, %v6635
  %6637 = vmatmul.bf16.gmra.mxu0 %v2169
  %v6638 = vpop.f32.mrf.mxu0
  %v6639 = vadd.f32 %v6611, %v6638
  %v6640 = vpop.f32.mrf.mxu0
  %6641 = vdwg.mxu0
  %6642 = vmatpush.bf16.msra.mxu0 %v4825
  %6643 = vmatpush.bf16.msra.mxu0 %v4824
  %6644 = vmatpush.bf16.msra.mxu0 %v4823
  %6645 = vmatpush.bf16.msra.mxu0 %v4822
  %6646 = vmatpush.bf16.msra.mxu0 %v4821
  %6647 = vmatpush.bf16.msra.mxu0 %v4820
  %6648 = vmatpush.bf16.msra.mxu0 %v4819
  %6649 = vmatpush.bf16.msra.mxu0 %v4818
  %6650 = vmatmul.bf16.gmra.mxu0 %v1978
  %v6651 = vpop.f32.mrf.mxu0
  %v6652 = vadd.f32 %v6624, %v6651
  %v6653 = vpop.f32.mrf.mxu0
  %v6654 = vadd.f32 %v6626, %v6653
  %6655 = vmatmul.bf16.gmra.mxu0 %v2042
  %v6656 = vpop.f32.mrf.mxu0
  %v6657 = vadd.f32 %v6629, %v6656
  %v6658 = vpop.f32.mrf.mxu0
  %v6659 = vadd.f32 %v6631, %v6658
  %6660 = vmatmul.bf16.gmra.mxu0 %v2106
  %v6661 = vpop.f32.mrf.mxu0
  %v6662 = vadd.f32 %v6634, %v6661
  %v6663 = vpop.f32.mrf.mxu0
  %v6664 = vadd.f32 %v6636, %v6663
  %6665 = vmatmul.bf16.gmra.mxu0 %v2170
  %v6666 = vpop.f32.mrf.mxu0
  %v6667 = vadd.f32 %v6639, %v6666
  %v6668 = vpop.f32.mrf.mxu0
  %6669 = vdwg.mxu0
  %6670 = vmatpush.bf16.msra.mxu0 %v4833
  %6671 = vmatpush.bf16.msra.mxu0 %v4832
  %6672 = vmatpush.bf16.msra.mxu0 %v4831
  %6673 = vmatpush.bf16.msra.mxu0 %v4830
  %6674 = vmatpush.bf16.msra.mxu0 %v4829
  %6675 = vmatpush.bf16.msra.mxu0 %v4828
  %6676 = vmatpush.bf16.msra.mxu0 %v4827
  %6677 = vmatpush.bf16.msra.mxu0 %v4826
  %6678 = vmatmul.bf16.gmra.mxu0 %v1979
  %v6679 = vpop.f32.mrf.mxu0
  %v6680 = vadd.f32 %v6652, %v6679
  %v6681 = vpop.f32.mrf.mxu0
  %v6682 = vadd.f32 %v6654, %v6681
  %6683 = vmatmul.bf16.gmra.mxu0 %v2043
  %v6684 = vpop.f32.mrf.mxu0
  %v6685 = vadd.f32 %v6657, %v6684
  %v6686 = vpop.f32.mrf.mxu0
  %v6687 = vadd.f32 %v6659, %v6686
  %6688 = vmatmul.bf16.gmra.mxu0 %v2107
  %v6689 = vpop.f32.mrf.mxu0
  %v6690 = vadd.f32 %v6662, %v6689
  %v6691 = vpop.f32.mrf.mxu0
  %v6692 = vadd.f32 %v6664, %v6691
  %6693 = vmatmul.bf16.gmra.mxu0 %v2171
  %v6694 = vpop.f32.mrf.mxu0
  %v6695 = vadd.f32 %v6667, %v6694
  %v6696 = vpop.f32.mrf.mxu0
  %6697 = vdwg.mxu0
  %6698 = vmatpush.bf16.msra.mxu0 %v4841
  %6699 = vmatpush.bf16.msra.mxu0 %v4840
  %6700 = vmatpush.bf16.msra.mxu0 %v4839
  %6701 = vmatpush.bf16.msra.mxu0 %v4838
  %6702 = vmatpush.bf16.msra.mxu0 %v4837
  %6703 = vmatpush.bf16.msra.mxu0 %v4836
  %6704 = vmatpush.bf16.msra.mxu0 %v4835
  %6705 = vmatpush.bf16.msra.mxu0 %v4834
  %6706 = vmatmul.bf16.gmra.mxu0 %v1980
  %v6707 = vpop.f32.mrf.mxu0
  %v6708 = vadd.f32 %v6680, %v6707
  %v6709 = vpop.f32.mrf.mxu0
  %v6710 = vadd.f32 %v6682, %v6709
  %6711 = vmatmul.bf16.gmra.mxu0 %v2044
  %v6712 = vpop.f32.mrf.mxu0
  %v6713 = vadd.f32 %v6685, %v6712
  %v6714 = vpop.f32.mrf.mxu0
  %v6715 = vadd.f32 %v6687, %v6714
  %6716 = vmatmul.bf16.gmra.mxu0 %v2108
  %v6717 = vpop.f32.mrf.mxu0
  %v6718 = vadd.f32 %v6690, %v6717
  %v6719 = vpop.f32.mrf.mxu0
  %v6720 = vadd.f32 %v6692, %v6719
  %6721 = vmatmul.bf16.gmra.mxu0 %v2172
  %v6722 = vpop.f32.mrf.mxu0
  %v6723 = vadd.f32 %v6695, %v6722
  %v6724 = vpop.f32.mrf.mxu0
  %6725 = vdwg.mxu0
  %6726 = vmatpush.bf16.msra.mxu0 %v4849
  %6727 = vmatpush.bf16.msra.mxu0 %v4848
  %6728 = vmatpush.bf16.msra.mxu0 %v4847
  %6729 = vmatpush.bf16.msra.mxu0 %v4846
  %6730 = vmatpush.bf16.msra.mxu0 %v4845
  %6731 = vmatpush.bf16.msra.mxu0 %v4844
  %6732 = vmatpush.bf16.msra.mxu0 %v4843
  %6733 = vmatpush.bf16.msra.mxu0 %v4842
  %6734 = vmatmul.bf16.gmra.mxu0 %v1981
  %v6735 = vpop.f32.mrf.mxu0
  %v6736 = vadd.f32 %v6708, %v6735
  %v6737 = vpop.f32.mrf.mxu0
  %v6738 = vadd.f32 %v6710, %v6737
  %6739 = vmatmul.bf16.gmra.mxu0 %v2045
  %v6740 = vpop.f32.mrf.mxu0
  %v6741 = vadd.f32 %v6713, %v6740
  %v6742 = vpop.f32.mrf.mxu0
  %v6743 = vadd.f32 %v6715, %v6742
  %6744 = vmatmul.bf16.gmra.mxu0 %v2109
  %v6745 = vpop.f32.mrf.mxu0
  %v6746 = vadd.f32 %v6718, %v6745
  %v6747 = vpop.f32.mrf.mxu0
  %v6748 = vadd.f32 %v6720, %v6747
  %6749 = vmatmul.bf16.gmra.mxu0 %v2173
  %v6750 = vpop.f32.mrf.mxu0
  %v6751 = vadd.f32 %v6723, %v6750
  %v6752 = vpop.f32.mrf.mxu0
  %6753 = vdwg.mxu0
  %6754 = vmatpush.bf16.msra.mxu0 %v4857
  %6755 = vmatpush.bf16.msra.mxu0 %v4856
  %6756 = vmatpush.bf16.msra.mxu0 %v4855
  %6757 = vmatpush.bf16.msra.mxu0 %v4854
  %6758 = vmatpush.bf16.msra.mxu0 %v4853
  %6759 = vmatpush.bf16.msra.mxu0 %v4852
  %6760 = vmatpush.bf16.msra.mxu0 %v4851
  %6761 = vmatpush.bf16.msra.mxu0 %v4850
  %6762 = vmatmul.bf16.gmra.mxu0 %v1982
  %v6763 = vpop.f32.mrf.mxu0
  %v6764 = vadd.f32 %v6736, %v6763
  %v6765 = vpop.f32.mrf.mxu0
  %v6766 = vadd.f32 %v6738, %v6765
  %6767 = vmatmul.bf16.gmra.mxu0 %v2046
  %v6768 = vpop.f32.mrf.mxu0
  %v6769 = vadd.f32 %v6741, %v6768
  %v6770 = vpop.f32.mrf.mxu0
  %v6771 = vadd.f32 %v6743, %v6770
  %6772 = vmatmul.bf16.gmra.mxu0 %v2110
  %v6773 = vpop.f32.mrf.mxu0
  %v6774 = vadd.f32 %v6746, %v6773
  %v6775 = vpop.f32.mrf.mxu0
  %v6776 = vadd.f32 %v6748, %v6775
  %6777 = vmatmul.bf16.gmra.mxu0 %v2174
  %v6778 = vpop.f32.mrf.mxu0
  %v6779 = vadd.f32 %v6751, %v6778
  %v6780 = vpop.f32.mrf.mxu0
  %6781 = vdwg.mxu0
  %6782 = vmatpush.bf16.msra.mxu0 %v4865
  %6783 = vmatpush.bf16.msra.mxu0 %v4864
  %6784 = vmatpush.bf16.msra.mxu0 %v4863
  %6785 = vmatpush.bf16.msra.mxu0 %v4862
  %6786 = vmatpush.bf16.msra.mxu0 %v4861
  %6787 = vmatpush.bf16.msra.mxu0 %v4860
  %6788 = vmatpush.bf16.msra.mxu0 %v4859
  %6789 = vmatpush.bf16.msra.mxu0 %v4858
  %6790 = vmatmul.bf16.gmra.mxu0 %v1983
  %v6791 = vpop.f32.mrf.mxu0
  %v6792 = vadd.f32 %v6764, %v6791
  %v6793 = vpop.f32.mrf.mxu0
  %v6794 = vadd.f32 %v6766, %v6793
  %6795 = vmatmul.bf16.gmra.mxu0 %v2047
  %v6796 = vpop.f32.mrf.mxu0
  %v6797 = vadd.f32 %v6769, %v6796
  %v6798 = vpop.f32.mrf.mxu0
  %v6799 = vadd.f32 %v6771, %v6798
  %6800 = vmatmul.bf16.gmra.mxu0 %v2111
  %v6801 = vpop.f32.mrf.mxu0
  %v6802 = vadd.f32 %v6774, %v6801
  %v6803 = vpop.f32.mrf.mxu0
  %v6804 = vadd.f32 %v6776, %v6803
  %6805 = vmatmul.bf16.gmra.mxu0 %v2175
  %v6806 = vpop.f32.mrf.mxu0
  %v6807 = vadd.f32 %v6779, %v6806
  %v6808 = vpop.f32.mrf.mxu0
  %6809 = vdwg.mxu0
  %6810 = vmatpush.bf16.msra.mxu0 %v4873
  %6811 = vmatpush.bf16.msra.mxu0 %v4872
  %6812 = vmatpush.bf16.msra.mxu0 %v4871
  %6813 = vmatpush.bf16.msra.mxu0 %v4870
  %6814 = vmatpush.bf16.msra.mxu0 %v4869
  %6815 = vmatpush.bf16.msra.mxu0 %v4868
  %6816 = vmatpush.bf16.msra.mxu0 %v4867
  %6817 = vmatpush.bf16.msra.mxu0 %v4866
  %6818 = vmatmul.bf16.gmra.mxu0 %v1984
  %v6819 = vpop.f32.mrf.mxu0
  %v6820 = vadd.f32 %v6792, %v6819
  %v6821 = vpop.f32.mrf.mxu0
  %v6822 = vadd.f32 %v6794, %v6821
  %6823 = vmatmul.bf16.gmra.mxu0 %v2048
  %v6824 = vpop.f32.mrf.mxu0
  %v6825 = vadd.f32 %v6797, %v6824
  %v6826 = vpop.f32.mrf.mxu0
  %v6827 = vadd.f32 %v6799, %v6826
  %6828 = vmatmul.bf16.gmra.mxu0 %v2112
  %v6829 = vpop.f32.mrf.mxu0
  %v6830 = vadd.f32 %v6802, %v6829
  %v6831 = vpop.f32.mrf.mxu0
  %v6832 = vadd.f32 %v6804, %v6831
  %6833 = vmatmul.bf16.gmra.mxu0 %v2176
  %v6834 = vpop.f32.mrf.mxu0
  %v6835 = vadd.f32 %v6807, %v6834
  %v6836 = vpop.f32.mrf.mxu0
  %6837 = vdwg.mxu0
  %6838 = vmatpush.bf16.msra.mxu0 %v4881
  %6839 = vmatpush.bf16.msra.mxu0 %v4880
  %6840 = vmatpush.bf16.msra.mxu0 %v4879
  %6841 = vmatpush.bf16.msra.mxu0 %v4878
  %6842 = vmatpush.bf16.msra.mxu0 %v4877
  %6843 = vmatpush.bf16.msra.mxu0 %v4876
  %6844 = vmatpush.bf16.msra.mxu0 %v4875
  %6845 = vmatpush.bf16.msra.mxu0 %v4874
  %6846 = vmatmul.bf16.gmra.mxu0 %v1985
  %v6847 = vpop.f32.mrf.mxu0
  %v6848 = vadd.f32 %v6820, %v6847
  %v6849 = vpop.f32.mrf.mxu0
  %v6850 = vadd.f32 %v6822, %v6849
  %6851 = vmatmul.bf16.gmra.mxu0 %v2049
  %v6852 = vpop.f32.mrf.mxu0
  %v6853 = vadd.f32 %v6825, %v6852
  %v6854 = vpop.f32.mrf.mxu0
  %v6855 = vadd.f32 %v6827, %v6854
  %6856 = vmatmul.bf16.gmra.mxu0 %v2113
  %v6857 = vpop.f32.mrf.mxu0
  %v6858 = vadd.f32 %v6830, %v6857
  %v6859 = vpop.f32.mrf.mxu0
  %v6860 = vadd.f32 %v6832, %v6859
  %6861 = vmatmul.bf16.gmra.mxu0 %v2177
  %v6862 = vpop.f32.mrf.mxu0
  %v6863 = vadd.f32 %v6835, %v6862
  %v6864 = vpop.f32.mrf.mxu0
  %6865 = vdwg.mxu0
  %6866 = vmatpush.bf16.msra.mxu0 %v4889
  %6867 = vmatpush.bf16.msra.mxu0 %v4888
  %6868 = vmatpush.bf16.msra.mxu0 %v4887
  %6869 = vmatpush.bf16.msra.mxu0 %v4886
  %6870 = vmatpush.bf16.msra.mxu0 %v4885
  %6871 = vmatpush.bf16.msra.mxu0 %v4884
  %6872 = vmatpush.bf16.msra.mxu0 %v4883
  %6873 = vmatpush.bf16.msra.mxu0 %v4882
  %6874 = vmatmul.bf16.gmra.mxu0 %v1986
  %v6875 = vpop.f32.mrf.mxu0
  %v6876 = vadd.f32 %v6848, %v6875
  %v6877 = vpop.f32.mrf.mxu0
  %v6878 = vadd.f32 %v6850, %v6877
  %6879 = vmatmul.bf16.gmra.mxu0 %v2050
  %v6880 = vpop.f32.mrf.mxu0
  %v6881 = vadd.f32 %v6853, %v6880
  %v6882 = vpop.f32.mrf.mxu0
  %v6883 = vadd.f32 %v6855, %v6882
  %6884 = vmatmul.bf16.gmra.mxu0 %v2114
  %v6885 = vpop.f32.mrf.mxu0
  %v6886 = vadd.f32 %v6858, %v6885
  %v6887 = vpop.f32.mrf.mxu0
  %v6888 = vadd.f32 %v6860, %v6887
  %6889 = vmatmul.bf16.gmra.mxu0 %v2178
  %v6890 = vpop.f32.mrf.mxu0
  %v6891 = vadd.f32 %v6863, %v6890
  %v6892 = vpop.f32.mrf.mxu0
  %6893 = vdwg.mxu0
  %6894 = vmatpush.bf16.msra.mxu0 %v4897
  %6895 = vmatpush.bf16.msra.mxu0 %v4896
  %6896 = vmatpush.bf16.msra.mxu0 %v4895
  %6897 = vmatpush.bf16.msra.mxu0 %v4894
  %6898 = vmatpush.bf16.msra.mxu0 %v4893
  %6899 = vmatpush.bf16.msra.mxu0 %v4892
  %6900 = vmatpush.bf16.msra.mxu0 %v4891
  %6901 = vmatpush.bf16.msra.mxu0 %v4890
  %6902 = vmatmul.bf16.gmra.mxu0 %v1987
  %v6903 = vpop.f32.mrf.mxu0
  %v6904 = vadd.f32 %v6876, %v6903
  %v6905 = vpop.f32.mrf.mxu0
  %v6906 = vadd.f32 %v6878, %v6905
  %6907 = vmatmul.bf16.gmra.mxu0 %v2051
  %v6908 = vpop.f32.mrf.mxu0
  %v6909 = vadd.f32 %v6881, %v6908
  %v6910 = vpop.f32.mrf.mxu0
  %v6911 = vadd.f32 %v6883, %v6910
  %6912 = vmatmul.bf16.gmra.mxu0 %v2115
  %v6913 = vpop.f32.mrf.mxu0
  %v6914 = vadd.f32 %v6886, %v6913
  %v6915 = vpop.f32.mrf.mxu0
  %v6916 = vadd.f32 %v6888, %v6915
  %6917 = vmatmul.bf16.gmra.mxu0 %v2179
  %v6918 = vpop.f32.mrf.mxu0
  %v6919 = vadd.f32 %v6891, %v6918
  %v6920 = vpop.f32.mrf.mxu0
  %6921 = vdwg.mxu0
  %6922 = vmatpush.bf16.msra.mxu0 %v4905
  %6923 = vmatpush.bf16.msra.mxu0 %v4904
  %6924 = vmatpush.bf16.msra.mxu0 %v4903
  %6925 = vmatpush.bf16.msra.mxu0 %v4902
  %6926 = vmatpush.bf16.msra.mxu0 %v4901
  %6927 = vmatpush.bf16.msra.mxu0 %v4900
  %6928 = vmatpush.bf16.msra.mxu0 %v4899
  %6929 = vmatpush.bf16.msra.mxu0 %v4898
  %6930 = vmatmul.bf16.gmra.mxu0 %v1988
  %v6931 = vpop.f32.mrf.mxu0
  %v6932 = vadd.f32 %v6904, %v6931
  %v6933 = vpop.f32.mrf.mxu0
  %v6934 = vadd.f32 %v6906, %v6933
  %6935 = vmatmul.bf16.gmra.mxu0 %v2052
  %v6936 = vpop.f32.mrf.mxu0
  %v6937 = vadd.f32 %v6909, %v6936
  %v6938 = vpop.f32.mrf.mxu0
  %v6939 = vadd.f32 %v6911, %v6938
  %6940 = vmatmul.bf16.gmra.mxu0 %v2116
  %v6941 = vpop.f32.mrf.mxu0
  %v6942 = vadd.f32 %v6914, %v6941
  %v6943 = vpop.f32.mrf.mxu0
  %v6944 = vadd.f32 %v6916, %v6943
  %6945 = vmatmul.bf16.gmra.mxu0 %v2180
  %v6946 = vpop.f32.mrf.mxu0
  %v6947 = vadd.f32 %v6919, %v6946
  %v6948 = vpop.f32.mrf.mxu0
  %6949 = vdwg.mxu0
  %6950 = vmatpush.bf16.msra.mxu0 %v4913
  %6951 = vmatpush.bf16.msra.mxu0 %v4912
  %6952 = vmatpush.bf16.msra.mxu0 %v4911
  %6953 = vmatpush.bf16.msra.mxu0 %v4910
  %6954 = vmatpush.bf16.msra.mxu0 %v4909
  %6955 = vmatpush.bf16.msra.mxu0 %v4908
  %6956 = vmatpush.bf16.msra.mxu0 %v4907
  %6957 = vmatpush.bf16.msra.mxu0 %v4906
  %6958 = vmatmul.bf16.gmra.mxu0 %v1989
  %v6959 = vpop.f32.mrf.mxu0
  %v6960 = vadd.f32 %v6932, %v6959
  %v6961 = vpop.f32.mrf.mxu0
  %v6962 = vadd.f32 %v6934, %v6961
  %6963 = vmatmul.bf16.gmra.mxu0 %v2053
  %v6964 = vpop.f32.mrf.mxu0
  %v6965 = vadd.f32 %v6937, %v6964
  %v6966 = vpop.f32.mrf.mxu0
  %v6967 = vadd.f32 %v6939, %v6966
  %6968 = vmatmul.bf16.gmra.mxu0 %v2117
  %v6969 = vpop.f32.mrf.mxu0
  %v6970 = vadd.f32 %v6942, %v6969
  %v6971 = vpop.f32.mrf.mxu0
  %v6972 = vadd.f32 %v6944, %v6971
  %6973 = vmatmul.bf16.gmra.mxu0 %v2181
  %v6974 = vpop.f32.mrf.mxu0
  %v6975 = vadd.f32 %v6947, %v6974
  %v6976 = vpop.f32.mrf.mxu0
  %6977 = vdwg.mxu0
  %6978 = vmatpush.bf16.msra.mxu0 %v4921
  %6979 = vmatpush.bf16.msra.mxu0 %v4920
  %6980 = vmatpush.bf16.msra.mxu0 %v4919
  %6981 = vmatpush.bf16.msra.mxu0 %v4918
  %6982 = vmatpush.bf16.msra.mxu0 %v4917
  %6983 = vmatpush.bf16.msra.mxu0 %v4916
  %6984 = vmatpush.bf16.msra.mxu0 %v4915
  %6985 = vmatpush.bf16.msra.mxu0 %v4914
  %6986 = vmatmul.bf16.gmra.mxu0 %v1990
  %v6987 = vpop.f32.mrf.mxu0
  %v6988 = vadd.f32 %v6960, %v6987
  %v6989 = vpop.f32.mrf.mxu0
  %v6990 = vadd.f32 %v6962, %v6989
  %6991 = vmatmul.bf16.gmra.mxu0 %v2054
  %v6992 = vpop.f32.mrf.mxu0
  %v6993 = vadd.f32 %v6965, %v6992
  %v6994 = vpop.f32.mrf.mxu0
  %v6995 = vadd.f32 %v6967, %v6994
  %6996 = vmatmul.bf16.gmra.mxu0 %v2118
  %v6997 = vpop.f32.mrf.mxu0
  %v6998 = vadd.f32 %v6970, %v6997
  %v6999 = vpop.f32.mrf.mxu0
  %v7000 = vadd.f32 %v6972, %v6999
  %7001 = vmatmul.bf16.gmra.mxu0 %v2182
  %v7002 = vpop.f32.mrf.mxu0
  %v7003 = vadd.f32 %v6975, %v7002
  %v7004 = vpop.f32.mrf.mxu0
  %7005 = vdwg.mxu0
  %7006 = vmatpush.bf16.msra.mxu0 %v4929
  %7007 = vmatpush.bf16.msra.mxu0 %v4928
  %7008 = vmatpush.bf16.msra.mxu0 %v4927
  %7009 = vmatpush.bf16.msra.mxu0 %v4926
  %7010 = vmatpush.bf16.msra.mxu0 %v4925
  %7011 = vmatpush.bf16.msra.mxu0 %v4924
  %7012 = vmatpush.bf16.msra.mxu0 %v4923
  %7013 = vmatpush.bf16.msra.mxu0 %v4922
  %7014 = vmatmul.bf16.gmra.mxu0 %v1991
  %v7015 = vpop.f32.mrf.mxu0
  %v7016 = vadd.f32 %v6988, %v7015
  %v7017 = vpop.f32.mrf.mxu0
  %v7018 = vadd.f32 %v6990, %v7017
  %7019 = vmatmul.bf16.gmra.mxu0 %v2055
  %v7020 = vpop.f32.mrf.mxu0
  %v7021 = vadd.f32 %v6993, %v7020
  %v7022 = vpop.f32.mrf.mxu0
  %v7023 = vadd.f32 %v6995, %v7022
  %7024 = vmatmul.bf16.gmra.mxu0 %v2119
  %v7025 = vpop.f32.mrf.mxu0
  %v7026 = vadd.f32 %v6998, %v7025
  %v7027 = vpop.f32.mrf.mxu0
  %v7028 = vadd.f32 %v7000, %v7027
  %7029 = vmatmul.bf16.gmra.mxu0 %v2183
  %v7030 = vpop.f32.mrf.mxu0
  %v7031 = vadd.f32 %v7003, %v7030
  %v7032 = vpop.f32.mrf.mxu0
  %7033 = vdwg.mxu0
  %7034 = vmatpush.bf16.msra.mxu0 %v4937
  %7035 = vmatpush.bf16.msra.mxu0 %v4936
  %7036 = vmatpush.bf16.msra.mxu0 %v4935
  %7037 = vmatpush.bf16.msra.mxu0 %v4934
  %7038 = vmatpush.bf16.msra.mxu0 %v4933
  %7039 = vmatpush.bf16.msra.mxu0 %v4932
  %7040 = vmatpush.bf16.msra.mxu0 %v4931
  %7041 = vmatpush.bf16.msra.mxu0 %v4930
  %7042 = vmatmul.bf16.gmra.mxu0 %v1992
  %v7043 = vpop.f32.mrf.mxu0
  %v7044 = vadd.f32 %v7016, %v7043
  %v7045 = vpop.f32.mrf.mxu0
  %v7046 = vadd.f32 %v7018, %v7045
  %7047 = vmatmul.bf16.gmra.mxu0 %v2056
  %v7048 = vpop.f32.mrf.mxu0
  %v7049 = vadd.f32 %v7021, %v7048
  %v7050 = vpop.f32.mrf.mxu0
  %v7051 = vadd.f32 %v7023, %v7050
  %7052 = vmatmul.bf16.gmra.mxu0 %v2120
  %v7053 = vpop.f32.mrf.mxu0
  %v7054 = vadd.f32 %v7026, %v7053
  %v7055 = vpop.f32.mrf.mxu0
  %v7056 = vadd.f32 %v7028, %v7055
  %7057 = vmatmul.bf16.gmra.mxu0 %v2184
  %v7058 = vpop.f32.mrf.mxu0
  %v7059 = vadd.f32 %v7031, %v7058
  %v7060 = vpop.f32.mrf.mxu0
  %7061 = vdwg.mxu0
  %7062 = vmatpush.bf16.msra.mxu0 %v4945
  %7063 = vmatpush.bf16.msra.mxu0 %v4944
  %7064 = vmatpush.bf16.msra.mxu0 %v4943
  %7065 = vmatpush.bf16.msra.mxu0 %v4942
  %7066 = vmatpush.bf16.msra.mxu0 %v4941
  %7067 = vmatpush.bf16.msra.mxu0 %v4940
  %7068 = vmatpush.bf16.msra.mxu0 %v4939
  %7069 = vmatpush.bf16.msra.mxu0 %v4938
  %7070 = vmatmul.bf16.gmra.mxu0 %v1993
  %v7071 = vpop.f32.mrf.mxu0
  %v7072 = vadd.f32 %v7044, %v7071
  %v7073 = vpop.f32.mrf.mxu0
  %v7074 = vadd.f32 %v7046, %v7073
  %7075 = vmatmul.bf16.gmra.mxu0 %v2057
  %v7076 = vpop.f32.mrf.mxu0
  %v7077 = vadd.f32 %v7049, %v7076
  %v7078 = vpop.f32.mrf.mxu0
  %v7079 = vadd.f32 %v7051, %v7078
  %7080 = vmatmul.bf16.gmra.mxu0 %v2121
  %v7081 = vpop.f32.mrf.mxu0
  %v7082 = vadd.f32 %v7054, %v7081
  %v7083 = vpop.f32.mrf.mxu0
  %v7084 = vadd.f32 %v7056, %v7083
  %7085 = vmatmul.bf16.gmra.mxu0 %v2185
  %v7086 = vpop.f32.mrf.mxu0
  %v7087 = vadd.f32 %v7059, %v7086
  %v7088 = vpop.f32.mrf.mxu0
  %7089 = vdwg.mxu0
  %7090 = vmatpush.bf16.msra.mxu0 %v4953
  %7091 = vmatpush.bf16.msra.mxu0 %v4952
  %7092 = vmatpush.bf16.msra.mxu0 %v4951
  %7093 = vmatpush.bf16.msra.mxu0 %v4950
  %7094 = vmatpush.bf16.msra.mxu0 %v4949
  %7095 = vmatpush.bf16.msra.mxu0 %v4948
  %7096 = vmatpush.bf16.msra.mxu0 %v4947
  %7097 = vmatpush.bf16.msra.mxu0 %v4946
  %7098 = vmatmul.bf16.gmra.mxu0 %v1994
  %v7099 = vpop.f32.mrf.mxu0
  %v7100 = vadd.f32 %v7072, %v7099
  %v7101 = vpop.f32.mrf.mxu0
  %v7102 = vadd.f32 %v7074, %v7101
  %7103 = vmatmul.bf16.gmra.mxu0 %v2058
  %v7104 = vpop.f32.mrf.mxu0
  %v7105 = vadd.f32 %v7077, %v7104
  %v7106 = vpop.f32.mrf.mxu0
  %v7107 = vadd.f32 %v7079, %v7106
  %7108 = vmatmul.bf16.gmra.mxu0 %v2122
  %v7109 = vpop.f32.mrf.mxu0
  %v7110 = vadd.f32 %v7082, %v7109
  %v7111 = vpop.f32.mrf.mxu0
  %v7112 = vadd.f32 %v7084, %v7111
  %7113 = vmatmul.bf16.gmra.mxu0 %v2186
  %v7114 = vpop.f32.mrf.mxu0
  %v7115 = vadd.f32 %v7087, %v7114
  %v7116 = vpop.f32.mrf.mxu0
  %7117 = vdwg.mxu0
  %7118 = vmatpush.bf16.msra.mxu0 %v4961
  %7119 = vmatpush.bf16.msra.mxu0 %v4960
  %7120 = vmatpush.bf16.msra.mxu0 %v4959
  %7121 = vmatpush.bf16.msra.mxu0 %v4958
  %7122 = vmatpush.bf16.msra.mxu0 %v4957
  %7123 = vmatpush.bf16.msra.mxu0 %v4956
  %7124 = vmatpush.bf16.msra.mxu0 %v4955
  %7125 = vmatpush.bf16.msra.mxu0 %v4954
  %7126 = vmatmul.bf16.gmra.mxu0 %v1995
  %v7127 = vpop.f32.mrf.mxu0
  %v7128 = vadd.f32 %v7100, %v7127
  %v7129 = vpop.f32.mrf.mxu0
  %v7130 = vadd.f32 %v7102, %v7129
  %7131 = vmatmul.bf16.gmra.mxu0 %v2059
  %v7132 = vpop.f32.mrf.mxu0
  %v7133 = vadd.f32 %v7105, %v7132
  %v7134 = vpop.f32.mrf.mxu0
  %v7135 = vadd.f32 %v7107, %v7134
  %7136 = vmatmul.bf16.gmra.mxu0 %v2123
  %v7137 = vpop.f32.mrf.mxu0
  %v7138 = vadd.f32 %v7110, %v7137
  %v7139 = vpop.f32.mrf.mxu0
  %v7140 = vadd.f32 %v7112, %v7139
  %7141 = vmatmul.bf16.gmra.mxu0 %v2187
  %v7142 = vpop.f32.mrf.mxu0
  %v7143 = vadd.f32 %v7115, %v7142
  %v7144 = vpop.f32.mrf.mxu0
  %7145 = vdwg.mxu0
  %7146 = vmatpush.bf16.msra.mxu0 %v4969
  %7147 = vmatpush.bf16.msra.mxu0 %v4968
  %7148 = vmatpush.bf16.msra.mxu0 %v4967
  %7149 = vmatpush.bf16.msra.mxu0 %v4966
  %7150 = vmatpush.bf16.msra.mxu0 %v4965
  %7151 = vmatpush.bf16.msra.mxu0 %v4964
  %7152 = vmatpush.bf16.msra.mxu0 %v4963
  %7153 = vmatpush.bf16.msra.mxu0 %v4962
  %7154 = vmatmul.bf16.gmra.mxu0 %v1996
  %v7155 = vpop.f32.mrf.mxu0
  %v7156 = vadd.f32 %v7128, %v7155
  %v7157 = vpop.f32.mrf.mxu0
  %v7158 = vadd.f32 %v7130, %v7157
  %7159 = vmatmul.bf16.gmra.mxu0 %v2060
  %v7160 = vpop.f32.mrf.mxu0
  %v7161 = vadd.f32 %v7133, %v7160
  %v7162 = vpop.f32.mrf.mxu0
  %v7163 = vadd.f32 %v7135, %v7162
  %7164 = vmatmul.bf16.gmra.mxu0 %v2124
  %v7165 = vpop.f32.mrf.mxu0
  %v7166 = vadd.f32 %v7138, %v7165
  %v7167 = vpop.f32.mrf.mxu0
  %v7168 = vadd.f32 %v7140, %v7167
  %7169 = vmatmul.bf16.gmra.mxu0 %v2188
  %v7170 = vpop.f32.mrf.mxu0
  %v7171 = vadd.f32 %v7143, %v7170
  %v7172 = vpop.f32.mrf.mxu0
  %7173 = vdwg.mxu0
  %7174 = vmatpush.bf16.msra.mxu0 %v4977
  %7175 = vmatpush.bf16.msra.mxu0 %v4976
  %7176 = vmatpush.bf16.msra.mxu0 %v4975
  %7177 = vmatpush.bf16.msra.mxu0 %v4974
  %7178 = vmatpush.bf16.msra.mxu0 %v4973
  %7179 = vmatpush.bf16.msra.mxu0 %v4972
  %7180 = vmatpush.bf16.msra.mxu0 %v4971
  %7181 = vmatpush.bf16.msra.mxu0 %v4970
  %7182 = vmatmul.bf16.gmra.mxu0 %v1997
  %v7183 = vpop.f32.mrf.mxu0
  %v7184 = vadd.f32 %v7156, %v7183
  %v7185 = vpop.f32.mrf.mxu0
  %v7186 = vadd.f32 %v7158, %v7185
  %7187 = vmatmul.bf16.gmra.mxu0 %v2061
  %v7188 = vpop.f32.mrf.mxu0
  %v7189 = vadd.f32 %v7161, %v7188
  %v7190 = vpop.f32.mrf.mxu0
  %v7191 = vadd.f32 %v7163, %v7190
  %7192 = vmatmul.bf16.gmra.mxu0 %v2125
  %v7193 = vpop.f32.mrf.mxu0
  %v7194 = vadd.f32 %v7166, %v7193
  %v7195 = vpop.f32.mrf.mxu0
  %v7196 = vadd.f32 %v7168, %v7195
  %7197 = vmatmul.bf16.gmra.mxu0 %v2189
  %v7198 = vpop.f32.mrf.mxu0
  %v7199 = vadd.f32 %v7171, %v7198
  %v7200 = vpop.f32.mrf.mxu0
  %7201 = vdwg.mxu0
  %7202 = vmatpush.bf16.msra.mxu0 %v4985
  %7203 = vmatpush.bf16.msra.mxu0 %v4984
  %7204 = vmatpush.bf16.msra.mxu0 %v4983
  %7205 = vmatpush.bf16.msra.mxu0 %v4982
  %7206 = vmatpush.bf16.msra.mxu0 %v4981
  %7207 = vmatpush.bf16.msra.mxu0 %v4980
  %7208 = vmatpush.bf16.msra.mxu0 %v4979
  %7209 = vmatpush.bf16.msra.mxu0 %v4978
  %7210 = vmatmul.bf16.gmra.mxu0 %v1998
  %v7211 = vpop.f32.mrf.mxu0
  %v7212 = vadd.f32 %v7184, %v7211
  %v7213 = vpop.f32.mrf.mxu0
  %v7214 = vadd.f32 %v7186, %v7213
  %7215 = vmatmul.bf16.gmra.mxu0 %v2062
  %v7216 = vpop.f32.mrf.mxu0
  %v7217 = vadd.f32 %v7189, %v7216
  %v7218 = vpop.f32.mrf.mxu0
  %v7219 = vadd.f32 %v7191, %v7218
  %7220 = vmatmul.bf16.gmra.mxu0 %v2126
  %v7221 = vpop.f32.mrf.mxu0
  %v7222 = vadd.f32 %v7194, %v7221
  %v7223 = vpop.f32.mrf.mxu0
  %v7224 = vadd.f32 %v7196, %v7223
  %7225 = vmatmul.bf16.gmra.mxu0 %v2190
  %v7226 = vpop.f32.mrf.mxu0
  %v7227 = vadd.f32 %v7199, %v7226
  %v7228 = vpop.f32.mrf.mxu0
  %7229 = vdwg.mxu0
  %7230 = vmatpush.bf16.msra.mxu0 %v4993
  %7231 = vmatpush.bf16.msra.mxu0 %v4992
  %7232 = vmatpush.bf16.msra.mxu0 %v4991
  %7233 = vmatpush.bf16.msra.mxu0 %v4990
  %7234 = vmatpush.bf16.msra.mxu0 %v4989
  %7235 = vmatpush.bf16.msra.mxu0 %v4988
  %7236 = vmatpush.bf16.msra.mxu0 %v4987
  %7237 = vmatpush.bf16.msra.mxu0 %v4986
  %7238 = vmatmul.bf16.gmra.mxu0 %v1999
  %v7239 = vpop.f32.mrf.mxu0
  %v7240 = vadd.f32 %v7212, %v7239
  %v7241 = vpop.f32.mrf.mxu0
  %v7242 = vadd.f32 %v7214, %v7241
  %7243 = vmatmul.bf16.gmra.mxu0 %v2063
  %v7244 = vpop.f32.mrf.mxu0
  %v7245 = vadd.f32 %v7217, %v7244
  %v7246 = vpop.f32.mrf.mxu0
  %v7247 = vadd.f32 %v7219, %v7246
  %7248 = vmatmul.bf16.gmra.mxu0 %v2127
  %v7249 = vpop.f32.mrf.mxu0
  %v7250 = vadd.f32 %v7222, %v7249
  %v7251 = vpop.f32.mrf.mxu0
  %v7252 = vadd.f32 %v7224, %v7251
  %7253 = vmatmul.bf16.gmra.mxu0 %v2191
  %v7254 = vpop.f32.mrf.mxu0
  %v7255 = vadd.f32 %v7227, %v7254
  %v7256 = vpop.f32.mrf.mxu0
  %7257 = vdwg.mxu0
  %7258 = vmatpush.bf16.msra.mxu0 %v5001
  %7259 = vmatpush.bf16.msra.mxu0 %v5000
  %7260 = vmatpush.bf16.msra.mxu0 %v4999
  %7261 = vmatpush.bf16.msra.mxu0 %v4998
  %7262 = vmatpush.bf16.msra.mxu0 %v4997
  %7263 = vmatpush.bf16.msra.mxu0 %v4996
  %7264 = vmatpush.bf16.msra.mxu0 %v4995
  %7265 = vmatpush.bf16.msra.mxu0 %v4994
  %7266 = vmatmul.bf16.gmra.mxu0 %v2000
  %v7267 = vpop.f32.mrf.mxu0
  %v7268 = vadd.f32 %v7240, %v7267
  %v7269 = vpop.f32.mrf.mxu0
  %v7270 = vadd.f32 %v7242, %v7269
  %7271 = vmatmul.bf16.gmra.mxu0 %v2064
  %v7272 = vpop.f32.mrf.mxu0
  %v7273 = vadd.f32 %v7245, %v7272
  %v7274 = vpop.f32.mrf.mxu0
  %v7275 = vadd.f32 %v7247, %v7274
  %7276 = vmatmul.bf16.gmra.mxu0 %v2128
  %v7277 = vpop.f32.mrf.mxu0
  %v7278 = vadd.f32 %v7250, %v7277
  %v7279 = vpop.f32.mrf.mxu0
  %v7280 = vadd.f32 %v7252, %v7279
  %7281 = vmatmul.bf16.gmra.mxu0 %v2192
  %v7282 = vpop.f32.mrf.mxu0
  %v7283 = vadd.f32 %v7255, %v7282
  %v7284 = vpop.f32.mrf.mxu0
  %7285 = vdwg.mxu0
  %7286 = vmatpush.bf16.msra.mxu0 %v5009
  %7287 = vmatpush.bf16.msra.mxu0 %v5008
  %7288 = vmatpush.bf16.msra.mxu0 %v5007
  %7289 = vmatpush.bf16.msra.mxu0 %v5006
  %7290 = vmatpush.bf16.msra.mxu0 %v5005
  %7291 = vmatpush.bf16.msra.mxu0 %v5004
  %7292 = vmatpush.bf16.msra.mxu0 %v5003
  %7293 = vmatpush.bf16.msra.mxu0 %v5002
  %7294 = vmatmul.bf16.gmra.mxu0 %v2001
  %v7295 = vpop.f32.mrf.mxu0
  %v7296 = vadd.f32 %v7268, %v7295
  %v7297 = vpop.f32.mrf.mxu0
  %v7298 = vadd.f32 %v7270, %v7297
  %7299 = vmatmul.bf16.gmra.mxu0 %v2065
  %v7300 = vpop.f32.mrf.mxu0
  %v7301 = vadd.f32 %v7273, %v7300
  %v7302 = vpop.f32.mrf.mxu0
  %v7303 = vadd.f32 %v7275, %v7302
  %7304 = vmatmul.bf16.gmra.mxu0 %v2129
  %v7305 = vpop.f32.mrf.mxu0
  %v7306 = vadd.f32 %v7278, %v7305
  %v7307 = vpop.f32.mrf.mxu0
  %v7308 = vadd.f32 %v7280, %v7307
  %7309 = vmatmul.bf16.gmra.mxu0 %v2193
  %v7310 = vpop.f32.mrf.mxu0
  %v7311 = vadd.f32 %v7283, %v7310
  %v7312 = vpop.f32.mrf.mxu0
  %7313 = vdwg.mxu0
  %v7314 = vmax.f32 %v7296, 0.0
  %v7315 = vmax.f32 %v7298, 0.0
  %v7316 = vmax.f32 %v7301, 0.0
  %v7317 = vmax.f32 %v7303, 0.0
  %v7318 = vmax.f32 %v7306, 0.0
  %v7319 = vmax.f32 %v7308, 0.0
  %v7320 = vmax.f32 %v7311, 0.0
  %v7321 = vpack.c.bf16 %v7314, %v7314
  %v7322 = vpack.c.bf16 %v7315, %v7315
  %v7323 = vpack.c.bf16 %v7316, %v7316
  %v7324 = vpack.c.bf16 %v7317, %v7317
  %v7325 = vpack.c.bf16 %v7318, %v7318
  %v7326 = vpack.c.bf16 %v7319, %v7319
  %v7327 = vpack.c.bf16 %v7320, %v7320
  %7328 = vst [vmem:[%s3] sm:$0xf] %v7321
  %7329 = vst [vmem:[%s3 + $0x4] sm:$0xf] %v7322
  %7330 = vst [vmem:[%s3 + $0x8] sm:$0xf] %v7323
  %7331 = vst [vmem:[%s3 + $0xc] sm:$0xf] %v7324
  %7332 = vst [vmem:[%s3 + $0x10] sm:$0xf] %v7325
  %7333 = vst [vmem:[%s3 + $0x14] sm:$0xf] %v7326
  %7334 = vst [vmem:[%s3 + $0x18] sm:$0x1] %v7327
  // Predicated region
  $region14: #{fcn_forward.4} parent=0 // pred_check
    _
  $region15: #{fcn_forward.4} parent=0 // pred_check_branch
    %7336 = sbr.rel (0) target = $region17
  $region16: #{fcn_forward.4} parent=0 // pred_region
    _
  $region17: #{fcn_forward.4} parent=0 // pred_fallthru
    _
  // Predicated region
  $region18: #{fcn_forward.4} parent=0 // pred_check
    _
  $region19: #{fcn_forward.4} parent=0 // pred_check_branch
    %7338 = sbr.rel (0) target = $region21
  $region20: #{fcn_forward.4} parent=0 // pred_region
    _
  $region21: #{fcn_forward.4} parent=0 // pred_fallthru
    _

// kernel: fcn_forward.5
$region0: #{fcn_forward.5}
  #allocation0 [shape = 'u32[]', space=smem, size = 0x4, offset = 0x4, fixed_abs, tag = 'smem constant byte address 0x4 - core index']
  #allocation1 [shape = 'u32[72,128]{1,0:T(1,128)}', space=vmem, size = 0x9000, scoped, tag = 'internal scratch']
  %s0 = inlined_call_operand.vmem [shape: bf16[18,3200], index: 0, kind: input, shape index: {}]
  %s1 = inlined_call_operand.vmem [shape: bf16[3200,256], index: 1, kind: input, shape index: {}]
  %s2 = inlined_call_operand.vmem [shape: f32[1,256], index: 2, kind: input, shape index: {}]
  %s3 = inlined_call_operand.vmem [shape: bf16[256,640], index: 3, kind: input, shape index: {}]
  %s4 = inlined_call_operand.vmem [shape: bf16[640,128], index: 4, kind: input, shape index: {}]
  %s5 = inlined_call_operand.vmem [shape: f32[18,128], index: 5, kind: output, shape index: {}]
  %s6 = sld [smem:[#allocation0]]
  $region30: #{fcn_forward.5} parent=0
    _
  %s8 = ssub.s32 1, %s6
  %s9 = scalar_select 0, %s8, %s6
  // Predicated region
  $region2: #{fcn_forward.5} parent=0 // pred_check
    _
  $region3: #{fcn_forward.5} parent=0 // pred_check_branch
    %11 = sbr.rel (0) target = $region5
  $region4: #{fcn_forward.5} parent=0 // pred_region
    _
  $region5: #{fcn_forward.5} parent=0 // pred_fallthru
    _
  // Predicated region
  $region6: #{fcn_forward.5} parent=0 // pred_check
    _
  $region7: #{fcn_forward.5} parent=0 // pred_check_branch
    %13 = sbr.rel (0) target = $region9
  $region8: #{fcn_forward.5} parent=0 // pred_region
    _
  $region9: #{fcn_forward.5} parent=0 // pred_fallthru
    _
  // Predicated region
  $region10: #{fcn_forward.5} parent=0 // pred_check
    _
  $region11: #{fcn_forward.5} parent=0 // pred_check_branch
    %15 = sbr.rel (0) target = $region13
  $region12: #{fcn_forward.5} parent=0 // pred_region
    _
  $region13: #{fcn_forward.5} parent=0 // pred_fallthru
    _
  // Predicated region
  $region14: #{fcn_forward.5} parent=0 // pred_check
    _
  $region15: #{fcn_forward.5} parent=0 // pred_check_branch
    %17 = sbr.rel (0) target = $region17
  $region16: #{fcn_forward.5} parent=0 // pred_region
    _
  $region17: #{fcn_forward.5} parent=0 // pred_fallthru
    _
  // Predicated region
  $region18: #{fcn_forward.5} parent=0 // pred_check
    _
  $region19: #{fcn_forward.5} parent=0 // pred_check_branch
    %19 = sbr.rel (0) target = $region21
  $region20: #{fcn_forward.5} parent=0 // pred_region
    _
  $region21: #{fcn_forward.5} parent=0 // pred_fallthru
    _
  %v20 = vld [vmem:[%s0] sm:$0xff]
  %v21 = vld [vmem:[%s0 + $0x8] sm:$0xff]
  %v22 = vld [vmem:[%s0 + $0x10] sm:$0xff]
  %v23 = vld [vmem:[%s0 + $0x18] sm:$0xff]
  %v24 = vld [vmem:[%s0 + $0x20] sm:$0xff]
  %v25 = vld [vmem:[%s0 + $0x28] sm:$0xff]
  %v26 = vld [vmem:[%s0 + $0x30] sm:$0xff]
  %v27 = vld [vmem:[%s0 + $0x38] sm:$0xff]
  %v28 = vld [vmem:[%s0 + $0x40] sm:$0xff]
  %v29 = vld [vmem:[%s0 + $0x48] sm:$0xff]
  %v30 = vld [vmem:[%s0 + $0x50] sm:$0xff]
  %v31 = vld [vmem:[%s0 + $0x58] sm:$0xff]
  %v32 = vld [vmem:[%s0 + $0x60] sm:$0xf]
  %v33 = vld [vmem:[%s0 + $0x64] sm:$0xff]
  %v34 = vld [vmem:[%s0 + $0x6c] sm:$0xff]
  %v35 = vld [vmem:[%s0 + $0x74] sm:$0xff]
  %v36 = vld [vmem:[%s0 + $0x7c] sm:$0xff]
  %v37 = vld [vmem:[%s0 + $0x84] sm:$0xff]
  %v38 = vld [vmem:[%s0 + $0x8c] sm:$0xff]
  %v39 = vld [vmem:[%s0 + $0x94] sm:$0xff]
  %v40 = vld [vmem:[%s0 + $0x9c] sm:$0xff]
  %v41 = vld [vmem:[%s0 + $0xa4] sm:$0xff]
  %v42 = vld [vmem:[%s0 + $0xac] sm:$0xff]
  %v43 = vld [vmem:[%s0 + $0xb4] sm:$0xff]
  %v44 = vld [vmem:[%s0 + $0xbc] sm:$0xff]
  %v45 = vld [vmem:[%s0 + $0xc4] sm:$0xf]
  %v46 = vld [vmem:[%s0 + $0xc8] sm:$0x11]
  %v47 = vld [vmem:[%s0 + $0xd0] sm:$0x11]
  %v48 = vld [vmem:[%s0 + $0xd8] sm:$0x11]
  %v49 = vld [vmem:[%s0 + $0xe0] sm:$0x11]
  %v50 = vld [vmem:[%s0 + $0xe8] sm:$0x11]
  %v51 = vld [vmem:[%s0 + $0xf0] sm:$0x11]
  %v52 = vld [vmem:[%s0 + $0xf8] sm:$0x11]
  %v53 = vld [vmem:[%s0 + $0x100] sm:$0x11]
  %v54 = vld [vmem:[%s0 + $0x108] sm:$0x11]
  %v55 = vld [vmem:[%s0 + $0x110] sm:$0x11]
  %v56 = vld [vmem:[%s0 + $0x118] sm:$0x11]
  %v57 = vld [vmem:[%s0 + $0x120] sm:$0x11]
  %v58 = vld [vmem:[%s0 + $0x128] sm:$0x1]
  %v59 = vld [vmem:[%s1] sm:$0xff]
  %v60 = vld [vmem:[%s1 + $0x8] sm:$0xff]
  %v61 = vld [vmem:[%s1 + $0x10] sm:$0xff]
  %v62 = vld [vmem:[%s1 + $0x18] sm:$0xff]
  %v63 = vld [vmem:[%s1 + $0x20] sm:$0xff]
  %v64 = vld [vmem:[%s1 + $0x28] sm:$0xff]
  %v65 = vld [vmem:[%s1 + $0x30] sm:$0xff]
  %v66 = vld [vmem:[%s1 + $0x38] sm:$0xff]
  %v67 = vld [vmem:[%s1 + $0x40] sm:$0xff]
  %v68 = vld [vmem:[%s1 + $0x48] sm:$0xff]
  %v69 = vld [vmem:[%s1 + $0x50] sm:$0xff]
  %v70 = vld [vmem:[%s1 + $0x58] sm:$0xff]
  %v71 = vld [vmem:[%s1 + $0x60] sm:$0xff]
  %v72 = vld [vmem:[%s1 + $0x68] sm:$0xff]
  %v73 = vld [vmem:[%s1 + $0x70] sm:$0xff]
  %v74 = vld [vmem:[%s1 + $0x78] sm:$0xff]
  %v75 = vld [vmem:[%s1 + $0x80] sm:$0xff]
  %v76 = vld [vmem:[%s1 + $0x88] sm:$0xff]
  %v77 = vld [vmem:[%s1 + $0x90] sm:$0xff]
  %v78 = vld [vmem:[%s1 + $0x98] sm:$0xff]
  %v79 = vld [vmem:[%s1 + $0xa0] sm:$0xff]
  %v80 = vld [vmem:[%s1 + $0xa8] sm:$0xff]
  %v81 = vld [vmem:[%s1 + $0xb0] sm:$0xff]
  %v82 = vld [vmem:[%s1 + $0xb8] sm:$0xff]
  %v83 = vld [vmem:[%s1 + $0xc0] sm:$0xff]
  %v84 = vld [vmem:[%s1 + $0xc8] sm:$0xff]
  %v85 = vld [vmem:[%s1 + $0xd0] sm:$0xff]
  %v86 = vld [vmem:[%s1 + $0xd8] sm:$0xff]
  %v87 = vld [vmem:[%s1 + $0xe0] sm:$0xff]
  %v88 = vld [vmem:[%s1 + $0xe8] sm:$0xff]
  %v89 = vld [vmem:[%s1 + $0xf0] sm:$0xff]
  %v90 = vld [vmem:[%s1 + $0xf8] sm:$0xff]
  %v91 = vld [vmem:[%s1 + $0x100] sm:$0xff]
  %v92 = vld [vmem:[%s1 + $0x108] sm:$0xff]
  %v93 = vld [vmem:[%s1 + $0x110] sm:$0xff]
  %v94 = vld [vmem:[%s1 + $0x118] sm:$0xff]
  %v95 = vld [vmem:[%s1 + $0x120] sm:$0xff]
  %v96 = vld [vmem:[%s1 + $0x128] sm:$0xff]
  %v97 = vld [vmem:[%s1 + $0x130] sm:$0xff]
  %v98 = vld [vmem:[%s1 + $0x138] sm:$0xff]
  %v99 = vld [vmem:[%s1 + $0x140] sm:$0xff]
  %v100 = vld [vmem:[%s1 + $0x148] sm:$0xff]
  %v101 = vld [vmem:[%s1 + $0x150] sm:$0xff]
  %v102 = vld [vmem:[%s1 + $0x158] sm:$0xff]
  %v103 = vld [vmem:[%s1 + $0x160] sm:$0xff]
  %v104 = vld [vmem:[%s1 + $0x168] sm:$0xff]
  %v105 = vld [vmem:[%s1 + $0x170] sm:$0xff]
  %v106 = vld [vmem:[%s1 + $0x178] sm:$0xff]
  %v107 = vld [vmem:[%s1 + $0x180] sm:$0xff]
  %v108 = vld [vmem:[%s1 + $0x188] sm:$0xff]
  %v109 = vld [vmem:[%s1 + $0x190] sm:$0xff]
  %v110 = vld [vmem:[%s1 + $0x198] sm:$0xff]
  %v111 = vld [vmem:[%s1 + $0x1a0] sm:$0xff]
  %v112 = vld [vmem:[%s1 + $0x1a8] sm:$0xff]
  %v113 = vld [vmem:[%s1 + $0x1b0] sm:$0xff]
  %v114 = vld [vmem:[%s1 + $0x1b8] sm:$0xff]
  %v115 = vld [vmem:[%s1 + $0x1c0] sm:$0xff]
  %v116 = vld [vmem:[%s1 + $0x1c8] sm:$0xff]
  %v117 = vld [vmem:[%s1 + $0x1d0] sm:$0xff]
  %v118 = vld [vmem:[%s1 + $0x1d8] sm:$0xff]
  %v119 = vld [vmem:[%s1 + $0x1e0] sm:$0xff]
  %v120 = vld [vmem:[%s1 + $0x1e8] sm:$0xff]
  %v121 = vld [vmem:[%s1 + $0x1f0] sm:$0xff]
  %v122 = vld [vmem:[%s1 + $0x1f8] sm:$0xff]
  %v123 = vld [vmem:[%s1 + $0x200] sm:$0xff]
  %v124 = vld [vmem:[%s1 + $0x208] sm:$0xff]
  %v125 = vld [vmem:[%s1 + $0x210] sm:$0xff]
  %v126 = vld [vmem:[%s1 + $0x218] sm:$0xff]
  %v127 = vld [vmem:[%s1 + $0x220] sm:$0xff]
  %v128 = vld [vmem:[%s1 + $0x228] sm:$0xff]
  %v129 = vld [vmem:[%s1 + $0x230] sm:$0xff]
  %v130 = vld [vmem:[%s1 + $0x238] sm:$0xff]
  %v131 = vld [vmem:[%s1 + $0x240] sm:$0xff]
  %v132 = vld [vmem:[%s1 + $0x248] sm:$0xff]
  %v133 = vld [vmem:[%s1 + $0x250] sm:$0xff]
  %v134 = vld [vmem:[%s1 + $0x258] sm:$0xff]
  %v135 = vld [vmem:[%s1 + $0x260] sm:$0xff]
  %v136 = vld [vmem:[%s1 + $0x268] sm:$0xff]
  %v137 = vld [vmem:[%s1 + $0x270] sm:$0xff]
  %v138 = vld [vmem:[%s1 + $0x278] sm:$0xff]
  %v139 = vld [vmem:[%s1 + $0x280] sm:$0xff]
  %v140 = vld [vmem:[%s1 + $0x288] sm:$0xff]
  %v141 = vld [vmem:[%s1 + $0x290] sm:$0xff]
  %v142 = vld [vmem:[%s1 + $0x298] sm:$0xff]
  %v143 = vld [vmem:[%s1 + $0x2a0] sm:$0xff]
  %v144 = vld [vmem:[%s1 + $0x2a8] sm:$0xff]
  %v145 = vld [vmem:[%s1 + $0x2b0] sm:$0xff]
  %v146 = vld [vmem:[%s1 + $0x2b8] sm:$0xff]
  %v147 = vld [vmem:[%s1 + $0x2c0] sm:$0xff]
  %v148 = vld [vmem:[%s1 + $0x2c8] sm:$0xff]
  %v149 = vld [vmem:[%s1 + $0x2d0] sm:$0xff]
  %v150 = vld [vmem:[%s1 + $0x2d8] sm:$0xff]
  %v151 = vld [vmem:[%s1 + $0x2e0] sm:$0xff]
  %v152 = vld [vmem:[%s1 + $0x2e8] sm:$0xff]
  %v153 = vld [vmem:[%s1 + $0x2f0] sm:$0xff]
  %v154 = vld [vmem:[%s1 + $0x2f8] sm:$0xff]
  %v155 = vld [vmem:[%s1 + $0x300] sm:$0xff]
  %v156 = vld [vmem:[%s1 + $0x308] sm:$0xff]
  %v157 = vld [vmem:[%s1 + $0x310] sm:$0xff]
  %v158 = vld [vmem:[%s1 + $0x318] sm:$0xff]
  %v159 = vld [vmem:[%s1 + $0x320] sm:$0xff]
  %v160 = vld [vmem:[%s1 + $0x328] sm:$0xff]
  %v161 = vld [vmem:[%s1 + $0x330] sm:$0xff]
  %v162 = vld [vmem:[%s1 + $0x338] sm:$0xff]
  %v163 = vld [vmem:[%s1 + $0x340] sm:$0xff]
  %v164 = vld [vmem:[%s1 + $0x348] sm:$0xff]
  %v165 = vld [vmem:[%s1 + $0x350] sm:$0xff]
  %v166 = vld [vmem:[%s1 + $0x358] sm:$0xff]
  %v167 = vld [vmem:[%s1 + $0x360] sm:$0xff]
  %v168 = vld [vmem:[%s1 + $0x368] sm:$0xff]
  %v169 = vld [vmem:[%s1 + $0x370] sm:$0xff]
  %v170 = vld [vmem:[%s1 + $0x378] sm:$0xff]
  %v171 = vld [vmem:[%s1 + $0x380] sm:$0xff]
  %v172 = vld [vmem:[%s1 + $0x388] sm:$0xff]
  %v173 = vld [vmem:[%s1 + $0x390] sm:$0xff]
  %v174 = vld [vmem:[%s1 + $0x398] sm:$0xff]
  %v175 = vld [vmem:[%s1 + $0x3a0] sm:$0xff]
  %v176 = vld [vmem:[%s1 + $0x3a8] sm:$0xff]
  %v177 = vld [vmem:[%s1 + $0x3b0] sm:$0xff]
  %v178 = vld [vmem:[%s1 + $0x3b8] sm:$0xff]
  %v179 = vld [vmem:[%s1 + $0x3c0] sm:$0xff]
  %v180 = vld [vmem:[%s1 + $0x3c8] sm:$0xff]
  %v181 = vld [vmem:[%s1 + $0x3d0] sm:$0xff]
  %v182 = vld [vmem:[%s1 + $0x3d8] sm:$0xff]
  %v183 = vld [vmem:[%s1 + $0x3e0] sm:$0xff]
  %v184 = vld [vmem:[%s1 + $0x3e8] sm:$0xff]
  %v185 = vld [vmem:[%s1 + $0x3f0] sm:$0xff]
  %v186 = vld [vmem:[%s1 + $0x3f8] sm:$0xff]
  %v187 = vld [vmem:[%s1 + $0x400] sm:$0xff]
  %v188 = vld [vmem:[%s1 + $0x408] sm:$0xff]
  %v189 = vld [vmem:[%s1 + $0x410] sm:$0xff]
  %v190 = vld [vmem:[%s1 + $0x418] sm:$0xff]
  %v191 = vld [vmem:[%s1 + $0x420] sm:$0xff]
  %v192 = vld [vmem:[%s1 + $0x428] sm:$0xff]
  %v193 = vld [vmem:[%s1 + $0x430] sm:$0xff]
  %v194 = vld [vmem:[%s1 + $0x438] sm:$0xff]
  %v195 = vld [vmem:[%s1 + $0x440] sm:$0xff]
  %v196 = vld [vmem:[%s1 + $0x448] sm:$0xff]
  %v197 = vld [vmem:[%s1 + $0x450] sm:$0xff]
  %v198 = vld [vmem:[%s1 + $0x458] sm:$0xff]
  %v199 = vld [vmem:[%s1 + $0x460] sm:$0xff]
  %v200 = vld [vmem:[%s1 + $0x468] sm:$0xff]
  %v201 = vld [vmem:[%s1 + $0x470] sm:$0xff]
  %v202 = vld [vmem:[%s1 + $0x478] sm:$0xff]
  %v203 = vld [vmem:[%s1 + $0x480] sm:$0xff]
  %v204 = vld [vmem:[%s1 + $0x488] sm:$0xff]
  %v205 = vld [vmem:[%s1 + $0x490] sm:$0xff]
  %v206 = vld [vmem:[%s1 + $0x498] sm:$0xff]
  %v207 = vld [vmem:[%s1 + $0x4a0] sm:$0xff]
  %v208 = vld [vmem:[%s1 + $0x4a8] sm:$0xff]
  %v209 = vld [vmem:[%s1 + $0x4b0] sm:$0xff]
  %v210 = vld [vmem:[%s1 + $0x4b8] sm:$0xff]
  %v211 = vld [vmem:[%s1 + $0x4c0] sm:$0xff]
  %v212 = vld [vmem:[%s1 + $0x4c8] sm:$0xff]
  %v213 = vld [vmem:[%s1 + $0x4d0] sm:$0xff]
  %v214 = vld [vmem:[%s1 + $0x4d8] sm:$0xff]
  %v215 = vld [vmem:[%s1 + $0x4e0] sm:$0xff]
  %v216 = vld [vmem:[%s1 + $0x4e8] sm:$0xff]
  %v217 = vld [vmem:[%s1 + $0x4f0] sm:$0xff]
  %v218 = vld [vmem:[%s1 + $0x4f8] sm:$0xff]
  %v219 = vld [vmem:[%s1 + $0x500] sm:$0xff]
  %v220 = vld [vmem:[%s1 + $0x508] sm:$0xff]
  %v221 = vld [vmem:[%s1 + $0x510] sm:$0xff]
  %v222 = vld [vmem:[%s1 + $0x518] sm:$0xff]
  %v223 = vld [vmem:[%s1 + $0x520] sm:$0xff]
  %v224 = vld [vmem:[%s1 + $0x528] sm:$0xff]
  %v225 = vld [vmem:[%s1 + $0x530] sm:$0xff]
  %v226 = vld [vmem:[%s1 + $0x538] sm:$0xff]
  %v227 = vld [vmem:[%s1 + $0x540] sm:$0xff]
  %v228 = vld [vmem:[%s1 + $0x548] sm:$0xff]
  %v229 = vld [vmem:[%s1 + $0x550] sm:$0xff]
  %v230 = vld [vmem:[%s1 + $0x558] sm:$0xff]
  %v231 = vld [vmem:[%s1 + $0x560] sm:$0xff]
  %v232 = vld [vmem:[%s1 + $0x568] sm:$0xff]
  %v233 = vld [vmem:[%s1 + $0x570] sm:$0xff]
  %v234 = vld [vmem:[%s1 + $0x578] sm:$0xff]
  %v235 = vld [vmem:[%s1 + $0x580] sm:$0xff]
  %v236 = vld [vmem:[%s1 + $0x588] sm:$0xff]
  %v237 = vld [vmem:[%s1 + $0x590] sm:$0xff]
  %v238 = vld [vmem:[%s1 + $0x598] sm:$0xff]
  %v239 = vld [vmem:[%s1 + $0x5a0] sm:$0xff]
  %v240 = vld [vmem:[%s1 + $0x5a8] sm:$0xff]
  %v241 = vld [vmem:[%s1 + $0x5b0] sm:$0xff]
  %v242 = vld [vmem:[%s1 + $0x5b8] sm:$0xff]
  %v243 = vld [vmem:[%s1 + $0x5c0] sm:$0xff]
  %v244 = vld [vmem:[%s1 + $0x5c8] sm:$0xff]
  %v245 = vld [vmem:[%s1 + $0x5d0] sm:$0xff]
  %v246 = vld [vmem:[%s1 + $0x5d8] sm:$0xff]
  %v247 = vld [vmem:[%s1 + $0x5e0] sm:$0xff]
  %v248 = vld [vmem:[%s1 + $0x5e8] sm:$0xff]
  %v249 = vld [vmem:[%s1 + $0x5f0] sm:$0xff]
  %v250 = vld [vmem:[%s1 + $0x5f8] sm:$0xff]
  %v251 = vld [vmem:[%s1 + $0x600] sm:$0xff]
  %v252 = vld [vmem:[%s1 + $0x608] sm:$0xff]
  %v253 = vld [vmem:[%s1 + $0x610] sm:$0xff]
  %v254 = vld [vmem:[%s1 + $0x618] sm:$0xff]
  %v255 = vld [vmem:[%s1 + $0x620] sm:$0xff]
  %v256 = vld [vmem:[%s1 + $0x628] sm:$0xff]
  %v257 = vld [vmem:[%s1 + $0x630] sm:$0xff]
  %v258 = vld [vmem:[%s1 + $0x638] sm:$0xff]
  %v259 = vld [vmem:[%s1 + $0x640] sm:$0xff]
  %v260 = vld [vmem:[%s1 + $0x648] sm:$0xff]
  %v261 = vld [vmem:[%s1 + $0x650] sm:$0xff]
  %v262 = vld [vmem:[%s1 + $0x658] sm:$0xff]
  %v263 = vld [vmem:[%s1 + $0x660] sm:$0xff]
  %v264 = vld [vmem:[%s1 + $0x668] sm:$0xff]
  %v265 = vld [vmem:[%s1 + $0x670] sm:$0xff]
  %v266 = vld [vmem:[%s1 + $0x678] sm:$0xff]
  %v267 = vld [vmem:[%s1 + $0x680] sm:$0xff]
  %v268 = vld [vmem:[%s1 + $0x688] sm:$0xff]
  %v269 = vld [vmem:[%s1 + $0x690] sm:$0xff]
  %v270 = vld [vmem:[%s1 + $0x698] sm:$0xff]
  %v271 = vld [vmem:[%s1 + $0x6a0] sm:$0xff]
  %v272 = vld [vmem:[%s1 + $0x6a8] sm:$0xff]
  %v273 = vld [vmem:[%s1 + $0x6b0] sm:$0xff]
  %v274 = vld [vmem:[%s1 + $0x6b8] sm:$0xff]
  %v275 = vld [vmem:[%s1 + $0x6c0] sm:$0xff]
  %v276 = vld [vmem:[%s1 + $0x6c8] sm:$0xff]
  %v277 = vld [vmem:[%s1 + $0x6d0] sm:$0xff]
  %v278 = vld [vmem:[%s1 + $0x6d8] sm:$0xff]
  %v279 = vld [vmem:[%s1 + $0x6e0] sm:$0xff]
  %v280 = vld [vmem:[%s1 + $0x6e8] sm:$0xff]
  %v281 = vld [vmem:[%s1 + $0x6f0] sm:$0xff]
  %v282 = vld [vmem:[%s1 + $0x6f8] sm:$0xff]
  %v283 = vld [vmem:[%s1 + $0x700] sm:$0xff]
  %v284 = vld [vmem:[%s1 + $0x708] sm:$0xff]
  %v285 = vld [vmem:[%s1 + $0x710] sm:$0xff]
  %v286 = vld [vmem:[%s1 + $0x718] sm:$0xff]
  %v287 = vld [vmem:[%s1 + $0x720] sm:$0xff]
  %v288 = vld [vmem:[%s1 + $0x728] sm:$0xff]
  %v289 = vld [vmem:[%s1 + $0x730] sm:$0xff]
  %v290 = vld [vmem:[%s1 + $0x738] sm:$0xff]
  %v291 = vld [vmem:[%s1 + $0x740] sm:$0xff]
  %v292 = vld [vmem:[%s1 + $0x748] sm:$0xff]
  %v293 = vld [vmem:[%s1 + $0x750] sm:$0xff]
  %v294 = vld [vmem:[%s1 + $0x758] sm:$0xff]
  %v295 = vld [vmem:[%s1 + $0x760] sm:$0xff]
  %v296 = vld [vmem:[%s1 + $0x768] sm:$0xff]
  %v297 = vld [vmem:[%s1 + $0x770] sm:$0xff]
  %v298 = vld [vmem:[%s1 + $0x778] sm:$0xff]
  %v299 = vld [vmem:[%s1 + $0x780] sm:$0xff]
  %v300 = vld [vmem:[%s1 + $0x788] sm:$0xff]
  %v301 = vld [vmem:[%s1 + $0x790] sm:$0xff]
  %v302 = vld [vmem:[%s1 + $0x798] sm:$0xff]
  %v303 = vld [vmem:[%s1 + $0x7a0] sm:$0xff]
  %v304 = vld [vmem:[%s1 + $0x7a8] sm:$0xff]
  %v305 = vld [vmem:[%s1 + $0x7b0] sm:$0xff]
  %v306 = vld [vmem:[%s1 + $0x7b8] sm:$0xff]
  %v307 = vld [vmem:[%s1 + $0x7c0] sm:$0xff]
  %v308 = vld [vmem:[%s1 + $0x7c8] sm:$0xff]
  %v309 = vld [vmem:[%s1 + $0x7d0] sm:$0xff]
  %v310 = vld [vmem:[%s1 + $0x7d8] sm:$0xff]
  %v311 = vld [vmem:[%s1 + $0x7e0] sm:$0xff]
  %v312 = vld [vmem:[%s1 + $0x7e8] sm:$0xff]
  %v313 = vld [vmem:[%s1 + $0x7f0] sm:$0xff]
  %v314 = vld [vmem:[%s1 + $0x7f8] sm:$0xff]
  %v315 = vld [vmem:[%s1 + $0x800] sm:$0xff]
  %v316 = vld [vmem:[%s1 + $0x808] sm:$0xff]
  %v317 = vld [vmem:[%s1 + $0x810] sm:$0xff]
  %v318 = vld [vmem:[%s1 + $0x818] sm:$0xff]
  %v319 = vld [vmem:[%s1 + $0x820] sm:$0xff]
  %v320 = vld [vmem:[%s1 + $0x828] sm:$0xff]
  %v321 = vld [vmem:[%s1 + $0x830] sm:$0xff]
  %v322 = vld [vmem:[%s1 + $0x838] sm:$0xff]
  %v323 = vld [vmem:[%s1 + $0x840] sm:$0xff]
  %v324 = vld [vmem:[%s1 + $0x848] sm:$0xff]
  %v325 = vld [vmem:[%s1 + $0x850] sm:$0xff]
  %v326 = vld [vmem:[%s1 + $0x858] sm:$0xff]
  %v327 = vld [vmem:[%s1 + $0x860] sm:$0xff]
  %v328 = vld [vmem:[%s1 + $0x868] sm:$0xff]
  %v329 = vld [vmem:[%s1 + $0x870] sm:$0xff]
  %v330 = vld [vmem:[%s1 + $0x878] sm:$0xff]
  %v331 = vld [vmem:[%s1 + $0x880] sm:$0xff]
  %v332 = vld [vmem:[%s1 + $0x888] sm:$0xff]
  %v333 = vld [vmem:[%s1 + $0x890] sm:$0xff]
  %v334 = vld [vmem:[%s1 + $0x898] sm:$0xff]
  %v335 = vld [vmem:[%s1 + $0x8a0] sm:$0xff]
  %v336 = vld [vmem:[%s1 + $0x8a8] sm:$0xff]
  %v337 = vld [vmem:[%s1 + $0x8b0] sm:$0xff]
  %v338 = vld [vmem:[%s1 + $0x8b8] sm:$0xff]
  %v339 = vld [vmem:[%s1 + $0x8c0] sm:$0xff]
  %v340 = vld [vmem:[%s1 + $0x8c8] sm:$0xff]
  %v341 = vld [vmem:[%s1 + $0x8d0] sm:$0xff]
  %v342 = vld [vmem:[%s1 + $0x8d8] sm:$0xff]
  %v343 = vld [vmem:[%s1 + $0x8e0] sm:$0xff]
  %v344 = vld [vmem:[%s1 + $0x8e8] sm:$0xff]
  %v345 = vld [vmem:[%s1 + $0x8f0] sm:$0xff]
  %v346 = vld [vmem:[%s1 + $0x8f8] sm:$0xff]
  %v347 = vld [vmem:[%s1 + $0x900] sm:$0xff]
  %v348 = vld [vmem:[%s1 + $0x908] sm:$0xff]
  %v349 = vld [vmem:[%s1 + $0x910] sm:$0xff]
  %v350 = vld [vmem:[%s1 + $0x918] sm:$0xff]
  %v351 = vld [vmem:[%s1 + $0x920] sm:$0xff]
  %v352 = vld [vmem:[%s1 + $0x928] sm:$0xff]
  %v353 = vld [vmem:[%s1 + $0x930] sm:$0xff]
  %v354 = vld [vmem:[%s1 + $0x938] sm:$0xff]
  %v355 = vld [vmem:[%s1 + $0x940] sm:$0xff]
  %v356 = vld [vmem:[%s1 + $0x948] sm:$0xff]
  %v357 = vld [vmem:[%s1 + $0x950] sm:$0xff]
  %v358 = vld [vmem:[%s1 + $0x958] sm:$0xff]
  %v359 = vld [vmem:[%s1 + $0x960] sm:$0xff]
  %v360 = vld [vmem:[%s1 + $0x968] sm:$0xff]
  %v361 = vld [vmem:[%s1 + $0x970] sm:$0xff]
  %v362 = vld [vmem:[%s1 + $0x978] sm:$0xff]
  %v363 = vld [vmem:[%s1 + $0x980] sm:$0xff]
  %v364 = vld [vmem:[%s1 + $0x988] sm:$0xff]
  %v365 = vld [vmem:[%s1 + $0x990] sm:$0xff]
  %v366 = vld [vmem:[%s1 + $0x998] sm:$0xff]
  %v367 = vld [vmem:[%s1 + $0x9a0] sm:$0xff]
  %v368 = vld [vmem:[%s1 + $0x9a8] sm:$0xff]
  %v369 = vld [vmem:[%s1 + $0x9b0] sm:$0xff]
  %v370 = vld [vmem:[%s1 + $0x9b8] sm:$0xff]
  %v371 = vld [vmem:[%s1 + $0x9c0] sm:$0xff]
  %v372 = vld [vmem:[%s1 + $0x9c8] sm:$0xff]
  %v373 = vld [vmem:[%s1 + $0x9d0] sm:$0xff]
  %v374 = vld [vmem:[%s1 + $0x9d8] sm:$0xff]
  %v375 = vld [vmem:[%s1 + $0x9e0] sm:$0xff]
  %v376 = vld [vmem:[%s1 + $0x9e8] sm:$0xff]
  %v377 = vld [vmem:[%s1 + $0x9f0] sm:$0xff]
  %v378 = vld [vmem:[%s1 + $0x9f8] sm:$0xff]
  %v379 = vld [vmem:[%s1 + $0xa00] sm:$0xff]
  %v380 = vld [vmem:[%s1 + $0xa08] sm:$0xff]
  %v381 = vld [vmem:[%s1 + $0xa10] sm:$0xff]
  %v382 = vld [vmem:[%s1 + $0xa18] sm:$0xff]
  %v383 = vld [vmem:[%s1 + $0xa20] sm:$0xff]
  %v384 = vld [vmem:[%s1 + $0xa28] sm:$0xff]
  %v385 = vld [vmem:[%s1 + $0xa30] sm:$0xff]
  %v386 = vld [vmem:[%s1 + $0xa38] sm:$0xff]
  %v387 = vld [vmem:[%s1 + $0xa40] sm:$0xff]
  %v388 = vld [vmem:[%s1 + $0xa48] sm:$0xff]
  %v389 = vld [vmem:[%s1 + $0xa50] sm:$0xff]
  %v390 = vld [vmem:[%s1 + $0xa58] sm:$0xff]
  %v391 = vld [vmem:[%s1 + $0xa60] sm:$0xff]
  %v392 = vld [vmem:[%s1 + $0xa68] sm:$0xff]
  %v393 = vld [vmem:[%s1 + $0xa70] sm:$0xff]
  %v394 = vld [vmem:[%s1 + $0xa78] sm:$0xff]
  %v395 = vld [vmem:[%s1 + $0xa80] sm:$0xff]
  %v396 = vld [vmem:[%s1 + $0xa88] sm:$0xff]
  %v397 = vld [vmem:[%s1 + $0xa90] sm:$0xff]
  %v398 = vld [vmem:[%s1 + $0xa98] sm:$0xff]
  %v399 = vld [vmem:[%s1 + $0xaa0] sm:$0xff]
  %v400 = vld [vmem:[%s1 + $0xaa8] sm:$0xff]
  %v401 = vld [vmem:[%s1 + $0xab0] sm:$0xff]
  %v402 = vld [vmem:[%s1 + $0xab8] sm:$0xff]
  %v403 = vld [vmem:[%s1 + $0xac0] sm:$0xff]
  %v404 = vld [vmem:[%s1 + $0xac8] sm:$0xff]
  %v405 = vld [vmem:[%s1 + $0xad0] sm:$0xff]
  %v406 = vld [vmem:[%s1 + $0xad8] sm:$0xff]
  %v407 = vld [vmem:[%s1 + $0xae0] sm:$0xff]
  %v408 = vld [vmem:[%s1 + $0xae8] sm:$0xff]
  %v409 = vld [vmem:[%s1 + $0xaf0] sm:$0xff]
  %v410 = vld [vmem:[%s1 + $0xaf8] sm:$0xff]
  %v411 = vld [vmem:[%s1 + $0xb00] sm:$0xff]
  %v412 = vld [vmem:[%s1 + $0xb08] sm:$0xff]
  %v413 = vld [vmem:[%s1 + $0xb10] sm:$0xff]
  %v414 = vld [vmem:[%s1 + $0xb18] sm:$0xff]
  %v415 = vld [vmem:[%s1 + $0xb20] sm:$0xff]
  %v416 = vld [vmem:[%s1 + $0xb28] sm:$0xff]
  %v417 = vld [vmem:[%s1 + $0xb30] sm:$0xff]
  %v418 = vld [vmem:[%s1 + $0xb38] sm:$0xff]
  %v419 = vld [vmem:[%s1 + $0xb40] sm:$0xff]
  %v420 = vld [vmem:[%s1 + $0xb48] sm:$0xff]
  %v421 = vld [vmem:[%s1 + $0xb50] sm:$0xff]
  %v422 = vld [vmem:[%s1 + $0xb58] sm:$0xff]
  %v423 = vld [vmem:[%s1 + $0xb60] sm:$0xff]
  %v424 = vld [vmem:[%s1 + $0xb68] sm:$0xff]
  %v425 = vld [vmem:[%s1 + $0xb70] sm:$0xff]
  %v426 = vld [vmem:[%s1 + $0xb78] sm:$0xff]
  %v427 = vld [vmem:[%s1 + $0xb80] sm:$0xff]
  %v428 = vld [vmem:[%s1 + $0xb88] sm:$0xff]
  %v429 = vld [vmem:[%s1 + $0xb90] sm:$0xff]
  %v430 = vld [vmem:[%s1 + $0xb98] sm:$0xff]
  %v431 = vld [vmem:[%s1 + $0xba0] sm:$0xff]
  %v432 = vld [vmem:[%s1 + $0xba8] sm:$0xff]
  %v433 = vld [vmem:[%s1 + $0xbb0] sm:$0xff]
  %v434 = vld [vmem:[%s1 + $0xbb8] sm:$0xff]
  %v435 = vld [vmem:[%s1 + $0xbc0] sm:$0xff]
  %v436 = vld [vmem:[%s1 + $0xbc8] sm:$0xff]
  %v437 = vld [vmem:[%s1 + $0xbd0] sm:$0xff]
  %v438 = vld [vmem:[%s1 + $0xbd8] sm:$0xff]
  %v439 = vld [vmem:[%s1 + $0xbe0] sm:$0xff]
  %v440 = vld [vmem:[%s1 + $0xbe8] sm:$0xff]
  %v441 = vld [vmem:[%s1 + $0xbf0] sm:$0xff]
  %v442 = vld [vmem:[%s1 + $0xbf8] sm:$0xff]
  %v443 = vld [vmem:[%s1 + $0xc00] sm:$0xff]
  %v444 = vld [vmem:[%s1 + $0xc08] sm:$0xff]
  %v445 = vld [vmem:[%s1 + $0xc10] sm:$0xff]
  %v446 = vld [vmem:[%s1 + $0xc18] sm:$0xff]
  %v447 = vld [vmem:[%s1 + $0xc20] sm:$0xff]
  %v448 = vld [vmem:[%s1 + $0xc28] sm:$0xff]
  %v449 = vld [vmem:[%s1 + $0xc30] sm:$0xff]
  %v450 = vld [vmem:[%s1 + $0xc38] sm:$0xff]
  %v451 = vld [vmem:[%s1 + $0xc40] sm:$0xff]
  %v452 = vld [vmem:[%s1 + $0xc48] sm:$0xff]
  %v453 = vld [vmem:[%s1 + $0xc50] sm:$0xff]
  %v454 = vld [vmem:[%s1 + $0xc58] sm:$0xff]
  %v455 = vld [vmem:[%s1 + $0xc60] sm:$0xff]
  %v456 = vld [vmem:[%s1 + $0xc68] sm:$0xff]
  %v457 = vld [vmem:[%s1 + $0xc70] sm:$0xff]
  %v458 = vld [vmem:[%s1 + $0xc78] sm:$0xff]
  %v459 = vld [vmem:[%s2] sm:$0x3]
  %v461 = vperm.slane %v459, 0
  %v462 = vperm.slane %v459, 1
  %v504 = vunpack.c.l.b16 %v20
  %v505 = vunpack.c.h.b16 %v20
  %v506 = vunpack.c.l.b16 %v21
  %v507 = vunpack.c.h.b16 %v21
  %v508 = vunpack.c.l.b16 %v22
  %v509 = vunpack.c.h.b16 %v22
  %v510 = vunpack.c.l.b16 %v23
  %v511 = vunpack.c.h.b16 %v23
  %v512 = vunpack.c.l.b16 %v24
  %v513 = vunpack.c.h.b16 %v24
  %v514 = vunpack.c.l.b16 %v25
  %v515 = vunpack.c.h.b16 %v25
  %v516 = vunpack.c.l.b16 %v26
  %v517 = vunpack.c.h.b16 %v26
  %v518 = vunpack.c.l.b16 %v27
  %v519 = vunpack.c.h.b16 %v27
  %v520 = vunpack.c.l.b16 %v28
  %v521 = vunpack.c.h.b16 %v28
  %v522 = vunpack.c.l.b16 %v29
  %v523 = vunpack.c.h.b16 %v29
  %v524 = vunpack.c.l.b16 %v30
  %v525 = vunpack.c.h.b16 %v30
  %v526 = vunpack.c.l.b16 %v31
  %v527 = vunpack.c.h.b16 %v31
  %v528 = vunpack.c.l.b16 %v32
  %v529 = vunpack.c.l.b16 %v33
  %v530 = vunpack.c.h.b16 %v33
  %v531 = vunpack.c.l.b16 %v34
  %v532 = vunpack.c.h.b16 %v34
  %v533 = vunpack.c.l.b16 %v35
  %v534 = vunpack.c.h.b16 %v35
  %v535 = vunpack.c.l.b16 %v36
  %v536 = vunpack.c.h.b16 %v36
  %v537 = vunpack.c.l.b16 %v37
  %v538 = vunpack.c.h.b16 %v37
  %v539 = vunpack.c.l.b16 %v38
  %v540 = vunpack.c.h.b16 %v38
  %v541 = vunpack.c.l.b16 %v39
  %v542 = vunpack.c.h.b16 %v39
  %v543 = vunpack.c.l.b16 %v40
  %v544 = vunpack.c.h.b16 %v40
  %v545 = vunpack.c.l.b16 %v41
  %v546 = vunpack.c.h.b16 %v41
  %v547 = vunpack.c.l.b16 %v42
  %v548 = vunpack.c.h.b16 %v42
  %v549 = vunpack.c.l.b16 %v43
  %v550 = vunpack.c.h.b16 %v43
  %v551 = vunpack.c.l.b16 %v44
  %v552 = vunpack.c.h.b16 %v44
  %v553 = vunpack.c.l.b16 %v45
  %v554 = vunpack.c.l.b16 %v46
  %v555 = vunpack.c.h.b16 %v46
  %v556 = vunpack.c.l.b16 %v47
  %v557 = vunpack.c.h.b16 %v47
  %v558 = vunpack.c.l.b16 %v48
  %v559 = vunpack.c.h.b16 %v48
  %v560 = vunpack.c.l.b16 %v49
  %v561 = vunpack.c.h.b16 %v49
  %v562 = vunpack.c.l.b16 %v50
  %v563 = vunpack.c.h.b16 %v50
  %v564 = vunpack.c.l.b16 %v51
  %v565 = vunpack.c.h.b16 %v51
  %v566 = vunpack.c.l.b16 %v52
  %v567 = vunpack.c.h.b16 %v52
  %v568 = vunpack.c.l.b16 %v53
  %v569 = vunpack.c.h.b16 %v53
  %v570 = vunpack.c.l.b16 %v54
  %v571 = vunpack.c.h.b16 %v54
  %v572 = vunpack.c.l.b16 %v55
  %v573 = vunpack.c.h.b16 %v55
  %v574 = vunpack.c.l.b16 %v56
  %v575 = vunpack.c.h.b16 %v56
  %v576 = vunpack.c.l.b16 %v57
  %v577 = vunpack.c.h.b16 %v57
  %v578 = vunpack.c.l.b16 %v58
  %v579 = vpack.c.b16 %v529, %v504
  %v580 = vpack.c.b16 %v530, %v505
  %v581 = vpack.c.b16 %v531, %v506
  %v582 = vpack.c.b16 %v532, %v507
  %v583 = vpack.c.b16 %v533, %v508
  %v584 = vpack.c.b16 %v534, %v509
  %v585 = vpack.c.b16 %v535, %v510
  %v586 = vpack.c.b16 %v536, %v511
  %v587 = vpack.c.b16 %v537, %v512
  %v588 = vpack.c.b16 %v538, %v513
  %v589 = vpack.c.b16 %v539, %v514
  %v590 = vpack.c.b16 %v540, %v515
  %v591 = vpack.c.b16 %v541, %v516
  %v592 = vpack.c.b16 %v542, %v517
  %v593 = vpack.c.b16 %v543, %v518
  %v594 = vpack.c.b16 %v544, %v519
  %v595 = vpack.c.b16 %v545, %v520
  %v596 = vpack.c.b16 %v546, %v521
  %v597 = vpack.c.b16 %v547, %v522
  %v598 = vpack.c.b16 %v548, %v523
  %v599 = vpack.c.b16 %v549, %v524
  %v600 = vpack.c.b16 %v550, %v525
  %v601 = vpack.c.b16 %v551, %v526
  %v602 = vpack.c.b16 %v552, %v527
  %v603 = vpack.c.b16 %v553, %v528
  %v604 = vpack.c.b16 %v554, %v554
  %v605 = vpack.c.b16 %v555, %v555
  %v606 = vpack.c.b16 %v556, %v556
  %v607 = vpack.c.b16 %v557, %v557
  %v608 = vpack.c.b16 %v558, %v558
  %v609 = vpack.c.b16 %v559, %v559
  %v610 = vpack.c.b16 %v560, %v560
  %v611 = vpack.c.b16 %v561, %v561
  %v612 = vpack.c.b16 %v562, %v562
  %v613 = vpack.c.b16 %v563, %v563
  %v614 = vpack.c.b16 %v564, %v564
  %v615 = vpack.c.b16 %v565, %v565
  %v616 = vpack.c.b16 %v566, %v566
  %v617 = vpack.c.b16 %v567, %v567
  %v618 = vpack.c.b16 %v568, %v568
  %v619 = vpack.c.b16 %v569, %v569
  %v620 = vpack.c.b16 %v570, %v570
  %v621 = vpack.c.b16 %v571, %v571
  %v622 = vpack.c.b16 %v572, %v572
  %v623 = vpack.c.b16 %v573, %v573
  %v624 = vpack.c.b16 %v574, %v574
  %v625 = vpack.c.b16 %v575, %v575
  %v626 = vpack.c.b16 %v576, %v576
  %v627 = vpack.c.b16 %v577, %v577
  %v628 = vpack.c.b16 %v578, %v578
  %v1079 = vunpack.c.l.b16 %v59
  %v1080 = vunpack.c.h.b16 %v59
  %v1081 = vunpack.c.l.b16 %v60
  %v1082 = vunpack.c.h.b16 %v60
  %v1083 = vunpack.c.l.b16 %v61
  %v1084 = vunpack.c.h.b16 %v61
  %v1085 = vunpack.c.l.b16 %v62
  %v1086 = vunpack.c.h.b16 %v62
  %v1087 = vunpack.c.l.b16 %v63
  %v1088 = vunpack.c.h.b16 %v63
  %v1089 = vunpack.c.l.b16 %v64
  %v1090 = vunpack.c.h.b16 %v64
  %v1091 = vunpack.c.l.b16 %v65
  %v1092 = vunpack.c.h.b16 %v65
  %v1093 = vunpack.c.l.b16 %v66
  %v1094 = vunpack.c.h.b16 %v66
  %v1095 = vunpack.c.l.b16 %v67
  %v1096 = vunpack.c.h.b16 %v67
  %v1097 = vunpack.c.l.b16 %v68
  %v1098 = vunpack.c.h.b16 %v68
  %v1099 = vunpack.c.l.b16 %v69
  %v1100 = vunpack.c.h.b16 %v69
  %v1101 = vunpack.c.l.b16 %v70
  %v1102 = vunpack.c.h.b16 %v70
  %v1103 = vunpack.c.l.b16 %v71
  %v1104 = vunpack.c.h.b16 %v71
  %v1105 = vunpack.c.l.b16 %v72
  %v1106 = vunpack.c.h.b16 %v72
  %v1107 = vunpack.c.l.b16 %v73
  %v1108 = vunpack.c.h.b16 %v73
  %v1109 = vunpack.c.l.b16 %v74
  %v1110 = vunpack.c.h.b16 %v74
  %v1111 = vunpack.c.l.b16 %v75
  %v1112 = vunpack.c.h.b16 %v75
  %v1113 = vunpack.c.l.b16 %v76
  %v1114 = vunpack.c.h.b16 %v76
  %v1115 = vunpack.c.l.b16 %v77
  %v1116 = vunpack.c.h.b16 %v77
  %v1117 = vunpack.c.l.b16 %v78
  %v1118 = vunpack.c.h.b16 %v78
  %v1119 = vunpack.c.l.b16 %v79
  %v1120 = vunpack.c.h.b16 %v79
  %v1121 = vunpack.c.l.b16 %v80
  %v1122 = vunpack.c.h.b16 %v80
  %v1123 = vunpack.c.l.b16 %v81
  %v1124 = vunpack.c.h.b16 %v81
  %v1125 = vunpack.c.l.b16 %v82
  %v1126 = vunpack.c.h.b16 %v82
  %v1127 = vunpack.c.l.b16 %v83
  %v1128 = vunpack.c.h.b16 %v83
  %v1129 = vunpack.c.l.b16 %v84
  %v1130 = vunpack.c.h.b16 %v84
  %v1131 = vunpack.c.l.b16 %v85
  %v1132 = vunpack.c.h.b16 %v85
  %v1133 = vunpack.c.l.b16 %v86
  %v1134 = vunpack.c.h.b16 %v86
  %v1135 = vunpack.c.l.b16 %v87
  %v1136 = vunpack.c.h.b16 %v87
  %v1137 = vunpack.c.l.b16 %v88
  %v1138 = vunpack.c.h.b16 %v88
  %v1139 = vunpack.c.l.b16 %v89
  %v1140 = vunpack.c.h.b16 %v89
  %v1141 = vunpack.c.l.b16 %v90
  %v1142 = vunpack.c.h.b16 %v90
  %v1143 = vunpack.c.l.b16 %v91
  %v1144 = vunpack.c.h.b16 %v91
  %v1145 = vunpack.c.l.b16 %v92
  %v1146 = vunpack.c.h.b16 %v92
  %v1147 = vunpack.c.l.b16 %v93
  %v1148 = vunpack.c.h.b16 %v93
  %v1149 = vunpack.c.l.b16 %v94
  %v1150 = vunpack.c.h.b16 %v94
  %v1151 = vunpack.c.l.b16 %v95
  %v1152 = vunpack.c.h.b16 %v95
  %v1153 = vunpack.c.l.b16 %v96
  %v1154 = vunpack.c.h.b16 %v96
  %v1155 = vunpack.c.l.b16 %v97
  %v1156 = vunpack.c.h.b16 %v97
  %v1157 = vunpack.c.l.b16 %v98
  %v1158 = vunpack.c.h.b16 %v98
  %v1159 = vunpack.c.l.b16 %v99
  %v1160 = vunpack.c.h.b16 %v99
  %v1161 = vunpack.c.l.b16 %v100
  %v1162 = vunpack.c.h.b16 %v100
  %v1163 = vunpack.c.l.b16 %v101
  %v1164 = vunpack.c.h.b16 %v101
  %v1165 = vunpack.c.l.b16 %v102
  %v1166 = vunpack.c.h.b16 %v102
  %v1167 = vunpack.c.l.b16 %v103
  %v1168 = vunpack.c.h.b16 %v103
  %v1169 = vunpack.c.l.b16 %v104
  %v1170 = vunpack.c.h.b16 %v104
  %v1171 = vunpack.c.l.b16 %v105
  %v1172 = vunpack.c.h.b16 %v105
  %v1173 = vunpack.c.l.b16 %v106
  %v1174 = vunpack.c.h.b16 %v106
  %v1175 = vunpack.c.l.b16 %v107
  %v1176 = vunpack.c.h.b16 %v107
  %v1177 = vunpack.c.l.b16 %v108
  %v1178 = vunpack.c.h.b16 %v108
  %v1179 = vunpack.c.l.b16 %v109
  %v1180 = vunpack.c.h.b16 %v109
  %v1181 = vunpack.c.l.b16 %v110
  %v1182 = vunpack.c.h.b16 %v110
  %v1183 = vunpack.c.l.b16 %v111
  %v1184 = vunpack.c.h.b16 %v111
  %v1185 = vunpack.c.l.b16 %v112
  %v1186 = vunpack.c.h.b16 %v112
  %v1187 = vunpack.c.l.b16 %v113
  %v1188 = vunpack.c.h.b16 %v113
  %v1189 = vunpack.c.l.b16 %v114
  %v1190 = vunpack.c.h.b16 %v114
  %v1191 = vunpack.c.l.b16 %v115
  %v1192 = vunpack.c.h.b16 %v115
  %v1193 = vunpack.c.l.b16 %v116
  %v1194 = vunpack.c.h.b16 %v116
  %v1195 = vunpack.c.l.b16 %v117
  %v1196 = vunpack.c.h.b16 %v117
  %v1197 = vunpack.c.l.b16 %v118
  %v1198 = vunpack.c.h.b16 %v118
  %v1199 = vunpack.c.l.b16 %v119
  %v1200 = vunpack.c.h.b16 %v119
  %v1201 = vunpack.c.l.b16 %v120
  %v1202 = vunpack.c.h.b16 %v120
  %v1203 = vunpack.c.l.b16 %v121
  %v1204 = vunpack.c.h.b16 %v121
  %v1205 = vunpack.c.l.b16 %v122
  %v1206 = vunpack.c.h.b16 %v122
  %v1207 = vunpack.c.l.b16 %v123
  %v1208 = vunpack.c.h.b16 %v123
  %v1209 = vunpack.c.l.b16 %v124
  %v1210 = vunpack.c.h.b16 %v124
  %v1211 = vunpack.c.l.b16 %v125
  %v1212 = vunpack.c.h.b16 %v125
  %v1213 = vunpack.c.l.b16 %v126
  %v1214 = vunpack.c.h.b16 %v126
  %v1215 = vunpack.c.l.b16 %v127
  %v1216 = vunpack.c.h.b16 %v127
  %v1217 = vunpack.c.l.b16 %v128
  %v1218 = vunpack.c.h.b16 %v128
  %v1219 = vunpack.c.l.b16 %v129
  %v1220 = vunpack.c.h.b16 %v129
  %v1221 = vunpack.c.l.b16 %v130
  %v1222 = vunpack.c.h.b16 %v130
  %v1223 = vunpack.c.l.b16 %v131
  %v1224 = vunpack.c.h.b16 %v131
  %v1225 = vunpack.c.l.b16 %v132
  %v1226 = vunpack.c.h.b16 %v132
  %v1227 = vunpack.c.l.b16 %v133
  %v1228 = vunpack.c.h.b16 %v133
  %v1229 = vunpack.c.l.b16 %v134
  %v1230 = vunpack.c.h.b16 %v134
  %v1231 = vunpack.c.l.b16 %v135
  %v1232 = vunpack.c.h.b16 %v135
  %v1233 = vunpack.c.l.b16 %v136
  %v1234 = vunpack.c.h.b16 %v136
  %v1235 = vunpack.c.l.b16 %v137
  %v1236 = vunpack.c.h.b16 %v137
  %v1237 = vunpack.c.l.b16 %v138
  %v1238 = vunpack.c.h.b16 %v138
  %v1239 = vunpack.c.l.b16 %v139
  %v1240 = vunpack.c.h.b16 %v139
  %v1241 = vunpack.c.l.b16 %v140
  %v1242 = vunpack.c.h.b16 %v140
  %v1243 = vunpack.c.l.b16 %v141
  %v1244 = vunpack.c.h.b16 %v141
  %v1245 = vunpack.c.l.b16 %v142
  %v1246 = vunpack.c.h.b16 %v142
  %v1247 = vunpack.c.l.b16 %v143
  %v1248 = vunpack.c.h.b16 %v143
  %v1249 = vunpack.c.l.b16 %v144
  %v1250 = vunpack.c.h.b16 %v144
  %v1251 = vunpack.c.l.b16 %v145
  %v1252 = vunpack.c.h.b16 %v145
  %v1253 = vunpack.c.l.b16 %v146
  %v1254 = vunpack.c.h.b16 %v146
  %v1255 = vunpack.c.l.b16 %v147
  %v1256 = vunpack.c.h.b16 %v147
  %v1257 = vunpack.c.l.b16 %v148
  %v1258 = vunpack.c.h.b16 %v148
  %v1259 = vunpack.c.l.b16 %v149
  %v1260 = vunpack.c.h.b16 %v149
  %v1261 = vunpack.c.l.b16 %v150
  %v1262 = vunpack.c.h.b16 %v150
  %v1263 = vunpack.c.l.b16 %v151
  %v1264 = vunpack.c.h.b16 %v151
  %v1265 = vunpack.c.l.b16 %v152
  %v1266 = vunpack.c.h.b16 %v152
  %v1267 = vunpack.c.l.b16 %v153
  %v1268 = vunpack.c.h.b16 %v153
  %v1269 = vunpack.c.l.b16 %v154
  %v1270 = vunpack.c.h.b16 %v154
  %v1271 = vunpack.c.l.b16 %v155
  %v1272 = vunpack.c.h.b16 %v155
  %v1273 = vunpack.c.l.b16 %v156
  %v1274 = vunpack.c.h.b16 %v156
  %v1275 = vunpack.c.l.b16 %v157
  %v1276 = vunpack.c.h.b16 %v157
  %v1277 = vunpack.c.l.b16 %v158
  %v1278 = vunpack.c.h.b16 %v158
  %v1279 = vunpack.c.l.b16 %v159
  %v1280 = vunpack.c.h.b16 %v159
  %v1281 = vunpack.c.l.b16 %v160
  %v1282 = vunpack.c.h.b16 %v160
  %v1283 = vunpack.c.l.b16 %v161
  %v1284 = vunpack.c.h.b16 %v161
  %v1285 = vunpack.c.l.b16 %v162
  %v1286 = vunpack.c.h.b16 %v162
  %v1287 = vunpack.c.l.b16 %v163
  %v1288 = vunpack.c.h.b16 %v163
  %v1289 = vunpack.c.l.b16 %v164
  %v1290 = vunpack.c.h.b16 %v164
  %v1291 = vunpack.c.l.b16 %v165
  %v1292 = vunpack.c.h.b16 %v165
  %v1293 = vunpack.c.l.b16 %v166
  %v1294 = vunpack.c.h.b16 %v166
  %v1295 = vunpack.c.l.b16 %v167
  %v1296 = vunpack.c.h.b16 %v167
  %v1297 = vunpack.c.l.b16 %v168
  %v1298 = vunpack.c.h.b16 %v168
  %v1299 = vunpack.c.l.b16 %v169
  %v1300 = vunpack.c.h.b16 %v169
  %v1301 = vunpack.c.l.b16 %v170
  %v1302 = vunpack.c.h.b16 %v170
  %v1303 = vunpack.c.l.b16 %v171
  %v1304 = vunpack.c.h.b16 %v171
  %v1305 = vunpack.c.l.b16 %v172
  %v1306 = vunpack.c.h.b16 %v172
  %v1307 = vunpack.c.l.b16 %v173
  %v1308 = vunpack.c.h.b16 %v173
  %v1309 = vunpack.c.l.b16 %v174
  %v1310 = vunpack.c.h.b16 %v174
  %v1311 = vunpack.c.l.b16 %v175
  %v1312 = vunpack.c.h.b16 %v175
  %v1313 = vunpack.c.l.b16 %v176
  %v1314 = vunpack.c.h.b16 %v176
  %v1315 = vunpack.c.l.b16 %v177
  %v1316 = vunpack.c.h.b16 %v177
  %v1317 = vunpack.c.l.b16 %v178
  %v1318 = vunpack.c.h.b16 %v178
  %v1319 = vunpack.c.l.b16 %v179
  %v1320 = vunpack.c.h.b16 %v179
  %v1321 = vunpack.c.l.b16 %v180
  %v1322 = vunpack.c.h.b16 %v180
  %v1323 = vunpack.c.l.b16 %v181
  %v1324 = vunpack.c.h.b16 %v181
  %v1325 = vunpack.c.l.b16 %v182
  %v1326 = vunpack.c.h.b16 %v182
  %v1327 = vunpack.c.l.b16 %v183
  %v1328 = vunpack.c.h.b16 %v183
  %v1329 = vunpack.c.l.b16 %v184
  %v1330 = vunpack.c.h.b16 %v184
  %v1331 = vunpack.c.l.b16 %v185
  %v1332 = vunpack.c.h.b16 %v185
  %v1333 = vunpack.c.l.b16 %v186
  %v1334 = vunpack.c.h.b16 %v186
  %v1335 = vunpack.c.l.b16 %v187
  %v1336 = vunpack.c.h.b16 %v187
  %v1337 = vunpack.c.l.b16 %v188
  %v1338 = vunpack.c.h.b16 %v188
  %v1339 = vunpack.c.l.b16 %v189
  %v1340 = vunpack.c.h.b16 %v189
  %v1341 = vunpack.c.l.b16 %v190
  %v1342 = vunpack.c.h.b16 %v190
  %v1343 = vunpack.c.l.b16 %v191
  %v1344 = vunpack.c.h.b16 %v191
  %v1345 = vunpack.c.l.b16 %v192
  %v1346 = vunpack.c.h.b16 %v192
  %v1347 = vunpack.c.l.b16 %v193
  %v1348 = vunpack.c.h.b16 %v193
  %v1349 = vunpack.c.l.b16 %v194
  %v1350 = vunpack.c.h.b16 %v194
  %v1351 = vunpack.c.l.b16 %v195
  %v1352 = vunpack.c.h.b16 %v195
  %v1353 = vunpack.c.l.b16 %v196
  %v1354 = vunpack.c.h.b16 %v196
  %v1355 = vunpack.c.l.b16 %v197
  %v1356 = vunpack.c.h.b16 %v197
  %v1357 = vunpack.c.l.b16 %v198
  %v1358 = vunpack.c.h.b16 %v198
  %v1359 = vunpack.c.l.b16 %v199
  %v1360 = vunpack.c.h.b16 %v199
  %v1361 = vunpack.c.l.b16 %v200
  %v1362 = vunpack.c.h.b16 %v200
  %v1363 = vunpack.c.l.b16 %v201
  %v1364 = vunpack.c.h.b16 %v201
  %v1365 = vunpack.c.l.b16 %v202
  %v1366 = vunpack.c.h.b16 %v202
  %v1367 = vunpack.c.l.b16 %v203
  %v1368 = vunpack.c.h.b16 %v203
  %v1369 = vunpack.c.l.b16 %v204
  %v1370 = vunpack.c.h.b16 %v204
  %v1371 = vunpack.c.l.b16 %v205
  %v1372 = vunpack.c.h.b16 %v205
  %v1373 = vunpack.c.l.b16 %v206
  %v1374 = vunpack.c.h.b16 %v206
  %v1375 = vunpack.c.l.b16 %v207
  %v1376 = vunpack.c.h.b16 %v207
  %v1377 = vunpack.c.l.b16 %v208
  %v1378 = vunpack.c.h.b16 %v208
  %v1379 = vunpack.c.l.b16 %v209
  %v1380 = vunpack.c.h.b16 %v209
  %v1381 = vunpack.c.l.b16 %v210
  %v1382 = vunpack.c.h.b16 %v210
  %v1383 = vunpack.c.l.b16 %v211
  %v1384 = vunpack.c.h.b16 %v211
  %v1385 = vunpack.c.l.b16 %v212
  %v1386 = vunpack.c.h.b16 %v212
  %v1387 = vunpack.c.l.b16 %v213
  %v1388 = vunpack.c.h.b16 %v213
  %v1389 = vunpack.c.l.b16 %v214
  %v1390 = vunpack.c.h.b16 %v214
  %v1391 = vunpack.c.l.b16 %v215
  %v1392 = vunpack.c.h.b16 %v215
  %v1393 = vunpack.c.l.b16 %v216
  %v1394 = vunpack.c.h.b16 %v216
  %v1395 = vunpack.c.l.b16 %v217
  %v1396 = vunpack.c.h.b16 %v217
  %v1397 = vunpack.c.l.b16 %v218
  %v1398 = vunpack.c.h.b16 %v218
  %v1399 = vunpack.c.l.b16 %v219
  %v1400 = vunpack.c.h.b16 %v219
  %v1401 = vunpack.c.l.b16 %v220
  %v1402 = vunpack.c.h.b16 %v220
  %v1403 = vunpack.c.l.b16 %v221
  %v1404 = vunpack.c.h.b16 %v221
  %v1405 = vunpack.c.l.b16 %v222
  %v1406 = vunpack.c.h.b16 %v222
  %v1407 = vunpack.c.l.b16 %v223
  %v1408 = vunpack.c.h.b16 %v223
  %v1409 = vunpack.c.l.b16 %v224
  %v1410 = vunpack.c.h.b16 %v224
  %v1411 = vunpack.c.l.b16 %v225
  %v1412 = vunpack.c.h.b16 %v225
  %v1413 = vunpack.c.l.b16 %v226
  %v1414 = vunpack.c.h.b16 %v226
  %v1415 = vunpack.c.l.b16 %v227
  %v1416 = vunpack.c.h.b16 %v227
  %v1417 = vunpack.c.l.b16 %v228
  %v1418 = vunpack.c.h.b16 %v228
  %v1419 = vunpack.c.l.b16 %v229
  %v1420 = vunpack.c.h.b16 %v229
  %v1421 = vunpack.c.l.b16 %v230
  %v1422 = vunpack.c.h.b16 %v230
  %v1423 = vunpack.c.l.b16 %v231
  %v1424 = vunpack.c.h.b16 %v231
  %v1425 = vunpack.c.l.b16 %v232
  %v1426 = vunpack.c.h.b16 %v232
  %v1427 = vunpack.c.l.b16 %v233
  %v1428 = vunpack.c.h.b16 %v233
  %v1429 = vunpack.c.l.b16 %v234
  %v1430 = vunpack.c.h.b16 %v234
  %v1431 = vunpack.c.l.b16 %v235
  %v1432 = vunpack.c.h.b16 %v235
  %v1433 = vunpack.c.l.b16 %v236
  %v1434 = vunpack.c.h.b16 %v236
  %v1435 = vunpack.c.l.b16 %v237
  %v1436 = vunpack.c.h.b16 %v237
  %v1437 = vunpack.c.l.b16 %v238
  %v1438 = vunpack.c.h.b16 %v238
  %v1439 = vunpack.c.l.b16 %v239
  %v1440 = vunpack.c.h.b16 %v239
  %v1441 = vunpack.c.l.b16 %v240
  %v1442 = vunpack.c.h.b16 %v240
  %v1443 = vunpack.c.l.b16 %v241
  %v1444 = vunpack.c.h.b16 %v241
  %v1445 = vunpack.c.l.b16 %v242
  %v1446 = vunpack.c.h.b16 %v242
  %v1447 = vunpack.c.l.b16 %v243
  %v1448 = vunpack.c.h.b16 %v243
  %v1449 = vunpack.c.l.b16 %v244
  %v1450 = vunpack.c.h.b16 %v244
  %v1451 = vunpack.c.l.b16 %v245
  %v1452 = vunpack.c.h.b16 %v245
  %v1453 = vunpack.c.l.b16 %v246
  %v1454 = vunpack.c.h.b16 %v246
  %v1455 = vunpack.c.l.b16 %v247
  %v1456 = vunpack.c.h.b16 %v247
  %v1457 = vunpack.c.l.b16 %v248
  %v1458 = vunpack.c.h.b16 %v248
  %v1459 = vunpack.c.l.b16 %v249
  %v1460 = vunpack.c.h.b16 %v249
  %v1461 = vunpack.c.l.b16 %v250
  %v1462 = vunpack.c.h.b16 %v250
  %v1463 = vunpack.c.l.b16 %v251
  %v1464 = vunpack.c.h.b16 %v251
  %v1465 = vunpack.c.l.b16 %v252
  %v1466 = vunpack.c.h.b16 %v252
  %v1467 = vunpack.c.l.b16 %v253
  %v1468 = vunpack.c.h.b16 %v253
  %v1469 = vunpack.c.l.b16 %v254
  %v1470 = vunpack.c.h.b16 %v254
  %v1471 = vunpack.c.l.b16 %v255
  %v1472 = vunpack.c.h.b16 %v255
  %v1473 = vunpack.c.l.b16 %v256
  %v1474 = vunpack.c.h.b16 %v256
  %v1475 = vunpack.c.l.b16 %v257
  %v1476 = vunpack.c.h.b16 %v257
  %v1477 = vunpack.c.l.b16 %v258
  %v1478 = vunpack.c.h.b16 %v258
  %v1479 = vunpack.c.l.b16 %v259
  %v1480 = vunpack.c.h.b16 %v259
  %v1481 = vunpack.c.l.b16 %v260
  %v1482 = vunpack.c.h.b16 %v260
  %v1483 = vunpack.c.l.b16 %v261
  %v1484 = vunpack.c.h.b16 %v261
  %v1485 = vunpack.c.l.b16 %v262
  %v1486 = vunpack.c.h.b16 %v262
  %v1487 = vunpack.c.l.b16 %v263
  %v1488 = vunpack.c.h.b16 %v263
  %v1489 = vunpack.c.l.b16 %v264
  %v1490 = vunpack.c.h.b16 %v264
  %v1491 = vunpack.c.l.b16 %v265
  %v1492 = vunpack.c.h.b16 %v265
  %v1493 = vunpack.c.l.b16 %v266
  %v1494 = vunpack.c.h.b16 %v266
  %v1495 = vunpack.c.l.b16 %v267
  %v1496 = vunpack.c.h.b16 %v267
  %v1497 = vunpack.c.l.b16 %v268
  %v1498 = vunpack.c.h.b16 %v268
  %v1499 = vunpack.c.l.b16 %v269
  %v1500 = vunpack.c.h.b16 %v269
  %v1501 = vunpack.c.l.b16 %v270
  %v1502 = vunpack.c.h.b16 %v270
  %v1503 = vunpack.c.l.b16 %v271
  %v1504 = vunpack.c.h.b16 %v271
  %v1505 = vunpack.c.l.b16 %v272
  %v1506 = vunpack.c.h.b16 %v272
  %v1507 = vunpack.c.l.b16 %v273
  %v1508 = vunpack.c.h.b16 %v273
  %v1509 = vunpack.c.l.b16 %v274
  %v1510 = vunpack.c.h.b16 %v274
  %v1511 = vunpack.c.l.b16 %v275
  %v1512 = vunpack.c.h.b16 %v275
  %v1513 = vunpack.c.l.b16 %v276
  %v1514 = vunpack.c.h.b16 %v276
  %v1515 = vunpack.c.l.b16 %v277
  %v1516 = vunpack.c.h.b16 %v277
  %v1517 = vunpack.c.l.b16 %v278
  %v1518 = vunpack.c.h.b16 %v278
  %v1519 = vunpack.c.l.b16 %v279
  %v1520 = vunpack.c.h.b16 %v279
  %v1521 = vunpack.c.l.b16 %v280
  %v1522 = vunpack.c.h.b16 %v280
  %v1523 = vunpack.c.l.b16 %v281
  %v1524 = vunpack.c.h.b16 %v281
  %v1525 = vunpack.c.l.b16 %v282
  %v1526 = vunpack.c.h.b16 %v282
  %v1527 = vunpack.c.l.b16 %v283
  %v1528 = vunpack.c.h.b16 %v283
  %v1529 = vunpack.c.l.b16 %v284
  %v1530 = vunpack.c.h.b16 %v284
  %v1531 = vunpack.c.l.b16 %v285
  %v1532 = vunpack.c.h.b16 %v285
  %v1533 = vunpack.c.l.b16 %v286
  %v1534 = vunpack.c.h.b16 %v286
  %v1535 = vunpack.c.l.b16 %v287
  %v1536 = vunpack.c.h.b16 %v287
  %v1537 = vunpack.c.l.b16 %v288
  %v1538 = vunpack.c.h.b16 %v288
  %v1539 = vunpack.c.l.b16 %v289
  %v1540 = vunpack.c.h.b16 %v289
  %v1541 = vunpack.c.l.b16 %v290
  %v1542 = vunpack.c.h.b16 %v290
  %v1543 = vunpack.c.l.b16 %v291
  %v1544 = vunpack.c.h.b16 %v291
  %v1545 = vunpack.c.l.b16 %v292
  %v1546 = vunpack.c.h.b16 %v292
  %v1547 = vunpack.c.l.b16 %v293
  %v1548 = vunpack.c.h.b16 %v293
  %v1549 = vunpack.c.l.b16 %v294
  %v1550 = vunpack.c.h.b16 %v294
  %v1551 = vunpack.c.l.b16 %v295
  %v1552 = vunpack.c.h.b16 %v295
  %v1553 = vunpack.c.l.b16 %v296
  %v1554 = vunpack.c.h.b16 %v296
  %v1555 = vunpack.c.l.b16 %v297
  %v1556 = vunpack.c.h.b16 %v297
  %v1557 = vunpack.c.l.b16 %v298
  %v1558 = vunpack.c.h.b16 %v298
  %v1559 = vunpack.c.l.b16 %v299
  %v1560 = vunpack.c.h.b16 %v299
  %v1561 = vunpack.c.l.b16 %v300
  %v1562 = vunpack.c.h.b16 %v300
  %v1563 = vunpack.c.l.b16 %v301
  %v1564 = vunpack.c.h.b16 %v301
  %v1565 = vunpack.c.l.b16 %v302
  %v1566 = vunpack.c.h.b16 %v302
  %v1567 = vunpack.c.l.b16 %v303
  %v1568 = vunpack.c.h.b16 %v303
  %v1569 = vunpack.c.l.b16 %v304
  %v1570 = vunpack.c.h.b16 %v304
  %v1571 = vunpack.c.l.b16 %v305
  %v1572 = vunpack.c.h.b16 %v305
  %v1573 = vunpack.c.l.b16 %v306
  %v1574 = vunpack.c.h.b16 %v306
  %v1575 = vunpack.c.l.b16 %v307
  %v1576 = vunpack.c.h.b16 %v307
  %v1577 = vunpack.c.l.b16 %v308
  %v1578 = vunpack.c.h.b16 %v308
  %v1579 = vunpack.c.l.b16 %v309
  %v1580 = vunpack.c.h.b16 %v309
  %v1581 = vunpack.c.l.b16 %v310
  %v1582 = vunpack.c.h.b16 %v310
  %v1583 = vunpack.c.l.b16 %v311
  %v1584 = vunpack.c.h.b16 %v311
  %v1585 = vunpack.c.l.b16 %v312
  %v1586 = vunpack.c.h.b16 %v312
  %v1587 = vunpack.c.l.b16 %v313
  %v1588 = vunpack.c.h.b16 %v313
  %v1589 = vunpack.c.l.b16 %v314
  %v1590 = vunpack.c.h.b16 %v314
  %v1591 = vunpack.c.l.b16 %v315
  %v1592 = vunpack.c.h.b16 %v315
  %v1593 = vunpack.c.l.b16 %v316
  %v1594 = vunpack.c.h.b16 %v316
  %v1595 = vunpack.c.l.b16 %v317
  %v1596 = vunpack.c.h.b16 %v317
  %v1597 = vunpack.c.l.b16 %v318
  %v1598 = vunpack.c.h.b16 %v318
  %v1599 = vunpack.c.l.b16 %v319
  %v1600 = vunpack.c.h.b16 %v319
  %v1601 = vunpack.c.l.b16 %v320
  %v1602 = vunpack.c.h.b16 %v320
  %v1603 = vunpack.c.l.b16 %v321
  %v1604 = vunpack.c.h.b16 %v321
  %v1605 = vunpack.c.l.b16 %v322
  %v1606 = vunpack.c.h.b16 %v322
  %v1607 = vunpack.c.l.b16 %v323
  %v1608 = vunpack.c.h.b16 %v323
  %v1609 = vunpack.c.l.b16 %v324
  %v1610 = vunpack.c.h.b16 %v324
  %v1611 = vunpack.c.l.b16 %v325
  %v1612 = vunpack.c.h.b16 %v325
  %v1613 = vunpack.c.l.b16 %v326
  %v1614 = vunpack.c.h.b16 %v326
  %v1615 = vunpack.c.l.b16 %v327
  %v1616 = vunpack.c.h.b16 %v327
  %v1617 = vunpack.c.l.b16 %v328
  %v1618 = vunpack.c.h.b16 %v328
  %v1619 = vunpack.c.l.b16 %v329
  %v1620 = vunpack.c.h.b16 %v329
  %v1621 = vunpack.c.l.b16 %v330
  %v1622 = vunpack.c.h.b16 %v330
  %v1623 = vunpack.c.l.b16 %v331
  %v1624 = vunpack.c.h.b16 %v331
  %v1625 = vunpack.c.l.b16 %v332
  %v1626 = vunpack.c.h.b16 %v332
  %v1627 = vunpack.c.l.b16 %v333
  %v1628 = vunpack.c.h.b16 %v333
  %v1629 = vunpack.c.l.b16 %v334
  %v1630 = vunpack.c.h.b16 %v334
  %v1631 = vunpack.c.l.b16 %v335
  %v1632 = vunpack.c.h.b16 %v335
  %v1633 = vunpack.c.l.b16 %v336
  %v1634 = vunpack.c.h.b16 %v336
  %v1635 = vunpack.c.l.b16 %v337
  %v1636 = vunpack.c.h.b16 %v337
  %v1637 = vunpack.c.l.b16 %v338
  %v1638 = vunpack.c.h.b16 %v338
  %v1639 = vunpack.c.l.b16 %v339
  %v1640 = vunpack.c.h.b16 %v339
  %v1641 = vunpack.c.l.b16 %v340
  %v1642 = vunpack.c.h.b16 %v340
  %v1643 = vunpack.c.l.b16 %v341
  %v1644 = vunpack.c.h.b16 %v341
  %v1645 = vunpack.c.l.b16 %v342
  %v1646 = vunpack.c.h.b16 %v342
  %v1647 = vunpack.c.l.b16 %v343
  %v1648 = vunpack.c.h.b16 %v343
  %v1649 = vunpack.c.l.b16 %v344
  %v1650 = vunpack.c.h.b16 %v344
  %v1651 = vunpack.c.l.b16 %v345
  %v1652 = vunpack.c.h.b16 %v345
  %v1653 = vunpack.c.l.b16 %v346
  %v1654 = vunpack.c.h.b16 %v346
  %v1655 = vunpack.c.l.b16 %v347
  %v1656 = vunpack.c.h.b16 %v347
  %v1657 = vunpack.c.l.b16 %v348
  %v1658 = vunpack.c.h.b16 %v348
  %v1659 = vunpack.c.l.b16 %v349
  %v1660 = vunpack.c.h.b16 %v349
  %v1661 = vunpack.c.l.b16 %v350
  %v1662 = vunpack.c.h.b16 %v350
  %v1663 = vunpack.c.l.b16 %v351
  %v1664 = vunpack.c.h.b16 %v351
  %v1665 = vunpack.c.l.b16 %v352
  %v1666 = vunpack.c.h.b16 %v352
  %v1667 = vunpack.c.l.b16 %v353
  %v1668 = vunpack.c.h.b16 %v353
  %v1669 = vunpack.c.l.b16 %v354
  %v1670 = vunpack.c.h.b16 %v354
  %v1671 = vunpack.c.l.b16 %v355
  %v1672 = vunpack.c.h.b16 %v355
  %v1673 = vunpack.c.l.b16 %v356
  %v1674 = vunpack.c.h.b16 %v356
  %v1675 = vunpack.c.l.b16 %v357
  %v1676 = vunpack.c.h.b16 %v357
  %v1677 = vunpack.c.l.b16 %v358
  %v1678 = vunpack.c.h.b16 %v358
  %v1679 = vunpack.c.l.b16 %v359
  %v1680 = vunpack.c.h.b16 %v359
  %v1681 = vunpack.c.l.b16 %v360
  %v1682 = vunpack.c.h.b16 %v360
  %v1683 = vunpack.c.l.b16 %v361
  %v1684 = vunpack.c.h.b16 %v361
  %v1685 = vunpack.c.l.b16 %v362
  %v1686 = vunpack.c.h.b16 %v362
  %v1687 = vunpack.c.l.b16 %v363
  %v1688 = vunpack.c.h.b16 %v363
  %v1689 = vunpack.c.l.b16 %v364
  %v1690 = vunpack.c.h.b16 %v364
  %v1691 = vunpack.c.l.b16 %v365
  %v1692 = vunpack.c.h.b16 %v365
  %v1693 = vunpack.c.l.b16 %v366
  %v1694 = vunpack.c.h.b16 %v366
  %v1695 = vunpack.c.l.b16 %v367
  %v1696 = vunpack.c.h.b16 %v367
  %v1697 = vunpack.c.l.b16 %v368
  %v1698 = vunpack.c.h.b16 %v368
  %v1699 = vunpack.c.l.b16 %v369
  %v1700 = vunpack.c.h.b16 %v369
  %v1701 = vunpack.c.l.b16 %v370
  %v1702 = vunpack.c.h.b16 %v370
  %v1703 = vunpack.c.l.b16 %v371
  %v1704 = vunpack.c.h.b16 %v371
  %v1705 = vunpack.c.l.b16 %v372
  %v1706 = vunpack.c.h.b16 %v372
  %v1707 = vunpack.c.l.b16 %v373
  %v1708 = vunpack.c.h.b16 %v373
  %v1709 = vunpack.c.l.b16 %v374
  %v1710 = vunpack.c.h.b16 %v374
  %v1711 = vunpack.c.l.b16 %v375
  %v1712 = vunpack.c.h.b16 %v375
  %v1713 = vunpack.c.l.b16 %v376
  %v1714 = vunpack.c.h.b16 %v376
  %v1715 = vunpack.c.l.b16 %v377
  %v1716 = vunpack.c.h.b16 %v377
  %v1717 = vunpack.c.l.b16 %v378
  %v1718 = vunpack.c.h.b16 %v378
  %v1719 = vunpack.c.l.b16 %v379
  %v1720 = vunpack.c.h.b16 %v379
  %v1721 = vunpack.c.l.b16 %v380
  %v1722 = vunpack.c.h.b16 %v380
  %v1723 = vunpack.c.l.b16 %v381
  %v1724 = vunpack.c.h.b16 %v381
  %v1725 = vunpack.c.l.b16 %v382
  %v1726 = vunpack.c.h.b16 %v382
  %v1727 = vunpack.c.l.b16 %v383
  %v1728 = vunpack.c.h.b16 %v383
  %v1729 = vunpack.c.l.b16 %v384
  %v1730 = vunpack.c.h.b16 %v384
  %v1731 = vunpack.c.l.b16 %v385
  %v1732 = vunpack.c.h.b16 %v385
  %v1733 = vunpack.c.l.b16 %v386
  %v1734 = vunpack.c.h.b16 %v386
  %v1735 = vunpack.c.l.b16 %v387
  %v1736 = vunpack.c.h.b16 %v387
  %v1737 = vunpack.c.l.b16 %v388
  %v1738 = vunpack.c.h.b16 %v388
  %v1739 = vunpack.c.l.b16 %v389
  %v1740 = vunpack.c.h.b16 %v389
  %v1741 = vunpack.c.l.b16 %v390
  %v1742 = vunpack.c.h.b16 %v390
  %v1743 = vunpack.c.l.b16 %v391
  %v1744 = vunpack.c.h.b16 %v391
  %v1745 = vunpack.c.l.b16 %v392
  %v1746 = vunpack.c.h.b16 %v392
  %v1747 = vunpack.c.l.b16 %v393
  %v1748 = vunpack.c.h.b16 %v393
  %v1749 = vunpack.c.l.b16 %v394
  %v1750 = vunpack.c.h.b16 %v394
  %v1751 = vunpack.c.l.b16 %v395
  %v1752 = vunpack.c.h.b16 %v395
  %v1753 = vunpack.c.l.b16 %v396
  %v1754 = vunpack.c.h.b16 %v396
  %v1755 = vunpack.c.l.b16 %v397
  %v1756 = vunpack.c.h.b16 %v397
  %v1757 = vunpack.c.l.b16 %v398
  %v1758 = vunpack.c.h.b16 %v398
  %v1759 = vunpack.c.l.b16 %v399
  %v1760 = vunpack.c.h.b16 %v399
  %v1761 = vunpack.c.l.b16 %v400
  %v1762 = vunpack.c.h.b16 %v400
  %v1763 = vunpack.c.l.b16 %v401
  %v1764 = vunpack.c.h.b16 %v401
  %v1765 = vunpack.c.l.b16 %v402
  %v1766 = vunpack.c.h.b16 %v402
  %v1767 = vunpack.c.l.b16 %v403
  %v1768 = vunpack.c.h.b16 %v403
  %v1769 = vunpack.c.l.b16 %v404
  %v1770 = vunpack.c.h.b16 %v404
  %v1771 = vunpack.c.l.b16 %v405
  %v1772 = vunpack.c.h.b16 %v405
  %v1773 = vunpack.c.l.b16 %v406
  %v1774 = vunpack.c.h.b16 %v406
  %v1775 = vunpack.c.l.b16 %v407
  %v1776 = vunpack.c.h.b16 %v407
  %v1777 = vunpack.c.l.b16 %v408
  %v1778 = vunpack.c.h.b16 %v408
  %v1779 = vunpack.c.l.b16 %v409
  %v1780 = vunpack.c.h.b16 %v409
  %v1781 = vunpack.c.l.b16 %v410
  %v1782 = vunpack.c.h.b16 %v410
  %v1783 = vunpack.c.l.b16 %v411
  %v1784 = vunpack.c.h.b16 %v411
  %v1785 = vunpack.c.l.b16 %v412
  %v1786 = vunpack.c.h.b16 %v412
  %v1787 = vunpack.c.l.b16 %v413
  %v1788 = vunpack.c.h.b16 %v413
  %v1789 = vunpack.c.l.b16 %v414
  %v1790 = vunpack.c.h.b16 %v414
  %v1791 = vunpack.c.l.b16 %v415
  %v1792 = vunpack.c.h.b16 %v415
  %v1793 = vunpack.c.l.b16 %v416
  %v1794 = vunpack.c.h.b16 %v416
  %v1795 = vunpack.c.l.b16 %v417
  %v1796 = vunpack.c.h.b16 %v417
  %v1797 = vunpack.c.l.b16 %v418
  %v1798 = vunpack.c.h.b16 %v418
  %v1799 = vunpack.c.l.b16 %v419
  %v1800 = vunpack.c.h.b16 %v419
  %v1801 = vunpack.c.l.b16 %v420
  %v1802 = vunpack.c.h.b16 %v420
  %v1803 = vunpack.c.l.b16 %v421
  %v1804 = vunpack.c.h.b16 %v421
  %v1805 = vunpack.c.l.b16 %v422
  %v1806 = vunpack.c.h.b16 %v422
  %v1807 = vunpack.c.l.b16 %v423
  %v1808 = vunpack.c.h.b16 %v423
  %v1809 = vunpack.c.l.b16 %v424
  %v1810 = vunpack.c.h.b16 %v424
  %v1811 = vunpack.c.l.b16 %v425
  %v1812 = vunpack.c.h.b16 %v425
  %v1813 = vunpack.c.l.b16 %v426
  %v1814 = vunpack.c.h.b16 %v426
  %v1815 = vunpack.c.l.b16 %v427
  %v1816 = vunpack.c.h.b16 %v427
  %v1817 = vunpack.c.l.b16 %v428
  %v1818 = vunpack.c.h.b16 %v428
  %v1819 = vunpack.c.l.b16 %v429
  %v1820 = vunpack.c.h.b16 %v429
  %v1821 = vunpack.c.l.b16 %v430
  %v1822 = vunpack.c.h.b16 %v430
  %v1823 = vunpack.c.l.b16 %v431
  %v1824 = vunpack.c.h.b16 %v431
  %v1825 = vunpack.c.l.b16 %v432
  %v1826 = vunpack.c.h.b16 %v432
  %v1827 = vunpack.c.l.b16 %v433
  %v1828 = vunpack.c.h.b16 %v433
  %v1829 = vunpack.c.l.b16 %v434
  %v1830 = vunpack.c.h.b16 %v434
  %v1831 = vunpack.c.l.b16 %v435
  %v1832 = vunpack.c.h.b16 %v435
  %v1833 = vunpack.c.l.b16 %v436
  %v1834 = vunpack.c.h.b16 %v436
  %v1835 = vunpack.c.l.b16 %v437
  %v1836 = vunpack.c.h.b16 %v437
  %v1837 = vunpack.c.l.b16 %v438
  %v1838 = vunpack.c.h.b16 %v438
  %v1839 = vunpack.c.l.b16 %v439
  %v1840 = vunpack.c.h.b16 %v439
  %v1841 = vunpack.c.l.b16 %v440
  %v1842 = vunpack.c.h.b16 %v440
  %v1843 = vunpack.c.l.b16 %v441
  %v1844 = vunpack.c.h.b16 %v441
  %v1845 = vunpack.c.l.b16 %v442
  %v1846 = vunpack.c.h.b16 %v442
  %v1847 = vunpack.c.l.b16 %v443
  %v1848 = vunpack.c.h.b16 %v443
  %v1849 = vunpack.c.l.b16 %v444
  %v1850 = vunpack.c.h.b16 %v444
  %v1851 = vunpack.c.l.b16 %v445
  %v1852 = vunpack.c.h.b16 %v445
  %v1853 = vunpack.c.l.b16 %v446
  %v1854 = vunpack.c.h.b16 %v446
  %v1855 = vunpack.c.l.b16 %v447
  %v1856 = vunpack.c.h.b16 %v447
  %v1857 = vunpack.c.l.b16 %v448
  %v1858 = vunpack.c.h.b16 %v448
  %v1859 = vunpack.c.l.b16 %v449
  %v1860 = vunpack.c.h.b16 %v449
  %v1861 = vunpack.c.l.b16 %v450
  %v1862 = vunpack.c.h.b16 %v450
  %v1863 = vunpack.c.l.b16 %v451
  %v1864 = vunpack.c.h.b16 %v451
  %v1865 = vunpack.c.l.b16 %v452
  %v1866 = vunpack.c.h.b16 %v452
  %v1867 = vunpack.c.l.b16 %v453
  %v1868 = vunpack.c.h.b16 %v453
  %v1869 = vunpack.c.l.b16 %v454
  %v1870 = vunpack.c.h.b16 %v454
  %v1871 = vunpack.c.l.b16 %v455
  %v1872 = vunpack.c.h.b16 %v455
  %v1873 = vunpack.c.l.b16 %v456
  %v1874 = vunpack.c.h.b16 %v456
  %v1875 = vunpack.c.l.b16 %v457
  %v1876 = vunpack.c.h.b16 %v457
  %v1877 = vunpack.c.l.b16 %v458
  %v1878 = vunpack.c.h.b16 %v458
  %v1879 = vpack.c.b16 %v1081, %v1079
  %v1880 = vpack.c.b16 %v1082, %v1080
  %v1881 = vpack.c.b16 %v1085, %v1083
  %v1882 = vpack.c.b16 %v1086, %v1084
  %v1883 = vpack.c.b16 %v1089, %v1087
  %v1884 = vpack.c.b16 %v1090, %v1088
  %v1885 = vpack.c.b16 %v1093, %v1091
  %v1886 = vpack.c.b16 %v1094, %v1092
  %v1887 = vpack.c.b16 %v1097, %v1095
  %v1888 = vpack.c.b16 %v1098, %v1096
  %v1889 = vpack.c.b16 %v1101, %v1099
  %v1890 = vpack.c.b16 %v1102, %v1100
  %v1891 = vpack.c.b16 %v1105, %v1103
  %v1892 = vpack.c.b16 %v1106, %v1104
  %v1893 = vpack.c.b16 %v1109, %v1107
  %v1894 = vpack.c.b16 %v1110, %v1108
  %v1895 = vpack.c.b16 %v1113, %v1111
  %v1896 = vpack.c.b16 %v1114, %v1112
  %v1897 = vpack.c.b16 %v1117, %v1115
  %v1898 = vpack.c.b16 %v1118, %v1116
  %v1899 = vpack.c.b16 %v1121, %v1119
  %v1900 = vpack.c.b16 %v1122, %v1120
  %v1901 = vpack.c.b16 %v1125, %v1123
  %v1902 = vpack.c.b16 %v1126, %v1124
  %v1903 = vpack.c.b16 %v1129, %v1127
  %v1904 = vpack.c.b16 %v1130, %v1128
  %v1905 = vpack.c.b16 %v1133, %v1131
  %v1906 = vpack.c.b16 %v1134, %v1132
  %v1907 = vpack.c.b16 %v1137, %v1135
  %v1908 = vpack.c.b16 %v1138, %v1136
  %v1909 = vpack.c.b16 %v1141, %v1139
  %v1910 = vpack.c.b16 %v1142, %v1140
  %v1911 = vpack.c.b16 %v1145, %v1143
  %v1912 = vpack.c.b16 %v1146, %v1144
  %v1913 = vpack.c.b16 %v1149, %v1147
  %v1914 = vpack.c.b16 %v1150, %v1148
  %v1915 = vpack.c.b16 %v1153, %v1151
  %v1916 = vpack.c.b16 %v1154, %v1152
  %v1917 = vpack.c.b16 %v1157, %v1155
  %v1918 = vpack.c.b16 %v1158, %v1156
  %v1919 = vpack.c.b16 %v1161, %v1159
  %v1920 = vpack.c.b16 %v1162, %v1160
  %v1921 = vpack.c.b16 %v1165, %v1163
  %v1922 = vpack.c.b16 %v1166, %v1164
  %v1923 = vpack.c.b16 %v1169, %v1167
  %v1924 = vpack.c.b16 %v1170, %v1168
  %v1925 = vpack.c.b16 %v1173, %v1171
  %v1926 = vpack.c.b16 %v1174, %v1172
  %v1927 = vpack.c.b16 %v1177, %v1175
  %v1928 = vpack.c.b16 %v1178, %v1176
  %v1929 = vpack.c.b16 %v1181, %v1179
  %v1930 = vpack.c.b16 %v1182, %v1180
  %v1931 = vpack.c.b16 %v1185, %v1183
  %v1932 = vpack.c.b16 %v1186, %v1184
  %v1933 = vpack.c.b16 %v1189, %v1187
  %v1934 = vpack.c.b16 %v1190, %v1188
  %v1935 = vpack.c.b16 %v1193, %v1191
  %v1936 = vpack.c.b16 %v1194, %v1192
  %v1937 = vpack.c.b16 %v1197, %v1195
  %v1938 = vpack.c.b16 %v1198, %v1196
  %v1939 = vpack.c.b16 %v1201, %v1199
  %v1940 = vpack.c.b16 %v1202, %v1200
  %v1941 = vpack.c.b16 %v1205, %v1203
  %v1942 = vpack.c.b16 %v1206, %v1204
  %v1943 = vpack.c.b16 %v1209, %v1207
  %v1944 = vpack.c.b16 %v1210, %v1208
  %v1945 = vpack.c.b16 %v1213, %v1211
  %v1946 = vpack.c.b16 %v1214, %v1212
  %v1947 = vpack.c.b16 %v1217, %v1215
  %v1948 = vpack.c.b16 %v1218, %v1216
  %v1949 = vpack.c.b16 %v1221, %v1219
  %v1950 = vpack.c.b16 %v1222, %v1220
  %v1951 = vpack.c.b16 %v1225, %v1223
  %v1952 = vpack.c.b16 %v1226, %v1224
  %v1953 = vpack.c.b16 %v1229, %v1227
  %v1954 = vpack.c.b16 %v1230, %v1228
  %v1955 = vpack.c.b16 %v1233, %v1231
  %v1956 = vpack.c.b16 %v1234, %v1232
  %v1957 = vpack.c.b16 %v1237, %v1235
  %v1958 = vpack.c.b16 %v1238, %v1236
  %v1959 = vpack.c.b16 %v1241, %v1239
  %v1960 = vpack.c.b16 %v1242, %v1240
  %v1961 = vpack.c.b16 %v1245, %v1243
  %v1962 = vpack.c.b16 %v1246, %v1244
  %v1963 = vpack.c.b16 %v1249, %v1247
  %v1964 = vpack.c.b16 %v1250, %v1248
  %v1965 = vpack.c.b16 %v1253, %v1251
  %v1966 = vpack.c.b16 %v1254, %v1252
  %v1967 = vpack.c.b16 %v1257, %v1255
  %v1968 = vpack.c.b16 %v1258, %v1256
  %v1969 = vpack.c.b16 %v1261, %v1259
  %v1970 = vpack.c.b16 %v1262, %v1260
  %v1971 = vpack.c.b16 %v1265, %v1263
  %v1972 = vpack.c.b16 %v1266, %v1264
  %v1973 = vpack.c.b16 %v1269, %v1267
  %v1974 = vpack.c.b16 %v1270, %v1268
  %v1975 = vpack.c.b16 %v1273, %v1271
  %v1976 = vpack.c.b16 %v1274, %v1272
  %v1977 = vpack.c.b16 %v1277, %v1275
  %v1978 = vpack.c.b16 %v1278, %v1276
  %v1979 = vpack.c.b16 %v1281, %v1279
  %v1980 = vpack.c.b16 %v1282, %v1280
  %v1981 = vpack.c.b16 %v1285, %v1283
  %v1982 = vpack.c.b16 %v1286, %v1284
  %v1983 = vpack.c.b16 %v1289, %v1287
  %v1984 = vpack.c.b16 %v1290, %v1288
  %v1985 = vpack.c.b16 %v1293, %v1291
  %v1986 = vpack.c.b16 %v1294, %v1292
  %v1987 = vpack.c.b16 %v1297, %v1295
  %v1988 = vpack.c.b16 %v1298, %v1296
  %v1989 = vpack.c.b16 %v1301, %v1299
  %v1990 = vpack.c.b16 %v1302, %v1300
  %v1991 = vpack.c.b16 %v1305, %v1303
  %v1992 = vpack.c.b16 %v1306, %v1304
  %v1993 = vpack.c.b16 %v1309, %v1307
  %v1994 = vpack.c.b16 %v1310, %v1308
  %v1995 = vpack.c.b16 %v1313, %v1311
  %v1996 = vpack.c.b16 %v1314, %v1312
  %v1997 = vpack.c.b16 %v1317, %v1315
  %v1998 = vpack.c.b16 %v1318, %v1316
  %v1999 = vpack.c.b16 %v1321, %v1319
  %v2000 = vpack.c.b16 %v1322, %v1320
  %v2001 = vpack.c.b16 %v1325, %v1323
  %v2002 = vpack.c.b16 %v1326, %v1324
  %v2003 = vpack.c.b16 %v1329, %v1327
  %v2004 = vpack.c.b16 %v1330, %v1328
  %v2005 = vpack.c.b16 %v1333, %v1331
  %v2006 = vpack.c.b16 %v1334, %v1332
  %v2007 = vpack.c.b16 %v1337, %v1335
  %v2008 = vpack.c.b16 %v1338, %v1336
  %v2009 = vpack.c.b16 %v1341, %v1339
  %v2010 = vpack.c.b16 %v1342, %v1340
  %v2011 = vpack.c.b16 %v1345, %v1343
  %v2012 = vpack.c.b16 %v1346, %v1344
  %v2013 = vpack.c.b16 %v1349, %v1347
  %v2014 = vpack.c.b16 %v1350, %v1348
  %v2015 = vpack.c.b16 %v1353, %v1351
  %v2016 = vpack.c.b16 %v1354, %v1352
  %v2017 = vpack.c.b16 %v1357, %v1355
  %v2018 = vpack.c.b16 %v1358, %v1356
  %v2019 = vpack.c.b16 %v1361, %v1359
  %v2020 = vpack.c.b16 %v1362, %v1360
  %v2021 = vpack.c.b16 %v1365, %v1363
  %v2022 = vpack.c.b16 %v1366, %v1364
  %v2023 = vpack.c.b16 %v1369, %v1367
  %v2024 = vpack.c.b16 %v1370, %v1368
  %v2025 = vpack.c.b16 %v1373, %v1371
  %v2026 = vpack.c.b16 %v1374, %v1372
  %v2027 = vpack.c.b16 %v1377, %v1375
  %v2028 = vpack.c.b16 %v1378, %v1376
  %v2029 = vpack.c.b16 %v1381, %v1379
  %v2030 = vpack.c.b16 %v1382, %v1380
  %v2031 = vpack.c.b16 %v1385, %v1383
  %v2032 = vpack.c.b16 %v1386, %v1384
  %v2033 = vpack.c.b16 %v1389, %v1387
  %v2034 = vpack.c.b16 %v1390, %v1388
  %v2035 = vpack.c.b16 %v1393, %v1391
  %v2036 = vpack.c.b16 %v1394, %v1392
  %v2037 = vpack.c.b16 %v1397, %v1395
  %v2038 = vpack.c.b16 %v1398, %v1396
  %v2039 = vpack.c.b16 %v1401, %v1399
  %v2040 = vpack.c.b16 %v1402, %v1400
  %v2041 = vpack.c.b16 %v1405, %v1403
  %v2042 = vpack.c.b16 %v1406, %v1404
  %v2043 = vpack.c.b16 %v1409, %v1407
  %v2044 = vpack.c.b16 %v1410, %v1408
  %v2045 = vpack.c.b16 %v1413, %v1411
  %v2046 = vpack.c.b16 %v1414, %v1412
  %v2047 = vpack.c.b16 %v1417, %v1415
  %v2048 = vpack.c.b16 %v1418, %v1416
  %v2049 = vpack.c.b16 %v1421, %v1419
  %v2050 = vpack.c.b16 %v1422, %v1420
  %v2051 = vpack.c.b16 %v1425, %v1423
  %v2052 = vpack.c.b16 %v1426, %v1424
  %v2053 = vpack.c.b16 %v1429, %v1427
  %v2054 = vpack.c.b16 %v1430, %v1428
  %v2055 = vpack.c.b16 %v1433, %v1431
  %v2056 = vpack.c.b16 %v1434, %v1432
  %v2057 = vpack.c.b16 %v1437, %v1435
  %v2058 = vpack.c.b16 %v1438, %v1436
  %v2059 = vpack.c.b16 %v1441, %v1439
  %v2060 = vpack.c.b16 %v1442, %v1440
  %v2061 = vpack.c.b16 %v1445, %v1443
  %v2062 = vpack.c.b16 %v1446, %v1444
  %v2063 = vpack.c.b16 %v1449, %v1447
  %v2064 = vpack.c.b16 %v1450, %v1448
  %v2065 = vpack.c.b16 %v1453, %v1451
  %v2066 = vpack.c.b16 %v1454, %v1452
  %v2067 = vpack.c.b16 %v1457, %v1455
  %v2068 = vpack.c.b16 %v1458, %v1456
  %v2069 = vpack.c.b16 %v1461, %v1459
  %v2070 = vpack.c.b16 %v1462, %v1460
  %v2071 = vpack.c.b16 %v1465, %v1463
  %v2072 = vpack.c.b16 %v1466, %v1464
  %v2073 = vpack.c.b16 %v1469, %v1467
  %v2074 = vpack.c.b16 %v1470, %v1468
  %v2075 = vpack.c.b16 %v1473, %v1471
  %v2076 = vpack.c.b16 %v1474, %v1472
  %v2077 = vpack.c.b16 %v1477, %v1475
  %v2078 = vpack.c.b16 %v1478, %v1476
  %v2079 = vpack.c.b16 %v1481, %v1479
  %v2080 = vpack.c.b16 %v1482, %v1480
  %v2081 = vpack.c.b16 %v1485, %v1483
  %v2082 = vpack.c.b16 %v1486, %v1484
  %v2083 = vpack.c.b16 %v1489, %v1487
  %v2084 = vpack.c.b16 %v1490, %v1488
  %v2085 = vpack.c.b16 %v1493, %v1491
  %v2086 = vpack.c.b16 %v1494, %v1492
  %v2087 = vpack.c.b16 %v1497, %v1495
  %v2088 = vpack.c.b16 %v1498, %v1496
  %v2089 = vpack.c.b16 %v1501, %v1499
  %v2090 = vpack.c.b16 %v1502, %v1500
  %v2091 = vpack.c.b16 %v1505, %v1503
  %v2092 = vpack.c.b16 %v1506, %v1504
  %v2093 = vpack.c.b16 %v1509, %v1507
  %v2094 = vpack.c.b16 %v1510, %v1508
  %v2095 = vpack.c.b16 %v1513, %v1511
  %v2096 = vpack.c.b16 %v1514, %v1512
  %v2097 = vpack.c.b16 %v1517, %v1515
  %v2098 = vpack.c.b16 %v1518, %v1516
  %v2099 = vpack.c.b16 %v1521, %v1519
  %v2100 = vpack.c.b16 %v1522, %v1520
  %v2101 = vpack.c.b16 %v1525, %v1523
  %v2102 = vpack.c.b16 %v1526, %v1524
  %v2103 = vpack.c.b16 %v1529, %v1527
  %v2104 = vpack.c.b16 %v1530, %v1528
  %v2105 = vpack.c.b16 %v1533, %v1531
  %v2106 = vpack.c.b16 %v1534, %v1532
  %v2107 = vpack.c.b16 %v1537, %v1535
  %v2108 = vpack.c.b16 %v1538, %v1536
  %v2109 = vpack.c.b16 %v1541, %v1539
  %v2110 = vpack.c.b16 %v1542, %v1540
  %v2111 = vpack.c.b16 %v1545, %v1543
  %v2112 = vpack.c.b16 %v1546, %v1544
  %v2113 = vpack.c.b16 %v1549, %v1547
  %v2114 = vpack.c.b16 %v1550, %v1548
  %v2115 = vpack.c.b16 %v1553, %v1551
  %v2116 = vpack.c.b16 %v1554, %v1552
  %v2117 = vpack.c.b16 %v1557, %v1555
  %v2118 = vpack.c.b16 %v1558, %v1556
  %v2119 = vpack.c.b16 %v1561, %v1559
  %v2120 = vpack.c.b16 %v1562, %v1560
  %v2121 = vpack.c.b16 %v1565, %v1563
  %v2122 = vpack.c.b16 %v1566, %v1564
  %v2123 = vpack.c.b16 %v1569, %v1567
  %v2124 = vpack.c.b16 %v1570, %v1568
  %v2125 = vpack.c.b16 %v1573, %v1571
  %v2126 = vpack.c.b16 %v1574, %v1572
  %v2127 = vpack.c.b16 %v1577, %v1575
  %v2128 = vpack.c.b16 %v1578, %v1576
  %v2129 = vpack.c.b16 %v1581, %v1579
  %v2130 = vpack.c.b16 %v1582, %v1580
  %v2131 = vpack.c.b16 %v1585, %v1583
  %v2132 = vpack.c.b16 %v1586, %v1584
  %v2133 = vpack.c.b16 %v1589, %v1587
  %v2134 = vpack.c.b16 %v1590, %v1588
  %v2135 = vpack.c.b16 %v1593, %v1591
  %v2136 = vpack.c.b16 %v1594, %v1592
  %v2137 = vpack.c.b16 %v1597, %v1595
  %v2138 = vpack.c.b16 %v1598, %v1596
  %v2139 = vpack.c.b16 %v1601, %v1599
  %v2140 = vpack.c.b16 %v1602, %v1600
  %v2141 = vpack.c.b16 %v1605, %v1603
  %v2142 = vpack.c.b16 %v1606, %v1604
  %v2143 = vpack.c.b16 %v1609, %v1607
  %v2144 = vpack.c.b16 %v1610, %v1608
  %v2145 = vpack.c.b16 %v1613, %v1611
  %v2146 = vpack.c.b16 %v1614, %v1612
  %v2147 = vpack.c.b16 %v1617, %v1615
  %v2148 = vpack.c.b16 %v1618, %v1616
  %v2149 = vpack.c.b16 %v1621, %v1619
  %v2150 = vpack.c.b16 %v1622, %v1620
  %v2151 = vpack.c.b16 %v1625, %v1623
  %v2152 = vpack.c.b16 %v1626, %v1624
  %v2153 = vpack.c.b16 %v1629, %v1627
  %v2154 = vpack.c.b16 %v1630, %v1628
  %v2155 = vpack.c.b16 %v1633, %v1631
  %v2156 = vpack.c.b16 %v1634, %v1632
  %v2157 = vpack.c.b16 %v1637, %v1635
  %v2158 = vpack.c.b16 %v1638, %v1636
  %v2159 = vpack.c.b16 %v1641, %v1639
  %v2160 = vpack.c.b16 %v1642, %v1640
  %v2161 = vpack.c.b16 %v1645, %v1643
  %v2162 = vpack.c.b16 %v1646, %v1644
  %v2163 = vpack.c.b16 %v1649, %v1647
  %v2164 = vpack.c.b16 %v1650, %v1648
  %v2165 = vpack.c.b16 %v1653, %v1651
  %v2166 = vpack.c.b16 %v1654, %v1652
  %v2167 = vpack.c.b16 %v1657, %v1655
  %v2168 = vpack.c.b16 %v1658, %v1656
  %v2169 = vpack.c.b16 %v1661, %v1659
  %v2170 = vpack.c.b16 %v1662, %v1660
  %v2171 = vpack.c.b16 %v1665, %v1663
  %v2172 = vpack.c.b16 %v1666, %v1664
  %v2173 = vpack.c.b16 %v1669, %v1667
  %v2174 = vpack.c.b16 %v1670, %v1668
  %v2175 = vpack.c.b16 %v1673, %v1671
  %v2176 = vpack.c.b16 %v1674, %v1672
  %v2177 = vpack.c.b16 %v1677, %v1675
  %v2178 = vpack.c.b16 %v1678, %v1676
  %v2179 = vpack.c.b16 %v1681, %v1679
  %v2180 = vpack.c.b16 %v1682, %v1680
  %v2181 = vpack.c.b16 %v1685, %v1683
  %v2182 = vpack.c.b16 %v1686, %v1684
  %v2183 = vpack.c.b16 %v1689, %v1687
  %v2184 = vpack.c.b16 %v1690, %v1688
  %v2185 = vpack.c.b16 %v1693, %v1691
  %v2186 = vpack.c.b16 %v1694, %v1692
  %v2187 = vpack.c.b16 %v1697, %v1695
  %v2188 = vpack.c.b16 %v1698, %v1696
  %v2189 = vpack.c.b16 %v1701, %v1699
  %v2190 = vpack.c.b16 %v1702, %v1700
  %v2191 = vpack.c.b16 %v1705, %v1703
  %v2192 = vpack.c.b16 %v1706, %v1704
  %v2193 = vpack.c.b16 %v1709, %v1707
  %v2194 = vpack.c.b16 %v1710, %v1708
  %v2195 = vpack.c.b16 %v1713, %v1711
  %v2196 = vpack.c.b16 %v1714, %v1712
  %v2197 = vpack.c.b16 %v1717, %v1715
  %v2198 = vpack.c.b16 %v1718, %v1716
  %v2199 = vpack.c.b16 %v1721, %v1719
  %v2200 = vpack.c.b16 %v1722, %v1720
  %v2201 = vpack.c.b16 %v1725, %v1723
  %v2202 = vpack.c.b16 %v1726, %v1724
  %v2203 = vpack.c.b16 %v1729, %v1727
  %v2204 = vpack.c.b16 %v1730, %v1728
  %v2205 = vpack.c.b16 %v1733, %v1731
  %v2206 = vpack.c.b16 %v1734, %v1732
  %v2207 = vpack.c.b16 %v1737, %v1735
  %v2208 = vpack.c.b16 %v1738, %v1736
  %v2209 = vpack.c.b16 %v1741, %v1739
  %v2210 = vpack.c.b16 %v1742, %v1740
  %v2211 = vpack.c.b16 %v1745, %v1743
  %v2212 = vpack.c.b16 %v1746, %v1744
  %v2213 = vpack.c.b16 %v1749, %v1747
  %v2214 = vpack.c.b16 %v1750, %v1748
  %v2215 = vpack.c.b16 %v1753, %v1751
  %v2216 = vpack.c.b16 %v1754, %v1752
  %v2217 = vpack.c.b16 %v1757, %v1755
  %v2218 = vpack.c.b16 %v1758, %v1756
  %v2219 = vpack.c.b16 %v1761, %v1759
  %v2220 = vpack.c.b16 %v1762, %v1760
  %v2221 = vpack.c.b16 %v1765, %v1763
  %v2222 = vpack.c.b16 %v1766, %v1764
  %v2223 = vpack.c.b16 %v1769, %v1767
  %v2224 = vpack.c.b16 %v1770, %v1768
  %v2225 = vpack.c.b16 %v1773, %v1771
  %v2226 = vpack.c.b16 %v1774, %v1772
  %v2227 = vpack.c.b16 %v1777, %v1775
  %v2228 = vpack.c.b16 %v1778, %v1776
  %v2229 = vpack.c.b16 %v1781, %v1779
  %v2230 = vpack.c.b16 %v1782, %v1780
  %v2231 = vpack.c.b16 %v1785, %v1783
  %v2232 = vpack.c.b16 %v1786, %v1784
  %v2233 = vpack.c.b16 %v1789, %v1787
  %v2234 = vpack.c.b16 %v1790, %v1788
  %v2235 = vpack.c.b16 %v1793, %v1791
  %v2236 = vpack.c.b16 %v1794, %v1792
  %v2237 = vpack.c.b16 %v1797, %v1795
  %v2238 = vpack.c.b16 %v1798, %v1796
  %v2239 = vpack.c.b16 %v1801, %v1799
  %v2240 = vpack.c.b16 %v1802, %v1800
  %v2241 = vpack.c.b16 %v1805, %v1803
  %v2242 = vpack.c.b16 %v1806, %v1804
  %v2243 = vpack.c.b16 %v1809, %v1807
  %v2244 = vpack.c.b16 %v1810, %v1808
  %v2245 = vpack.c.b16 %v1813, %v1811
  %v2246 = vpack.c.b16 %v1814, %v1812
  %v2247 = vpack.c.b16 %v1817, %v1815
  %v2248 = vpack.c.b16 %v1818, %v1816
  %v2249 = vpack.c.b16 %v1821, %v1819
  %v2250 = vpack.c.b16 %v1822, %v1820
  %v2251 = vpack.c.b16 %v1825, %v1823
  %v2252 = vpack.c.b16 %v1826, %v1824
  %v2253 = vpack.c.b16 %v1829, %v1827
  %v2254 = vpack.c.b16 %v1830, %v1828
  %v2255 = vpack.c.b16 %v1833, %v1831
  %v2256 = vpack.c.b16 %v1834, %v1832
  %v2257 = vpack.c.b16 %v1837, %v1835
  %v2258 = vpack.c.b16 %v1838, %v1836
  %v2259 = vpack.c.b16 %v1841, %v1839
  %v2260 = vpack.c.b16 %v1842, %v1840
  %v2261 = vpack.c.b16 %v1845, %v1843
  %v2262 = vpack.c.b16 %v1846, %v1844
  %v2263 = vpack.c.b16 %v1849, %v1847
  %v2264 = vpack.c.b16 %v1850, %v1848
  %v2265 = vpack.c.b16 %v1853, %v1851
  %v2266 = vpack.c.b16 %v1854, %v1852
  %v2267 = vpack.c.b16 %v1857, %v1855
  %v2268 = vpack.c.b16 %v1858, %v1856
  %v2269 = vpack.c.b16 %v1861, %v1859
  %v2270 = vpack.c.b16 %v1862, %v1860
  %v2271 = vpack.c.b16 %v1865, %v1863
  %v2272 = vpack.c.b16 %v1866, %v1864
  %v2273 = vpack.c.b16 %v1869, %v1867
  %v2274 = vpack.c.b16 %v1870, %v1868
  %v2275 = vpack.c.b16 %v1873, %v1871
  %v2276 = vpack.c.b16 %v1874, %v1872
  %v2277 = vpack.c.b16 %v1877, %v1875
  %v2278 = vpack.c.b16 %v1878, %v1876
  %2679 = vmatpush.bf16.msra.mxu0 %v1893
  %2680 = vmatpush.bf16.msra.mxu0 %v1891
  %2681 = vmatpush.bf16.msra.mxu0 %v1889
  %2682 = vmatpush.bf16.msra.mxu0 %v1887
  %2683 = vmatpush.bf16.msra.mxu0 %v1885
  %2684 = vmatpush.bf16.msra.mxu0 %v1883
  %2685 = vmatpush.bf16.msra.mxu0 %v1881
  %2686 = vmatpush.bf16.msra.mxu0 %v1879
  %2687 = vmatmul.bf16.gmra.mxu0 %v579
  %v2688 = vpop.f32.mrf.mxu0
  %v2689 = vadd.f32 %v461, %v2688
  %v2690 = vpop.f32.mrf.mxu0
  %v2691 = vadd.f32 %v461, %v2690
  %2692 = vmatmul.bf16.gmra.mxu0 %v604
  %v2693 = vpop.f32.mrf.mxu0
  %v2694 = vadd.f32 %v461, %v2693
  %v2695 = vpop.f32.mrf.mxu0
  %2696 = vdwg.mxu0
  %2697 = vmatpush.bf16.msra.mxu0 %v1909
  %2698 = vmatpush.bf16.msra.mxu0 %v1907
  %2699 = vmatpush.bf16.msra.mxu0 %v1905
  %2700 = vmatpush.bf16.msra.mxu0 %v1903
  %2701 = vmatpush.bf16.msra.mxu0 %v1901
  %2702 = vmatpush.bf16.msra.mxu0 %v1899
  %2703 = vmatpush.bf16.msra.mxu0 %v1897
  %2704 = vmatpush.bf16.msra.mxu0 %v1895
  %2705 = vmatmul.bf16.gmra.mxu0 %v580
  %v2706 = vpop.f32.mrf.mxu0
  %v2707 = vadd.f32 %v2689, %v2706
  %v2708 = vpop.f32.mrf.mxu0
  %v2709 = vadd.f32 %v2691, %v2708
  %2710 = vmatmul.bf16.gmra.mxu0 %v605
  %v2711 = vpop.f32.mrf.mxu0
  %v2712 = vadd.f32 %v2694, %v2711
  %v2713 = vpop.f32.mrf.mxu0
  %2714 = vdwg.mxu0
  %2715 = vmatpush.bf16.msra.mxu0 %v1925
  %2716 = vmatpush.bf16.msra.mxu0 %v1923
  %2717 = vmatpush.bf16.msra.mxu0 %v1921
  %2718 = vmatpush.bf16.msra.mxu0 %v1919
  %2719 = vmatpush.bf16.msra.mxu0 %v1917
  %2720 = vmatpush.bf16.msra.mxu0 %v1915
  %2721 = vmatpush.bf16.msra.mxu0 %v1913
  %2722 = vmatpush.bf16.msra.mxu0 %v1911
  %2723 = vmatmul.bf16.gmra.mxu0 %v581
  %v2724 = vpop.f32.mrf.mxu0
  %v2725 = vadd.f32 %v2707, %v2724
  %v2726 = vpop.f32.mrf.mxu0
  %v2727 = vadd.f32 %v2709, %v2726
  %2728 = vmatmul.bf16.gmra.mxu0 %v606
  %v2729 = vpop.f32.mrf.mxu0
  %v2730 = vadd.f32 %v2712, %v2729
  %v2731 = vpop.f32.mrf.mxu0
  %2732 = vdwg.mxu0
  %2733 = vmatpush.bf16.msra.mxu0 %v1941
  %2734 = vmatpush.bf16.msra.mxu0 %v1939
  %2735 = vmatpush.bf16.msra.mxu0 %v1937
  %2736 = vmatpush.bf16.msra.mxu0 %v1935
  %2737 = vmatpush.bf16.msra.mxu0 %v1933
  %2738 = vmatpush.bf16.msra.mxu0 %v1931
  %2739 = vmatpush.bf16.msra.mxu0 %v1929
  %2740 = vmatpush.bf16.msra.mxu0 %v1927
  %2741 = vmatmul.bf16.gmra.mxu0 %v582
  %v2742 = vpop.f32.mrf.mxu0
  %v2743 = vadd.f32 %v2725, %v2742
  %v2744 = vpop.f32.mrf.mxu0
  %v2745 = vadd.f32 %v2727, %v2744
  %2746 = vmatmul.bf16.gmra.mxu0 %v607
  %v2747 = vpop.f32.mrf.mxu0
  %v2748 = vadd.f32 %v2730, %v2747
  %v2749 = vpop.f32.mrf.mxu0
  %2750 = vdwg.mxu0
  %2751 = vmatpush.bf16.msra.mxu0 %v1957
  %2752 = vmatpush.bf16.msra.mxu0 %v1955
  %2753 = vmatpush.bf16.msra.mxu0 %v1953
  %2754 = vmatpush.bf16.msra.mxu0 %v1951
  %2755 = vmatpush.bf16.msra.mxu0 %v1949
  %2756 = vmatpush.bf16.msra.mxu0 %v1947
  %2757 = vmatpush.bf16.msra.mxu0 %v1945
  %2758 = vmatpush.bf16.msra.mxu0 %v1943
  %2759 = vmatmul.bf16.gmra.mxu0 %v583
  %v2760 = vpop.f32.mrf.mxu0
  %v2761 = vadd.f32 %v2743, %v2760
  %v2762 = vpop.f32.mrf.mxu0
  %v2763 = vadd.f32 %v2745, %v2762
  %2764 = vmatmul.bf16.gmra.mxu0 %v608
  %v2765 = vpop.f32.mrf.mxu0
  %v2766 = vadd.f32 %v2748, %v2765
  %v2767 = vpop.f32.mrf.mxu0
  %2768 = vdwg.mxu0
  %2769 = vmatpush.bf16.msra.mxu0 %v1973
  %2770 = vmatpush.bf16.msra.mxu0 %v1971
  %2771 = vmatpush.bf16.msra.mxu0 %v1969
  %2772 = vmatpush.bf16.msra.mxu0 %v1967
  %2773 = vmatpush.bf16.msra.mxu0 %v1965
  %2774 = vmatpush.bf16.msra.mxu0 %v1963
  %2775 = vmatpush.bf16.msra.mxu0 %v1961
  %2776 = vmatpush.bf16.msra.mxu0 %v1959
  %2777 = vmatmul.bf16.gmra.mxu0 %v584
  %v2778 = vpop.f32.mrf.mxu0
  %v2779 = vadd.f32 %v2761, %v2778
  %v2780 = vpop.f32.mrf.mxu0
  %v2781 = vadd.f32 %v2763, %v2780
  %2782 = vmatmul.bf16.gmra.mxu0 %v609
  %v2783 = vpop.f32.mrf.mxu0
  %v2784 = vadd.f32 %v2766, %v2783
  %v2785 = vpop.f32.mrf.mxu0
  %2786 = vdwg.mxu0
  %2787 = vmatpush.bf16.msra.mxu0 %v1989
  %2788 = vmatpush.bf16.msra.mxu0 %v1987
  %2789 = vmatpush.bf16.msra.mxu0 %v1985
  %2790 = vmatpush.bf16.msra.mxu0 %v1983
  %2791 = vmatpush.bf16.msra.mxu0 %v1981
  %2792 = vmatpush.bf16.msra.mxu0 %v1979
  %2793 = vmatpush.bf16.msra.mxu0 %v1977
  %2794 = vmatpush.bf16.msra.mxu0 %v1975
  %2795 = vmatmul.bf16.gmra.mxu0 %v585
  %v2796 = vpop.f32.mrf.mxu0
  %v2797 = vadd.f32 %v2779, %v2796
  %v2798 = vpop.f32.mrf.mxu0
  %v2799 = vadd.f32 %v2781, %v2798
  %2800 = vmatmul.bf16.gmra.mxu0 %v610
  %v2801 = vpop.f32.mrf.mxu0
  %v2802 = vadd.f32 %v2784, %v2801
  %v2803 = vpop.f32.mrf.mxu0
  %2804 = vdwg.mxu0
  %2805 = vmatpush.bf16.msra.mxu0 %v2005
  %2806 = vmatpush.bf16.msra.mxu0 %v2003
  %2807 = vmatpush.bf16.msra.mxu0 %v2001
  %2808 = vmatpush.bf16.msra.mxu0 %v1999
  %2809 = vmatpush.bf16.msra.mxu0 %v1997
  %2810 = vmatpush.bf16.msra.mxu0 %v1995
  %2811 = vmatpush.bf16.msra.mxu0 %v1993
  %2812 = vmatpush.bf16.msra.mxu0 %v1991
  %2813 = vmatmul.bf16.gmra.mxu0 %v586
  %v2814 = vpop.f32.mrf.mxu0
  %v2815 = vadd.f32 %v2797, %v2814
  %v2816 = vpop.f32.mrf.mxu0
  %v2817 = vadd.f32 %v2799, %v2816
  %2818 = vmatmul.bf16.gmra.mxu0 %v611
  %v2819 = vpop.f32.mrf.mxu0
  %v2820 = vadd.f32 %v2802, %v2819
  %v2821 = vpop.f32.mrf.mxu0
  %2822 = vdwg.mxu0
  %2823 = vmatpush.bf16.msra.mxu0 %v2021
  %2824 = vmatpush.bf16.msra.mxu0 %v2019
  %2825 = vmatpush.bf16.msra.mxu0 %v2017
  %2826 = vmatpush.bf16.msra.mxu0 %v2015
  %2827 = vmatpush.bf16.msra.mxu0 %v2013
  %2828 = vmatpush.bf16.msra.mxu0 %v2011
  %2829 = vmatpush.bf16.msra.mxu0 %v2009
  %2830 = vmatpush.bf16.msra.mxu0 %v2007
  %2831 = vmatmul.bf16.gmra.mxu0 %v587
  %v2832 = vpop.f32.mrf.mxu0
  %v2833 = vadd.f32 %v2815, %v2832
  %v2834 = vpop.f32.mrf.mxu0
  %v2835 = vadd.f32 %v2817, %v2834
  %2836 = vmatmul.bf16.gmra.mxu0 %v612
  %v2837 = vpop.f32.mrf.mxu0
  %v2838 = vadd.f32 %v2820, %v2837
  %v2839 = vpop.f32.mrf.mxu0
  %2840 = vdwg.mxu0
  %2841 = vmatpush.bf16.msra.mxu0 %v2037
  %2842 = vmatpush.bf16.msra.mxu0 %v2035
  %2843 = vmatpush.bf16.msra.mxu0 %v2033
  %2844 = vmatpush.bf16.msra.mxu0 %v2031
  %2845 = vmatpush.bf16.msra.mxu0 %v2029
  %2846 = vmatpush.bf16.msra.mxu0 %v2027
  %2847 = vmatpush.bf16.msra.mxu0 %v2025
  %2848 = vmatpush.bf16.msra.mxu0 %v2023
  %2849 = vmatmul.bf16.gmra.mxu0 %v588
  %v2850 = vpop.f32.mrf.mxu0
  %v2851 = vadd.f32 %v2833, %v2850
  %v2852 = vpop.f32.mrf.mxu0
  %v2853 = vadd.f32 %v2835, %v2852
  %2854 = vmatmul.bf16.gmra.mxu0 %v613
  %v2855 = vpop.f32.mrf.mxu0
  %v2856 = vadd.f32 %v2838, %v2855
  %v2857 = vpop.f32.mrf.mxu0
  %2858 = vdwg.mxu0
  %2859 = vmatpush.bf16.msra.mxu0 %v2053
  %2860 = vmatpush.bf16.msra.mxu0 %v2051
  %2861 = vmatpush.bf16.msra.mxu0 %v2049
  %2862 = vmatpush.bf16.msra.mxu0 %v2047
  %2863 = vmatpush.bf16.msra.mxu0 %v2045
  %2864 = vmatpush.bf16.msra.mxu0 %v2043
  %2865 = vmatpush.bf16.msra.mxu0 %v2041
  %2866 = vmatpush.bf16.msra.mxu0 %v2039
  %2867 = vmatmul.bf16.gmra.mxu0 %v589
  %v2868 = vpop.f32.mrf.mxu0
  %v2869 = vadd.f32 %v2851, %v2868
  %v2870 = vpop.f32.mrf.mxu0
  %v2871 = vadd.f32 %v2853, %v2870
  %2872 = vmatmul.bf16.gmra.mxu0 %v614
  %v2873 = vpop.f32.mrf.mxu0
  %v2874 = vadd.f32 %v2856, %v2873
  %v2875 = vpop.f32.mrf.mxu0
  %2876 = vdwg.mxu0
  %2877 = vmatpush.bf16.msra.mxu0 %v2069
  %2878 = vmatpush.bf16.msra.mxu0 %v2067
  %2879 = vmatpush.bf16.msra.mxu0 %v2065
  %2880 = vmatpush.bf16.msra.mxu0 %v2063
  %2881 = vmatpush.bf16.msra.mxu0 %v2061
  %2882 = vmatpush.bf16.msra.mxu0 %v2059
  %2883 = vmatpush.bf16.msra.mxu0 %v2057
  %2884 = vmatpush.bf16.msra.mxu0 %v2055
  %2885 = vmatmul.bf16.gmra.mxu0 %v590
  %v2886 = vpop.f32.mrf.mxu0
  %v2887 = vadd.f32 %v2869, %v2886
  %v2888 = vpop.f32.mrf.mxu0
  %v2889 = vadd.f32 %v2871, %v2888
  %2890 = vmatmul.bf16.gmra.mxu0 %v615
  %v2891 = vpop.f32.mrf.mxu0
  %v2892 = vadd.f32 %v2874, %v2891
  %v2893 = vpop.f32.mrf.mxu0
  %2894 = vdwg.mxu0
  %2895 = vmatpush.bf16.msra.mxu0 %v2085
  %2896 = vmatpush.bf16.msra.mxu0 %v2083
  %2897 = vmatpush.bf16.msra.mxu0 %v2081
  %2898 = vmatpush.bf16.msra.mxu0 %v2079
  %2899 = vmatpush.bf16.msra.mxu0 %v2077
  %2900 = vmatpush.bf16.msra.mxu0 %v2075
  %2901 = vmatpush.bf16.msra.mxu0 %v2073
  %2902 = vmatpush.bf16.msra.mxu0 %v2071
  %2903 = vmatmul.bf16.gmra.mxu0 %v591
  %v2904 = vpop.f32.mrf.mxu0
  %v2905 = vadd.f32 %v2887, %v2904
  %v2906 = vpop.f32.mrf.mxu0
  %v2907 = vadd.f32 %v2889, %v2906
  %2908 = vmatmul.bf16.gmra.mxu0 %v616
  %v2909 = vpop.f32.mrf.mxu0
  %v2910 = vadd.f32 %v2892, %v2909
  %v2911 = vpop.f32.mrf.mxu0
  %2912 = vdwg.mxu0
  %2913 = vmatpush.bf16.msra.mxu0 %v2101
  %2914 = vmatpush.bf16.msra.mxu0 %v2099
  %2915 = vmatpush.bf16.msra.mxu0 %v2097
  %2916 = vmatpush.bf16.msra.mxu0 %v2095
  %2917 = vmatpush.bf16.msra.mxu0 %v2093
  %2918 = vmatpush.bf16.msra.mxu0 %v2091
  %2919 = vmatpush.bf16.msra.mxu0 %v2089
  %2920 = vmatpush.bf16.msra.mxu0 %v2087
  %2921 = vmatmul.bf16.gmra.mxu0 %v592
  %v2922 = vpop.f32.mrf.mxu0
  %v2923 = vadd.f32 %v2905, %v2922
  %v2924 = vpop.f32.mrf.mxu0
  %v2925 = vadd.f32 %v2907, %v2924
  %2926 = vmatmul.bf16.gmra.mxu0 %v617
  %v2927 = vpop.f32.mrf.mxu0
  %v2928 = vadd.f32 %v2910, %v2927
  %v2929 = vpop.f32.mrf.mxu0
  %2930 = vdwg.mxu0
  %2931 = vmatpush.bf16.msra.mxu0 %v2117
  %2932 = vmatpush.bf16.msra.mxu0 %v2115
  %2933 = vmatpush.bf16.msra.mxu0 %v2113
  %2934 = vmatpush.bf16.msra.mxu0 %v2111
  %2935 = vmatpush.bf16.msra.mxu0 %v2109
  %2936 = vmatpush.bf16.msra.mxu0 %v2107
  %2937 = vmatpush.bf16.msra.mxu0 %v2105
  %2938 = vmatpush.bf16.msra.mxu0 %v2103
  %2939 = vmatmul.bf16.gmra.mxu0 %v593
  %v2940 = vpop.f32.mrf.mxu0
  %v2941 = vadd.f32 %v2923, %v2940
  %v2942 = vpop.f32.mrf.mxu0
  %v2943 = vadd.f32 %v2925, %v2942
  %2944 = vmatmul.bf16.gmra.mxu0 %v618
  %v2945 = vpop.f32.mrf.mxu0
  %v2946 = vadd.f32 %v2928, %v2945
  %v2947 = vpop.f32.mrf.mxu0
  %2948 = vdwg.mxu0
  %2949 = vmatpush.bf16.msra.mxu0 %v2133
  %2950 = vmatpush.bf16.msra.mxu0 %v2131
  %2951 = vmatpush.bf16.msra.mxu0 %v2129
  %2952 = vmatpush.bf16.msra.mxu0 %v2127
  %2953 = vmatpush.bf16.msra.mxu0 %v2125
  %2954 = vmatpush.bf16.msra.mxu0 %v2123
  %2955 = vmatpush.bf16.msra.mxu0 %v2121
  %2956 = vmatpush.bf16.msra.mxu0 %v2119
  %2957 = vmatmul.bf16.gmra.mxu0 %v594
  %v2958 = vpop.f32.mrf.mxu0
  %v2959 = vadd.f32 %v2941, %v2958
  %v2960 = vpop.f32.mrf.mxu0
  %v2961 = vadd.f32 %v2943, %v2960
  %2962 = vmatmul.bf16.gmra.mxu0 %v619
  %v2963 = vpop.f32.mrf.mxu0
  %v2964 = vadd.f32 %v2946, %v2963
  %v2965 = vpop.f32.mrf.mxu0
  %2966 = vdwg.mxu0
  %2967 = vmatpush.bf16.msra.mxu0 %v2149
  %2968 = vmatpush.bf16.msra.mxu0 %v2147
  %2969 = vmatpush.bf16.msra.mxu0 %v2145
  %2970 = vmatpush.bf16.msra.mxu0 %v2143
  %2971 = vmatpush.bf16.msra.mxu0 %v2141
  %2972 = vmatpush.bf16.msra.mxu0 %v2139
  %2973 = vmatpush.bf16.msra.mxu0 %v2137
  %2974 = vmatpush.bf16.msra.mxu0 %v2135
  %2975 = vmatmul.bf16.gmra.mxu0 %v595
  %v2976 = vpop.f32.mrf.mxu0
  %v2977 = vadd.f32 %v2959, %v2976
  %v2978 = vpop.f32.mrf.mxu0
  %v2979 = vadd.f32 %v2961, %v2978
  %2980 = vmatmul.bf16.gmra.mxu0 %v620
  %v2981 = vpop.f32.mrf.mxu0
  %v2982 = vadd.f32 %v2964, %v2981
  %v2983 = vpop.f32.mrf.mxu0
  %2984 = vdwg.mxu0
  %2985 = vmatpush.bf16.msra.mxu0 %v2165
  %2986 = vmatpush.bf16.msra.mxu0 %v2163
  %2987 = vmatpush.bf16.msra.mxu0 %v2161
  %2988 = vmatpush.bf16.msra.mxu0 %v2159
  %2989 = vmatpush.bf16.msra.mxu0 %v2157
  %2990 = vmatpush.bf16.msra.mxu0 %v2155
  %2991 = vmatpush.bf16.msra.mxu0 %v2153
  %2992 = vmatpush.bf16.msra.mxu0 %v2151
  %2993 = vmatmul.bf16.gmra.mxu0 %v596
  %v2994 = vpop.f32.mrf.mxu0
  %v2995 = vadd.f32 %v2977, %v2994
  %v2996 = vpop.f32.mrf.mxu0
  %v2997 = vadd.f32 %v2979, %v2996
  %2998 = vmatmul.bf16.gmra.mxu0 %v621
  %v2999 = vpop.f32.mrf.mxu0
  %v3000 = vadd.f32 %v2982, %v2999
  %v3001 = vpop.f32.mrf.mxu0
  %3002 = vdwg.mxu0
  %3003 = vmatpush.bf16.msra.mxu0 %v2181
  %3004 = vmatpush.bf16.msra.mxu0 %v2179
  %3005 = vmatpush.bf16.msra.mxu0 %v2177
  %3006 = vmatpush.bf16.msra.mxu0 %v2175
  %3007 = vmatpush.bf16.msra.mxu0 %v2173
  %3008 = vmatpush.bf16.msra.mxu0 %v2171
  %3009 = vmatpush.bf16.msra.mxu0 %v2169
  %3010 = vmatpush.bf16.msra.mxu0 %v2167
  %3011 = vmatmul.bf16.gmra.mxu0 %v597
  %v3012 = vpop.f32.mrf.mxu0
  %v3013 = vadd.f32 %v2995, %v3012
  %v3014 = vpop.f32.mrf.mxu0
  %v3015 = vadd.f32 %v2997, %v3014
  %3016 = vmatmul.bf16.gmra.mxu0 %v622
  %v3017 = vpop.f32.mrf.mxu0
  %v3018 = vadd.f32 %v3000, %v3017
  %v3019 = vpop.f32.mrf.mxu0
  %3020 = vdwg.mxu0
  %3021 = vmatpush.bf16.msra.mxu0 %v2197
  %3022 = vmatpush.bf16.msra.mxu0 %v2195
  %3023 = vmatpush.bf16.msra.mxu0 %v2193
  %3024 = vmatpush.bf16.msra.mxu0 %v2191
  %3025 = vmatpush.bf16.msra.mxu0 %v2189
  %3026 = vmatpush.bf16.msra.mxu0 %v2187
  %3027 = vmatpush.bf16.msra.mxu0 %v2185
  %3028 = vmatpush.bf16.msra.mxu0 %v2183
  %3029 = vmatmul.bf16.gmra.mxu0 %v598
  %v3030 = vpop.f32.mrf.mxu0
  %v3031 = vadd.f32 %v3013, %v3030
  %v3032 = vpop.f32.mrf.mxu0
  %v3033 = vadd.f32 %v3015, %v3032
  %3034 = vmatmul.bf16.gmra.mxu0 %v623
  %v3035 = vpop.f32.mrf.mxu0
  %v3036 = vadd.f32 %v3018, %v3035
  %v3037 = vpop.f32.mrf.mxu0
  %3038 = vdwg.mxu0
  %3039 = vmatpush.bf16.msra.mxu0 %v2213
  %3040 = vmatpush.bf16.msra.mxu0 %v2211
  %3041 = vmatpush.bf16.msra.mxu0 %v2209
  %3042 = vmatpush.bf16.msra.mxu0 %v2207
  %3043 = vmatpush.bf16.msra.mxu0 %v2205
  %3044 = vmatpush.bf16.msra.mxu0 %v2203
  %3045 = vmatpush.bf16.msra.mxu0 %v2201
  %3046 = vmatpush.bf16.msra.mxu0 %v2199
  %3047 = vmatmul.bf16.gmra.mxu0 %v599
  %v3048 = vpop.f32.mrf.mxu0
  %v3049 = vadd.f32 %v3031, %v3048
  %v3050 = vpop.f32.mrf.mxu0
  %v3051 = vadd.f32 %v3033, %v3050
  %3052 = vmatmul.bf16.gmra.mxu0 %v624
  %v3053 = vpop.f32.mrf.mxu0
  %v3054 = vadd.f32 %v3036, %v3053
  %v3055 = vpop.f32.mrf.mxu0
  %3056 = vdwg.mxu0
  %3057 = vmatpush.bf16.msra.mxu0 %v2229
  %3058 = vmatpush.bf16.msra.mxu0 %v2227
  %3059 = vmatpush.bf16.msra.mxu0 %v2225
  %3060 = vmatpush.bf16.msra.mxu0 %v2223
  %3061 = vmatpush.bf16.msra.mxu0 %v2221
  %3062 = vmatpush.bf16.msra.mxu0 %v2219
  %3063 = vmatpush.bf16.msra.mxu0 %v2217
  %3064 = vmatpush.bf16.msra.mxu0 %v2215
  %3065 = vmatmul.bf16.gmra.mxu0 %v600
  %v3066 = vpop.f32.mrf.mxu0
  %v3067 = vadd.f32 %v3049, %v3066
  %v3068 = vpop.f32.mrf.mxu0
  %v3069 = vadd.f32 %v3051, %v3068
  %3070 = vmatmul.bf16.gmra.mxu0 %v625
  %v3071 = vpop.f32.mrf.mxu0
  %v3072 = vadd.f32 %v3054, %v3071
  %v3073 = vpop.f32.mrf.mxu0
  %3074 = vdwg.mxu0
  %3075 = vmatpush.bf16.msra.mxu0 %v2245
  %3076 = vmatpush.bf16.msra.mxu0 %v2243
  %3077 = vmatpush.bf16.msra.mxu0 %v2241
  %3078 = vmatpush.bf16.msra.mxu0 %v2239
  %3079 = vmatpush.bf16.msra.mxu0 %v2237
  %3080 = vmatpush.bf16.msra.mxu0 %v2235
  %3081 = vmatpush.bf16.msra.mxu0 %v2233
  %3082 = vmatpush.bf16.msra.mxu0 %v2231
  %3083 = vmatmul.bf16.gmra.mxu0 %v601
  %v3084 = vpop.f32.mrf.mxu0
  %v3085 = vadd.f32 %v3067, %v3084
  %v3086 = vpop.f32.mrf.mxu0
  %v3087 = vadd.f32 %v3069, %v3086
  %3088 = vmatmul.bf16.gmra.mxu0 %v626
  %v3089 = vpop.f32.mrf.mxu0
  %v3090 = vadd.f32 %v3072, %v3089
  %v3091 = vpop.f32.mrf.mxu0
  %3092 = vdwg.mxu0
  %3093 = vmatpush.bf16.msra.mxu0 %v2261
  %3094 = vmatpush.bf16.msra.mxu0 %v2259
  %3095 = vmatpush.bf16.msra.mxu0 %v2257
  %3096 = vmatpush.bf16.msra.mxu0 %v2255
  %3097 = vmatpush.bf16.msra.mxu0 %v2253
  %3098 = vmatpush.bf16.msra.mxu0 %v2251
  %3099 = vmatpush.bf16.msra.mxu0 %v2249
  %3100 = vmatpush.bf16.msra.mxu0 %v2247
  %3101 = vmatmul.bf16.gmra.mxu0 %v602
  %v3102 = vpop.f32.mrf.mxu0
  %v3103 = vadd.f32 %v3085, %v3102
  %v3104 = vpop.f32.mrf.mxu0
  %v3105 = vadd.f32 %v3087, %v3104
  %3106 = vmatmul.bf16.gmra.mxu0 %v627
  %v3107 = vpop.f32.mrf.mxu0
  %v3108 = vadd.f32 %v3090, %v3107
  %v3109 = vpop.f32.mrf.mxu0
  %3110 = vdwg.mxu0
  %3111 = vmatpush.bf16.msra.mxu0 %v2277
  %3112 = vmatpush.bf16.msra.mxu0 %v2275
  %3113 = vmatpush.bf16.msra.mxu0 %v2273
  %3114 = vmatpush.bf16.msra.mxu0 %v2271
  %3115 = vmatpush.bf16.msra.mxu0 %v2269
  %3116 = vmatpush.bf16.msra.mxu0 %v2267
  %3117 = vmatpush.bf16.msra.mxu0 %v2265
  %3118 = vmatpush.bf16.msra.mxu0 %v2263
  %3119 = vmatmul.bf16.gmra.mxu0 %v603
  %v3120 = vpop.f32.mrf.mxu0
  %v3121 = vadd.f32 %v3103, %v3120
  %v3122 = vpop.f32.mrf.mxu0
  %v3123 = vadd.f32 %v3105, %v3122
  %3124 = vmatmul.bf16.gmra.mxu0 %v628
  %v3125 = vpop.f32.mrf.mxu0
  %v3126 = vadd.f32 %v3108, %v3125
  %v3127 = vpop.f32.mrf.mxu0
  %3128 = vdwg.mxu0
  %3129 = vmatpush.bf16.msra.mxu0 %v1894
  %3130 = vmatpush.bf16.msra.mxu0 %v1892
  %3131 = vmatpush.bf16.msra.mxu0 %v1890
  %3132 = vmatpush.bf16.msra.mxu0 %v1888
  %3133 = vmatpush.bf16.msra.mxu0 %v1886
  %3134 = vmatpush.bf16.msra.mxu0 %v1884
  %3135 = vmatpush.bf16.msra.mxu0 %v1882
  %3136 = vmatpush.bf16.msra.mxu0 %v1880
  %3137 = vmatmul.bf16.gmra.mxu0 %v579
  %v3138 = vpop.f32.mrf.mxu0
  %v3139 = vadd.f32 %v462, %v3138
  %v3140 = vpop.f32.mrf.mxu0
  %v3141 = vadd.f32 %v462, %v3140
  %3142 = vmatmul.bf16.gmra.mxu0 %v604
  %v3143 = vpop.f32.mrf.mxu0
  %v3144 = vadd.f32 %v462, %v3143
  %v3145 = vpop.f32.mrf.mxu0
  %3146 = vdwg.mxu0
  %3147 = vmatpush.bf16.msra.mxu0 %v1910
  %3148 = vmatpush.bf16.msra.mxu0 %v1908
  %3149 = vmatpush.bf16.msra.mxu0 %v1906
  %3150 = vmatpush.bf16.msra.mxu0 %v1904
  %3151 = vmatpush.bf16.msra.mxu0 %v1902
  %3152 = vmatpush.bf16.msra.mxu0 %v1900
  %3153 = vmatpush.bf16.msra.mxu0 %v1898
  %3154 = vmatpush.bf16.msra.mxu0 %v1896
  %3155 = vmatmul.bf16.gmra.mxu0 %v580
  %v3156 = vpop.f32.mrf.mxu0
  %v3157 = vadd.f32 %v3139, %v3156
  %v3158 = vpop.f32.mrf.mxu0
  %v3159 = vadd.f32 %v3141, %v3158
  %3160 = vmatmul.bf16.gmra.mxu0 %v605
  %v3161 = vpop.f32.mrf.mxu0
  %v3162 = vadd.f32 %v3144, %v3161
  %v3163 = vpop.f32.mrf.mxu0
  %3164 = vdwg.mxu0
  %3165 = vmatpush.bf16.msra.mxu0 %v1926
  %3166 = vmatpush.bf16.msra.mxu0 %v1924
  %3167 = vmatpush.bf16.msra.mxu0 %v1922
  %3168 = vmatpush.bf16.msra.mxu0 %v1920
  %3169 = vmatpush.bf16.msra.mxu0 %v1918
  %3170 = vmatpush.bf16.msra.mxu0 %v1916
  %3171 = vmatpush.bf16.msra.mxu0 %v1914
  %3172 = vmatpush.bf16.msra.mxu0 %v1912
  %3173 = vmatmul.bf16.gmra.mxu0 %v581
  %v3174 = vpop.f32.mrf.mxu0
  %v3175 = vadd.f32 %v3157, %v3174
  %v3176 = vpop.f32.mrf.mxu0
  %v3177 = vadd.f32 %v3159, %v3176
  %3178 = vmatmul.bf16.gmra.mxu0 %v606
  %v3179 = vpop.f32.mrf.mxu0
  %v3180 = vadd.f32 %v3162, %v3179
  %v3181 = vpop.f32.mrf.mxu0
  %3182 = vdwg.mxu0
  %3183 = vmatpush.bf16.msra.mxu0 %v1942
  %3184 = vmatpush.bf16.msra.mxu0 %v1940
  %3185 = vmatpush.bf16.msra.mxu0 %v1938
  %3186 = vmatpush.bf16.msra.mxu0 %v1936
  %3187 = vmatpush.bf16.msra.mxu0 %v1934
  %3188 = vmatpush.bf16.msra.mxu0 %v1932
  %3189 = vmatpush.bf16.msra.mxu0 %v1930
  %3190 = vmatpush.bf16.msra.mxu0 %v1928
  %3191 = vmatmul.bf16.gmra.mxu0 %v582
  %v3192 = vpop.f32.mrf.mxu0
  %v3193 = vadd.f32 %v3175, %v3192
  %v3194 = vpop.f32.mrf.mxu0
  %v3195 = vadd.f32 %v3177, %v3194
  %3196 = vmatmul.bf16.gmra.mxu0 %v607
  %v3197 = vpop.f32.mrf.mxu0
  %v3198 = vadd.f32 %v3180, %v3197
  %v3199 = vpop.f32.mrf.mxu0
  %3200 = vdwg.mxu0
  %3201 = vmatpush.bf16.msra.mxu0 %v1958
  %3202 = vmatpush.bf16.msra.mxu0 %v1956
  %3203 = vmatpush.bf16.msra.mxu0 %v1954
  %3204 = vmatpush.bf16.msra.mxu0 %v1952
  %3205 = vmatpush.bf16.msra.mxu0 %v1950
  %3206 = vmatpush.bf16.msra.mxu0 %v1948
  %3207 = vmatpush.bf16.msra.mxu0 %v1946
  %3208 = vmatpush.bf16.msra.mxu0 %v1944
  %3209 = vmatmul.bf16.gmra.mxu0 %v583
  %v3210 = vpop.f32.mrf.mxu0
  %v3211 = vadd.f32 %v3193, %v3210
  %v3212 = vpop.f32.mrf.mxu0
  %v3213 = vadd.f32 %v3195, %v3212
  %3214 = vmatmul.bf16.gmra.mxu0 %v608
  %v3215 = vpop.f32.mrf.mxu0
  %v3216 = vadd.f32 %v3198, %v3215
  %v3217 = vpop.f32.mrf.mxu0
  %3218 = vdwg.mxu0
  %3219 = vmatpush.bf16.msra.mxu0 %v1974
  %3220 = vmatpush.bf16.msra.mxu0 %v1972
  %3221 = vmatpush.bf16.msra.mxu0 %v1970
  %3222 = vmatpush.bf16.msra.mxu0 %v1968
  %3223 = vmatpush.bf16.msra.mxu0 %v1966
  %3224 = vmatpush.bf16.msra.mxu0 %v1964
  %3225 = vmatpush.bf16.msra.mxu0 %v1962
  %3226 = vmatpush.bf16.msra.mxu0 %v1960
  %3227 = vmatmul.bf16.gmra.mxu0 %v584
  %v3228 = vpop.f32.mrf.mxu0
  %v3229 = vadd.f32 %v3211, %v3228
  %v3230 = vpop.f32.mrf.mxu0
  %v3231 = vadd.f32 %v3213, %v3230
  %3232 = vmatmul.bf16.gmra.mxu0 %v609
  %v3233 = vpop.f32.mrf.mxu0
  %v3234 = vadd.f32 %v3216, %v3233
  %v3235 = vpop.f32.mrf.mxu0
  %3236 = vdwg.mxu0
  %3237 = vmatpush.bf16.msra.mxu0 %v1990
  %3238 = vmatpush.bf16.msra.mxu0 %v1988
  %3239 = vmatpush.bf16.msra.mxu0 %v1986
  %3240 = vmatpush.bf16.msra.mxu0 %v1984
  %3241 = vmatpush.bf16.msra.mxu0 %v1982
  %3242 = vmatpush.bf16.msra.mxu0 %v1980
  %3243 = vmatpush.bf16.msra.mxu0 %v1978
  %3244 = vmatpush.bf16.msra.mxu0 %v1976
  %3245 = vmatmul.bf16.gmra.mxu0 %v585
  %v3246 = vpop.f32.mrf.mxu0
  %v3247 = vadd.f32 %v3229, %v3246
  %v3248 = vpop.f32.mrf.mxu0
  %v3249 = vadd.f32 %v3231, %v3248
  %3250 = vmatmul.bf16.gmra.mxu0 %v610
  %v3251 = vpop.f32.mrf.mxu0
  %v3252 = vadd.f32 %v3234, %v3251
  %v3253 = vpop.f32.mrf.mxu0
  %3254 = vdwg.mxu0
  %3255 = vmatpush.bf16.msra.mxu0 %v2006
  %3256 = vmatpush.bf16.msra.mxu0 %v2004
  %3257 = vmatpush.bf16.msra.mxu0 %v2002
  %3258 = vmatpush.bf16.msra.mxu0 %v2000
  %3259 = vmatpush.bf16.msra.mxu0 %v1998
  %3260 = vmatpush.bf16.msra.mxu0 %v1996
  %3261 = vmatpush.bf16.msra.mxu0 %v1994
  %3262 = vmatpush.bf16.msra.mxu0 %v1992
  %3263 = vmatmul.bf16.gmra.mxu0 %v586
  %v3264 = vpop.f32.mrf.mxu0
  %v3265 = vadd.f32 %v3247, %v3264
  %v3266 = vpop.f32.mrf.mxu0
  %v3267 = vadd.f32 %v3249, %v3266
  %3268 = vmatmul.bf16.gmra.mxu0 %v611
  %v3269 = vpop.f32.mrf.mxu0
  %v3270 = vadd.f32 %v3252, %v3269
  %v3271 = vpop.f32.mrf.mxu0
  %3272 = vdwg.mxu0
  %3273 = vmatpush.bf16.msra.mxu0 %v2022
  %3274 = vmatpush.bf16.msra.mxu0 %v2020
  %3275 = vmatpush.bf16.msra.mxu0 %v2018
  %3276 = vmatpush.bf16.msra.mxu0 %v2016
  %3277 = vmatpush.bf16.msra.mxu0 %v2014
  %3278 = vmatpush.bf16.msra.mxu0 %v2012
  %3279 = vmatpush.bf16.msra.mxu0 %v2010
  %3280 = vmatpush.bf16.msra.mxu0 %v2008
  %3281 = vmatmul.bf16.gmra.mxu0 %v587
  %v3282 = vpop.f32.mrf.mxu0
  %v3283 = vadd.f32 %v3265, %v3282
  %v3284 = vpop.f32.mrf.mxu0
  %v3285 = vadd.f32 %v3267, %v3284
  %3286 = vmatmul.bf16.gmra.mxu0 %v612
  %v3287 = vpop.f32.mrf.mxu0
  %v3288 = vadd.f32 %v3270, %v3287
  %v3289 = vpop.f32.mrf.mxu0
  %3290 = vdwg.mxu0
  %3291 = vmatpush.bf16.msra.mxu0 %v2038
  %3292 = vmatpush.bf16.msra.mxu0 %v2036
  %3293 = vmatpush.bf16.msra.mxu0 %v2034
  %3294 = vmatpush.bf16.msra.mxu0 %v2032
  %3295 = vmatpush.bf16.msra.mxu0 %v2030
  %3296 = vmatpush.bf16.msra.mxu0 %v2028
  %3297 = vmatpush.bf16.msra.mxu0 %v2026
  %3298 = vmatpush.bf16.msra.mxu0 %v2024
  %3299 = vmatmul.bf16.gmra.mxu0 %v588
  %v3300 = vpop.f32.mrf.mxu0
  %v3301 = vadd.f32 %v3283, %v3300
  %v3302 = vpop.f32.mrf.mxu0
  %v3303 = vadd.f32 %v3285, %v3302
  %3304 = vmatmul.bf16.gmra.mxu0 %v613
  %v3305 = vpop.f32.mrf.mxu0
  %v3306 = vadd.f32 %v3288, %v3305
  %v3307 = vpop.f32.mrf.mxu0
  %3308 = vdwg.mxu0
  %3309 = vmatpush.bf16.msra.mxu0 %v2054
  %3310 = vmatpush.bf16.msra.mxu0 %v2052
  %3311 = vmatpush.bf16.msra.mxu0 %v2050
  %3312 = vmatpush.bf16.msra.mxu0 %v2048
  %3313 = vmatpush.bf16.msra.mxu0 %v2046
  %3314 = vmatpush.bf16.msra.mxu0 %v2044
  %3315 = vmatpush.bf16.msra.mxu0 %v2042
  %3316 = vmatpush.bf16.msra.mxu0 %v2040
  %3317 = vmatmul.bf16.gmra.mxu0 %v589
  %v3318 = vpop.f32.mrf.mxu0
  %v3319 = vadd.f32 %v3301, %v3318
  %v3320 = vpop.f32.mrf.mxu0
  %v3321 = vadd.f32 %v3303, %v3320
  %3322 = vmatmul.bf16.gmra.mxu0 %v614
  %v3323 = vpop.f32.mrf.mxu0
  %v3324 = vadd.f32 %v3306, %v3323
  %v3325 = vpop.f32.mrf.mxu0
  %3326 = vdwg.mxu0
  %3327 = vmatpush.bf16.msra.mxu0 %v2070
  %3328 = vmatpush.bf16.msra.mxu0 %v2068
  %3329 = vmatpush.bf16.msra.mxu0 %v2066
  %3330 = vmatpush.bf16.msra.mxu0 %v2064
  %3331 = vmatpush.bf16.msra.mxu0 %v2062
  %3332 = vmatpush.bf16.msra.mxu0 %v2060
  %3333 = vmatpush.bf16.msra.mxu0 %v2058
  %3334 = vmatpush.bf16.msra.mxu0 %v2056
  %3335 = vmatmul.bf16.gmra.mxu0 %v590
  %v3336 = vpop.f32.mrf.mxu0
  %v3337 = vadd.f32 %v3319, %v3336
  %v3338 = vpop.f32.mrf.mxu0
  %v3339 = vadd.f32 %v3321, %v3338
  %3340 = vmatmul.bf16.gmra.mxu0 %v615
  %v3341 = vpop.f32.mrf.mxu0
  %v3342 = vadd.f32 %v3324, %v3341
  %v3343 = vpop.f32.mrf.mxu0
  %3344 = vdwg.mxu0
  %3345 = vmatpush.bf16.msra.mxu0 %v2086
  %3346 = vmatpush.bf16.msra.mxu0 %v2084
  %3347 = vmatpush.bf16.msra.mxu0 %v2082
  %3348 = vmatpush.bf16.msra.mxu0 %v2080
  %3349 = vmatpush.bf16.msra.mxu0 %v2078
  %3350 = vmatpush.bf16.msra.mxu0 %v2076
  %3351 = vmatpush.bf16.msra.mxu0 %v2074
  %3352 = vmatpush.bf16.msra.mxu0 %v2072
  %3353 = vmatmul.bf16.gmra.mxu0 %v591
  %v3354 = vpop.f32.mrf.mxu0
  %v3355 = vadd.f32 %v3337, %v3354
  %v3356 = vpop.f32.mrf.mxu0
  %v3357 = vadd.f32 %v3339, %v3356
  %3358 = vmatmul.bf16.gmra.mxu0 %v616
  %v3359 = vpop.f32.mrf.mxu0
  %v3360 = vadd.f32 %v3342, %v3359
  %v3361 = vpop.f32.mrf.mxu0
  %3362 = vdwg.mxu0
  %3363 = vmatpush.bf16.msra.mxu0 %v2102
  %3364 = vmatpush.bf16.msra.mxu0 %v2100
  %3365 = vmatpush.bf16.msra.mxu0 %v2098
  %3366 = vmatpush.bf16.msra.mxu0 %v2096
  %3367 = vmatpush.bf16.msra.mxu0 %v2094
  %3368 = vmatpush.bf16.msra.mxu0 %v2092
  %3369 = vmatpush.bf16.msra.mxu0 %v2090
  %3370 = vmatpush.bf16.msra.mxu0 %v2088
  %3371 = vmatmul.bf16.gmra.mxu0 %v592
  %v3372 = vpop.f32.mrf.mxu0
  %v3373 = vadd.f32 %v3355, %v3372
  %v3374 = vpop.f32.mrf.mxu0
  %v3375 = vadd.f32 %v3357, %v3374
  %3376 = vmatmul.bf16.gmra.mxu0 %v617
  %v3377 = vpop.f32.mrf.mxu0
  %v3378 = vadd.f32 %v3360, %v3377
  %v3379 = vpop.f32.mrf.mxu0
  %3380 = vdwg.mxu0
  %3381 = vmatpush.bf16.msra.mxu0 %v2118
  %3382 = vmatpush.bf16.msra.mxu0 %v2116
  %3383 = vmatpush.bf16.msra.mxu0 %v2114
  %3384 = vmatpush.bf16.msra.mxu0 %v2112
  %3385 = vmatpush.bf16.msra.mxu0 %v2110
  %3386 = vmatpush.bf16.msra.mxu0 %v2108
  %3387 = vmatpush.bf16.msra.mxu0 %v2106
  %3388 = vmatpush.bf16.msra.mxu0 %v2104
  %3389 = vmatmul.bf16.gmra.mxu0 %v593
  %v3390 = vpop.f32.mrf.mxu0
  %v3391 = vadd.f32 %v3373, %v3390
  %v3392 = vpop.f32.mrf.mxu0
  %v3393 = vadd.f32 %v3375, %v3392
  %3394 = vmatmul.bf16.gmra.mxu0 %v618
  %v3395 = vpop.f32.mrf.mxu0
  %v3396 = vadd.f32 %v3378, %v3395
  %v3397 = vpop.f32.mrf.mxu0
  %3398 = vdwg.mxu0
  %3399 = vmatpush.bf16.msra.mxu0 %v2134
  %3400 = vmatpush.bf16.msra.mxu0 %v2132
  %3401 = vmatpush.bf16.msra.mxu0 %v2130
  %3402 = vmatpush.bf16.msra.mxu0 %v2128
  %3403 = vmatpush.bf16.msra.mxu0 %v2126
  %3404 = vmatpush.bf16.msra.mxu0 %v2124
  %3405 = vmatpush.bf16.msra.mxu0 %v2122
  %3406 = vmatpush.bf16.msra.mxu0 %v2120
  %3407 = vmatmul.bf16.gmra.mxu0 %v594
  %v3408 = vpop.f32.mrf.mxu0
  %v3409 = vadd.f32 %v3391, %v3408
  %v3410 = vpop.f32.mrf.mxu0
  %v3411 = vadd.f32 %v3393, %v3410
  %3412 = vmatmul.bf16.gmra.mxu0 %v619
  %v3413 = vpop.f32.mrf.mxu0
  %v3414 = vadd.f32 %v3396, %v3413
  %v3415 = vpop.f32.mrf.mxu0
  %3416 = vdwg.mxu0
  %3417 = vmatpush.bf16.msra.mxu0 %v2150
  %3418 = vmatpush.bf16.msra.mxu0 %v2148
  %3419 = vmatpush.bf16.msra.mxu0 %v2146
  %3420 = vmatpush.bf16.msra.mxu0 %v2144
  %3421 = vmatpush.bf16.msra.mxu0 %v2142
  %3422 = vmatpush.bf16.msra.mxu0 %v2140
  %3423 = vmatpush.bf16.msra.mxu0 %v2138
  %3424 = vmatpush.bf16.msra.mxu0 %v2136
  %3425 = vmatmul.bf16.gmra.mxu0 %v595
  %v3426 = vpop.f32.mrf.mxu0
  %v3427 = vadd.f32 %v3409, %v3426
  %v3428 = vpop.f32.mrf.mxu0
  %v3429 = vadd.f32 %v3411, %v3428
  %3430 = vmatmul.bf16.gmra.mxu0 %v620
  %v3431 = vpop.f32.mrf.mxu0
  %v3432 = vadd.f32 %v3414, %v3431
  %v3433 = vpop.f32.mrf.mxu0
  %3434 = vdwg.mxu0
  %3435 = vmatpush.bf16.msra.mxu0 %v2166
  %3436 = vmatpush.bf16.msra.mxu0 %v2164
  %3437 = vmatpush.bf16.msra.mxu0 %v2162
  %3438 = vmatpush.bf16.msra.mxu0 %v2160
  %3439 = vmatpush.bf16.msra.mxu0 %v2158
  %3440 = vmatpush.bf16.msra.mxu0 %v2156
  %3441 = vmatpush.bf16.msra.mxu0 %v2154
  %3442 = vmatpush.bf16.msra.mxu0 %v2152
  %3443 = vmatmul.bf16.gmra.mxu0 %v596
  %v3444 = vpop.f32.mrf.mxu0
  %v3445 = vadd.f32 %v3427, %v3444
  %v3446 = vpop.f32.mrf.mxu0
  %v3447 = vadd.f32 %v3429, %v3446
  %3448 = vmatmul.bf16.gmra.mxu0 %v621
  %v3449 = vpop.f32.mrf.mxu0
  %v3450 = vadd.f32 %v3432, %v3449
  %v3451 = vpop.f32.mrf.mxu0
  %3452 = vdwg.mxu0
  %3453 = vmatpush.bf16.msra.mxu0 %v2182
  %3454 = vmatpush.bf16.msra.mxu0 %v2180
  %3455 = vmatpush.bf16.msra.mxu0 %v2178
  %3456 = vmatpush.bf16.msra.mxu0 %v2176
  %3457 = vmatpush.bf16.msra.mxu0 %v2174
  %3458 = vmatpush.bf16.msra.mxu0 %v2172
  %3459 = vmatpush.bf16.msra.mxu0 %v2170
  %3460 = vmatpush.bf16.msra.mxu0 %v2168
  %3461 = vmatmul.bf16.gmra.mxu0 %v597
  %v3462 = vpop.f32.mrf.mxu0
  %v3463 = vadd.f32 %v3445, %v3462
  %v3464 = vpop.f32.mrf.mxu0
  %v3465 = vadd.f32 %v3447, %v3464
  %3466 = vmatmul.bf16.gmra.mxu0 %v622
  %v3467 = vpop.f32.mrf.mxu0
  %v3468 = vadd.f32 %v3450, %v3467
  %v3469 = vpop.f32.mrf.mxu0
  %3470 = vdwg.mxu0
  %3471 = vmatpush.bf16.msra.mxu0 %v2198
  %3472 = vmatpush.bf16.msra.mxu0 %v2196
  %3473 = vmatpush.bf16.msra.mxu0 %v2194
  %3474 = vmatpush.bf16.msra.mxu0 %v2192
  %3475 = vmatpush.bf16.msra.mxu0 %v2190
  %3476 = vmatpush.bf16.msra.mxu0 %v2188
  %3477 = vmatpush.bf16.msra.mxu0 %v2186
  %3478 = vmatpush.bf16.msra.mxu0 %v2184
  %3479 = vmatmul.bf16.gmra.mxu0 %v598
  %v3480 = vpop.f32.mrf.mxu0
  %v3481 = vadd.f32 %v3463, %v3480
  %v3482 = vpop.f32.mrf.mxu0
  %v3483 = vadd.f32 %v3465, %v3482
  %3484 = vmatmul.bf16.gmra.mxu0 %v623
  %v3485 = vpop.f32.mrf.mxu0
  %v3486 = vadd.f32 %v3468, %v3485
  %v3487 = vpop.f32.mrf.mxu0
  %3488 = vdwg.mxu0
  %3489 = vmatpush.bf16.msra.mxu0 %v2214
  %3490 = vmatpush.bf16.msra.mxu0 %v2212
  %3491 = vmatpush.bf16.msra.mxu0 %v2210
  %3492 = vmatpush.bf16.msra.mxu0 %v2208
  %3493 = vmatpush.bf16.msra.mxu0 %v2206
  %3494 = vmatpush.bf16.msra.mxu0 %v2204
  %3495 = vmatpush.bf16.msra.mxu0 %v2202
  %3496 = vmatpush.bf16.msra.mxu0 %v2200
  %3497 = vmatmul.bf16.gmra.mxu0 %v599
  %v3498 = vpop.f32.mrf.mxu0
  %v3499 = vadd.f32 %v3481, %v3498
  %v3500 = vpop.f32.mrf.mxu0
  %v3501 = vadd.f32 %v3483, %v3500
  %3502 = vmatmul.bf16.gmra.mxu0 %v624
  %v3503 = vpop.f32.mrf.mxu0
  %v3504 = vadd.f32 %v3486, %v3503
  %v3505 = vpop.f32.mrf.mxu0
  %3506 = vdwg.mxu0
  %3507 = vmatpush.bf16.msra.mxu0 %v2230
  %3508 = vmatpush.bf16.msra.mxu0 %v2228
  %3509 = vmatpush.bf16.msra.mxu0 %v2226
  %3510 = vmatpush.bf16.msra.mxu0 %v2224
  %3511 = vmatpush.bf16.msra.mxu0 %v2222
  %3512 = vmatpush.bf16.msra.mxu0 %v2220
  %3513 = vmatpush.bf16.msra.mxu0 %v2218
  %3514 = vmatpush.bf16.msra.mxu0 %v2216
  %3515 = vmatmul.bf16.gmra.mxu0 %v600
  %v3516 = vpop.f32.mrf.mxu0
  %v3517 = vadd.f32 %v3499, %v3516
  %v3518 = vpop.f32.mrf.mxu0
  %v3519 = vadd.f32 %v3501, %v3518
  %3520 = vmatmul.bf16.gmra.mxu0 %v625
  %v3521 = vpop.f32.mrf.mxu0
  %v3522 = vadd.f32 %v3504, %v3521
  %v3523 = vpop.f32.mrf.mxu0
  %3524 = vdwg.mxu0
  %3525 = vmatpush.bf16.msra.mxu0 %v2246
  %3526 = vmatpush.bf16.msra.mxu0 %v2244
  %3527 = vmatpush.bf16.msra.mxu0 %v2242
  %3528 = vmatpush.bf16.msra.mxu0 %v2240
  %3529 = vmatpush.bf16.msra.mxu0 %v2238
  %3530 = vmatpush.bf16.msra.mxu0 %v2236
  %3531 = vmatpush.bf16.msra.mxu0 %v2234
  %3532 = vmatpush.bf16.msra.mxu0 %v2232
  %3533 = vmatmul.bf16.gmra.mxu0 %v601
  %v3534 = vpop.f32.mrf.mxu0
  %v3535 = vadd.f32 %v3517, %v3534
  %v3536 = vpop.f32.mrf.mxu0
  %v3537 = vadd.f32 %v3519, %v3536
  %3538 = vmatmul.bf16.gmra.mxu0 %v626
  %v3539 = vpop.f32.mrf.mxu0
  %v3540 = vadd.f32 %v3522, %v3539
  %v3541 = vpop.f32.mrf.mxu0
  %3542 = vdwg.mxu0
  %3543 = vmatpush.bf16.msra.mxu0 %v2262
  %3544 = vmatpush.bf16.msra.mxu0 %v2260
  %3545 = vmatpush.bf16.msra.mxu0 %v2258
  %3546 = vmatpush.bf16.msra.mxu0 %v2256
  %3547 = vmatpush.bf16.msra.mxu0 %v2254
  %3548 = vmatpush.bf16.msra.mxu0 %v2252
  %3549 = vmatpush.bf16.msra.mxu0 %v2250
  %3550 = vmatpush.bf16.msra.mxu0 %v2248
  %3551 = vmatmul.bf16.gmra.mxu0 %v602
  %v3552 = vpop.f32.mrf.mxu0
  %v3553 = vadd.f32 %v3535, %v3552
  %v3554 = vpop.f32.mrf.mxu0
  %v3555 = vadd.f32 %v3537, %v3554
  %3556 = vmatmul.bf16.gmra.mxu0 %v627
  %v3557 = vpop.f32.mrf.mxu0
  %v3558 = vadd.f32 %v3540, %v3557
  %v3559 = vpop.f32.mrf.mxu0
  %3560 = vdwg.mxu0
  %3561 = vmatpush.bf16.msra.mxu0 %v2278
  %3562 = vmatpush.bf16.msra.mxu0 %v2276
  %3563 = vmatpush.bf16.msra.mxu0 %v2274
  %3564 = vmatpush.bf16.msra.mxu0 %v2272
  %3565 = vmatpush.bf16.msra.mxu0 %v2270
  %3566 = vmatpush.bf16.msra.mxu0 %v2268
  %3567 = vmatpush.bf16.msra.mxu0 %v2266
  %3568 = vmatpush.bf16.msra.mxu0 %v2264
  %3569 = vmatmul.bf16.gmra.mxu0 %v603
  %v3570 = vpop.f32.mrf.mxu0
  %v3571 = vadd.f32 %v3553, %v3570
  %v3572 = vpop.f32.mrf.mxu0
  %v3573 = vadd.f32 %v3555, %v3572
  %3574 = vmatmul.bf16.gmra.mxu0 %v628
  %v3575 = vpop.f32.mrf.mxu0
  %v3576 = vadd.f32 %v3558, %v3575
  %v3577 = vpop.f32.mrf.mxu0
  %3578 = vdwg.mxu0
  %v3579 = vmax.f32 %v3121, 0.0
  %v3580 = vmax.f32 %v3571, 0.0
  %v3581 = vmax.f32 %v3123, 0.0
  %v3582 = vmax.f32 %v3573, 0.0
  %v3583 = vmax.f32 %v3126, 0.0
  %v3584 = vmax.f32 %v3576, 0.0
  %v3585 = vpack.c.bf16 %v3581, %v3579
  %v3586 = vpack.c.bf16 %v3582, %v3580
  %v3587 = vpack.c.bf16 %v3583, %v3583
  %v3588 = vpack.c.bf16 %v3584, %v3584
  %v3589 = vld [vmem:[%s3] sm:$0xff]
  %v3590 = vld [vmem:[%s3 + $0x8] sm:$0xff]
  %v3591 = vld [vmem:[%s3 + $0x10] sm:$0xf]
  %v3592 = vld [vmem:[%s3 + $0x14] sm:$0xff]
  %v3593 = vld [vmem:[%s3 + $0x1c] sm:$0xff]
  %v3594 = vld [vmem:[%s3 + $0x24] sm:$0xf]
  %v3595 = vld [vmem:[%s3 + $0x28] sm:$0xff]
  %v3596 = vld [vmem:[%s3 + $0x30] sm:$0xff]
  %v3597 = vld [vmem:[%s3 + $0x38] sm:$0xf]
  %v3598 = vld [vmem:[%s3 + $0x3c] sm:$0xff]
  %v3599 = vld [vmem:[%s3 + $0x44] sm:$0xff]
  %v3600 = vld [vmem:[%s3 + $0x4c] sm:$0xf]
  %v3601 = vld [vmem:[%s3 + $0x50] sm:$0xff]
  %v3602 = vld [vmem:[%s3 + $0x58] sm:$0xff]
  %v3603 = vld [vmem:[%s3 + $0x60] sm:$0xf]
  %v3604 = vld [vmem:[%s3 + $0x64] sm:$0xff]
  %v3605 = vld [vmem:[%s3 + $0x6c] sm:$0xff]
  %v3606 = vld [vmem:[%s3 + $0x74] sm:$0xf]
  %v3607 = vld [vmem:[%s3 + $0x78] sm:$0xff]
  %v3608 = vld [vmem:[%s3 + $0x80] sm:$0xff]
  %v3609 = vld [vmem:[%s3 + $0x88] sm:$0xf]
  %v3610 = vld [vmem:[%s3 + $0x8c] sm:$0xff]
  %v3611 = vld [vmem:[%s3 + $0x94] sm:$0xff]
  %v3612 = vld [vmem:[%s3 + $0x9c] sm:$0xf]
  %v3613 = vld [vmem:[%s3 + $0xa0] sm:$0xff]
  %v3614 = vld [vmem:[%s3 + $0xa8] sm:$0xff]
  %v3615 = vld [vmem:[%s3 + $0xb0] sm:$0xf]
  %v3616 = vld [vmem:[%s3 + $0xb4] sm:$0xff]
  %v3617 = vld [vmem:[%s3 + $0xbc] sm:$0xff]
  %v3618 = vld [vmem:[%s3 + $0xc4] sm:$0xf]
  %v3619 = vld [vmem:[%s3 + $0xc8] sm:$0xff]
  %v3620 = vld [vmem:[%s3 + $0xd0] sm:$0xff]
  %v3621 = vld [vmem:[%s3 + $0xd8] sm:$0xf]
  %v3622 = vld [vmem:[%s3 + $0xdc] sm:$0xff]
  %v3623 = vld [vmem:[%s3 + $0xe4] sm:$0xff]
  %v3624 = vld [vmem:[%s3 + $0xec] sm:$0xf]
  %v3625 = vld [vmem:[%s3 + $0xf0] sm:$0xff]
  %v3626 = vld [vmem:[%s3 + $0xf8] sm:$0xff]
  %v3627 = vld [vmem:[%s3 + $0x100] sm:$0xf]
  %v3628 = vld [vmem:[%s3 + $0x104] sm:$0xff]
  %v3629 = vld [vmem:[%s3 + $0x10c] sm:$0xff]
  %v3630 = vld [vmem:[%s3 + $0x114] sm:$0xf]
  %v3631 = vld [vmem:[%s3 + $0x118] sm:$0xff]
  %v3632 = vld [vmem:[%s3 + $0x120] sm:$0xff]
  %v3633 = vld [vmem:[%s3 + $0x128] sm:$0xf]
  %v3634 = vld [vmem:[%s3 + $0x12c] sm:$0xff]
  %v3635 = vld [vmem:[%s3 + $0x134] sm:$0xff]
  %v3636 = vld [vmem:[%s3 + $0x13c] sm:$0xf]
  %v3637 = vld [vmem:[%s3 + $0x140] sm:$0xff]
  %v3638 = vld [vmem:[%s3 + $0x148] sm:$0xff]
  %v3639 = vld [vmem:[%s3 + $0x150] sm:$0xf]
  %v3640 = vld [vmem:[%s3 + $0x154] sm:$0xff]
  %v3641 = vld [vmem:[%s3 + $0x15c] sm:$0xff]
  %v3642 = vld [vmem:[%s3 + $0x164] sm:$0xf]
  %v3643 = vld [vmem:[%s3 + $0x168] sm:$0xff]
  %v3644 = vld [vmem:[%s3 + $0x170] sm:$0xff]
  %v3645 = vld [vmem:[%s3 + $0x178] sm:$0xf]
  %v3646 = vld [vmem:[%s3 + $0x17c] sm:$0xff]
  %v3647 = vld [vmem:[%s3 + $0x184] sm:$0xff]
  %v3648 = vld [vmem:[%s3 + $0x18c] sm:$0xf]
  %v3649 = vld [vmem:[%s3 + $0x190] sm:$0xff]
  %v3650 = vld [vmem:[%s3 + $0x198] sm:$0xff]
  %v3651 = vld [vmem:[%s3 + $0x1a0] sm:$0xf]
  %v3652 = vld [vmem:[%s3 + $0x1a4] sm:$0xff]
  %v3653 = vld [vmem:[%s3 + $0x1ac] sm:$0xff]
  %v3654 = vld [vmem:[%s3 + $0x1b4] sm:$0xf]
  %v3655 = vld [vmem:[%s3 + $0x1b8] sm:$0xff]
  %v3656 = vld [vmem:[%s3 + $0x1c0] sm:$0xff]
  %v3657 = vld [vmem:[%s3 + $0x1c8] sm:$0xf]
  %v3658 = vld [vmem:[%s3 + $0x1cc] sm:$0xff]
  %v3659 = vld [vmem:[%s3 + $0x1d4] sm:$0xff]
  %v3660 = vld [vmem:[%s3 + $0x1dc] sm:$0xf]
  %v3661 = vld [vmem:[%s3 + $0x1e0] sm:$0xff]
  %v3662 = vld [vmem:[%s3 + $0x1e8] sm:$0xff]
  %v3663 = vld [vmem:[%s3 + $0x1f0] sm:$0xf]
  %v3664 = vld [vmem:[%s3 + $0x1f4] sm:$0xff]
  %v3665 = vld [vmem:[%s3 + $0x1fc] sm:$0xff]
  %v3666 = vld [vmem:[%s3 + $0x204] sm:$0xf]
  %v3667 = vld [vmem:[%s3 + $0x208] sm:$0xff]
  %v3668 = vld [vmem:[%s3 + $0x210] sm:$0xff]
  %v3669 = vld [vmem:[%s3 + $0x218] sm:$0xf]
  %v3670 = vld [vmem:[%s3 + $0x21c] sm:$0xff]
  %v3671 = vld [vmem:[%s3 + $0x224] sm:$0xff]
  %v3672 = vld [vmem:[%s3 + $0x22c] sm:$0xf]
  %v3673 = vld [vmem:[%s3 + $0x230] sm:$0xff]
  %v3674 = vld [vmem:[%s3 + $0x238] sm:$0xff]
  %v3675 = vld [vmem:[%s3 + $0x240] sm:$0xf]
  %v3676 = vld [vmem:[%s3 + $0x244] sm:$0xff]
  %v3677 = vld [vmem:[%s3 + $0x24c] sm:$0xff]
  %v3678 = vld [vmem:[%s3 + $0x254] sm:$0xf]
  %v3679 = vld [vmem:[%s3 + $0x258] sm:$0xff]
  %v3680 = vld [vmem:[%s3 + $0x260] sm:$0xff]
  %v3681 = vld [vmem:[%s3 + $0x268] sm:$0xf]
  %v3682 = vld [vmem:[%s3 + $0x26c] sm:$0xff]
  %v3683 = vld [vmem:[%s3 + $0x274] sm:$0xff]
  %v3684 = vld [vmem:[%s3 + $0x27c] sm:$0xf]
  %v3781 = vunpack.c.l.b16 %v3589
  %v3782 = vunpack.c.h.b16 %v3589
  %v3783 = vunpack.c.l.b16 %v3590
  %v3784 = vunpack.c.h.b16 %v3590
  %v3785 = vunpack.c.l.b16 %v3591
  %v3786 = vunpack.c.l.b16 %v3592
  %v3787 = vunpack.c.h.b16 %v3592
  %v3788 = vunpack.c.l.b16 %v3593
  %v3789 = vunpack.c.h.b16 %v3593
  %v3790 = vunpack.c.l.b16 %v3594
  %v3791 = vunpack.c.l.b16 %v3595
  %v3792 = vunpack.c.h.b16 %v3595
  %v3793 = vunpack.c.l.b16 %v3596
  %v3794 = vunpack.c.h.b16 %v3596
  %v3795 = vunpack.c.l.b16 %v3597
  %v3796 = vunpack.c.l.b16 %v3598
  %v3797 = vunpack.c.h.b16 %v3598
  %v3798 = vunpack.c.l.b16 %v3599
  %v3799 = vunpack.c.h.b16 %v3599
  %v3800 = vunpack.c.l.b16 %v3600
  %v3801 = vunpack.c.l.b16 %v3601
  %v3802 = vunpack.c.h.b16 %v3601
  %v3803 = vunpack.c.l.b16 %v3602
  %v3804 = vunpack.c.h.b16 %v3602
  %v3805 = vunpack.c.l.b16 %v3603
  %v3806 = vunpack.c.l.b16 %v3604
  %v3807 = vunpack.c.h.b16 %v3604
  %v3808 = vunpack.c.l.b16 %v3605
  %v3809 = vunpack.c.h.b16 %v3605
  %v3810 = vunpack.c.l.b16 %v3606
  %v3811 = vunpack.c.l.b16 %v3607
  %v3812 = vunpack.c.h.b16 %v3607
  %v3813 = vunpack.c.l.b16 %v3608
  %v3814 = vunpack.c.h.b16 %v3608
  %v3815 = vunpack.c.l.b16 %v3609
  %v3816 = vunpack.c.l.b16 %v3610
  %v3817 = vunpack.c.h.b16 %v3610
  %v3818 = vunpack.c.l.b16 %v3611
  %v3819 = vunpack.c.h.b16 %v3611
  %v3820 = vunpack.c.l.b16 %v3612
  %v3821 = vunpack.c.l.b16 %v3613
  %v3822 = vunpack.c.h.b16 %v3613
  %v3823 = vunpack.c.l.b16 %v3614
  %v3824 = vunpack.c.h.b16 %v3614
  %v3825 = vunpack.c.l.b16 %v3615
  %v3826 = vunpack.c.l.b16 %v3616
  %v3827 = vunpack.c.h.b16 %v3616
  %v3828 = vunpack.c.l.b16 %v3617
  %v3829 = vunpack.c.h.b16 %v3617
  %v3830 = vunpack.c.l.b16 %v3618
  %v3831 = vunpack.c.l.b16 %v3619
  %v3832 = vunpack.c.h.b16 %v3619
  %v3833 = vunpack.c.l.b16 %v3620
  %v3834 = vunpack.c.h.b16 %v3620
  %v3835 = vunpack.c.l.b16 %v3621
  %v3836 = vunpack.c.l.b16 %v3622
  %v3837 = vunpack.c.h.b16 %v3622
  %v3838 = vunpack.c.l.b16 %v3623
  %v3839 = vunpack.c.h.b16 %v3623
  %v3840 = vunpack.c.l.b16 %v3624
  %v3841 = vunpack.c.l.b16 %v3625
  %v3842 = vunpack.c.h.b16 %v3625
  %v3843 = vunpack.c.l.b16 %v3626
  %v3844 = vunpack.c.h.b16 %v3626
  %v3845 = vunpack.c.l.b16 %v3627
  %v3846 = vunpack.c.l.b16 %v3628
  %v3847 = vunpack.c.h.b16 %v3628
  %v3848 = vunpack.c.l.b16 %v3629
  %v3849 = vunpack.c.h.b16 %v3629
  %v3850 = vunpack.c.l.b16 %v3630
  %v3851 = vunpack.c.l.b16 %v3631
  %v3852 = vunpack.c.h.b16 %v3631
  %v3853 = vunpack.c.l.b16 %v3632
  %v3854 = vunpack.c.h.b16 %v3632
  %v3855 = vunpack.c.l.b16 %v3633
  %v3856 = vunpack.c.l.b16 %v3634
  %v3857 = vunpack.c.h.b16 %v3634
  %v3858 = vunpack.c.l.b16 %v3635
  %v3859 = vunpack.c.h.b16 %v3635
  %v3860 = vunpack.c.l.b16 %v3636
  %v3861 = vunpack.c.l.b16 %v3637
  %v3862 = vunpack.c.h.b16 %v3637
  %v3863 = vunpack.c.l.b16 %v3638
  %v3864 = vunpack.c.h.b16 %v3638
  %v3865 = vunpack.c.l.b16 %v3639
  %v3866 = vunpack.c.l.b16 %v3640
  %v3867 = vunpack.c.h.b16 %v3640
  %v3868 = vunpack.c.l.b16 %v3641
  %v3869 = vunpack.c.h.b16 %v3641
  %v3870 = vunpack.c.l.b16 %v3642
  %v3871 = vunpack.c.l.b16 %v3643
  %v3872 = vunpack.c.h.b16 %v3643
  %v3873 = vunpack.c.l.b16 %v3644
  %v3874 = vunpack.c.h.b16 %v3644
  %v3875 = vunpack.c.l.b16 %v3645
  %v3876 = vunpack.c.l.b16 %v3646
  %v3877 = vunpack.c.h.b16 %v3646
  %v3878 = vunpack.c.l.b16 %v3647
  %v3879 = vunpack.c.h.b16 %v3647
  %v3880 = vunpack.c.l.b16 %v3648
  %v3881 = vunpack.c.l.b16 %v3649
  %v3882 = vunpack.c.h.b16 %v3649
  %v3883 = vunpack.c.l.b16 %v3650
  %v3884 = vunpack.c.h.b16 %v3650
  %v3885 = vunpack.c.l.b16 %v3651
  %v3886 = vunpack.c.l.b16 %v3652
  %v3887 = vunpack.c.h.b16 %v3652
  %v3888 = vunpack.c.l.b16 %v3653
  %v3889 = vunpack.c.h.b16 %v3653
  %v3890 = vunpack.c.l.b16 %v3654
  %v3891 = vunpack.c.l.b16 %v3655
  %v3892 = vunpack.c.h.b16 %v3655
  %v3893 = vunpack.c.l.b16 %v3656
  %v3894 = vunpack.c.h.b16 %v3656
  %v3895 = vunpack.c.l.b16 %v3657
  %v3896 = vunpack.c.l.b16 %v3658
  %v3897 = vunpack.c.h.b16 %v3658
  %v3898 = vunpack.c.l.b16 %v3659
  %v3899 = vunpack.c.h.b16 %v3659
  %v3900 = vunpack.c.l.b16 %v3660
  %v3901 = vunpack.c.l.b16 %v3661
  %v3902 = vunpack.c.h.b16 %v3661
  %v3903 = vunpack.c.l.b16 %v3662
  %v3904 = vunpack.c.h.b16 %v3662
  %v3905 = vunpack.c.l.b16 %v3663
  %v3906 = vunpack.c.l.b16 %v3664
  %v3907 = vunpack.c.h.b16 %v3664
  %v3908 = vunpack.c.l.b16 %v3665
  %v3909 = vunpack.c.h.b16 %v3665
  %v3910 = vunpack.c.l.b16 %v3666
  %v3911 = vunpack.c.l.b16 %v3667
  %v3912 = vunpack.c.h.b16 %v3667
  %v3913 = vunpack.c.l.b16 %v3668
  %v3914 = vunpack.c.h.b16 %v3668
  %v3915 = vunpack.c.l.b16 %v3669
  %v3916 = vunpack.c.l.b16 %v3670
  %v3917 = vunpack.c.h.b16 %v3670
  %v3918 = vunpack.c.l.b16 %v3671
  %v3919 = vunpack.c.h.b16 %v3671
  %v3920 = vunpack.c.l.b16 %v3672
  %v3921 = vunpack.c.l.b16 %v3673
  %v3922 = vunpack.c.h.b16 %v3673
  %v3923 = vunpack.c.l.b16 %v3674
  %v3924 = vunpack.c.h.b16 %v3674
  %v3925 = vunpack.c.l.b16 %v3675
  %v3926 = vunpack.c.l.b16 %v3676
  %v3927 = vunpack.c.h.b16 %v3676
  %v3928 = vunpack.c.l.b16 %v3677
  %v3929 = vunpack.c.h.b16 %v3677
  %v3930 = vunpack.c.l.b16 %v3678
  %v3931 = vunpack.c.l.b16 %v3679
  %v3932 = vunpack.c.h.b16 %v3679
  %v3933 = vunpack.c.l.b16 %v3680
  %v3934 = vunpack.c.h.b16 %v3680
  %v3935 = vunpack.c.l.b16 %v3681
  %v3936 = vunpack.c.l.b16 %v3682
  %v3937 = vunpack.c.h.b16 %v3682
  %v3938 = vunpack.c.l.b16 %v3683
  %v3939 = vunpack.c.h.b16 %v3683
  %v3940 = vunpack.c.l.b16 %v3684
  %v3941 = vpack.c.b16 %v3786, %v3781
  %v3942 = vpack.c.b16 %v3787, %v3782
  %v3943 = vpack.c.b16 %v3788, %v3783
  %v3944 = vpack.c.b16 %v3789, %v3784
  %v3945 = vpack.c.b16 %v3790, %v3785
  %v3946 = vpack.c.b16 %v3796, %v3791
  %v3947 = vpack.c.b16 %v3797, %v3792
  %v3948 = vpack.c.b16 %v3798, %v3793
  %v3949 = vpack.c.b16 %v3799, %v3794
  %v3950 = vpack.c.b16 %v3800, %v3795
  %v3951 = vpack.c.b16 %v3806, %v3801
  %v3952 = vpack.c.b16 %v3807, %v3802
  %v3953 = vpack.c.b16 %v3808, %v3803
  %v3954 = vpack.c.b16 %v3809, %v3804
  %v3955 = vpack.c.b16 %v3810, %v3805
  %v3956 = vpack.c.b16 %v3816, %v3811
  %v3957 = vpack.c.b16 %v3817, %v3812
  %v3958 = vpack.c.b16 %v3818, %v3813
  %v3959 = vpack.c.b16 %v3819, %v3814
  %v3960 = vpack.c.b16 %v3820, %v3815
  %v3961 = vpack.c.b16 %v3826, %v3821
  %v3962 = vpack.c.b16 %v3827, %v3822
  %v3963 = vpack.c.b16 %v3828, %v3823
  %v3964 = vpack.c.b16 %v3829, %v3824
  %v3965 = vpack.c.b16 %v3830, %v3825
  %v3966 = vpack.c.b16 %v3836, %v3831
  %v3967 = vpack.c.b16 %v3837, %v3832
  %v3968 = vpack.c.b16 %v3838, %v3833
  %v3969 = vpack.c.b16 %v3839, %v3834
  %v3970 = vpack.c.b16 %v3840, %v3835
  %v3971 = vpack.c.b16 %v3846, %v3841
  %v3972 = vpack.c.b16 %v3847, %v3842
  %v3973 = vpack.c.b16 %v3848, %v3843
  %v3974 = vpack.c.b16 %v3849, %v3844
  %v3975 = vpack.c.b16 %v3850, %v3845
  %v3976 = vpack.c.b16 %v3856, %v3851
  %v3977 = vpack.c.b16 %v3857, %v3852
  %v3978 = vpack.c.b16 %v3858, %v3853
  %v3979 = vpack.c.b16 %v3859, %v3854
  %v3980 = vpack.c.b16 %v3860, %v3855
  %v3981 = vpack.c.b16 %v3866, %v3861
  %v3982 = vpack.c.b16 %v3867, %v3862
  %v3983 = vpack.c.b16 %v3868, %v3863
  %v3984 = vpack.c.b16 %v3869, %v3864
  %v3985 = vpack.c.b16 %v3870, %v3865
  %v3986 = vpack.c.b16 %v3876, %v3871
  %v3987 = vpack.c.b16 %v3877, %v3872
  %v3988 = vpack.c.b16 %v3878, %v3873
  %v3989 = vpack.c.b16 %v3879, %v3874
  %v3990 = vpack.c.b16 %v3880, %v3875
  %v3991 = vpack.c.b16 %v3886, %v3881
  %v3992 = vpack.c.b16 %v3887, %v3882
  %v3993 = vpack.c.b16 %v3888, %v3883
  %v3994 = vpack.c.b16 %v3889, %v3884
  %v3995 = vpack.c.b16 %v3890, %v3885
  %v3996 = vpack.c.b16 %v3896, %v3891
  %v3997 = vpack.c.b16 %v3897, %v3892
  %v3998 = vpack.c.b16 %v3898, %v3893
  %v3999 = vpack.c.b16 %v3899, %v3894
  %v4000 = vpack.c.b16 %v3900, %v3895
  %v4001 = vpack.c.b16 %v3906, %v3901
  %v4002 = vpack.c.b16 %v3907, %v3902
  %v4003 = vpack.c.b16 %v3908, %v3903
  %v4004 = vpack.c.b16 %v3909, %v3904
  %v4005 = vpack.c.b16 %v3910, %v3905
  %v4006 = vpack.c.b16 %v3916, %v3911
  %v4007 = vpack.c.b16 %v3917, %v3912
  %v4008 = vpack.c.b16 %v3918, %v3913
  %v4009 = vpack.c.b16 %v3919, %v3914
  %v4010 = vpack.c.b16 %v3920, %v3915
  %v4011 = vpack.c.b16 %v3926, %v3921
  %v4012 = vpack.c.b16 %v3927, %v3922
  %v4013 = vpack.c.b16 %v3928, %v3923
  %v4014 = vpack.c.b16 %v3929, %v3924
  %v4015 = vpack.c.b16 %v3930, %v3925
  %v4016 = vpack.c.b16 %v3936, %v3931
  %v4017 = vpack.c.b16 %v3937, %v3932
  %v4018 = vpack.c.b16 %v3938, %v3933
  %v4019 = vpack.c.b16 %v3939, %v3934
  %v4020 = vpack.c.b16 %v3940, %v3935
  %4101 = vmatpush.bf16.msra.mxu0 %v3976
  %4102 = vmatpush.bf16.msra.mxu0 %v3971
  %4103 = vmatpush.bf16.msra.mxu0 %v3966
  %4104 = vmatpush.bf16.msra.mxu0 %v3961
  %4105 = vmatpush.bf16.msra.mxu0 %v3956
  %4106 = vmatpush.bf16.msra.mxu0 %v3951
  %4107 = vmatpush.bf16.msra.mxu0 %v3946
  %4108 = vmatpush.bf16.msra.mxu0 %v3941
  %4109 = vmatmul.bf16.gmra.mxu0 %v3585
  %v4110 = vpop.f32.mrf.mxu0
  %v4111 = vadd.f32 0.0, %v4110
  %v4112 = vpop.f32.mrf.mxu0
  %v4113 = vadd.f32 0.0, %v4112
  %4114 = vmatmul.bf16.gmra.mxu0 %v3587
  %v4115 = vpop.f32.mrf.mxu0
  %v4116 = vadd.f32 0.0, %v4115
  %v4117 = vpop.f32.mrf.mxu0
  %4118 = vdwg.mxu0
  %4119 = vmatpush.bf16.msra.mxu0 %v4016
  %4120 = vmatpush.bf16.msra.mxu0 %v4011
  %4121 = vmatpush.bf16.msra.mxu0 %v4006
  %4122 = vmatpush.bf16.msra.mxu0 %v4001
  %4123 = vmatpush.bf16.msra.mxu0 %v3996
  %4124 = vmatpush.bf16.msra.mxu0 %v3991
  %4125 = vmatpush.bf16.msra.mxu0 %v3986
  %4126 = vmatpush.bf16.msra.mxu0 %v3981
  %4127 = vmatmul.bf16.gmra.mxu0 %v3586
  %v4128 = vpop.f32.mrf.mxu0
  %v4129 = vadd.f32 %v4111, %v4128
  %v4130 = vpop.f32.mrf.mxu0
  %v4131 = vadd.f32 %v4113, %v4130
  %4132 = vmatmul.bf16.gmra.mxu0 %v3588
  %v4133 = vpop.f32.mrf.mxu0
  %v4134 = vadd.f32 %v4116, %v4133
  %v4135 = vpop.f32.mrf.mxu0
  %4136 = vdwg.mxu0
  %4137 = vmatpush.bf16.msra.mxu0 %v3977
  %4138 = vmatpush.bf16.msra.mxu0 %v3972
  %4139 = vmatpush.bf16.msra.mxu0 %v3967
  %4140 = vmatpush.bf16.msra.mxu0 %v3962
  %4141 = vmatpush.bf16.msra.mxu0 %v3957
  %4142 = vmatpush.bf16.msra.mxu0 %v3952
  %4143 = vmatpush.bf16.msra.mxu0 %v3947
  %4144 = vmatpush.bf16.msra.mxu0 %v3942
  %4145 = vmatmul.bf16.gmra.mxu0 %v3585
  %v4146 = vpop.f32.mrf.mxu0
  %v4147 = vadd.f32 0.0, %v4146
  %v4148 = vpop.f32.mrf.mxu0
  %v4149 = vadd.f32 0.0, %v4148
  %4150 = vmatmul.bf16.gmra.mxu0 %v3587
  %v4151 = vpop.f32.mrf.mxu0
  %v4152 = vadd.f32 0.0, %v4151
  %v4153 = vpop.f32.mrf.mxu0
  %4154 = vdwg.mxu0
  %4155 = vmatpush.bf16.msra.mxu0 %v4017
  %4156 = vmatpush.bf16.msra.mxu0 %v4012
  %4157 = vmatpush.bf16.msra.mxu0 %v4007
  %4158 = vmatpush.bf16.msra.mxu0 %v4002
  %4159 = vmatpush.bf16.msra.mxu0 %v3997
  %4160 = vmatpush.bf16.msra.mxu0 %v3992
  %4161 = vmatpush.bf16.msra.mxu0 %v3987
  %4162 = vmatpush.bf16.msra.mxu0 %v3982
  %4163 = vmatmul.bf16.gmra.mxu0 %v3586
  %v4164 = vpop.f32.mrf.mxu0
  %v4165 = vadd.f32 %v4147, %v4164
  %v4166 = vpop.f32.mrf.mxu0
  %v4167 = vadd.f32 %v4149, %v4166
  %4168 = vmatmul.bf16.gmra.mxu0 %v3588
  %v4169 = vpop.f32.mrf.mxu0
  %v4170 = vadd.f32 %v4152, %v4169
  %v4171 = vpop.f32.mrf.mxu0
  %4172 = vdwg.mxu0
  %4173 = vmatpush.bf16.msra.mxu0 %v3978
  %4174 = vmatpush.bf16.msra.mxu0 %v3973
  %4175 = vmatpush.bf16.msra.mxu0 %v3968
  %4176 = vmatpush.bf16.msra.mxu0 %v3963
  %4177 = vmatpush.bf16.msra.mxu0 %v3958
  %4178 = vmatpush.bf16.msra.mxu0 %v3953
  %4179 = vmatpush.bf16.msra.mxu0 %v3948
  %4180 = vmatpush.bf16.msra.mxu0 %v3943
  %4181 = vmatmul.bf16.gmra.mxu0 %v3585
  %v4182 = vpop.f32.mrf.mxu0
  %v4183 = vadd.f32 0.0, %v4182
  %v4184 = vpop.f32.mrf.mxu0
  %v4185 = vadd.f32 0.0, %v4184
  %4186 = vmatmul.bf16.gmra.mxu0 %v3587
  %v4187 = vpop.f32.mrf.mxu0
  %v4188 = vadd.f32 0.0, %v4187
  %v4189 = vpop.f32.mrf.mxu0
  %4190 = vdwg.mxu0
  %4191 = vmatpush.bf16.msra.mxu0 %v4018
  %4192 = vmatpush.bf16.msra.mxu0 %v4013
  %4193 = vmatpush.bf16.msra.mxu0 %v4008
  %4194 = vmatpush.bf16.msra.mxu0 %v4003
  %4195 = vmatpush.bf16.msra.mxu0 %v3998
  %4196 = vmatpush.bf16.msra.mxu0 %v3993
  %4197 = vmatpush.bf16.msra.mxu0 %v3988
  %4198 = vmatpush.bf16.msra.mxu0 %v3983
  %4199 = vmatmul.bf16.gmra.mxu0 %v3586
  %v4200 = vpop.f32.mrf.mxu0
  %v4201 = vadd.f32 %v4183, %v4200
  %v4202 = vpop.f32.mrf.mxu0
  %v4203 = vadd.f32 %v4185, %v4202
  %4204 = vmatmul.bf16.gmra.mxu0 %v3588
  %v4205 = vpop.f32.mrf.mxu0
  %v4206 = vadd.f32 %v4188, %v4205
  %v4207 = vpop.f32.mrf.mxu0
  %4208 = vdwg.mxu0
  %4209 = vmatpush.bf16.msra.mxu0 %v3979
  %4210 = vmatpush.bf16.msra.mxu0 %v3974
  %4211 = vmatpush.bf16.msra.mxu0 %v3969
  %4212 = vmatpush.bf16.msra.mxu0 %v3964
  %4213 = vmatpush.bf16.msra.mxu0 %v3959
  %4214 = vmatpush.bf16.msra.mxu0 %v3954
  %4215 = vmatpush.bf16.msra.mxu0 %v3949
  %4216 = vmatpush.bf16.msra.mxu0 %v3944
  %4217 = vmatmul.bf16.gmra.mxu0 %v3585
  %v4218 = vpop.f32.mrf.mxu0
  %v4219 = vadd.f32 0.0, %v4218
  %v4220 = vpop.f32.mrf.mxu0
  %v4221 = vadd.f32 0.0, %v4220
  %4222 = vmatmul.bf16.gmra.mxu0 %v3587
  %v4223 = vpop.f32.mrf.mxu0
  %v4224 = vadd.f32 0.0, %v4223
  %v4225 = vpop.f32.mrf.mxu0
  %4226 = vdwg.mxu0
  %4227 = vmatpush.bf16.msra.mxu0 %v4019
  %4228 = vmatpush.bf16.msra.mxu0 %v4014
  %4229 = vmatpush.bf16.msra.mxu0 %v4009
  %4230 = vmatpush.bf16.msra.mxu0 %v4004
  %4231 = vmatpush.bf16.msra.mxu0 %v3999
  %4232 = vmatpush.bf16.msra.mxu0 %v3994
  %4233 = vmatpush.bf16.msra.mxu0 %v3989
  %4234 = vmatpush.bf16.msra.mxu0 %v3984
  %4235 = vmatmul.bf16.gmra.mxu0 %v3586
  %v4236 = vpop.f32.mrf.mxu0
  %v4237 = vadd.f32 %v4219, %v4236
  %v4238 = vpop.f32.mrf.mxu0
  %v4239 = vadd.f32 %v4221, %v4238
  %4240 = vmatmul.bf16.gmra.mxu0 %v3588
  %v4241 = vpop.f32.mrf.mxu0
  %v4242 = vadd.f32 %v4224, %v4241
  %v4243 = vpop.f32.mrf.mxu0
  %4244 = vdwg.mxu0
  %4245 = vmatpush.bf16.msra.mxu0 %v3980
  %4246 = vmatpush.bf16.msra.mxu0 %v3975
  %4247 = vmatpush.bf16.msra.mxu0 %v3970
  %4248 = vmatpush.bf16.msra.mxu0 %v3965
  %4249 = vmatpush.bf16.msra.mxu0 %v3960
  %4250 = vmatpush.bf16.msra.mxu0 %v3955
  %4251 = vmatpush.bf16.msra.mxu0 %v3950
  %4252 = vmatpush.bf16.msra.mxu0 %v3945
  %4253 = vmatmul.bf16.gmra.mxu0 %v3585
  %v4254 = vpop.f32.mrf.mxu0
  %v4255 = vadd.f32 0.0, %v4254
  %v4256 = vpop.f32.mrf.mxu0
  %v4257 = vadd.f32 0.0, %v4256
  %4258 = vmatmul.bf16.gmra.mxu0 %v3587
  %v4259 = vpop.f32.mrf.mxu0
  %v4260 = vadd.f32 0.0, %v4259
  %v4261 = vpop.f32.mrf.mxu0
  %4262 = vdwg.mxu0
  %4263 = vmatpush.bf16.msra.mxu0 %v4020
  %4264 = vmatpush.bf16.msra.mxu0 %v4015
  %4265 = vmatpush.bf16.msra.mxu0 %v4010
  %4266 = vmatpush.bf16.msra.mxu0 %v4005
  %4267 = vmatpush.bf16.msra.mxu0 %v4000
  %4268 = vmatpush.bf16.msra.mxu0 %v3995
  %4269 = vmatpush.bf16.msra.mxu0 %v3990
  %4270 = vmatpush.bf16.msra.mxu0 %v3985
  %4271 = vmatmul.bf16.gmra.mxu0 %v3586
  %v4272 = vpop.f32.mrf.mxu0
  %v4273 = vadd.f32 %v4255, %v4272
  %v4274 = vpop.f32.mrf.mxu0
  %v4275 = vadd.f32 %v4257, %v4274
  %4276 = vmatmul.bf16.gmra.mxu0 %v3588
  %v4277 = vpop.f32.mrf.mxu0
  %v4278 = vadd.f32 %v4260, %v4277
  %v4279 = vpop.f32.mrf.mxu0
  %4280 = vdwg.mxu0
  %v4281 = vmax.f32 %v4129, 0.0
  %v4282 = vmax.f32 %v4165, 0.0
  %v4283 = vmax.f32 %v4201, 0.0
  %v4284 = vmax.f32 %v4237, 0.0
  %v4285 = vmax.f32 %v4273, 0.0
  %v4286 = vmax.f32 %v4131, 0.0
  %v4287 = vmax.f32 %v4167, 0.0
  %v4288 = vmax.f32 %v4203, 0.0
  %v4289 = vmax.f32 %v4239, 0.0
  %v4290 = vmax.f32 %v4275, 0.0
  %v4291 = vmax.f32 %v4134, 0.0
  %v4292 = vmax.f32 %v4170, 0.0
  %v4293 = vmax.f32 %v4206, 0.0
  %v4294 = vmax.f32 %v4242, 0.0
  %v4295 = vmax.f32 %v4278, 0.0
  %v4296 = vpack.c.bf16 %v4286, %v4281
  %v4297 = vpack.c.bf16 %v4287, %v4282
  %v4298 = vpack.c.bf16 %v4288, %v4283
  %v4299 = vpack.c.bf16 %v4289, %v4284
  %v4300 = vpack.c.bf16 %v4290, %v4285
  %v4301 = vpack.c.bf16 %v4291, %v4291
  %v4302 = vpack.c.bf16 %v4292, %v4292
  %v4303 = vpack.c.bf16 %v4293, %v4293
  %v4304 = vpack.c.bf16 %v4294, %v4294
  %v4305 = vpack.c.bf16 %v4295, %v4295
  %v4306 = vld [vmem:[%s4] sm:$0xf]
  %v4307 = vld [vmem:[%s4 + $0x4] sm:$0xf]
  %v4308 = vld [vmem:[%s4 + $0x8] sm:$0xf]
  %v4309 = vld [vmem:[%s4 + $0xc] sm:$0xf]
  %v4310 = vld [vmem:[%s4 + $0x10] sm:$0xf]
  %v4311 = vld [vmem:[%s4 + $0x14] sm:$0xf]
  %v4312 = vld [vmem:[%s4 + $0x18] sm:$0xf]
  %v4313 = vld [vmem:[%s4 + $0x1c] sm:$0xf]
  %v4314 = vld [vmem:[%s4 + $0x20] sm:$0xf]
  %v4315 = vld [vmem:[%s4 + $0x24] sm:$0xf]
  %v4316 = vld [vmem:[%s4 + $0x28] sm:$0xf]
  %v4317 = vld [vmem:[%s4 + $0x2c] sm:$0xf]
  %v4318 = vld [vmem:[%s4 + $0x30] sm:$0xf]
  %v4319 = vld [vmem:[%s4 + $0x34] sm:$0xf]
  %v4320 = vld [vmem:[%s4 + $0x38] sm:$0xf]
  %v4321 = vld [vmem:[%s4 + $0x3c] sm:$0xf]
  %v4322 = vld [vmem:[%s4 + $0x40] sm:$0xf]
  %v4323 = vld [vmem:[%s4 + $0x44] sm:$0xf]
  %v4324 = vld [vmem:[%s4 + $0x48] sm:$0xf]
  %v4325 = vld [vmem:[%s4 + $0x4c] sm:$0xf]
  %v4326 = vld [vmem:[%s4 + $0x50] sm:$0xf]
  %v4327 = vld [vmem:[%s4 + $0x54] sm:$0xf]
  %v4328 = vld [vmem:[%s4 + $0x58] sm:$0xf]
  %v4329 = vld [vmem:[%s4 + $0x5c] sm:$0xf]
  %v4330 = vld [vmem:[%s4 + $0x60] sm:$0xf]
  %v4331 = vld [vmem:[%s4 + $0x64] sm:$0xf]
  %v4332 = vld [vmem:[%s4 + $0x68] sm:$0xf]
  %v4333 = vld [vmem:[%s4 + $0x6c] sm:$0xf]
  %v4334 = vld [vmem:[%s4 + $0x70] sm:$0xf]
  %v4335 = vld [vmem:[%s4 + $0x74] sm:$0xf]
  %v4336 = vld [vmem:[%s4 + $0x78] sm:$0xf]
  %v4337 = vld [vmem:[%s4 + $0x7c] sm:$0xf]
  %v4338 = vld [vmem:[%s4 + $0x80] sm:$0xf]
  %v4339 = vld [vmem:[%s4 + $0x84] sm:$0xf]
  %v4340 = vld [vmem:[%s4 + $0x88] sm:$0xf]
  %v4341 = vld [vmem:[%s4 + $0x8c] sm:$0xf]
  %v4342 = vld [vmem:[%s4 + $0x90] sm:$0xf]
  %v4343 = vld [vmem:[%s4 + $0x94] sm:$0xf]
  %v4344 = vld [vmem:[%s4 + $0x98] sm:$0xf]
  %v4345 = vld [vmem:[%s4 + $0x9c] sm:$0xf]
  %v4346 = vld [vmem:[%s4 + $0xa0] sm:$0xf]
  %v4347 = vld [vmem:[%s4 + $0xa4] sm:$0xf]
  %v4348 = vld [vmem:[%s4 + $0xa8] sm:$0xf]
  %v4349 = vld [vmem:[%s4 + $0xac] sm:$0xf]
  %v4350 = vld [vmem:[%s4 + $0xb0] sm:$0xf]
  %v4351 = vld [vmem:[%s4 + $0xb4] sm:$0xf]
  %v4352 = vld [vmem:[%s4 + $0xb8] sm:$0xf]
  %v4353 = vld [vmem:[%s4 + $0xbc] sm:$0xf]
  %v4354 = vld [vmem:[%s4 + $0xc0] sm:$0xf]
  %v4355 = vld [vmem:[%s4 + $0xc4] sm:$0xf]
  %v4356 = vld [vmem:[%s4 + $0xc8] sm:$0xf]
  %v4357 = vld [vmem:[%s4 + $0xcc] sm:$0xf]
  %v4358 = vld [vmem:[%s4 + $0xd0] sm:$0xf]
  %v4359 = vld [vmem:[%s4 + $0xd4] sm:$0xf]
  %v4360 = vld [vmem:[%s4 + $0xd8] sm:$0xf]
  %v4361 = vld [vmem:[%s4 + $0xdc] sm:$0xf]
  %v4362 = vld [vmem:[%s4 + $0xe0] sm:$0xf]
  %v4363 = vld [vmem:[%s4 + $0xe4] sm:$0xf]
  %v4364 = vld [vmem:[%s4 + $0xe8] sm:$0xf]
  %v4365 = vld [vmem:[%s4 + $0xec] sm:$0xf]
  %v4366 = vld [vmem:[%s4 + $0xf0] sm:$0xf]
  %v4367 = vld [vmem:[%s4 + $0xf4] sm:$0xf]
  %v4368 = vld [vmem:[%s4 + $0xf8] sm:$0xf]
  %v4369 = vld [vmem:[%s4 + $0xfc] sm:$0xf]
  %v4370 = vld [vmem:[%s4 + $0x100] sm:$0xf]
  %v4371 = vld [vmem:[%s4 + $0x104] sm:$0xf]
  %v4372 = vld [vmem:[%s4 + $0x108] sm:$0xf]
  %v4373 = vld [vmem:[%s4 + $0x10c] sm:$0xf]
  %v4374 = vld [vmem:[%s4 + $0x110] sm:$0xf]
  %v4375 = vld [vmem:[%s4 + $0x114] sm:$0xf]
  %v4376 = vld [vmem:[%s4 + $0x118] sm:$0xf]
  %v4377 = vld [vmem:[%s4 + $0x11c] sm:$0xf]
  %v4378 = vld [vmem:[%s4 + $0x120] sm:$0xf]
  %v4379 = vld [vmem:[%s4 + $0x124] sm:$0xf]
  %v4380 = vld [vmem:[%s4 + $0x128] sm:$0xf]
  %v4381 = vld [vmem:[%s4 + $0x12c] sm:$0xf]
  %v4382 = vld [vmem:[%s4 + $0x130] sm:$0xf]
  %v4383 = vld [vmem:[%s4 + $0x134] sm:$0xf]
  %v4384 = vld [vmem:[%s4 + $0x138] sm:$0xf]
  %v4385 = vld [vmem:[%s4 + $0x13c] sm:$0xf]
  %v4466 = vunpack.c.l.b16 %v4306
  %v4467 = vunpack.c.l.b16 %v4307
  %v4468 = vunpack.c.l.b16 %v4308
  %v4469 = vunpack.c.l.b16 %v4309
  %v4470 = vunpack.c.l.b16 %v4310
  %v4471 = vunpack.c.l.b16 %v4311
  %v4472 = vunpack.c.l.b16 %v4312
  %v4473 = vunpack.c.l.b16 %v4313
  %v4474 = vunpack.c.l.b16 %v4314
  %v4475 = vunpack.c.l.b16 %v4315
  %v4476 = vunpack.c.l.b16 %v4316
  %v4477 = vunpack.c.l.b16 %v4317
  %v4478 = vunpack.c.l.b16 %v4318
  %v4479 = vunpack.c.l.b16 %v4319
  %v4480 = vunpack.c.l.b16 %v4320
  %v4481 = vunpack.c.l.b16 %v4321
  %v4482 = vunpack.c.l.b16 %v4322
  %v4483 = vunpack.c.l.b16 %v4323
  %v4484 = vunpack.c.l.b16 %v4324
  %v4485 = vunpack.c.l.b16 %v4325
  %v4486 = vunpack.c.l.b16 %v4326
  %v4487 = vunpack.c.l.b16 %v4327
  %v4488 = vunpack.c.l.b16 %v4328
  %v4489 = vunpack.c.l.b16 %v4329
  %v4490 = vunpack.c.l.b16 %v4330
  %v4491 = vunpack.c.l.b16 %v4331
  %v4492 = vunpack.c.l.b16 %v4332
  %v4493 = vunpack.c.l.b16 %v4333
  %v4494 = vunpack.c.l.b16 %v4334
  %v4495 = vunpack.c.l.b16 %v4335
  %v4496 = vunpack.c.l.b16 %v4336
  %v4497 = vunpack.c.l.b16 %v4337
  %v4498 = vunpack.c.l.b16 %v4338
  %v4499 = vunpack.c.l.b16 %v4339
  %v4500 = vunpack.c.l.b16 %v4340
  %v4501 = vunpack.c.l.b16 %v4341
  %v4502 = vunpack.c.l.b16 %v4342
  %v4503 = vunpack.c.l.b16 %v4343
  %v4504 = vunpack.c.l.b16 %v4344
  %v4505 = vunpack.c.l.b16 %v4345
  %v4506 = vunpack.c.l.b16 %v4346
  %v4507 = vunpack.c.l.b16 %v4347
  %v4508 = vunpack.c.l.b16 %v4348
  %v4509 = vunpack.c.l.b16 %v4349
  %v4510 = vunpack.c.l.b16 %v4350
  %v4511 = vunpack.c.l.b16 %v4351
  %v4512 = vunpack.c.l.b16 %v4352
  %v4513 = vunpack.c.l.b16 %v4353
  %v4514 = vunpack.c.l.b16 %v4354
  %v4515 = vunpack.c.l.b16 %v4355
  %v4516 = vunpack.c.l.b16 %v4356
  %v4517 = vunpack.c.l.b16 %v4357
  %v4518 = vunpack.c.l.b16 %v4358
  %v4519 = vunpack.c.l.b16 %v4359
  %v4520 = vunpack.c.l.b16 %v4360
  %v4521 = vunpack.c.l.b16 %v4361
  %v4522 = vunpack.c.l.b16 %v4362
  %v4523 = vunpack.c.l.b16 %v4363
  %v4524 = vunpack.c.l.b16 %v4364
  %v4525 = vunpack.c.l.b16 %v4365
  %v4526 = vunpack.c.l.b16 %v4366
  %v4527 = vunpack.c.l.b16 %v4367
  %v4528 = vunpack.c.l.b16 %v4368
  %v4529 = vunpack.c.l.b16 %v4369
  %v4530 = vunpack.c.l.b16 %v4370
  %v4531 = vunpack.c.l.b16 %v4371
  %v4532 = vunpack.c.l.b16 %v4372
  %v4533 = vunpack.c.l.b16 %v4373
  %v4534 = vunpack.c.l.b16 %v4374
  %v4535 = vunpack.c.l.b16 %v4375
  %v4536 = vunpack.c.l.b16 %v4376
  %v4537 = vunpack.c.l.b16 %v4377
  %v4538 = vunpack.c.l.b16 %v4378
  %v4539 = vunpack.c.l.b16 %v4379
  %v4540 = vunpack.c.l.b16 %v4380
  %v4541 = vunpack.c.l.b16 %v4381
  %v4542 = vunpack.c.l.b16 %v4382
  %v4543 = vunpack.c.l.b16 %v4383
  %v4544 = vunpack.c.l.b16 %v4384
  %v4545 = vunpack.c.l.b16 %v4385
  %v4546 = vpack.c.b16 %v4467, %v4466
  %v4547 = vpack.c.b16 %v4469, %v4468
  %v4548 = vpack.c.b16 %v4471, %v4470
  %v4549 = vpack.c.b16 %v4473, %v4472
  %v4550 = vpack.c.b16 %v4475, %v4474
  %v4551 = vpack.c.b16 %v4477, %v4476
  %v4552 = vpack.c.b16 %v4479, %v4478
  %v4553 = vpack.c.b16 %v4481, %v4480
  %v4554 = vpack.c.b16 %v4483, %v4482
  %v4555 = vpack.c.b16 %v4485, %v4484
  %v4556 = vpack.c.b16 %v4487, %v4486
  %v4557 = vpack.c.b16 %v4489, %v4488
  %v4558 = vpack.c.b16 %v4491, %v4490
  %v4559 = vpack.c.b16 %v4493, %v4492
  %v4560 = vpack.c.b16 %v4495, %v4494
  %v4561 = vpack.c.b16 %v4497, %v4496
  %v4562 = vpack.c.b16 %v4499, %v4498
  %v4563 = vpack.c.b16 %v4501, %v4500
  %v4564 = vpack.c.b16 %v4503, %v4502
  %v4565 = vpack.c.b16 %v4505, %v4504
  %v4566 = vpack.c.b16 %v4507, %v4506
  %v4567 = vpack.c.b16 %v4509, %v4508
  %v4568 = vpack.c.b16 %v4511, %v4510
  %v4569 = vpack.c.b16 %v4513, %v4512
  %v4570 = vpack.c.b16 %v4515, %v4514
  %v4571 = vpack.c.b16 %v4517, %v4516
  %v4572 = vpack.c.b16 %v4519, %v4518
  %v4573 = vpack.c.b16 %v4521, %v4520
  %v4574 = vpack.c.b16 %v4523, %v4522
  %v4575 = vpack.c.b16 %v4525, %v4524
  %v4576 = vpack.c.b16 %v4527, %v4526
  %v4577 = vpack.c.b16 %v4529, %v4528
  %v4578 = vpack.c.b16 %v4531, %v4530
  %v4579 = vpack.c.b16 %v4533, %v4532
  %v4580 = vpack.c.b16 %v4535, %v4534
  %v4581 = vpack.c.b16 %v4537, %v4536
  %v4582 = vpack.c.b16 %v4539, %v4538
  %v4583 = vpack.c.b16 %v4541, %v4540
  %v4584 = vpack.c.b16 %v4543, %v4542
  %v4585 = vpack.c.b16 %v4545, %v4544
  %4626 = vmatpush.bf16.msra.mxu0 %v4553
  %4627 = vmatpush.bf16.msra.mxu0 %v4552
  %4628 = vmatpush.bf16.msra.mxu0 %v4551
  %4629 = vmatpush.bf16.msra.mxu0 %v4550
  %4630 = vmatpush.bf16.msra.mxu0 %v4549
  %4631 = vmatpush.bf16.msra.mxu0 %v4548
  %4632 = vmatpush.bf16.msra.mxu0 %v4547
  %4633 = vmatpush.bf16.msra.mxu0 %v4546
  %4634 = vmatmul.bf16.gmra.mxu0 %v4296
  %v4635 = vpop.f32.mrf.mxu0
  %v4636 = vadd.f32 0.0, %v4635
  %v4637 = vpop.f32.mrf.mxu0
  %v4638 = vadd.f32 0.0, %v4637
  %4639 = vmatmul.bf16.gmra.mxu0 %v4301
  %v4640 = vpop.f32.mrf.mxu0
  %v4641 = vadd.f32 0.0, %v4640
  %v4642 = vpop.f32.mrf.mxu0
  %4643 = vdwg.mxu0
  %4644 = vmatpush.bf16.msra.mxu0 %v4561
  %4645 = vmatpush.bf16.msra.mxu0 %v4560
  %4646 = vmatpush.bf16.msra.mxu0 %v4559
  %4647 = vmatpush.bf16.msra.mxu0 %v4558
  %4648 = vmatpush.bf16.msra.mxu0 %v4557
  %4649 = vmatpush.bf16.msra.mxu0 %v4556
  %4650 = vmatpush.bf16.msra.mxu0 %v4555
  %4651 = vmatpush.bf16.msra.mxu0 %v4554
  %4652 = vmatmul.bf16.gmra.mxu0 %v4297
  %v4653 = vpop.f32.mrf.mxu0
  %v4654 = vadd.f32 %v4636, %v4653
  %v4655 = vpop.f32.mrf.mxu0
  %v4656 = vadd.f32 %v4638, %v4655
  %4657 = vmatmul.bf16.gmra.mxu0 %v4302
  %v4658 = vpop.f32.mrf.mxu0
  %v4659 = vadd.f32 %v4641, %v4658
  %v4660 = vpop.f32.mrf.mxu0
  %4661 = vdwg.mxu0
  %4662 = vmatpush.bf16.msra.mxu0 %v4569
  %4663 = vmatpush.bf16.msra.mxu0 %v4568
  %4664 = vmatpush.bf16.msra.mxu0 %v4567
  %4665 = vmatpush.bf16.msra.mxu0 %v4566
  %4666 = vmatpush.bf16.msra.mxu0 %v4565
  %4667 = vmatpush.bf16.msra.mxu0 %v4564
  %4668 = vmatpush.bf16.msra.mxu0 %v4563
  %4669 = vmatpush.bf16.msra.mxu0 %v4562
  %4670 = vmatmul.bf16.gmra.mxu0 %v4298
  %v4671 = vpop.f32.mrf.mxu0
  %v4672 = vadd.f32 %v4654, %v4671
  %v4673 = vpop.f32.mrf.mxu0
  %v4674 = vadd.f32 %v4656, %v4673
  %4675 = vmatmul.bf16.gmra.mxu0 %v4303
  %v4676 = vpop.f32.mrf.mxu0
  %v4677 = vadd.f32 %v4659, %v4676
  %v4678 = vpop.f32.mrf.mxu0
  %4679 = vdwg.mxu0
  %4680 = vmatpush.bf16.msra.mxu0 %v4577
  %4681 = vmatpush.bf16.msra.mxu0 %v4576
  %4682 = vmatpush.bf16.msra.mxu0 %v4575
  %4683 = vmatpush.bf16.msra.mxu0 %v4574
  %4684 = vmatpush.bf16.msra.mxu0 %v4573
  %4685 = vmatpush.bf16.msra.mxu0 %v4572
  %4686 = vmatpush.bf16.msra.mxu0 %v4571
  %4687 = vmatpush.bf16.msra.mxu0 %v4570
  %4688 = vmatmul.bf16.gmra.mxu0 %v4299
  %v4689 = vpop.f32.mrf.mxu0
  %v4690 = vadd.f32 %v4672, %v4689
  %v4691 = vpop.f32.mrf.mxu0
  %v4692 = vadd.f32 %v4674, %v4691
  %4693 = vmatmul.bf16.gmra.mxu0 %v4304
  %v4694 = vpop.f32.mrf.mxu0
  %v4695 = vadd.f32 %v4677, %v4694
  %v4696 = vpop.f32.mrf.mxu0
  %4697 = vdwg.mxu0
  %4698 = vmatpush.bf16.msra.mxu0 %v4585
  %4699 = vmatpush.bf16.msra.mxu0 %v4584
  %4700 = vmatpush.bf16.msra.mxu0 %v4583
  %4701 = vmatpush.bf16.msra.mxu0 %v4582
  %4702 = vmatpush.bf16.msra.mxu0 %v4581
  %4703 = vmatpush.bf16.msra.mxu0 %v4580
  %4704 = vmatpush.bf16.msra.mxu0 %v4579
  %4705 = vmatpush.bf16.msra.mxu0 %v4578
  %4706 = vmatmul.bf16.gmra.mxu0 %v4300
  %v4707 = vpop.f32.mrf.mxu0
  %v4708 = vadd.f32 %v4690, %v4707
  %v4709 = vpop.f32.mrf.mxu0
  %v4710 = vadd.f32 %v4692, %v4709
  %4711 = vmatmul.bf16.gmra.mxu0 %v4305
  %v4712 = vpop.f32.mrf.mxu0
  %v4713 = vadd.f32 %v4695, %v4712
  %v4714 = vpop.f32.mrf.mxu0
  %4715 = vdwg.mxu0
  %v4716 = vmax.f32 %v4708, 0.0
  %v4717 = vmax.f32 %v4710, 0.0
  %v4718 = vmax.f32 %v4713, 0.0
  %4719 = vst [vmem:[%s5] sm:$0xff] %v4716
  %4720 = vst [vmem:[%s5 + $0x8] sm:$0xff] %v4717
  %4721 = vst [vmem:[%s5 + $0x10] sm:$0x3] %v4718
  // Predicated region
  $region22: #{fcn_forward.5} parent=0 // pred_check
    _
  $region23: #{fcn_forward.5} parent=0 // pred_check_branch
    %4723 = sbr.rel (0) target = $region25
  $region24: #{fcn_forward.5} parent=0 // pred_region
    _
  $region25: #{fcn_forward.5} parent=0 // pred_fallthru
    _
  // Predicated region
  $region26: #{fcn_forward.5} parent=0 // pred_check
    _
  $region27: #{fcn_forward.5} parent=0 // pred_check_branch
    %4725 = sbr.rel (0) target = $region29
  $region28: #{fcn_forward.5} parent=0 // pred_region
    _
  $region29: #{fcn_forward.5} parent=0 // pred_fallthru
    _

</llo_original>
